<compile_context>
chip_gen: v6e
topology: v6e:2x2x1
jax: 0.10.0
libtpu: 0.0.40
codegen_flags: <defaults>
</compile_context>

<pallas_src>
import functools

import jax
import jax.numpy as jnp
from jax.experimental import pallas as pl
from jax.experimental.pallas import tpu as pltpu


# ---------------------------------------------------------------------------
# Pallas kernel: the entire decoder forward = 3 fused matmul+bias+activation.
# ---------------------------------------------------------------------------
def _decoder_kernel(x_ref, w1_ref, b1_ref, w2_ref, b2_ref, w3_ref, b3_ref, o_ref):
    # Layer 1: (Linear composed with ConvTranspose2d #1), then ReLU.
    h = jnp.dot(x_ref[...], w1_ref[...], preferred_element_type=jnp.float32)
    h = jnp.maximum(h + b1_ref[...], 0.0)
    # Layer 2: ConvTranspose2d #2, then ReLU.
    h = jnp.dot(h.astype(jnp.bfloat16), w2_ref[...],
                preferred_element_type=jnp.float32)
    h = jnp.maximum(h + b2_ref[...], 0.0)
    # Layer 3: ConvTranspose2d #3, then Sigmoid (EUP epilogue, f32).
    h = jnp.dot(h.astype(jnp.bfloat16), w3_ref[...],
                preferred_element_type=jnp.float32)
    o_ref[...] = jax.nn.sigmoid(h + b3_ref[...])


def decoder_forward(x, prep, *, num_input_channels):
    """x: (B, latent_dim) f32 -> (B, num_input_channels, 28, 28) f32."""
    B, L = x.shape
    Mp = max(8, ((B + 7) // 8) * 8)           # pad batch rows to a full sublane tile
    xp = jnp.zeros((Mp, L), jnp.bfloat16).at[:B].set(x.astype(jnp.bfloat16))

    d3_pad = prep["w3"].shape[1]              # lane-padded output width (mult of 128)
    out_hw = 28 * 28                          # fixed by the arch: 4 -> 7 -> 14 -> 28
    d3 = num_input_channels * out_hw          # real (unpadded) output width

    vmem = pl.BlockSpec(memory_space=pltpu.MemorySpace.VMEM)
    out = pl.pallas_call(
        _decoder_kernel,
        out_shape=jax.ShapeDtypeStruct((Mp, d3_pad), jnp.float32),
        in_specs=[vmem] * 7,
        out_specs=vmem,
    )(xp, prep["w1"], prep["b1"], prep["w2"], prep["b2"], prep["w3"], prep["b3"])

    return out[:B, :d3].reshape(B, num_input_channels, 28, 28)   # NCHW, as in PyTorch


# ---------------------------------------------------------------------------
# One-time preparation (all weight preprocessing hoisted off the hot path).
# ---------------------------------------------------------------------------
def _conv_transpose2d_ref(x, w, b, stride, padding, output_padding):
    """PyTorch-semantics ConvTranspose2d in plain JAX.

    Used only (a) once at prepare time to unroll each conv into a dense operator
    and (b) as the f32 correctness reference.
    x: (B, C_in, H, W) NCHW; w: (C_in, C_out, kH, kW) (PyTorch weight layout)."""
    B, C_in, H, W = x.shape
    C_out, kH, kW = w.shape[1], w.shape[2], w.shape[3]
    Hd = (H - 1) * stride + 1
    Wd = (W - 1) * stride + 1
    xd = jnp.zeros((B, C_in, Hd, Wd), x.dtype).at[:, :, ::stride, ::stride].set(x)
    pt = kH - 1 - padding
    pb = kH - 1 - padding + output_padding
    plf = kW - 1 - padding
    prt = kW - 1 - padding + output_padding
    xp = jnp.pad(xd, ((0, 0), (0, 0), (pt, pb), (plf, prt)))
    Ho = Hd + pt + pb - kH + 1
    Wo = Wd + plf + prt - kW + 1
    wf = jnp.flip(w, axis=(2, 3))    # flipped kernel -> plain correlation
    out = jnp.zeros((B, C_out, Ho, Wo), jnp.float32)
    for ky in range(kH):
        for kx in range(kW):
            out = out + jnp.einsum(
                "bcij,cd->bdij",
                xp[:, :, ky:ky + Ho, kx:kx + Wo], wf[:, :, ky, kx])
    if b is not None:
        out = out + b[None, :, None, None]
    return out


def _unroll_conv_transpose(w, b, H, W, stride, padding, output_padding):
    """Dense affine operator of ConvTranspose2d at a fixed HxW input size:
    flat_out = flat_in @ M + bias_flat, both NCHW-flattened."""
    C_in, C_out = w.shape[0], w.shape[1]
    d_in = C_in * H * W
    basis = jnp.eye(d_in, dtype=jnp.float32).reshape(d_in, C_in, H, W)
    resp = _conv_transpose2d_ref(basis, w, None, stride, padding, output_padding)
    _, _, Ho, Wo = resp.shape
    M = resp.reshape(d_in, C_out * Ho * Wo)
    bias = jnp.broadcast_to(b[:, None, None], (C_out, Ho, Wo)).reshape(-1)
    return M, bias


def _round_up(n, m):
    return ((n + m - 1) // m) * m


def _pad2d(a, rows, cols):
    out = jnp.zeros((rows, cols), a.dtype)
    return out.at[:a.shape[0], :a.shape[1]].set(a)


def prepare_params(params):
    """Hoist ALL weight preprocessing out of the forward path (runs once)."""
    M1, b1 = _unroll_conv_transpose(params["w1"], params["b1"], 4, 4, 2, 1, 1)
    M2, b2 = _unroll_conv_transpose(params["w2"], params["b2"], 7, 7, 2, 1, 1)
    M3, b3 = _unroll_conv_transpose(params["w3"], params["b3"], 14, 14, 2, 1, 1)
    # No activation between Linear and conv #1 -> compose the two affine maps.
    W1 = params["lin_w"] @ M1
    b1 = params["lin_b"] @ M1 + b1

    L = W1.shape[0]
    d1, d2, d3 = W1.shape[1], M2.shape[1], M3.shape[1]
    d1p, d2p, d3p = _round_up(d1, 128), _round_up(d2, 128), _round_up(d3, 128)

    # Zero-pad every feature dim to a multiple of 128 -> lane-dense vregs/stores.
    # Padded columns stay exactly 0 through bias-add(0) + ReLU and feed zero rows
    # of the next operator, so numerics are unchanged.
    return {
        "w1": _pad2d(W1, L, d1p).astype(jnp.bfloat16),
        "w2": _pad2d(M2, d1p, d2p).astype(jnp.bfloat16),
        "w3": _pad2d(M3, d2p, d3p).astype(jnp.bfloat16),
        "b1": _pad2d(b1.reshape(1, -1), 1, d1p).astype(jnp.float32),
        "b2": _pad2d(b2.reshape(1, -1), 1, d2p).astype(jnp.float32),
        "b3": _pad2d(b3.reshape(1, -1), 1, d3p).astype(jnp.float32),
    }


# ---------------------------------------------------------------------------
# Reference (plain JAX, f32) and parameter init mirroring the PyTorch module.
# ---------------------------------------------------------------------------
def decoder_reference(x, params):
    c_hid = params["c_hid"]
    h = x @ params["lin_w"] + params["lin_b"]
    h = h.reshape(x.shape[0], 4 * c_hid, 4, 4)
    h = jax.nn.relu(_conv_transpose2d_ref(h, params["w1"], params["b1"], 2, 1, 1))
    h = jax.nn.relu(_conv_transpose2d_ref(h, params["w2"], params["b2"], 2, 1, 1))
    h = jax.nn.sigmoid(_conv_transpose2d_ref(h, params["w3"], params["b3"], 2, 1, 1))
    return h


def init_params(key, num_input_channels, c_hid, latent_dim):
    ks = jax.random.split(key, 8)
    s = 0.1
    return {
        "c_hid": c_hid,
        # nn.Linear(latent_dim, 4*c_hid*4*4), stored (in, out) so y = x @ W + b
        "lin_w": s * jax.random.normal(ks[0], (latent_dim, 4 * c_hid * 16), jnp.float32),
        "lin_b": s * jax.random.normal(ks[1], (4 * c_hid * 16,), jnp.float32),
        # ConvTranspose2d weights in PyTorch layout (C_in, C_out, kH, kW)
        "w1": s * jax.random.normal(ks[2], (4 * c_hid, 2 * c_hid, 2, 2), jnp.float32),
        "b1": s * jax.random.normal(ks[3], (2 * c_hid,), jnp.float32),
        "w2": s * jax.random.normal(ks[4], (2 * c_hid, c_hid, 3, 3), jnp.float32),
        "b2": s * jax.random.normal(ks[5], (c_hid,), jnp.float32),
        "w3": s * jax.random.normal(ks[6], (c_hid, num_input_channels, 3, 3), jnp.float32),
        "b3": s * jax.random.normal(ks[7], (num_input_channels,), jnp.float32),
    }


if __name__ == "__main__":
    key = jax.random.PRNGKey(0)
    num_input_channels, c_hid, latent_dim, batch = 1, 8, 16, 2

    pkey, xkey = jax.random.split(key)
    params = init_params(pkey, num_input_channels, c_hid, latent_dim)
    prep = prepare_params(params)                        # one-time, off the hot path
    x = jax.random.normal(xkey, (batch, latent_dim), jnp.float32)

    fwd = jax.jit(functools.partial(decoder_forward,
                                    num_input_channels=num_input_channels))
    out = jax.block_until_ready(fwd(x, prep))

    assert out.shape == (batch, num_input_channels, 28, 28), out.shape
    assert bool(jnp.all(jnp.isfinite(out)))
    assert bool(jnp.all((out >= 0.0) & (out <= 1.0)))    # sigmoid output range

    # Correctness vs. plain-JAX f32 reference (bf16 operands -> loose tolerance).
    ref = decoder_reference(x, params)
    max_err = float(jnp.max(jnp.abs(out - ref)))
    assert max_err < 3e-2, f"max abs error vs reference: {max_err}"

    print("KERNEL_OK")
</pallas_src>

<mosaic_0001>
module attributes {stable_mosaic.version = 11 : i64} {
  func.func @_decoder_kernel(%arg0: memref<8x16xbf16, #tpu.memory_space<vmem>>, %arg1: memref<16x896xbf16, #tpu.memory_space<vmem>>, %arg2: memref<1x896xf32, #tpu.memory_space<vmem>>, %arg3: memref<896x1664xbf16, #tpu.memory_space<vmem>>, %arg4: memref<1x1664xf32, #tpu.memory_space<vmem>>, %arg5: memref<1664x896xbf16, #tpu.memory_space<vmem>>, %arg6: memref<1x896xf32, #tpu.memory_space<vmem>>, %arg7: memref<8x896xf32, #tpu.memory_space<vmem>>) attributes {dimension_semantics = [], scalar_prefetch = 0 : i64, scratch_operands = 0 : i64, tpu.core_type = #tpu.core_type<tc>} {
    %c0 = arith.constant 0 : index
    %c0_0 = arith.constant 0 : index
    %0 = vector.load %arg0[%c0, %c0_0] : memref<8x16xbf16, #tpu.memory_space<vmem>>, vector<8x16xbf16>
    %c0_1 = arith.constant 0 : index
    %c0_2 = arith.constant 0 : index
    %1 = vector.load %arg1[%c0_1, %c0_2] : memref<16x896xbf16, #tpu.memory_space<vmem>>, vector<16x896xbf16>
    %cst = arith.constant dense<0.000000e+00> : vector<8x896xf32>
    %2 = tpu.matmul %0, %1, %cst {dimension_numbers = #tpu.dot_dimension_numbers<[1], [0], [0], [1], [0, 0, 1, 1], [], []>} : vector<8x16xbf16>, vector<16x896xbf16>, vector<8x896xf32> -> vector<8x896xf32>
    %c0_3 = arith.constant 0 : index
    %c0_4 = arith.constant 0 : index
    %3 = vector.load %arg2[%c0_3, %c0_4] : memref<1x896xf32, #tpu.memory_space<vmem>>, vector<1x896xf32>
    %4 = vector.broadcast %3 : vector<1x896xf32> to vector<8x896xf32>
    %5 = arith.addf %2, %4 : vector<8x896xf32>
    %cst_5 = arith.constant 0.000000e+00 : f32
    %6 = vector.broadcast %cst_5 : f32 to vector<8x896xf32>
    %7 = arith.maximumf %5, %6 : vector<8x896xf32>
    %8 = arith.truncf %7 : vector<8x896xf32> to vector<8x896xbf16>
    %c0_6 = arith.constant 0 : index
    %c0_7 = arith.constant 0 : index
    %9 = vector.load %arg3[%c0_6, %c0_7] : memref<896x1664xbf16, #tpu.memory_space<vmem>>, vector<896x1664xbf16>
    %cst_8 = arith.constant dense<0.000000e+00> : vector<8x1664xf32>
    %10 = tpu.matmul %8, %9, %cst_8 {dimension_numbers = #tpu.dot_dimension_numbers<[1], [0], [0], [1], [0, 0, 1, 1], [], []>} : vector<8x896xbf16>, vector<896x1664xbf16>, vector<8x1664xf32> -> vector<8x1664xf32>
    %c0_9 = arith.constant 0 : index
    %c0_10 = arith.constant 0 : index
    %11 = vector.load %arg4[%c0_9, %c0_10] : memref<1x1664xf32, #tpu.memory_space<vmem>>, vector<1x1664xf32>
    %12 = vector.broadcast %11 : vector<1x1664xf32> to vector<8x1664xf32>
    %13 = arith.addf %10, %12 : vector<8x1664xf32>
    %cst_11 = arith.constant 0.000000e+00 : f32
    %14 = vector.broadcast %cst_11 : f32 to vector<8x1664xf32>
    %15 = arith.maximumf %13, %14 : vector<8x1664xf32>
    %16 = arith.truncf %15 : vector<8x1664xf32> to vector<8x1664xbf16>
    %c0_12 = arith.constant 0 : index
    %c0_13 = arith.constant 0 : index
    %17 = vector.load %arg5[%c0_12, %c0_13] : memref<1664x896xbf16, #tpu.memory_space<vmem>>, vector<1664x896xbf16>
    %cst_14 = arith.constant dense<0.000000e+00> : vector<8x896xf32>
    %18 = tpu.matmul %16, %17, %cst_14 {dimension_numbers = #tpu.dot_dimension_numbers<[1], [0], [0], [1], [0, 0, 1, 1], [], []>} : vector<8x1664xbf16>, vector<1664x896xbf16>, vector<8x896xf32> -> vector<8x896xf32>
    %c0_15 = arith.constant 0 : index
    %c0_16 = arith.constant 0 : index
    %19 = vector.load %arg6[%c0_15, %c0_16] : memref<1x896xf32, #tpu.memory_space<vmem>>, vector<1x896xf32>
    %20 = vector.broadcast %19 : vector<1x896xf32> to vector<8x896xf32>
    %21 = arith.addf %18, %20 : vector<8x896xf32>
    %22 = arith.negf %21 : vector<8x896xf32>
    %23 = math.exp %22 : vector<8x896xf32>
    %cst_17 = arith.constant 1.000000e+00 : f32
    %24 = vector.broadcast %cst_17 : f32 to vector<8x896xf32>
    %25 = arith.addf %24, %23 : vector<8x896xf32>
    %26 = arith.divf %24, %25 : vector<8x896xf32>
    %c0_18 = arith.constant 0 : index
    %c0_19 = arith.constant 0 : index
    %27 = vector.load %arg7[%c0_18, %c0_19] : memref<8x896xf32, #tpu.memory_space<vmem>>, vector<8x896xf32>
    tpu.vector_store %arg7[%c0_18, %c0_19], %26 {strides = array<i32>} : memref<8x896xf32, #tpu.memory_space<vmem>>, vector<8x896xf32>,
    return
  }
}

</mosaic_0001>

<llo_original>
// kernel: decoder_forward.1
$region0: #{decoder_forward.1}
  #allocation0 [shape = 'u32[]', space=smem, size = 0x4, offset = 0x4, fixed_abs, tag = 'smem constant byte address 0x4 - core index']
  #allocation1 [shape = 'u32[144,128]{1,0:T(1,128)}', space=vmem, size = 0x12000, scoped, tag = 'internal scratch']
  %s0 = inlined_call_operand.vmem [shape: bf16[8,16], index: 0, kind: input, shape index: {}]
  %s1 = inlined_call_operand.hbm [shape: bf16[16,896], index: 1, kind: input, shape index: {}]
  %s2 = inlined_call_operand.hbm [shape: f32[1,896], index: 2, kind: input, shape index: {}]
  %s3 = inlined_call_operand.hbm [shape: bf16[896,1664], index: 3, kind: input, shape index: {}]
  %s4 = inlined_call_operand.hbm [shape: f32[1,1664], index: 4, kind: input, shape index: {}]
  %s5 = inlined_call_operand.hbm [shape: bf16[1664,896], index: 5, kind: input, shape index: {}]
  %s6 = inlined_call_operand.hbm [shape: f32[1,896], index: 6, kind: input, shape index: {}]
  %s7 = inlined_call_operand.vmem [shape: f32[8,896], index: 7, kind: output, shape index: {}]
  %s8 = sld [smem:[#allocation0]]
  $region62: #{decoder_forward.1} parent=0
    _
  %s10 = ssub.s32 1, %s8
  %s11 = scalar_select 0, %s10, %s8
  $region1: #{decoder_forward.1} parent=0
    #allocation2 [shape = 'u8[28672]{0}', space=vmem, size = 0x7000, scoped, tag = 'input window, operand 1, single buffered']
    #allocation3 [shape = 's32[1]{0}', space=sflag, size = 0x4, scoped, tag = 'scoped memory for decoder_forward.1']
    #allocation4 [shape = 'u8[3584]{0}', space=vmem, size = 0x1000, scoped, tag = 'input window, operand 2, single buffered']
    #allocation5 [shape = 's32[1]{0}', space=sflag, size = 0x4, scoped, tag = 'scoped memory for decoder_forward.1']
    #allocation6 [shape = 'u8[2981888]{0}', space=vmem, size = 0x2d8000, scoped, tag = 'input window, operand 3, single buffered']
    #allocation7 [shape = 'u8[6656]{0}', space=vmem, size = 0x1c00, scoped, tag = 'input window, operand 4, single buffered']
    #allocation8 [shape = 's32[1]{0}', space=sflag, size = 0x4, scoped, tag = 'scoped memory for decoder_forward.1']
    #allocation9 [shape = 'u8[2981888]{0}', space=vmem, size = 0x2d8000, scoped, tag = 'input window, operand 5, single buffered']
    #allocation10 [shape = 'u8[3584]{0}', space=vmem, size = 0x1000, scoped, tag = 'input window, operand 6, single buffered']
    #allocation11 [shape = 's32[1]{0}', space=sflag, size = 0x4, scoped, tag = 'scoped memory for decoder_forward.1']
    %12 = vsyncpa [#allocation3], 0
    %13 = vsyncpa [#allocation5], 0
    %14 = vsyncpa [#allocation8], 0
    %15 = vsyncpa [#allocation11], 0
    // Predicated region
    $region2: #{decoder_forward.1} parent=1 // pred_check
      _
    $region3: #{decoder_forward.1} parent=1 // pred_check_branch
      %17 = sbr.rel (0) target = $region5
    $region4: #{decoder_forward.1} parent=1 // pred_region
      _
    $region5: #{decoder_forward.1} parent=1 // pred_fallthru
      _
    // Predicated region
    $region6: #{decoder_forward.1} parent=1 // pred_check
      _
    $region7: #{decoder_forward.1} parent=1 // pred_check_branch
      %19 = sbr.rel (0) target = $region9
    $region8: #{decoder_forward.1} parent=1 // pred_region
      %s21 = ssub.s32 896, 896
      %22 = vsyncadd [#allocation3], %s21
      %s23 = sshll.u32 [#allocation2], 4
      %s24 = int_to_ptr.vmem [resolvable:$true] %s23
      %29 = dma.hbm_to_vmem [thread:$0]  %s1, 896, %s24, [#allocation3], 448, 448, 28
    $region9: #{decoder_forward.1} parent=1 // pred_fallthru
      _
    // Predicated region
    $region10: #{decoder_forward.1} parent=1 // pred_check
      _
    $region11: #{decoder_forward.1} parent=1 // pred_check_branch
      %31 = sbr.rel (0) target = $region13
    $region12: #{decoder_forward.1} parent=1 // pred_region
      %s33 = ssub.s32 112, 112
      %34 = vsyncadd [#allocation5], %s33
      %s36 = sshll.u32 [#allocation4], 4
      %s37 = int_to_ptr.vmem [resolvable:$true] %s36
      %39 = dma.hbm_to_vmem [thread:$0]  %s2, 112, %s37, [#allocation5]
    $region13: #{decoder_forward.1} parent=1 // pred_fallthru
      _
    // Predicated region
    $region14: #{decoder_forward.1} parent=1 // pred_check
      _
    $region15: #{decoder_forward.1} parent=1 // pred_check_branch
      %41 = sbr.rel (0) target = $region17
    $region16: #{decoder_forward.1} parent=1 // pred_region
      %s43 = ssub.s32 93184, 93184
      %44 = vsyncadd [#allocation5], %s43
      %s45 = sshll.u32 [#allocation6], 4
      %s46 = int_to_ptr.vmem [resolvable:$true] %s45
      %51 = dma.hbm_to_vmem [thread:$0]  %s3, 93184, %s46, [#allocation5], 832, 832, 52
    $region17: #{decoder_forward.1} parent=1 // pred_fallthru
      _
    // Predicated region
    $region18: #{decoder_forward.1} parent=1 // pred_check
      _
    $region19: #{decoder_forward.1} parent=1 // pred_check_branch
      %53 = sbr.rel (0) target = $region21
    $region20: #{decoder_forward.1} parent=1 // pred_region
      %s55 = ssub.s32 208, 208
      %56 = vsyncadd [#allocation8], %s55
      %s58 = sshll.u32 [#allocation7], 4
      %s59 = int_to_ptr.vmem [resolvable:$true] %s58
      %61 = dma.hbm_to_vmem [thread:$0]  %s4, 208, %s59, [#allocation8]
    $region21: #{decoder_forward.1} parent=1 // pred_fallthru
      _
    // Predicated region
    $region22: #{decoder_forward.1} parent=1 // pred_check
      _
    $region23: #{decoder_forward.1} parent=1 // pred_check_branch
      %63 = sbr.rel (0) target = $region25
    $region24: #{decoder_forward.1} parent=1 // pred_region
      %s65 = ssub.s32 93184, 93184
      %66 = vsyncadd [#allocation8], %s65
      %s67 = sshll.u32 [#allocation9], 4
      %s68 = int_to_ptr.vmem [resolvable:$true] %s67
      %73 = dma.hbm_to_vmem [thread:$0]  %s5, 93184, %s68, [#allocation8], 448, 448, 28
    $region25: #{decoder_forward.1} parent=1 // pred_fallthru
      _
    // Predicated region
    $region26: #{decoder_forward.1} parent=1 // pred_check
      _
    $region27: #{decoder_forward.1} parent=1 // pred_check_branch
      %75 = sbr.rel (0) target = $region29
    $region28: #{decoder_forward.1} parent=1 // pred_region
      %s77 = ssub.s32 112, 112
      %78 = vsyncadd [#allocation11], %s77
      %s80 = sshll.u32 [#allocation10], 4
      %s81 = int_to_ptr.vmem [resolvable:$true] %s80
      %83 = dma.hbm_to_vmem [thread:$0]  %s6, 112, %s81, [#allocation11]
    $region29: #{decoder_forward.1} parent=1 // pred_fallthru
      _
    // Predicated region
    $region30: #{decoder_forward.1} parent=1 // pred_check
      _
    $region31: #{decoder_forward.1} parent=1 // pred_check_branch
      %85 = sbr.rel (0) target = $region33
    $region32: #{decoder_forward.1} parent=1 // pred_region
      %86 = dma.done [#allocation3], 896
    $region33: #{decoder_forward.1} parent=1 // pred_fallthru
      _
    // Predicated region
    $region34: #{decoder_forward.1} parent=1 // pred_check
      _
    $region35: #{decoder_forward.1} parent=1 // pred_check_branch
      %88 = sbr.rel (0) target = $region37
    $region36: #{decoder_forward.1} parent=1 // pred_region
      %89 = dma.done [#allocation5], 112
    $region37: #{decoder_forward.1} parent=1 // pred_fallthru
      _
    // Predicated region
    $region38: #{decoder_forward.1} parent=1 // pred_check
      _
    $region39: #{decoder_forward.1} parent=1 // pred_check_branch
      %91 = sbr.rel (0) target = $region41
    $region40: #{decoder_forward.1} parent=1 // pred_region
      %92 = dma.done [#allocation5], 93184
    $region41: #{decoder_forward.1} parent=1 // pred_fallthru
      _
    // Predicated region
    $region42: #{decoder_forward.1} parent=1 // pred_check
      _
    $region43: #{decoder_forward.1} parent=1 // pred_check_branch
      %94 = sbr.rel (0) target = $region45
    $region44: #{decoder_forward.1} parent=1 // pred_region
      %95 = dma.done [#allocation8], 208
    $region45: #{decoder_forward.1} parent=1 // pred_fallthru
      _
    // Predicated region
    $region46: #{decoder_forward.1} parent=1 // pred_check
      _
    $region47: #{decoder_forward.1} parent=1 // pred_check_branch
      %97 = sbr.rel (0) target = $region49
    $region48: #{decoder_forward.1} parent=1 // pred_region
      %98 = dma.done [#allocation8], 93184
    $region49: #{decoder_forward.1} parent=1 // pred_fallthru
      _
    // Predicated region
    $region50: #{decoder_forward.1} parent=1 // pred_check
      _
    $region51: #{decoder_forward.1} parent=1 // pred_check_branch
      %100 = sbr.rel (0) target = $region53
    $region52: #{decoder_forward.1} parent=1 // pred_region
      %101 = dma.done [#allocation11], 112
    $region53: #{decoder_forward.1} parent=1 // pred_fallthru
      _
    %v103 = vld [vmem:[%s0] sm:$0xf]
    %v104 = vld [vmem:[#allocation2] sm:$0xff]
    %v105 = vld [vmem:[#allocation2 + $0x8] sm:$0xff]
    %v106 = vld [vmem:[#allocation2 + $0x10] sm:$0xff]
    %v107 = vld [vmem:[#allocation2 + $0x18] sm:$0xf]
    %v108 = vld [vmem:[#allocation2 + $0x1c] sm:$0xff]
    %v109 = vld [vmem:[#allocation2 + $0x24] sm:$0xff]
    %v110 = vld [vmem:[#allocation2 + $0x2c] sm:$0xff]
    %v111 = vld [vmem:[#allocation2 + $0x34] sm:$0xf]
    %v112 = vld [vmem:[#allocation4] sm:$0xff]
    %v114 = vlaneseq
    %v115 = vshrl.u32 %v114, 7
    %v116 = vsub.s32 0, %v115
    %v117 = vrot.slane %v112, %v116
    %v118 = vlaneseq
    %v119 = vshrl.u32 %v118, 7
    %v120 = vsub.s32 1, %v119
    %v121 = vrot.slane %v112, %v120
    %v122 = vlaneseq
    %v123 = vshrl.u32 %v122, 7
    %v124 = vsub.s32 2, %v123
    %v125 = vrot.slane %v112, %v124
    %v126 = vlaneseq
    %v127 = vshrl.u32 %v126, 7
    %v128 = vsub.s32 3, %v127
    %v129 = vrot.slane %v112, %v128
    %v130 = vlaneseq
    %v131 = vshrl.u32 %v130, 7
    %v132 = vsub.s32 4, %v131
    %v133 = vrot.slane %v112, %v132
    %v134 = vlaneseq
    %v135 = vshrl.u32 %v134, 7
    %v136 = vsub.s32 5, %v135
    %v137 = vrot.slane %v112, %v136
    %v138 = vlaneseq
    %v139 = vshrl.u32 %v138, 7
    %v140 = vsub.s32 6, %v139
    %v141 = vrot.slane %v112, %v140
    %v157 = vunpack.c.l.b16 %v104
    %v158 = vunpack.c.h.b16 %v104
    %v159 = vunpack.c.l.b16 %v105
    %v160 = vunpack.c.h.b16 %v105
    %v161 = vunpack.c.l.b16 %v106
    %v162 = vunpack.c.h.b16 %v106
    %v163 = vunpack.c.l.b16 %v107
    %v164 = vunpack.c.l.b16 %v108
    %v165 = vunpack.c.h.b16 %v108
    %v166 = vunpack.c.l.b16 %v109
    %v167 = vunpack.c.h.b16 %v109
    %v168 = vunpack.c.l.b16 %v110
    %v169 = vunpack.c.h.b16 %v110
    %v170 = vunpack.c.l.b16 %v111
    %v171 = vpack.c.b16 %v164, %v157
    %v172 = vpack.c.b16 %v165, %v158
    %v173 = vpack.c.b16 %v166, %v159
    %v174 = vpack.c.b16 %v167, %v160
    %v175 = vpack.c.b16 %v168, %v161
    %v176 = vpack.c.b16 %v169, %v162
    %v177 = vpack.c.b16 %v170, %v163
    %vm185 = vcmask 130048
    %v187 = vsel %vm185, %v103, 0
    %189 = vmatprep.subr.bf16.mxu0 0
    %190 = vmatpush1.bf16.msra.mxu0 0
    %191 = vmatprep.subr.bf16.mxu0 0
    %192 = vmatpush1.bf16.msra.mxu0 0
    %193 = vmatprep.subr.bf16.mxu0 0
    %194 = vmatpush1.bf16.msra.mxu0 0
    %195 = vmatprep.subr.bf16.mxu0 0
    %196 = vmatpush1.bf16.msra.mxu0 0
    %197 = vmatprep.subr.bf16.mxu0 0
    %198 = vmatpush1.bf16.msra.mxu0 0
    %199 = vmatprep.subr.bf16.mxu0 0
    %200 = vmatpush1.bf16.msra.mxu0 0
    %201 = vmatprep.subr.bf16.mxu0 0
    %202 = vmatpush1.bf16.msra.mxu0 0
    %203 = vmatprep.subr.bf16.mxu0 %v172
    %204 = vmatpush1.bf16.msra.mxu0 %v171
    %205 = vmatprep.subr.bf16.mxu0 0
    %206 = vmatpush2.bf16.msra.mxu0 0
    %207 = vmatprep.subr.bf16.mxu0 0
    %208 = vmatpush2.bf16.msra.mxu0 0
    %209 = vmatprep.subr.bf16.mxu0 0
    %210 = vmatpush2.bf16.msra.mxu0 0
    %211 = vmatprep.subr.bf16.mxu0 0
    %212 = vmatpush2.bf16.msra.mxu0 0
    %213 = vmatprep.subr.bf16.mxu0 0
    %214 = vmatpush2.bf16.msra.mxu0 0
    %215 = vmatprep.subr.bf16.mxu0 0
    %216 = vmatpush2.bf16.msra.mxu0 0
    %217 = vmatprep.subr.bf16.mxu0 0
    %218 = vmatpush2.bf16.msra.mxu0 0
    %219 = vmatprep.subr.bf16.mxu0 0
    %220 = vmatpush2.bf16.msra.mxu0 0
    %221 = vmatprep.mubr.bf16.mxu0 0
    %222 = vmatmul.mubr.bf16.gmra.mxu0 %v187
    %v223 = vpop.f32.mrf.mxu0
    %v224 = vadd.f32 %v117, %v223
    %v225 = vpop.f32.mrf.mxu0
    %v226 = vadd.f32 %v121, %v225
    %v227 = vpop.f32.mrf.mxu0
    %v228 = vpop.f32.mrf.mxu0
    %229 = vdwg.mxu0
    %230 = vmatprep.subr.bf16.mxu0 0
    %231 = vmatpush1.bf16.msra.mxu0 0
    %232 = vmatprep.subr.bf16.mxu0 0
    %233 = vmatpush1.bf16.msra.mxu0 0
    %234 = vmatprep.subr.bf16.mxu0 0
    %235 = vmatpush1.bf16.msra.mxu0 0
    %236 = vmatprep.subr.bf16.mxu0 0
    %237 = vmatpush1.bf16.msra.mxu0 0
    %238 = vmatprep.subr.bf16.mxu0 0
    %239 = vmatpush1.bf16.msra.mxu0 0
    %240 = vmatprep.subr.bf16.mxu0 0
    %241 = vmatpush1.bf16.msra.mxu0 0
    %242 = vmatprep.subr.bf16.mxu0 0
    %243 = vmatpush1.bf16.msra.mxu0 0
    %244 = vmatprep.subr.bf16.mxu0 %v174
    %245 = vmatpush1.bf16.msra.mxu0 %v173
    %246 = vmatprep.subr.bf16.mxu0 0
    %247 = vmatpush2.bf16.msra.mxu0 0
    %248 = vmatprep.subr.bf16.mxu0 0
    %249 = vmatpush2.bf16.msra.mxu0 0
    %250 = vmatprep.subr.bf16.mxu0 0
    %251 = vmatpush2.bf16.msra.mxu0 0
    %252 = vmatprep.subr.bf16.mxu0 0
    %253 = vmatpush2.bf16.msra.mxu0 0
    %254 = vmatprep.subr.bf16.mxu0 0
    %255 = vmatpush2.bf16.msra.mxu0 0
    %256 = vmatprep.subr.bf16.mxu0 0
    %257 = vmatpush2.bf16.msra.mxu0 0
    %258 = vmatprep.subr.bf16.mxu0 0
    %259 = vmatpush2.bf16.msra.mxu0 0
    %260 = vmatprep.subr.bf16.mxu0 0
    %261 = vmatpush2.bf16.msra.mxu0 0
    %262 = vmatprep.mubr.bf16.mxu0 0
    %263 = vmatmul.mubr.bf16.gmra.mxu0 %v187
    %v264 = vpop.f32.mrf.mxu0
    %v265 = vadd.f32 %v125, %v264
    %v266 = vpop.f32.mrf.mxu0
    %v267 = vadd.f32 %v129, %v266
    %v268 = vpop.f32.mrf.mxu0
    %v269 = vpop.f32.mrf.mxu0
    %270 = vdwg.mxu0
    %271 = vmatprep.subr.bf16.mxu0 0
    %272 = vmatpush1.bf16.msra.mxu0 0
    %273 = vmatprep.subr.bf16.mxu0 0
    %274 = vmatpush1.bf16.msra.mxu0 0
    %275 = vmatprep.subr.bf16.mxu0 0
    %276 = vmatpush1.bf16.msra.mxu0 0
    %277 = vmatprep.subr.bf16.mxu0 0
    %278 = vmatpush1.bf16.msra.mxu0 0
    %279 = vmatprep.subr.bf16.mxu0 0
    %280 = vmatpush1.bf16.msra.mxu0 0
    %281 = vmatprep.subr.bf16.mxu0 0
    %282 = vmatpush1.bf16.msra.mxu0 0
    %283 = vmatprep.subr.bf16.mxu0 0
    %284 = vmatpush1.bf16.msra.mxu0 0
    %285 = vmatprep.subr.bf16.mxu0 %v176
    %286 = vmatpush1.bf16.msra.mxu0 %v175
    %287 = vmatprep.subr.bf16.mxu0 0
    %288 = vmatpush2.bf16.msra.mxu0 0
    %289 = vmatprep.subr.bf16.mxu0 0
    %290 = vmatpush2.bf16.msra.mxu0 0
    %291 = vmatprep.subr.bf16.mxu0 0
    %292 = vmatpush2.bf16.msra.mxu0 0
    %293 = vmatprep.subr.bf16.mxu0 0
    %294 = vmatpush2.bf16.msra.mxu0 0
    %295 = vmatprep.subr.bf16.mxu0 0
    %296 = vmatpush2.bf16.msra.mxu0 0
    %297 = vmatprep.subr.bf16.mxu0 0
    %298 = vmatpush2.bf16.msra.mxu0 0
    %299 = vmatprep.subr.bf16.mxu0 0
    %300 = vmatpush2.bf16.msra.mxu0 0
    %301 = vmatprep.subr.bf16.mxu0 0
    %302 = vmatpush2.bf16.msra.mxu0 0
    %303 = vmatprep.mubr.bf16.mxu0 0
    %304 = vmatmul.mubr.bf16.gmra.mxu0 %v187
    %v305 = vpop.f32.mrf.mxu0
    %v306 = vadd.f32 %v133, %v305
    %v307 = vpop.f32.mrf.mxu0
    %v308 = vadd.f32 %v137, %v307
    %v309 = vpop.f32.mrf.mxu0
    %v310 = vpop.f32.mrf.mxu0
    %311 = vdwg.mxu0
    %312 = vmatprep.subr.bf16.mxu0 0
    %313 = vmatpush1.bf16.msra.mxu0 0
    %314 = vmatprep.subr.bf16.mxu0 0
    %315 = vmatpush1.bf16.msra.mxu0 0
    %316 = vmatprep.subr.bf16.mxu0 0
    %317 = vmatpush1.bf16.msra.mxu0 0
    %318 = vmatprep.subr.bf16.mxu0 0
    %319 = vmatpush1.bf16.msra.mxu0 0
    %320 = vmatprep.subr.bf16.mxu0 0
    %321 = vmatpush1.bf16.msra.mxu0 0
    %322 = vmatprep.subr.bf16.mxu0 0
    %323 = vmatpush1.bf16.msra.mxu0 0
    %324 = vmatprep.subr.bf16.mxu0 0
    %325 = vmatpush1.bf16.msra.mxu0 0
    %326 = vmatprep.subr.bf16.mxu0 0
    %327 = vmatpush1.bf16.msra.mxu0 %v177
    %328 = vmatprep.subr.bf16.mxu0 0
    %329 = vmatpush2.bf16.msra.mxu0 0
    %330 = vmatprep.subr.bf16.mxu0 0
    %331 = vmatpush2.bf16.msra.mxu0 0
    %332 = vmatprep.subr.bf16.mxu0 0
    %333 = vmatpush2.bf16.msra.mxu0 0
    %334 = vmatprep.subr.bf16.mxu0 0
    %335 = vmatpush2.bf16.msra.mxu0 0
    %336 = vmatprep.subr.bf16.mxu0 0
    %337 = vmatpush2.bf16.msra.mxu0 0
    %338 = vmatprep.subr.bf16.mxu0 0
    %339 = vmatpush2.bf16.msra.mxu0 0
    %340 = vmatprep.subr.bf16.mxu0 0
    %341 = vmatpush2.bf16.msra.mxu0 0
    %342 = vmatprep.subr.bf16.mxu0 0
    %343 = vmatpush2.bf16.msra.mxu0 0
    %344 = vmatprep.mubr.bf16.mxu0 0
    %345 = vmatmul.mubr.bf16.gmra.mxu0 %v187
    %v346 = vpop.f32.mrf.mxu0
    %v347 = vadd.f32 %v141, %v346
    %v348 = vpop.f32.mrf.mxu0
    %v349 = vpop.f32.mrf.mxu0
    %v350 = vpop.f32.mrf.mxu0
    %351 = vdwg.mxu0
    %v352 = vmax.f32 %v224, 0.0
    %v353 = vmax.f32 %v226, 0.0
    %v354 = vmax.f32 %v265, 0.0
    %v355 = vmax.f32 %v267, 0.0
    %v356 = vmax.f32 %v306, 0.0
    %v357 = vmax.f32 %v308, 0.0
    %v358 = vmax.f32 %v347, 0.0
    %v359 = vpack.c.bf16 %v352, %v352
    %v360 = vpack.c.bf16 %v353, %v353
    %v361 = vpack.c.bf16 %v354, %v354
    %v362 = vpack.c.bf16 %v355, %v355
    %v363 = vpack.c.bf16 %v356, %v356
    %v364 = vpack.c.bf16 %v357, %v357
    %v365 = vpack.c.bf16 %v358, %v358
    %v366 = vld [vmem:[#allocation6] sm:$0xff]
    %v367 = vld [vmem:[#allocation6 + $0x8] sm:$0xff]
    %v368 = vld [vmem:[#allocation6 + $0x10] sm:$0xff]
    %v369 = vld [vmem:[#allocation6 + $0x18] sm:$0xff]
    %v370 = vld [vmem:[#allocation6 + $0x20] sm:$0xff]
    %v371 = vld [vmem:[#allocation6 + $0x28] sm:$0xff]
    %v372 = vld [vmem:[#allocation6 + $0x30] sm:$0xf]
    %v373 = vld [vmem:[#allocation6 + $0x34] sm:$0xff]
    %v374 = vld [vmem:[#allocation6 + $0x3c] sm:$0xff]
    %v375 = vld [vmem:[#allocation6 + $0x44] sm:$0xff]
    %v376 = vld [vmem:[#allocation6 + $0x4c] sm:$0xff]
    %v377 = vld [vmem:[#allocation6 + $0x54] sm:$0xff]
    %v378 = vld [vmem:[#allocation6 + $0x5c] sm:$0xff]
    %v379 = vld [vmem:[#allocation6 + $0x64] sm:$0xf]
    %v380 = vld [vmem:[#allocation6 + $0x68] sm:$0xff]
    %v381 = vld [vmem:[#allocation6 + $0x70] sm:$0xff]
    %v382 = vld [vmem:[#allocation6 + $0x78] sm:$0xff]
    %v383 = vld [vmem:[#allocation6 + $0x80] sm:$0xff]
    %v384 = vld [vmem:[#allocation6 + $0x88] sm:$0xff]
    %v385 = vld [vmem:[#allocation6 + $0x90] sm:$0xff]
    %v386 = vld [vmem:[#allocation6 + $0x98] sm:$0xf]
    %v387 = vld [vmem:[#allocation6 + $0x9c] sm:$0xff]
    %v388 = vld [vmem:[#allocation6 + $0xa4] sm:$0xff]
    %v389 = vld [vmem:[#allocation6 + $0xac] sm:$0xff]
    %v390 = vld [vmem:[#allocation6 + $0xb4] sm:$0xff]
    %v391 = vld [vmem:[#allocation6 + $0xbc] sm:$0xff]
    %v392 = vld [vmem:[#allocation6 + $0xc4] sm:$0xff]
    %v393 = vld [vmem:[#allocation6 + $0xcc] sm:$0xf]
    %v394 = vld [vmem:[#allocation6 + $0xd0] sm:$0xff]
    %v395 = vld [vmem:[#allocation6 + $0xd8] sm:$0xff]
    %v396 = vld [vmem:[#allocation6 + $0xe0] sm:$0xff]
    %v397 = vld [vmem:[#allocation6 + $0xe8] sm:$0xff]
    %v398 = vld [vmem:[#allocation6 + $0xf0] sm:$0xff]
    %v399 = vld [vmem:[#allocation6 + $0xf8] sm:$0xff]
    %v400 = vld [vmem:[#allocation6 + $0x100] sm:$0xf]
    %v401 = vld [vmem:[#allocation6 + $0x104] sm:$0xff]
    %v402 = vld [vmem:[#allocation6 + $0x10c] sm:$0xff]
    %v403 = vld [vmem:[#allocation6 + $0x114] sm:$0xff]
    %v404 = vld [vmem:[#allocation6 + $0x11c] sm:$0xff]
    %v405 = vld [vmem:[#allocation6 + $0x124] sm:$0xff]
    %v406 = vld [vmem:[#allocation6 + $0x12c] sm:$0xff]
    %v407 = vld [vmem:[#allocation6 + $0x134] sm:$0xf]
    %v408 = vld [vmem:[#allocation6 + $0x138] sm:$0xff]
    %v409 = vld [vmem:[#allocation6 + $0x140] sm:$0xff]
    %v410 = vld [vmem:[#allocation6 + $0x148] sm:$0xff]
    %v411 = vld [vmem:[#allocation6 + $0x150] sm:$0xff]
    %v412 = vld [vmem:[#allocation6 + $0x158] sm:$0xff]
    %v413 = vld [vmem:[#allocation6 + $0x160] sm:$0xff]
    %v414 = vld [vmem:[#allocation6 + $0x168] sm:$0xf]
    %v415 = vld [vmem:[#allocation6 + $0x16c] sm:$0xff]
    %v416 = vld [vmem:[#allocation6 + $0x174] sm:$0xff]
    %v417 = vld [vmem:[#allocation6 + $0x17c] sm:$0xff]
    %v418 = vld [vmem:[#allocation6 + $0x184] sm:$0xff]
    %v419 = vld [vmem:[#allocation6 + $0x18c] sm:$0xff]
    %v420 = vld [vmem:[#allocation6 + $0x194] sm:$0xff]
    %v421 = vld [vmem:[#allocation6 + $0x19c] sm:$0xf]
    %v422 = vld [vmem:[#allocation6 + $0x1a0] sm:$0xff]
    %v423 = vld [vmem:[#allocation6 + $0x1a8] sm:$0xff]
    %v424 = vld [vmem:[#allocation6 + $0x1b0] sm:$0xff]
    %v425 = vld [vmem:[#allocation6 + $0x1b8] sm:$0xff]
    %v426 = vld [vmem:[#allocation6 + $0x1c0] sm:$0xff]
    %v427 = vld [vmem:[#allocation6 + $0x1c8] sm:$0xff]
    %v428 = vld [vmem:[#allocation6 + $0x1d0] sm:$0xf]
    %v429 = vld [vmem:[#allocation6 + $0x1d4] sm:$0xff]
    %v430 = vld [vmem:[#allocation6 + $0x1dc] sm:$0xff]
    %v431 = vld [vmem:[#allocation6 + $0x1e4] sm:$0xff]
    %v432 = vld [vmem:[#allocation6 + $0x1ec] sm:$0xff]
    %v433 = vld [vmem:[#allocation6 + $0x1f4] sm:$0xff]
    %v434 = vld [vmem:[#allocation6 + $0x1fc] sm:$0xff]
    %v435 = vld [vmem:[#allocation6 + $0x204] sm:$0xf]
    %v436 = vld [vmem:[#allocation6 + $0x208] sm:$0xff]
    %v437 = vld [vmem:[#allocation6 + $0x210] sm:$0xff]
    %v438 = vld [vmem:[#allocation6 + $0x218] sm:$0xff]
    %v439 = vld [vmem:[#allocation6 + $0x220] sm:$0xff]
    %v440 = vld [vmem:[#allocation6 + $0x228] sm:$0xff]
    %v441 = vld [vmem:[#allocation6 + $0x230] sm:$0xff]
    %v442 = vld [vmem:[#allocation6 + $0x238] sm:$0xf]
    %v443 = vld [vmem:[#allocation6 + $0x23c] sm:$0xff]
    %v444 = vld [vmem:[#allocation6 + $0x244] sm:$0xff]
    %v445 = vld [vmem:[#allocation6 + $0x24c] sm:$0xff]
    %v446 = vld [vmem:[#allocation6 + $0x254] sm:$0xff]
    %v447 = vld [vmem:[#allocation6 + $0x25c] sm:$0xff]
    %v448 = vld [vmem:[#allocation6 + $0x264] sm:$0xff]
    %v449 = vld [vmem:[#allocation6 + $0x26c] sm:$0xf]
    %v450 = vld [vmem:[#allocation6 + $0x270] sm:$0xff]
    %v451 = vld [vmem:[#allocation6 + $0x278] sm:$0xff]
    %v452 = vld [vmem:[#allocation6 + $0x280] sm:$0xff]
    %v453 = vld [vmem:[#allocation6 + $0x288] sm:$0xff]
    %v454 = vld [vmem:[#allocation6 + $0x290] sm:$0xff]
    %v455 = vld [vmem:[#allocation6 + $0x298] sm:$0xff]
    %v456 = vld [vmem:[#allocation6 + $0x2a0] sm:$0xf]
    %v457 = vld [vmem:[#allocation6 + $0x2a4] sm:$0xff]
    %v458 = vld [vmem:[#allocation6 + $0x2ac] sm:$0xff]
    %v459 = vld [vmem:[#allocation6 + $0x2b4] sm:$0xff]
    %v460 = vld [vmem:[#allocation6 + $0x2bc] sm:$0xff]
    %v461 = vld [vmem:[#allocation6 + $0x2c4] sm:$0xff]
    %v462 = vld [vmem:[#allocation6 + $0x2cc] sm:$0xff]
    %v463 = vld [vmem:[#allocation6 + $0x2d4] sm:$0xf]
    %v464 = vld [vmem:[#allocation6 + $0x2d8] sm:$0xff]
    %v465 = vld [vmem:[#allocation6 + $0x2e0] sm:$0xff]
    %v466 = vld [vmem:[#allocation6 + $0x2e8] sm:$0xff]
    %v467 = vld [vmem:[#allocation6 + $0x2f0] sm:$0xff]
    %v468 = vld [vmem:[#allocation6 + $0x2f8] sm:$0xff]
    %v469 = vld [vmem:[#allocation6 + $0x300] sm:$0xff]
    %v470 = vld [vmem:[#allocation6 + $0x308] sm:$0xf]
    %v471 = vld [vmem:[#allocation6 + $0x30c] sm:$0xff]
    %v472 = vld [vmem:[#allocation6 + $0x314] sm:$0xff]
    %v473 = vld [vmem:[#allocation6 + $0x31c] sm:$0xff]
    %v474 = vld [vmem:[#allocation6 + $0x324] sm:$0xff]
    %v475 = vld [vmem:[#allocation6 + $0x32c] sm:$0xff]
    %v476 = vld [vmem:[#allocation6 + $0x334] sm:$0xff]
    %v477 = vld [vmem:[#allocation6 + $0x33c] sm:$0xf]
    %v478 = vld [vmem:[#allocation6 + $0x340] sm:$0xff]
    %v479 = vld [vmem:[#allocation6 + $0x348] sm:$0xff]
    %v480 = vld [vmem:[#allocation6 + $0x350] sm:$0xff]
    %v481 = vld [vmem:[#allocation6 + $0x358] sm:$0xff]
    %v482 = vld [vmem:[#allocation6 + $0x360] sm:$0xff]
    %v483 = vld [vmem:[#allocation6 + $0x368] sm:$0xff]
    %v484 = vld [vmem:[#allocation6 + $0x370] sm:$0xf]
    %v485 = vld [vmem:[#allocation6 + $0x374] sm:$0xff]
    %v486 = vld [vmem:[#allocation6 + $0x37c] sm:$0xff]
    %v487 = vld [vmem:[#allocation6 + $0x384] sm:$0xff]
    %v488 = vld [vmem:[#allocation6 + $0x38c] sm:$0xff]
    %v489 = vld [vmem:[#allocation6 + $0x394] sm:$0xff]
    %v490 = vld [vmem:[#allocation6 + $0x39c] sm:$0xff]
    %v491 = vld [vmem:[#allocation6 + $0x3a4] sm:$0xf]
    %v492 = vld [vmem:[#allocation6 + $0x3a8] sm:$0xff]
    %v493 = vld [vmem:[#allocation6 + $0x3b0] sm:$0xff]
    %v494 = vld [vmem:[#allocation6 + $0x3b8] sm:$0xff]
    %v495 = vld [vmem:[#allocation6 + $0x3c0] sm:$0xff]
    %v496 = vld [vmem:[#allocation6 + $0x3c8] sm:$0xff]
    %v497 = vld [vmem:[#allocation6 + $0x3d0] sm:$0xff]
    %v498 = vld [vmem:[#allocation6 + $0x3d8] sm:$0xf]
    %v499 = vld [vmem:[#allocation6 + $0x3dc] sm:$0xff]
    %v500 = vld [vmem:[#allocation6 + $0x3e4] sm:$0xff]
    %v501 = vld [vmem:[#allocation6 + $0x3ec] sm:$0xff]
    %v502 = vld [vmem:[#allocation6 + $0x3f4] sm:$0xff]
    %v503 = vld [vmem:[#allocation6 + $0x3fc] sm:$0xff]
    %v504 = vld [vmem:[#allocation6 + $0x404] sm:$0xff]
    %v505 = vld [vmem:[#allocation6 + $0x40c] sm:$0xf]
    %v506 = vld [vmem:[#allocation6 + $0x410] sm:$0xff]
    %v507 = vld [vmem:[#allocation6 + $0x418] sm:$0xff]
    %v508 = vld [vmem:[#allocation6 + $0x420] sm:$0xff]
    %v509 = vld [vmem:[#allocation6 + $0x428] sm:$0xff]
    %v510 = vld [vmem:[#allocation6 + $0x430] sm:$0xff]
    %v511 = vld [vmem:[#allocation6 + $0x438] sm:$0xff]
    %v512 = vld [vmem:[#allocation6 + $0x440] sm:$0xf]
    %v513 = vld [vmem:[#allocation6 + $0x444] sm:$0xff]
    %v514 = vld [vmem:[#allocation6 + $0x44c] sm:$0xff]
    %v515 = vld [vmem:[#allocation6 + $0x454] sm:$0xff]
    %v516 = vld [vmem:[#allocation6 + $0x45c] sm:$0xff]
    %v517 = vld [vmem:[#allocation6 + $0x464] sm:$0xff]
    %v518 = vld [vmem:[#allocation6 + $0x46c] sm:$0xff]
    %v519 = vld [vmem:[#allocation6 + $0x474] sm:$0xf]
    %v520 = vld [vmem:[#allocation6 + $0x478] sm:$0xff]
    %v521 = vld [vmem:[#allocation6 + $0x480] sm:$0xff]
    %v522 = vld [vmem:[#allocation6 + $0x488] sm:$0xff]
    %v523 = vld [vmem:[#allocation6 + $0x490] sm:$0xff]
    %v524 = vld [vmem:[#allocation6 + $0x498] sm:$0xff]
    %v525 = vld [vmem:[#allocation6 + $0x4a0] sm:$0xff]
    %v526 = vld [vmem:[#allocation6 + $0x4a8] sm:$0xf]
    %v527 = vld [vmem:[#allocation6 + $0x4ac] sm:$0xff]
    %v528 = vld [vmem:[#allocation6 + $0x4b4] sm:$0xff]
    %v529 = vld [vmem:[#allocation6 + $0x4bc] sm:$0xff]
    %v530 = vld [vmem:[#allocation6 + $0x4c4] sm:$0xff]
    %v531 = vld [vmem:[#allocation6 + $0x4cc] sm:$0xff]
    %v532 = vld [vmem:[#allocation6 + $0x4d4] sm:$0xff]
    %v533 = vld [vmem:[#allocation6 + $0x4dc] sm:$0xf]
    %v534 = vld [vmem:[#allocation6 + $0x4e0] sm:$0xff]
    %v535 = vld [vmem:[#allocation6 + $0x4e8] sm:$0xff]
    %v536 = vld [vmem:[#allocation6 + $0x4f0] sm:$0xff]
    %v537 = vld [vmem:[#allocation6 + $0x4f8] sm:$0xff]
    %v538 = vld [vmem:[#allocation6 + $0x500] sm:$0xff]
    %v539 = vld [vmem:[#allocation6 + $0x508] sm:$0xff]
    %v540 = vld [vmem:[#allocation6 + $0x510] sm:$0xf]
    %v541 = vld [vmem:[#allocation6 + $0x514] sm:$0xff]
    %v542 = vld [vmem:[#allocation6 + $0x51c] sm:$0xff]
    %v543 = vld [vmem:[#allocation6 + $0x524] sm:$0xff]
    %v544 = vld [vmem:[#allocation6 + $0x52c] sm:$0xff]
    %v545 = vld [vmem:[#allocation6 + $0x534] sm:$0xff]
    %v546 = vld [vmem:[#allocation6 + $0x53c] sm:$0xff]
    %v547 = vld [vmem:[#allocation6 + $0x544] sm:$0xf]
    %v548 = vld [vmem:[#allocation6 + $0x548] sm:$0xff]
    %v549 = vld [vmem:[#allocation6 + $0x550] sm:$0xff]
    %v550 = vld [vmem:[#allocation6 + $0x558] sm:$0xff]
    %v551 = vld [vmem:[#allocation6 + $0x560] sm:$0xff]
    %v552 = vld [vmem:[#allocation6 + $0x568] sm:$0xff]
    %v553 = vld [vmem:[#allocation6 + $0x570] sm:$0xff]
    %v554 = vld [vmem:[#allocation6 + $0x578] sm:$0xf]
    %v555 = vld [vmem:[#allocation6 + $0x57c] sm:$0xff]
    %v556 = vld [vmem:[#allocation6 + $0x584] sm:$0xff]
    %v557 = vld [vmem:[#allocation6 + $0x58c] sm:$0xff]
    %v558 = vld [vmem:[#allocation6 + $0x594] sm:$0xff]
    %v559 = vld [vmem:[#allocation6 + $0x59c] sm:$0xff]
    %v560 = vld [vmem:[#allocation6 + $0x5a4] sm:$0xff]
    %v561 = vld [vmem:[#allocation6 + $0x5ac] sm:$0xf]
    %v562 = vld [vmem:[#allocation6 + $0x5b0] sm:$0xff]
    %v563 = vld [vmem:[#allocation6 + $0x5b8] sm:$0xff]
    %v564 = vld [vmem:[#allocation6 + $0x5c0] sm:$0xff]
    %v565 = vld [vmem:[#allocation6 + $0x5c8] sm:$0xff]
    %v566 = vld [vmem:[#allocation6 + $0x5d0] sm:$0xff]
    %v567 = vld [vmem:[#allocation6 + $0x5d8] sm:$0xff]
    %v568 = vld [vmem:[#allocation6 + $0x5e0] sm:$0xf]
    %v569 = vld [vmem:[#allocation6 + $0x5e4] sm:$0xff]
    %v570 = vld [vmem:[#allocation6 + $0x5ec] sm:$0xff]
    %v571 = vld [vmem:[#allocation6 + $0x5f4] sm:$0xff]
    %v572 = vld [vmem:[#allocation6 + $0x5fc] sm:$0xff]
    %v573 = vld [vmem:[#allocation6 + $0x604] sm:$0xff]
    %v574 = vld [vmem:[#allocation6 + $0x60c] sm:$0xff]
    %v575 = vld [vmem:[#allocation6 + $0x614] sm:$0xf]
    %v576 = vld [vmem:[#allocation6 + $0x618] sm:$0xff]
    %v577 = vld [vmem:[#allocation6 + $0x620] sm:$0xff]
    %v578 = vld [vmem:[#allocation6 + $0x628] sm:$0xff]
    %v579 = vld [vmem:[#allocation6 + $0x630] sm:$0xff]
    %v580 = vld [vmem:[#allocation6 + $0x638] sm:$0xff]
    %v581 = vld [vmem:[#allocation6 + $0x640] sm:$0xff]
    %v582 = vld [vmem:[#allocation6 + $0x648] sm:$0xf]
    %v583 = vld [vmem:[#allocation6 + $0x64c] sm:$0xff]
    %v584 = vld [vmem:[#allocation6 + $0x654] sm:$0xff]
    %v585 = vld [vmem:[#allocation6 + $0x65c] sm:$0xff]
    %v586 = vld [vmem:[#allocation6 + $0x664] sm:$0xff]
    %v587 = vld [vmem:[#allocation6 + $0x66c] sm:$0xff]
    %v588 = vld [vmem:[#allocation6 + $0x674] sm:$0xff]
    %v589 = vld [vmem:[#allocation6 + $0x67c] sm:$0xf]
    %v590 = vld [vmem:[#allocation6 + $0x680] sm:$0xff]
    %v591 = vld [vmem:[#allocation6 + $0x688] sm:$0xff]
    %v592 = vld [vmem:[#allocation6 + $0x690] sm:$0xff]
    %v593 = vld [vmem:[#allocation6 + $0x698] sm:$0xff]
    %v594 = vld [vmem:[#allocation6 + $0x6a0] sm:$0xff]
    %v595 = vld [vmem:[#allocation6 + $0x6a8] sm:$0xff]
    %v596 = vld [vmem:[#allocation6 + $0x6b0] sm:$0xf]
    %v597 = vld [vmem:[#allocation6 + $0x6b4] sm:$0xff]
    %v598 = vld [vmem:[#allocation6 + $0x6bc] sm:$0xff]
    %v599 = vld [vmem:[#allocation6 + $0x6c4] sm:$0xff]
    %v600 = vld [vmem:[#allocation6 + $0x6cc] sm:$0xff]
    %v601 = vld [vmem:[#allocation6 + $0x6d4] sm:$0xff]
    %v602 = vld [vmem:[#allocation6 + $0x6dc] sm:$0xff]
    %v603 = vld [vmem:[#allocation6 + $0x6e4] sm:$0xf]
    %v604 = vld [vmem:[#allocation6 + $0x6e8] sm:$0xff]
    %v605 = vld [vmem:[#allocation6 + $0x6f0] sm:$0xff]
    %v606 = vld [vmem:[#allocation6 + $0x6f8] sm:$0xff]
    %v607 = vld [vmem:[#allocation6 + $0x700] sm:$0xff]
    %v608 = vld [vmem:[#allocation6 + $0x708] sm:$0xff]
    %v609 = vld [vmem:[#allocation6 + $0x710] sm:$0xff]
    %v610 = vld [vmem:[#allocation6 + $0x718] sm:$0xf]
    %v611 = vld [vmem:[#allocation6 + $0x71c] sm:$0xff]
    %v612 = vld [vmem:[#allocation6 + $0x724] sm:$0xff]
    %v613 = vld [vmem:[#allocation6 + $0x72c] sm:$0xff]
    %v614 = vld [vmem:[#allocation6 + $0x734] sm:$0xff]
    %v615 = vld [vmem:[#allocation6 + $0x73c] sm:$0xff]
    %v616 = vld [vmem:[#allocation6 + $0x744] sm:$0xff]
    %v617 = vld [vmem:[#allocation6 + $0x74c] sm:$0xf]
    %v618 = vld [vmem:[#allocation6 + $0x750] sm:$0xff]
    %v619 = vld [vmem:[#allocation6 + $0x758] sm:$0xff]
    %v620 = vld [vmem:[#allocation6 + $0x760] sm:$0xff]
    %v621 = vld [vmem:[#allocation6 + $0x768] sm:$0xff]
    %v622 = vld [vmem:[#allocation6 + $0x770] sm:$0xff]
    %v623 = vld [vmem:[#allocation6 + $0x778] sm:$0xff]
    %v624 = vld [vmem:[#allocation6 + $0x780] sm:$0xf]
    %v625 = vld [vmem:[#allocation6 + $0x784] sm:$0xff]
    %v626 = vld [vmem:[#allocation6 + $0x78c] sm:$0xff]
    %v627 = vld [vmem:[#allocation6 + $0x794] sm:$0xff]
    %v628 = vld [vmem:[#allocation6 + $0x79c] sm:$0xff]
    %v629 = vld [vmem:[#allocation6 + $0x7a4] sm:$0xff]
    %v630 = vld [vmem:[#allocation6 + $0x7ac] sm:$0xff]
    %v631 = vld [vmem:[#allocation6 + $0x7b4] sm:$0xf]
    %v632 = vld [vmem:[#allocation6 + $0x7b8] sm:$0xff]
    %v633 = vld [vmem:[#allocation6 + $0x7c0] sm:$0xff]
    %v634 = vld [vmem:[#allocation6 + $0x7c8] sm:$0xff]
    %v635 = vld [vmem:[#allocation6 + $0x7d0] sm:$0xff]
    %v636 = vld [vmem:[#allocation6 + $0x7d8] sm:$0xff]
    %v637 = vld [vmem:[#allocation6 + $0x7e0] sm:$0xff]
    %v638 = vld [vmem:[#allocation6 + $0x7e8] sm:$0xf]
    %v639 = vld [vmem:[#allocation6 + $0x7ec] sm:$0xff]
    %v640 = vld [vmem:[#allocation6 + $0x7f4] sm:$0xff]
    %v641 = vld [vmem:[#allocation6 + $0x7fc] sm:$0xff]
    %v642 = vld [vmem:[#allocation6 + $0x804] sm:$0xff]
    %v643 = vld [vmem:[#allocation6 + $0x80c] sm:$0xff]
    %v644 = vld [vmem:[#allocation6 + $0x814] sm:$0xff]
    %v645 = vld [vmem:[#allocation6 + $0x81c] sm:$0xf]
    %v646 = vld [vmem:[#allocation6 + $0x820] sm:$0xff]
    %v647 = vld [vmem:[#allocation6 + $0x828] sm:$0xff]
    %v648 = vld [vmem:[#allocation6 + $0x830] sm:$0xff]
    %v649 = vld [vmem:[#allocation6 + $0x838] sm:$0xff]
    %v650 = vld [vmem:[#allocation6 + $0x840] sm:$0xff]
    %v651 = vld [vmem:[#allocation6 + $0x848] sm:$0xff]
    %v652 = vld [vmem:[#allocation6 + $0x850] sm:$0xf]
    %v653 = vld [vmem:[#allocation6 + $0x854] sm:$0xff]
    %v654 = vld [vmem:[#allocation6 + $0x85c] sm:$0xff]
    %v655 = vld [vmem:[#allocation6 + $0x864] sm:$0xff]
    %v656 = vld [vmem:[#allocation6 + $0x86c] sm:$0xff]
    %v657 = vld [vmem:[#allocation6 + $0x874] sm:$0xff]
    %v658 = vld [vmem:[#allocation6 + $0x87c] sm:$0xff]
    %v659 = vld [vmem:[#allocation6 + $0x884] sm:$0xf]
    %v660 = vld [vmem:[#allocation6 + $0x888] sm:$0xff]
    %v661 = vld [vmem:[#allocation6 + $0x890] sm:$0xff]
    %v662 = vld [vmem:[#allocation6 + $0x898] sm:$0xff]
    %v663 = vld [vmem:[#allocation6 + $0x8a0] sm:$0xff]
    %v664 = vld [vmem:[#allocation6 + $0x8a8] sm:$0xff]
    %v665 = vld [vmem:[#allocation6 + $0x8b0] sm:$0xff]
    %v666 = vld [vmem:[#allocation6 + $0x8b8] sm:$0xf]
    %v667 = vld [vmem:[#allocation6 + $0x8bc] sm:$0xff]
    %v668 = vld [vmem:[#allocation6 + $0x8c4] sm:$0xff]
    %v669 = vld [vmem:[#allocation6 + $0x8cc] sm:$0xff]
    %v670 = vld [vmem:[#allocation6 + $0x8d4] sm:$0xff]
    %v671 = vld [vmem:[#allocation6 + $0x8dc] sm:$0xff]
    %v672 = vld [vmem:[#allocation6 + $0x8e4] sm:$0xff]
    %v673 = vld [vmem:[#allocation6 + $0x8ec] sm:$0xf]
    %v674 = vld [vmem:[#allocation6 + $0x8f0] sm:$0xff]
    %v675 = vld [vmem:[#allocation6 + $0x8f8] sm:$0xff]
    %v676 = vld [vmem:[#allocation6 + $0x900] sm:$0xff]
    %v677 = vld [vmem:[#allocation6 + $0x908] sm:$0xff]
    %v678 = vld [vmem:[#allocation6 + $0x910] sm:$0xff]
    %v679 = vld [vmem:[#allocation6 + $0x918] sm:$0xff]
    %v680 = vld [vmem:[#allocation6 + $0x920] sm:$0xf]
    %v681 = vld [vmem:[#allocation6 + $0x924] sm:$0xff]
    %v682 = vld [vmem:[#allocation6 + $0x92c] sm:$0xff]
    %v683 = vld [vmem:[#allocation6 + $0x934] sm:$0xff]
    %v684 = vld [vmem:[#allocation6 + $0x93c] sm:$0xff]
    %v685 = vld [vmem:[#allocation6 + $0x944] sm:$0xff]
    %v686 = vld [vmem:[#allocation6 + $0x94c] sm:$0xff]
    %v687 = vld [vmem:[#allocation6 + $0x954] sm:$0xf]
    %v688 = vld [vmem:[#allocation6 + $0x958] sm:$0xff]
    %v689 = vld [vmem:[#allocation6 + $0x960] sm:$0xff]
    %v690 = vld [vmem:[#allocation6 + $0x968] sm:$0xff]
    %v691 = vld [vmem:[#allocation6 + $0x970] sm:$0xff]
    %v692 = vld [vmem:[#allocation6 + $0x978] sm:$0xff]
    %v693 = vld [vmem:[#allocation6 + $0x980] sm:$0xff]
    %v694 = vld [vmem:[#allocation6 + $0x988] sm:$0xf]
    %v695 = vld [vmem:[#allocation6 + $0x98c] sm:$0xff]
    %v696 = vld [vmem:[#allocation6 + $0x994] sm:$0xff]
    %v697 = vld [vmem:[#allocation6 + $0x99c] sm:$0xff]
    %v698 = vld [vmem:[#allocation6 + $0x9a4] sm:$0xff]
    %v699 = vld [vmem:[#allocation6 + $0x9ac] sm:$0xff]
    %v700 = vld [vmem:[#allocation6 + $0x9b4] sm:$0xff]
    %v701 = vld [vmem:[#allocation6 + $0x9bc] sm:$0xf]
    %v702 = vld [vmem:[#allocation6 + $0x9c0] sm:$0xff]
    %v703 = vld [vmem:[#allocation6 + $0x9c8] sm:$0xff]
    %v704 = vld [vmem:[#allocation6 + $0x9d0] sm:$0xff]
    %v705 = vld [vmem:[#allocation6 + $0x9d8] sm:$0xff]
    %v706 = vld [vmem:[#allocation6 + $0x9e0] sm:$0xff]
    %v707 = vld [vmem:[#allocation6 + $0x9e8] sm:$0xff]
    %v708 = vld [vmem:[#allocation6 + $0x9f0] sm:$0xf]
    %v709 = vld [vmem:[#allocation6 + $0x9f4] sm:$0xff]
    %v710 = vld [vmem:[#allocation6 + $0x9fc] sm:$0xff]
    %v711 = vld [vmem:[#allocation6 + $0xa04] sm:$0xff]
    %v712 = vld [vmem:[#allocation6 + $0xa0c] sm:$0xff]
    %v713 = vld [vmem:[#allocation6 + $0xa14] sm:$0xff]
    %v714 = vld [vmem:[#allocation6 + $0xa1c] sm:$0xff]
    %v715 = vld [vmem:[#allocation6 + $0xa24] sm:$0xf]
    %v716 = vld [vmem:[#allocation6 + $0xa28] sm:$0xff]
    %v717 = vld [vmem:[#allocation6 + $0xa30] sm:$0xff]
    %v718 = vld [vmem:[#allocation6 + $0xa38] sm:$0xff]
    %v719 = vld [vmem:[#allocation6 + $0xa40] sm:$0xff]
    %v720 = vld [vmem:[#allocation6 + $0xa48] sm:$0xff]
    %v721 = vld [vmem:[#allocation6 + $0xa50] sm:$0xff]
    %v722 = vld [vmem:[#allocation6 + $0xa58] sm:$0xf]
    %v723 = vld [vmem:[#allocation6 + $0xa5c] sm:$0xff]
    %v724 = vld [vmem:[#allocation6 + $0xa64] sm:$0xff]
    %v725 = vld [vmem:[#allocation6 + $0xa6c] sm:$0xff]
    %v726 = vld [vmem:[#allocation6 + $0xa74] sm:$0xff]
    %v727 = vld [vmem:[#allocation6 + $0xa7c] sm:$0xff]
    %v728 = vld [vmem:[#allocation6 + $0xa84] sm:$0xff]
    %v729 = vld [vmem:[#allocation6 + $0xa8c] sm:$0xf]
    %v730 = vld [vmem:[#allocation6 + $0xa90] sm:$0xff]
    %v731 = vld [vmem:[#allocation6 + $0xa98] sm:$0xff]
    %v732 = vld [vmem:[#allocation6 + $0xaa0] sm:$0xff]
    %v733 = vld [vmem:[#allocation6 + $0xaa8] sm:$0xff]
    %v734 = vld [vmem:[#allocation6 + $0xab0] sm:$0xff]
    %v735 = vld [vmem:[#allocation6 + $0xab8] sm:$0xff]
    %v736 = vld [vmem:[#allocation6 + $0xac0] sm:$0xf]
    %v737 = vld [vmem:[#allocation6 + $0xac4] sm:$0xff]
    %v738 = vld [vmem:[#allocation6 + $0xacc] sm:$0xff]
    %v739 = vld [vmem:[#allocation6 + $0xad4] sm:$0xff]
    %v740 = vld [vmem:[#allocation6 + $0xadc] sm:$0xff]
    %v741 = vld [vmem:[#allocation6 + $0xae4] sm:$0xff]
    %v742 = vld [vmem:[#allocation6 + $0xaec] sm:$0xff]
    %v743 = vld [vmem:[#allocation6 + $0xaf4] sm:$0xf]
    %v744 = vld [vmem:[#allocation6 + $0xaf8] sm:$0xff]
    %v745 = vld [vmem:[#allocation6 + $0xb00] sm:$0xff]
    %v746 = vld [vmem:[#allocation6 + $0xb08] sm:$0xff]
    %v747 = vld [vmem:[#allocation6 + $0xb10] sm:$0xff]
    %v748 = vld [vmem:[#allocation6 + $0xb18] sm:$0xff]
    %v749 = vld [vmem:[#allocation6 + $0xb20] sm:$0xff]
    %v750 = vld [vmem:[#allocation6 + $0xb28] sm:$0xf]
    %v751 = vld [vmem:[#allocation6 + $0xb2c] sm:$0xff]
    %v752 = vld [vmem:[#allocation6 + $0xb34] sm:$0xff]
    %v753 = vld [vmem:[#allocation6 + $0xb3c] sm:$0xff]
    %v754 = vld [vmem:[#allocation6 + $0xb44] sm:$0xff]
    %v755 = vld [vmem:[#allocation6 + $0xb4c] sm:$0xff]
    %v756 = vld [vmem:[#allocation6 + $0xb54] sm:$0xff]
    %v757 = vld [vmem:[#allocation6 + $0xb5c] sm:$0xf]
    %v758 = vld [vmem:[#allocation6 + $0xb60] sm:$0xff]
    %v759 = vld [vmem:[#allocation6 + $0xb68] sm:$0xff]
    %v760 = vld [vmem:[#allocation6 + $0xb70] sm:$0xff]
    %v761 = vld [vmem:[#allocation6 + $0xb78] sm:$0xff]
    %v762 = vld [vmem:[#allocation6 + $0xb80] sm:$0xff]
    %v763 = vld [vmem:[#allocation6 + $0xb88] sm:$0xff]
    %v764 = vld [vmem:[#allocation6 + $0xb90] sm:$0xf]
    %v765 = vld [vmem:[#allocation6 + $0xb94] sm:$0xff]
    %v766 = vld [vmem:[#allocation6 + $0xb9c] sm:$0xff]
    %v767 = vld [vmem:[#allocation6 + $0xba4] sm:$0xff]
    %v768 = vld [vmem:[#allocation6 + $0xbac] sm:$0xff]
    %v769 = vld [vmem:[#allocation6 + $0xbb4] sm:$0xff]
    %v770 = vld [vmem:[#allocation6 + $0xbbc] sm:$0xff]
    %v771 = vld [vmem:[#allocation6 + $0xbc4] sm:$0xf]
    %v772 = vld [vmem:[#allocation6 + $0xbc8] sm:$0xff]
    %v773 = vld [vmem:[#allocation6 + $0xbd0] sm:$0xff]
    %v774 = vld [vmem:[#allocation6 + $0xbd8] sm:$0xff]
    %v775 = vld [vmem:[#allocation6 + $0xbe0] sm:$0xff]
    %v776 = vld [vmem:[#allocation6 + $0xbe8] sm:$0xff]
    %v777 = vld [vmem:[#allocation6 + $0xbf0] sm:$0xff]
    %v778 = vld [vmem:[#allocation6 + $0xbf8] sm:$0xf]
    %v779 = vld [vmem:[#allocation6 + $0xbfc] sm:$0xff]
    %v780 = vld [vmem:[#allocation6 + $0xc04] sm:$0xff]
    %v781 = vld [vmem:[#allocation6 + $0xc0c] sm:$0xff]
    %v782 = vld [vmem:[#allocation6 + $0xc14] sm:$0xff]
    %v783 = vld [vmem:[#allocation6 + $0xc1c] sm:$0xff]
    %v784 = vld [vmem:[#allocation6 + $0xc24] sm:$0xff]
    %v785 = vld [vmem:[#allocation6 + $0xc2c] sm:$0xf]
    %v786 = vld [vmem:[#allocation6 + $0xc30] sm:$0xff]
    %v787 = vld [vmem:[#allocation6 + $0xc38] sm:$0xff]
    %v788 = vld [vmem:[#allocation6 + $0xc40] sm:$0xff]
    %v789 = vld [vmem:[#allocation6 + $0xc48] sm:$0xff]
    %v790 = vld [vmem:[#allocation6 + $0xc50] sm:$0xff]
    %v791 = vld [vmem:[#allocation6 + $0xc58] sm:$0xff]
    %v792 = vld [vmem:[#allocation6 + $0xc60] sm:$0xf]
    %v793 = vld [vmem:[#allocation6 + $0xc64] sm:$0xff]
    %v794 = vld [vmem:[#allocation6 + $0xc6c] sm:$0xff]
    %v795 = vld [vmem:[#allocation6 + $0xc74] sm:$0xff]
    %v796 = vld [vmem:[#allocation6 + $0xc7c] sm:$0xff]
    %v797 = vld [vmem:[#allocation6 + $0xc84] sm:$0xff]
    %v798 = vld [vmem:[#allocation6 + $0xc8c] sm:$0xff]
    %v799 = vld [vmem:[#allocation6 + $0xc94] sm:$0xf]
    %v800 = vld [vmem:[#allocation6 + $0xc98] sm:$0xff]
    %v801 = vld [vmem:[#allocation6 + $0xca0] sm:$0xff]
    %v802 = vld [vmem:[#allocation6 + $0xca8] sm:$0xff]
    %v803 = vld [vmem:[#allocation6 + $0xcb0] sm:$0xff]
    %v804 = vld [vmem:[#allocation6 + $0xcb8] sm:$0xff]
    %v805 = vld [vmem:[#allocation6 + $0xcc0] sm:$0xff]
    %v806 = vld [vmem:[#allocation6 + $0xcc8] sm:$0xf]
    %v807 = vld [vmem:[#allocation6 + $0xccc] sm:$0xff]
    %v808 = vld [vmem:[#allocation6 + $0xcd4] sm:$0xff]
    %v809 = vld [vmem:[#allocation6 + $0xcdc] sm:$0xff]
    %v810 = vld [vmem:[#allocation6 + $0xce4] sm:$0xff]
    %v811 = vld [vmem:[#allocation6 + $0xcec] sm:$0xff]
    %v812 = vld [vmem:[#allocation6 + $0xcf4] sm:$0xff]
    %v813 = vld [vmem:[#allocation6 + $0xcfc] sm:$0xf]
    %v814 = vld [vmem:[#allocation6 + $0xd00] sm:$0xff]
    %v815 = vld [vmem:[#allocation6 + $0xd08] sm:$0xff]
    %v816 = vld [vmem:[#allocation6 + $0xd10] sm:$0xff]
    %v817 = vld [vmem:[#allocation6 + $0xd18] sm:$0xff]
    %v818 = vld [vmem:[#allocation6 + $0xd20] sm:$0xff]
    %v819 = vld [vmem:[#allocation6 + $0xd28] sm:$0xff]
    %v820 = vld [vmem:[#allocation6 + $0xd30] sm:$0xf]
    %v821 = vld [vmem:[#allocation6 + $0xd34] sm:$0xff]
    %v822 = vld [vmem:[#allocation6 + $0xd3c] sm:$0xff]
    %v823 = vld [vmem:[#allocation6 + $0xd44] sm:$0xff]
    %v824 = vld [vmem:[#allocation6 + $0xd4c] sm:$0xff]
    %v825 = vld [vmem:[#allocation6 + $0xd54] sm:$0xff]
    %v826 = vld [vmem:[#allocation6 + $0xd5c] sm:$0xff]
    %v827 = vld [vmem:[#allocation6 + $0xd64] sm:$0xf]
    %v828 = vld [vmem:[#allocation6 + $0xd68] sm:$0xff]
    %v829 = vld [vmem:[#allocation6 + $0xd70] sm:$0xff]
    %v830 = vld [vmem:[#allocation6 + $0xd78] sm:$0xff]
    %v831 = vld [vmem:[#allocation6 + $0xd80] sm:$0xff]
    %v832 = vld [vmem:[#allocation6 + $0xd88] sm:$0xff]
    %v833 = vld [vmem:[#allocation6 + $0xd90] sm:$0xff]
    %v834 = vld [vmem:[#allocation6 + $0xd98] sm:$0xf]
    %v835 = vld [vmem:[#allocation6 + $0xd9c] sm:$0xff]
    %v836 = vld [vmem:[#allocation6 + $0xda4] sm:$0xff]
    %v837 = vld [vmem:[#allocation6 + $0xdac] sm:$0xff]
    %v838 = vld [vmem:[#allocation6 + $0xdb4] sm:$0xff]
    %v839 = vld [vmem:[#allocation6 + $0xdbc] sm:$0xff]
    %v840 = vld [vmem:[#allocation6 + $0xdc4] sm:$0xff]
    %v841 = vld [vmem:[#allocation6 + $0xdcc] sm:$0xf]
    %v842 = vld [vmem:[#allocation6 + $0xdd0] sm:$0xff]
    %v843 = vld [vmem:[#allocation6 + $0xdd8] sm:$0xff]
    %v844 = vld [vmem:[#allocation6 + $0xde0] sm:$0xff]
    %v845 = vld [vmem:[#allocation6 + $0xde8] sm:$0xff]
    %v846 = vld [vmem:[#allocation6 + $0xdf0] sm:$0xff]
    %v847 = vld [vmem:[#allocation6 + $0xdf8] sm:$0xff]
    %v848 = vld [vmem:[#allocation6 + $0xe00] sm:$0xf]
    %v849 = vld [vmem:[#allocation6 + $0xe04] sm:$0xff]
    %v850 = vld [vmem:[#allocation6 + $0xe0c] sm:$0xff]
    %v851 = vld [vmem:[#allocation6 + $0xe14] sm:$0xff]
    %v852 = vld [vmem:[#allocation6 + $0xe1c] sm:$0xff]
    %v853 = vld [vmem:[#allocation6 + $0xe24] sm:$0xff]
    %v854 = vld [vmem:[#allocation6 + $0xe2c] sm:$0xff]
    %v855 = vld [vmem:[#allocation6 + $0xe34] sm:$0xf]
    %v856 = vld [vmem:[#allocation6 + $0xe38] sm:$0xff]
    %v857 = vld [vmem:[#allocation6 + $0xe40] sm:$0xff]
    %v858 = vld [vmem:[#allocation6 + $0xe48] sm:$0xff]
    %v859 = vld [vmem:[#allocation6 + $0xe50] sm:$0xff]
    %v860 = vld [vmem:[#allocation6 + $0xe58] sm:$0xff]
    %v861 = vld [vmem:[#allocation6 + $0xe60] sm:$0xff]
    %v862 = vld [vmem:[#allocation6 + $0xe68] sm:$0xf]
    %v863 = vld [vmem:[#allocation6 + $0xe6c] sm:$0xff]
    %v864 = vld [vmem:[#allocation6 + $0xe74] sm:$0xff]
    %v865 = vld [vmem:[#allocation6 + $0xe7c] sm:$0xff]
    %v866 = vld [vmem:[#allocation6 + $0xe84] sm:$0xff]
    %v867 = vld [vmem:[#allocation6 + $0xe8c] sm:$0xff]
    %v868 = vld [vmem:[#allocation6 + $0xe94] sm:$0xff]
    %v869 = vld [vmem:[#allocation6 + $0xe9c] sm:$0xf]
    %v870 = vld [vmem:[#allocation6 + $0xea0] sm:$0xff]
    %v871 = vld [vmem:[#allocation6 + $0xea8] sm:$0xff]
    %v872 = vld [vmem:[#allocation6 + $0xeb0] sm:$0xff]
    %v873 = vld [vmem:[#allocation6 + $0xeb8] sm:$0xff]
    %v874 = vld [vmem:[#allocation6 + $0xec0] sm:$0xff]
    %v875 = vld [vmem:[#allocation6 + $0xec8] sm:$0xff]
    %v876 = vld [vmem:[#allocation6 + $0xed0] sm:$0xf]
    %v877 = vld [vmem:[#allocation6 + $0xed4] sm:$0xff]
    %v878 = vld [vmem:[#allocation6 + $0xedc] sm:$0xff]
    %v879 = vld [vmem:[#allocation6 + $0xee4] sm:$0xff]
    %v880 = vld [vmem:[#allocation6 + $0xeec] sm:$0xff]
    %v881 = vld [vmem:[#allocation6 + $0xef4] sm:$0xff]
    %v882 = vld [vmem:[#allocation6 + $0xefc] sm:$0xff]
    %v883 = vld [vmem:[#allocation6 + $0xf04] sm:$0xf]
    %v884 = vld [vmem:[#allocation6 + $0xf08] sm:$0xff]
    %v885 = vld [vmem:[#allocation6 + $0xf10] sm:$0xff]
    %v886 = vld [vmem:[#allocation6 + $0xf18] sm:$0xff]
    %v887 = vld [vmem:[#allocation6 + $0xf20] sm:$0xff]
    %v888 = vld [vmem:[#allocation6 + $0xf28] sm:$0xff]
    %v889 = vld [vmem:[#allocation6 + $0xf30] sm:$0xff]
    %v890 = vld [vmem:[#allocation6 + $0xf38] sm:$0xf]
    %v891 = vld [vmem:[#allocation6 + $0xf3c] sm:$0xff]
    %v892 = vld [vmem:[#allocation6 + $0xf44] sm:$0xff]
    %v893 = vld [vmem:[#allocation6 + $0xf4c] sm:$0xff]
    %v894 = vld [vmem:[#allocation6 + $0xf54] sm:$0xff]
    %v895 = vld [vmem:[#allocation6 + $0xf5c] sm:$0xff]
    %v896 = vld [vmem:[#allocation6 + $0xf64] sm:$0xff]
    %v897 = vld [vmem:[#allocation6 + $0xf6c] sm:$0xf]
    %v898 = vld [vmem:[#allocation6 + $0xf70] sm:$0xff]
    %v899 = vld [vmem:[#allocation6 + $0xf78] sm:$0xff]
    %v900 = vld [vmem:[#allocation6 + $0xf80] sm:$0xff]
    %v901 = vld [vmem:[#allocation6 + $0xf88] sm:$0xff]
    %v902 = vld [vmem:[#allocation6 + $0xf90] sm:$0xff]
    %v903 = vld [vmem:[#allocation6 + $0xf98] sm:$0xff]
    %v904 = vld [vmem:[#allocation6 + $0xfa0] sm:$0xf]
    %v905 = vld [vmem:[#allocation6 + $0xfa4] sm:$0xff]
    %v906 = vld [vmem:[#allocation6 + $0xfac] sm:$0xff]
    %v907 = vld [vmem:[#allocation6 + $0xfb4] sm:$0xff]
    %v908 = vld [vmem:[#allocation6 + $0xfbc] sm:$0xff]
    %v909 = vld [vmem:[#allocation6 + $0xfc4] sm:$0xff]
    %v910 = vld [vmem:[#allocation6 + $0xfcc] sm:$0xff]
    %v911 = vld [vmem:[#allocation6 + $0xfd4] sm:$0xf]
    %v912 = vld [vmem:[#allocation6 + $0xfd8] sm:$0xff]
    %v913 = vld [vmem:[#allocation6 + $0xfe0] sm:$0xff]
    %v914 = vld [vmem:[#allocation6 + $0xfe8] sm:$0xff]
    %v915 = vld [vmem:[#allocation6 + $0xff0] sm:$0xff]
    %v916 = vld [vmem:[#allocation6 + $0xff8] sm:$0xff]
    %v917 = vld [vmem:[#allocation6 + $0x1000] sm:$0xff]
    %v918 = vld [vmem:[#allocation6 + $0x1008] sm:$0xf]
    %v919 = vld [vmem:[#allocation6 + $0x100c] sm:$0xff]
    %v920 = vld [vmem:[#allocation6 + $0x1014] sm:$0xff]
    %v921 = vld [vmem:[#allocation6 + $0x101c] sm:$0xff]
    %v922 = vld [vmem:[#allocation6 + $0x1024] sm:$0xff]
    %v923 = vld [vmem:[#allocation6 + $0x102c] sm:$0xff]
    %v924 = vld [vmem:[#allocation6 + $0x1034] sm:$0xff]
    %v925 = vld [vmem:[#allocation6 + $0x103c] sm:$0xf]
    %v926 = vld [vmem:[#allocation6 + $0x1040] sm:$0xff]
    %v927 = vld [vmem:[#allocation6 + $0x1048] sm:$0xff]
    %v928 = vld [vmem:[#allocation6 + $0x1050] sm:$0xff]
    %v929 = vld [vmem:[#allocation6 + $0x1058] sm:$0xff]
    %v930 = vld [vmem:[#allocation6 + $0x1060] sm:$0xff]
    %v931 = vld [vmem:[#allocation6 + $0x1068] sm:$0xff]
    %v932 = vld [vmem:[#allocation6 + $0x1070] sm:$0xf]
    %v933 = vld [vmem:[#allocation6 + $0x1074] sm:$0xff]
    %v934 = vld [vmem:[#allocation6 + $0x107c] sm:$0xff]
    %v935 = vld [vmem:[#allocation6 + $0x1084] sm:$0xff]
    %v936 = vld [vmem:[#allocation6 + $0x108c] sm:$0xff]
    %v937 = vld [vmem:[#allocation6 + $0x1094] sm:$0xff]
    %v938 = vld [vmem:[#allocation6 + $0x109c] sm:$0xff]
    %v939 = vld [vmem:[#allocation6 + $0x10a4] sm:$0xf]
    %v940 = vld [vmem:[#allocation6 + $0x10a8] sm:$0xff]
    %v941 = vld [vmem:[#allocation6 + $0x10b0] sm:$0xff]
    %v942 = vld [vmem:[#allocation6 + $0x10b8] sm:$0xff]
    %v943 = vld [vmem:[#allocation6 + $0x10c0] sm:$0xff]
    %v944 = vld [vmem:[#allocation6 + $0x10c8] sm:$0xff]
    %v945 = vld [vmem:[#allocation6 + $0x10d0] sm:$0xff]
    %v946 = vld [vmem:[#allocation6 + $0x10d8] sm:$0xf]
    %v947 = vld [vmem:[#allocation6 + $0x10dc] sm:$0xff]
    %v948 = vld [vmem:[#allocation6 + $0x10e4] sm:$0xff]
    %v949 = vld [vmem:[#allocation6 + $0x10ec] sm:$0xff]
    %v950 = vld [vmem:[#allocation6 + $0x10f4] sm:$0xff]
    %v951 = vld [vmem:[#allocation6 + $0x10fc] sm:$0xff]
    %v952 = vld [vmem:[#allocation6 + $0x1104] sm:$0xff]
    %v953 = vld [vmem:[#allocation6 + $0x110c] sm:$0xf]
    %v954 = vld [vmem:[#allocation6 + $0x1110] sm:$0xff]
    %v955 = vld [vmem:[#allocation6 + $0x1118] sm:$0xff]
    %v956 = vld [vmem:[#allocation6 + $0x1120] sm:$0xff]
    %v957 = vld [vmem:[#allocation6 + $0x1128] sm:$0xff]
    %v958 = vld [vmem:[#allocation6 + $0x1130] sm:$0xff]
    %v959 = vld [vmem:[#allocation6 + $0x1138] sm:$0xff]
    %v960 = vld [vmem:[#allocation6 + $0x1140] sm:$0xf]
    %v961 = vld [vmem:[#allocation6 + $0x1144] sm:$0xff]
    %v962 = vld [vmem:[#allocation6 + $0x114c] sm:$0xff]
    %v963 = vld [vmem:[#allocation6 + $0x1154] sm:$0xff]
    %v964 = vld [vmem:[#allocation6 + $0x115c] sm:$0xff]
    %v965 = vld [vmem:[#allocation6 + $0x1164] sm:$0xff]
    %v966 = vld [vmem:[#allocation6 + $0x116c] sm:$0xff]
    %v967 = vld [vmem:[#allocation6 + $0x1174] sm:$0xf]
    %v968 = vld [vmem:[#allocation6 + $0x1178] sm:$0xff]
    %v969 = vld [vmem:[#allocation6 + $0x1180] sm:$0xff]
    %v970 = vld [vmem:[#allocation6 + $0x1188] sm:$0xff]
    %v971 = vld [vmem:[#allocation6 + $0x1190] sm:$0xff]
    %v972 = vld [vmem:[#allocation6 + $0x1198] sm:$0xff]
    %v973 = vld [vmem:[#allocation6 + $0x11a0] sm:$0xff]
    %v974 = vld [vmem:[#allocation6 + $0x11a8] sm:$0xf]
    %v975 = vld [vmem:[#allocation6 + $0x11ac] sm:$0xff]
    %v976 = vld [vmem:[#allocation6 + $0x11b4] sm:$0xff]
    %v977 = vld [vmem:[#allocation6 + $0x11bc] sm:$0xff]
    %v978 = vld [vmem:[#allocation6 + $0x11c4] sm:$0xff]
    %v979 = vld [vmem:[#allocation6 + $0x11cc] sm:$0xff]
    %v980 = vld [vmem:[#allocation6 + $0x11d4] sm:$0xff]
    %v981 = vld [vmem:[#allocation6 + $0x11dc] sm:$0xf]
    %v982 = vld [vmem:[#allocation6 + $0x11e0] sm:$0xff]
    %v983 = vld [vmem:[#allocation6 + $0x11e8] sm:$0xff]
    %v984 = vld [vmem:[#allocation6 + $0x11f0] sm:$0xff]
    %v985 = vld [vmem:[#allocation6 + $0x11f8] sm:$0xff]
    %v986 = vld [vmem:[#allocation6 + $0x1200] sm:$0xff]
    %v987 = vld [vmem:[#allocation6 + $0x1208] sm:$0xff]
    %v988 = vld [vmem:[#allocation6 + $0x1210] sm:$0xf]
    %v989 = vld [vmem:[#allocation6 + $0x1214] sm:$0xff]
    %v990 = vld [vmem:[#allocation6 + $0x121c] sm:$0xff]
    %v991 = vld [vmem:[#allocation6 + $0x1224] sm:$0xff]
    %v992 = vld [vmem:[#allocation6 + $0x122c] sm:$0xff]
    %v993 = vld [vmem:[#allocation6 + $0x1234] sm:$0xff]
    %v994 = vld [vmem:[#allocation6 + $0x123c] sm:$0xff]
    %v995 = vld [vmem:[#allocation6 + $0x1244] sm:$0xf]
    %v996 = vld [vmem:[#allocation6 + $0x1248] sm:$0xff]
    %v997 = vld [vmem:[#allocation6 + $0x1250] sm:$0xff]
    %v998 = vld [vmem:[#allocation6 + $0x1258] sm:$0xff]
    %v999 = vld [vmem:[#allocation6 + $0x1260] sm:$0xff]
    %v1000 = vld [vmem:[#allocation6 + $0x1268] sm:$0xff]
    %v1001 = vld [vmem:[#allocation6 + $0x1270] sm:$0xff]
    %v1002 = vld [vmem:[#allocation6 + $0x1278] sm:$0xf]
    %v1003 = vld [vmem:[#allocation6 + $0x127c] sm:$0xff]
    %v1004 = vld [vmem:[#allocation6 + $0x1284] sm:$0xff]
    %v1005 = vld [vmem:[#allocation6 + $0x128c] sm:$0xff]
    %v1006 = vld [vmem:[#allocation6 + $0x1294] sm:$0xff]
    %v1007 = vld [vmem:[#allocation6 + $0x129c] sm:$0xff]
    %v1008 = vld [vmem:[#allocation6 + $0x12a4] sm:$0xff]
    %v1009 = vld [vmem:[#allocation6 + $0x12ac] sm:$0xf]
    %v1010 = vld [vmem:[#allocation6 + $0x12b0] sm:$0xff]
    %v1011 = vld [vmem:[#allocation6 + $0x12b8] sm:$0xff]
    %v1012 = vld [vmem:[#allocation6 + $0x12c0] sm:$0xff]
    %v1013 = vld [vmem:[#allocation6 + $0x12c8] sm:$0xff]
    %v1014 = vld [vmem:[#allocation6 + $0x12d0] sm:$0xff]
    %v1015 = vld [vmem:[#allocation6 + $0x12d8] sm:$0xff]
    %v1016 = vld [vmem:[#allocation6 + $0x12e0] sm:$0xf]
    %v1017 = vld [vmem:[#allocation6 + $0x12e4] sm:$0xff]
    %v1018 = vld [vmem:[#allocation6 + $0x12ec] sm:$0xff]
    %v1019 = vld [vmem:[#allocation6 + $0x12f4] sm:$0xff]
    %v1020 = vld [vmem:[#allocation6 + $0x12fc] sm:$0xff]
    %v1021 = vld [vmem:[#allocation6 + $0x1304] sm:$0xff]
    %v1022 = vld [vmem:[#allocation6 + $0x130c] sm:$0xff]
    %v1023 = vld [vmem:[#allocation6 + $0x1314] sm:$0xf]
    %v1024 = vld [vmem:[#allocation6 + $0x1318] sm:$0xff]
    %v1025 = vld [vmem:[#allocation6 + $0x1320] sm:$0xff]
    %v1026 = vld [vmem:[#allocation6 + $0x1328] sm:$0xff]
    %v1027 = vld [vmem:[#allocation6 + $0x1330] sm:$0xff]
    %v1028 = vld [vmem:[#allocation6 + $0x1338] sm:$0xff]
    %v1029 = vld [vmem:[#allocation6 + $0x1340] sm:$0xff]
    %v1030 = vld [vmem:[#allocation6 + $0x1348] sm:$0xf]
    %v1031 = vld [vmem:[#allocation6 + $0x134c] sm:$0xff]
    %v1032 = vld [vmem:[#allocation6 + $0x1354] sm:$0xff]
    %v1033 = vld [vmem:[#allocation6 + $0x135c] sm:$0xff]
    %v1034 = vld [vmem:[#allocation6 + $0x1364] sm:$0xff]
    %v1035 = vld [vmem:[#allocation6 + $0x136c] sm:$0xff]
    %v1036 = vld [vmem:[#allocation6 + $0x1374] sm:$0xff]
    %v1037 = vld [vmem:[#allocation6 + $0x137c] sm:$0xf]
    %v1038 = vld [vmem:[#allocation6 + $0x1380] sm:$0xff]
    %v1039 = vld [vmem:[#allocation6 + $0x1388] sm:$0xff]
    %v1040 = vld [vmem:[#allocation6 + $0x1390] sm:$0xff]
    %v1041 = vld [vmem:[#allocation6 + $0x1398] sm:$0xff]
    %v1042 = vld [vmem:[#allocation6 + $0x13a0] sm:$0xff]
    %v1043 = vld [vmem:[#allocation6 + $0x13a8] sm:$0xff]
    %v1044 = vld [vmem:[#allocation6 + $0x13b0] sm:$0xf]
    %v1045 = vld [vmem:[#allocation6 + $0x13b4] sm:$0xff]
    %v1046 = vld [vmem:[#allocation6 + $0x13bc] sm:$0xff]
    %v1047 = vld [vmem:[#allocation6 + $0x13c4] sm:$0xff]
    %v1048 = vld [vmem:[#allocation6 + $0x13cc] sm:$0xff]
    %v1049 = vld [vmem:[#allocation6 + $0x13d4] sm:$0xff]
    %v1050 = vld [vmem:[#allocation6 + $0x13dc] sm:$0xff]
    %v1051 = vld [vmem:[#allocation6 + $0x13e4] sm:$0xf]
    %v1052 = vld [vmem:[#allocation6 + $0x13e8] sm:$0xff]
    %v1053 = vld [vmem:[#allocation6 + $0x13f0] sm:$0xff]
    %v1054 = vld [vmem:[#allocation6 + $0x13f8] sm:$0xff]
    %v1055 = vld [vmem:[#allocation6 + $0x1400] sm:$0xff]
    %v1056 = vld [vmem:[#allocation6 + $0x1408] sm:$0xff]
    %v1057 = vld [vmem:[#allocation6 + $0x1410] sm:$0xff]
    %v1058 = vld [vmem:[#allocation6 + $0x1418] sm:$0xf]
    %v1059 = vld [vmem:[#allocation6 + $0x141c] sm:$0xff]
    %v1060 = vld [vmem:[#allocation6 + $0x1424] sm:$0xff]
    %v1061 = vld [vmem:[#allocation6 + $0x142c] sm:$0xff]
    %v1062 = vld [vmem:[#allocation6 + $0x1434] sm:$0xff]
    %v1063 = vld [vmem:[#allocation6 + $0x143c] sm:$0xff]
    %v1064 = vld [vmem:[#allocation6 + $0x1444] sm:$0xff]
    %v1065 = vld [vmem:[#allocation6 + $0x144c] sm:$0xf]
    %v1066 = vld [vmem:[#allocation6 + $0x1450] sm:$0xff]
    %v1067 = vld [vmem:[#allocation6 + $0x1458] sm:$0xff]
    %v1068 = vld [vmem:[#allocation6 + $0x1460] sm:$0xff]
    %v1069 = vld [vmem:[#allocation6 + $0x1468] sm:$0xff]
    %v1070 = vld [vmem:[#allocation6 + $0x1470] sm:$0xff]
    %v1071 = vld [vmem:[#allocation6 + $0x1478] sm:$0xff]
    %v1072 = vld [vmem:[#allocation6 + $0x1480] sm:$0xf]
    %v1073 = vld [vmem:[#allocation6 + $0x1484] sm:$0xff]
    %v1074 = vld [vmem:[#allocation6 + $0x148c] sm:$0xff]
    %v1075 = vld [vmem:[#allocation6 + $0x1494] sm:$0xff]
    %v1076 = vld [vmem:[#allocation6 + $0x149c] sm:$0xff]
    %v1077 = vld [vmem:[#allocation6 + $0x14a4] sm:$0xff]
    %v1078 = vld [vmem:[#allocation6 + $0x14ac] sm:$0xff]
    %v1079 = vld [vmem:[#allocation6 + $0x14b4] sm:$0xf]
    %v1080 = vld [vmem:[#allocation6 + $0x14b8] sm:$0xff]
    %v1081 = vld [vmem:[#allocation6 + $0x14c0] sm:$0xff]
    %v1082 = vld [vmem:[#allocation6 + $0x14c8] sm:$0xff]
    %v1083 = vld [vmem:[#allocation6 + $0x14d0] sm:$0xff]
    %v1084 = vld [vmem:[#allocation6 + $0x14d8] sm:$0xff]
    %v1085 = vld [vmem:[#allocation6 + $0x14e0] sm:$0xff]
    %v1086 = vld [vmem:[#allocation6 + $0x14e8] sm:$0xf]
    %v1087 = vld [vmem:[#allocation6 + $0x14ec] sm:$0xff]
    %v1088 = vld [vmem:[#allocation6 + $0x14f4] sm:$0xff]
    %v1089 = vld [vmem:[#allocation6 + $0x14fc] sm:$0xff]
    %v1090 = vld [vmem:[#allocation6 + $0x1504] sm:$0xff]
    %v1091 = vld [vmem:[#allocation6 + $0x150c] sm:$0xff]
    %v1092 = vld [vmem:[#allocation6 + $0x1514] sm:$0xff]
    %v1093 = vld [vmem:[#allocation6 + $0x151c] sm:$0xf]
    %v1094 = vld [vmem:[#allocation6 + $0x1520] sm:$0xff]
    %v1095 = vld [vmem:[#allocation6 + $0x1528] sm:$0xff]
    %v1096 = vld [vmem:[#allocation6 + $0x1530] sm:$0xff]
    %v1097 = vld [vmem:[#allocation6 + $0x1538] sm:$0xff]
    %v1098 = vld [vmem:[#allocation6 + $0x1540] sm:$0xff]
    %v1099 = vld [vmem:[#allocation6 + $0x1548] sm:$0xff]
    %v1100 = vld [vmem:[#allocation6 + $0x1550] sm:$0xf]
    %v1101 = vld [vmem:[#allocation6 + $0x1554] sm:$0xff]
    %v1102 = vld [vmem:[#allocation6 + $0x155c] sm:$0xff]
    %v1103 = vld [vmem:[#allocation6 + $0x1564] sm:$0xff]
    %v1104 = vld [vmem:[#allocation6 + $0x156c] sm:$0xff]
    %v1105 = vld [vmem:[#allocation6 + $0x1574] sm:$0xff]
    %v1106 = vld [vmem:[#allocation6 + $0x157c] sm:$0xff]
    %v1107 = vld [vmem:[#allocation6 + $0x1584] sm:$0xf]
    %v1108 = vld [vmem:[#allocation6 + $0x1588] sm:$0xff]
    %v1109 = vld [vmem:[#allocation6 + $0x1590] sm:$0xff]
    %v1110 = vld [vmem:[#allocation6 + $0x1598] sm:$0xff]
    %v1111 = vld [vmem:[#allocation6 + $0x15a0] sm:$0xff]
    %v1112 = vld [vmem:[#allocation6 + $0x15a8] sm:$0xff]
    %v1113 = vld [vmem:[#allocation6 + $0x15b0] sm:$0xff]
    %v1114 = vld [vmem:[#allocation6 + $0x15b8] sm:$0xf]
    %v1115 = vld [vmem:[#allocation6 + $0x15bc] sm:$0xff]
    %v1116 = vld [vmem:[#allocation6 + $0x15c4] sm:$0xff]
    %v1117 = vld [vmem:[#allocation6 + $0x15cc] sm:$0xff]
    %v1118 = vld [vmem:[#allocation6 + $0x15d4] sm:$0xff]
    %v1119 = vld [vmem:[#allocation6 + $0x15dc] sm:$0xff]
    %v1120 = vld [vmem:[#allocation6 + $0x15e4] sm:$0xff]
    %v1121 = vld [vmem:[#allocation6 + $0x15ec] sm:$0xf]
    %v1122 = vld [vmem:[#allocation6 + $0x15f0] sm:$0xff]
    %v1123 = vld [vmem:[#allocation6 + $0x15f8] sm:$0xff]
    %v1124 = vld [vmem:[#allocation6 + $0x1600] sm:$0xff]
    %v1125 = vld [vmem:[#allocation6 + $0x1608] sm:$0xff]
    %v1126 = vld [vmem:[#allocation6 + $0x1610] sm:$0xff]
    %v1127 = vld [vmem:[#allocation6 + $0x1618] sm:$0xff]
    %v1128 = vld [vmem:[#allocation6 + $0x1620] sm:$0xf]
    %v1129 = vld [vmem:[#allocation6 + $0x1624] sm:$0xff]
    %v1130 = vld [vmem:[#allocation6 + $0x162c] sm:$0xff]
    %v1131 = vld [vmem:[#allocation6 + $0x1634] sm:$0xff]
    %v1132 = vld [vmem:[#allocation6 + $0x163c] sm:$0xff]
    %v1133 = vld [vmem:[#allocation6 + $0x1644] sm:$0xff]
    %v1134 = vld [vmem:[#allocation6 + $0x164c] sm:$0xff]
    %v1135 = vld [vmem:[#allocation6 + $0x1654] sm:$0xf]
    %v1136 = vld [vmem:[#allocation6 + $0x1658] sm:$0xff]
    %v1137 = vld [vmem:[#allocation6 + $0x1660] sm:$0xff]
    %v1138 = vld [vmem:[#allocation6 + $0x1668] sm:$0xff]
    %v1139 = vld [vmem:[#allocation6 + $0x1670] sm:$0xff]
    %v1140 = vld [vmem:[#allocation6 + $0x1678] sm:$0xff]
    %v1141 = vld [vmem:[#allocation6 + $0x1680] sm:$0xff]
    %v1142 = vld [vmem:[#allocation6 + $0x1688] sm:$0xf]
    %v1143 = vld [vmem:[#allocation6 + $0x168c] sm:$0xff]
    %v1144 = vld [vmem:[#allocation6 + $0x1694] sm:$0xff]
    %v1145 = vld [vmem:[#allocation6 + $0x169c] sm:$0xff]
    %v1146 = vld [vmem:[#allocation6 + $0x16a4] sm:$0xff]
    %v1147 = vld [vmem:[#allocation6 + $0x16ac] sm:$0xff]
    %v1148 = vld [vmem:[#allocation6 + $0x16b4] sm:$0xff]
    %v1149 = vld [vmem:[#allocation6 + $0x16bc] sm:$0xf]
    %v1150 = vld [vmem:[#allocation7] sm:$0xff]
    %v1151 = vld [vmem:[#allocation7 + $0x8] sm:$0x1f]
    %v1154 = vlaneseq
    %v1155 = vshrl.u32 %v1154, 7
    %v1156 = vsub.s32 0, %v1155
    %v1157 = vrot.slane %v1150, %v1156
    %v1158 = vlaneseq
    %v1159 = vshrl.u32 %v1158, 7
    %v1160 = vsub.s32 1, %v1159
    %v1161 = vrot.slane %v1150, %v1160
    %v1162 = vlaneseq
    %v1163 = vshrl.u32 %v1162, 7
    %v1164 = vsub.s32 2, %v1163
    %v1165 = vrot.slane %v1150, %v1164
    %v1166 = vlaneseq
    %v1167 = vshrl.u32 %v1166, 7
    %v1168 = vsub.s32 3, %v1167
    %v1169 = vrot.slane %v1150, %v1168
    %v1170 = vlaneseq
    %v1171 = vshrl.u32 %v1170, 7
    %v1172 = vsub.s32 4, %v1171
    %v1173 = vrot.slane %v1150, %v1172
    %v1174 = vlaneseq
    %v1175 = vshrl.u32 %v1174, 7
    %v1176 = vsub.s32 5, %v1175
    %v1177 = vrot.slane %v1150, %v1176
    %v1178 = vlaneseq
    %v1179 = vshrl.u32 %v1178, 7
    %v1180 = vsub.s32 6, %v1179
    %v1181 = vrot.slane %v1150, %v1180
    %v1182 = vlaneseq
    %v1183 = vshrl.u32 %v1182, 7
    %v1184 = vsub.s32 7, %v1183
    %v1185 = vrot.slane %v1150, %v1184
    %v1186 = vlaneseq
    %v1187 = vshrl.u32 %v1186, 7
    %v1188 = vsub.s32 0, %v1187
    %v1189 = vrot.slane %v1151, %v1188
    %v1190 = vlaneseq
    %v1191 = vshrl.u32 %v1190, 7
    %v1192 = vsub.s32 1, %v1191
    %v1193 = vrot.slane %v1151, %v1192
    %v1194 = vlaneseq
    %v1195 = vshrl.u32 %v1194, 7
    %v1196 = vsub.s32 2, %v1195
    %v1197 = vrot.slane %v1151, %v1196
    %v1198 = vlaneseq
    %v1199 = vshrl.u32 %v1198, 7
    %v1200 = vsub.s32 3, %v1199
    %v1201 = vrot.slane %v1151, %v1200
    %v1202 = vlaneseq
    %v1203 = vshrl.u32 %v1202, 7
    %v1204 = vsub.s32 4, %v1203
    %v1205 = vrot.slane %v1151, %v1204
    %v2003 = vunpack.c.l.b16 %v366
    %v2004 = vunpack.c.h.b16 %v366
    %v2005 = vunpack.c.l.b16 %v367
    %v2006 = vunpack.c.h.b16 %v367
    %v2007 = vunpack.c.l.b16 %v368
    %v2008 = vunpack.c.h.b16 %v368
    %v2009 = vunpack.c.l.b16 %v369
    %v2010 = vunpack.c.h.b16 %v369
    %v2011 = vunpack.c.l.b16 %v370
    %v2012 = vunpack.c.h.b16 %v370
    %v2013 = vunpack.c.l.b16 %v371
    %v2014 = vunpack.c.h.b16 %v371
    %v2015 = vunpack.c.l.b16 %v372
    %v2016 = vunpack.c.l.b16 %v373
    %v2017 = vunpack.c.h.b16 %v373
    %v2018 = vunpack.c.l.b16 %v374
    %v2019 = vunpack.c.h.b16 %v374
    %v2020 = vunpack.c.l.b16 %v375
    %v2021 = vunpack.c.h.b16 %v375
    %v2022 = vunpack.c.l.b16 %v376
    %v2023 = vunpack.c.h.b16 %v376
    %v2024 = vunpack.c.l.b16 %v377
    %v2025 = vunpack.c.h.b16 %v377
    %v2026 = vunpack.c.l.b16 %v378
    %v2027 = vunpack.c.h.b16 %v378
    %v2028 = vunpack.c.l.b16 %v379
    %v2029 = vunpack.c.l.b16 %v380
    %v2030 = vunpack.c.h.b16 %v380
    %v2031 = vunpack.c.l.b16 %v381
    %v2032 = vunpack.c.h.b16 %v381
    %v2033 = vunpack.c.l.b16 %v382
    %v2034 = vunpack.c.h.b16 %v382
    %v2035 = vunpack.c.l.b16 %v383
    %v2036 = vunpack.c.h.b16 %v383
    %v2037 = vunpack.c.l.b16 %v384
    %v2038 = vunpack.c.h.b16 %v384
    %v2039 = vunpack.c.l.b16 %v385
    %v2040 = vunpack.c.h.b16 %v385
    %v2041 = vunpack.c.l.b16 %v386
    %v2042 = vunpack.c.l.b16 %v387
    %v2043 = vunpack.c.h.b16 %v387
    %v2044 = vunpack.c.l.b16 %v388
    %v2045 = vunpack.c.h.b16 %v388
    %v2046 = vunpack.c.l.b16 %v389
    %v2047 = vunpack.c.h.b16 %v389
    %v2048 = vunpack.c.l.b16 %v390
    %v2049 = vunpack.c.h.b16 %v390
    %v2050 = vunpack.c.l.b16 %v391
    %v2051 = vunpack.c.h.b16 %v391
    %v2052 = vunpack.c.l.b16 %v392
    %v2053 = vunpack.c.h.b16 %v392
    %v2054 = vunpack.c.l.b16 %v393
    %v2055 = vunpack.c.l.b16 %v394
    %v2056 = vunpack.c.h.b16 %v394
    %v2057 = vunpack.c.l.b16 %v395
    %v2058 = vunpack.c.h.b16 %v395
    %v2059 = vunpack.c.l.b16 %v396
    %v2060 = vunpack.c.h.b16 %v396
    %v2061 = vunpack.c.l.b16 %v397
    %v2062 = vunpack.c.h.b16 %v397
    %v2063 = vunpack.c.l.b16 %v398
    %v2064 = vunpack.c.h.b16 %v398
    %v2065 = vunpack.c.l.b16 %v399
    %v2066 = vunpack.c.h.b16 %v399
    %v2067 = vunpack.c.l.b16 %v400
    %v2068 = vunpack.c.l.b16 %v401
    %v2069 = vunpack.c.h.b16 %v401
    %v2070 = vunpack.c.l.b16 %v402
    %v2071 = vunpack.c.h.b16 %v402
    %v2072 = vunpack.c.l.b16 %v403
    %v2073 = vunpack.c.h.b16 %v403
    %v2074 = vunpack.c.l.b16 %v404
    %v2075 = vunpack.c.h.b16 %v404
    %v2076 = vunpack.c.l.b16 %v405
    %v2077 = vunpack.c.h.b16 %v405
    %v2078 = vunpack.c.l.b16 %v406
    %v2079 = vunpack.c.h.b16 %v406
    %v2080 = vunpack.c.l.b16 %v407
    %v2081 = vunpack.c.l.b16 %v408
    %v2082 = vunpack.c.h.b16 %v408
    %v2083 = vunpack.c.l.b16 %v409
    %v2084 = vunpack.c.h.b16 %v409
    %v2085 = vunpack.c.l.b16 %v410
    %v2086 = vunpack.c.h.b16 %v410
    %v2087 = vunpack.c.l.b16 %v411
    %v2088 = vunpack.c.h.b16 %v411
    %v2089 = vunpack.c.l.b16 %v412
    %v2090 = vunpack.c.h.b16 %v412
    %v2091 = vunpack.c.l.b16 %v413
    %v2092 = vunpack.c.h.b16 %v413
    %v2093 = vunpack.c.l.b16 %v414
    %v2094 = vunpack.c.l.b16 %v415
    %v2095 = vunpack.c.h.b16 %v415
    %v2096 = vunpack.c.l.b16 %v416
    %v2097 = vunpack.c.h.b16 %v416
    %v2098 = vunpack.c.l.b16 %v417
    %v2099 = vunpack.c.h.b16 %v417
    %v2100 = vunpack.c.l.b16 %v418
    %v2101 = vunpack.c.h.b16 %v418
    %v2102 = vunpack.c.l.b16 %v419
    %v2103 = vunpack.c.h.b16 %v419
    %v2104 = vunpack.c.l.b16 %v420
    %v2105 = vunpack.c.h.b16 %v420
    %v2106 = vunpack.c.l.b16 %v421
    %v2107 = vunpack.c.l.b16 %v422
    %v2108 = vunpack.c.h.b16 %v422
    %v2109 = vunpack.c.l.b16 %v423
    %v2110 = vunpack.c.h.b16 %v423
    %v2111 = vunpack.c.l.b16 %v424
    %v2112 = vunpack.c.h.b16 %v424
    %v2113 = vunpack.c.l.b16 %v425
    %v2114 = vunpack.c.h.b16 %v425
    %v2115 = vunpack.c.l.b16 %v426
    %v2116 = vunpack.c.h.b16 %v426
    %v2117 = vunpack.c.l.b16 %v427
    %v2118 = vunpack.c.h.b16 %v427
    %v2119 = vunpack.c.l.b16 %v428
    %v2120 = vunpack.c.l.b16 %v429
    %v2121 = vunpack.c.h.b16 %v429
    %v2122 = vunpack.c.l.b16 %v430
    %v2123 = vunpack.c.h.b16 %v430
    %v2124 = vunpack.c.l.b16 %v431
    %v2125 = vunpack.c.h.b16 %v431
    %v2126 = vunpack.c.l.b16 %v432
    %v2127 = vunpack.c.h.b16 %v432
    %v2128 = vunpack.c.l.b16 %v433
    %v2129 = vunpack.c.h.b16 %v433
    %v2130 = vunpack.c.l.b16 %v434
    %v2131 = vunpack.c.h.b16 %v434
    %v2132 = vunpack.c.l.b16 %v435
    %v2133 = vunpack.c.l.b16 %v436
    %v2134 = vunpack.c.h.b16 %v436
    %v2135 = vunpack.c.l.b16 %v437
    %v2136 = vunpack.c.h.b16 %v437
    %v2137 = vunpack.c.l.b16 %v438
    %v2138 = vunpack.c.h.b16 %v438
    %v2139 = vunpack.c.l.b16 %v439
    %v2140 = vunpack.c.h.b16 %v439
    %v2141 = vunpack.c.l.b16 %v440
    %v2142 = vunpack.c.h.b16 %v440
    %v2143 = vunpack.c.l.b16 %v441
    %v2144 = vunpack.c.h.b16 %v441
    %v2145 = vunpack.c.l.b16 %v442
    %v2146 = vunpack.c.l.b16 %v443
    %v2147 = vunpack.c.h.b16 %v443
    %v2148 = vunpack.c.l.b16 %v444
    %v2149 = vunpack.c.h.b16 %v444
    %v2150 = vunpack.c.l.b16 %v445
    %v2151 = vunpack.c.h.b16 %v445
    %v2152 = vunpack.c.l.b16 %v446
    %v2153 = vunpack.c.h.b16 %v446
    %v2154 = vunpack.c.l.b16 %v447
    %v2155 = vunpack.c.h.b16 %v447
    %v2156 = vunpack.c.l.b16 %v448
    %v2157 = vunpack.c.h.b16 %v448
    %v2158 = vunpack.c.l.b16 %v449
    %v2159 = vunpack.c.l.b16 %v450
    %v2160 = vunpack.c.h.b16 %v450
    %v2161 = vunpack.c.l.b16 %v451
    %v2162 = vunpack.c.h.b16 %v451
    %v2163 = vunpack.c.l.b16 %v452
    %v2164 = vunpack.c.h.b16 %v452
    %v2165 = vunpack.c.l.b16 %v453
    %v2166 = vunpack.c.h.b16 %v453
    %v2167 = vunpack.c.l.b16 %v454
    %v2168 = vunpack.c.h.b16 %v454
    %v2169 = vunpack.c.l.b16 %v455
    %v2170 = vunpack.c.h.b16 %v455
    %v2171 = vunpack.c.l.b16 %v456
    %v2172 = vunpack.c.l.b16 %v457
    %v2173 = vunpack.c.h.b16 %v457
    %v2174 = vunpack.c.l.b16 %v458
    %v2175 = vunpack.c.h.b16 %v458
    %v2176 = vunpack.c.l.b16 %v459
    %v2177 = vunpack.c.h.b16 %v459
    %v2178 = vunpack.c.l.b16 %v460
    %v2179 = vunpack.c.h.b16 %v460
    %v2180 = vunpack.c.l.b16 %v461
    %v2181 = vunpack.c.h.b16 %v461
    %v2182 = vunpack.c.l.b16 %v462
    %v2183 = vunpack.c.h.b16 %v462
    %v2184 = vunpack.c.l.b16 %v463
    %v2185 = vunpack.c.l.b16 %v464
    %v2186 = vunpack.c.h.b16 %v464
    %v2187 = vunpack.c.l.b16 %v465
    %v2188 = vunpack.c.h.b16 %v465
    %v2189 = vunpack.c.l.b16 %v466
    %v2190 = vunpack.c.h.b16 %v466
    %v2191 = vunpack.c.l.b16 %v467
    %v2192 = vunpack.c.h.b16 %v467
    %v2193 = vunpack.c.l.b16 %v468
    %v2194 = vunpack.c.h.b16 %v468
    %v2195 = vunpack.c.l.b16 %v469
    %v2196 = vunpack.c.h.b16 %v469
    %v2197 = vunpack.c.l.b16 %v470
    %v2198 = vunpack.c.l.b16 %v471
    %v2199 = vunpack.c.h.b16 %v471
    %v2200 = vunpack.c.l.b16 %v472
    %v2201 = vunpack.c.h.b16 %v472
    %v2202 = vunpack.c.l.b16 %v473
    %v2203 = vunpack.c.h.b16 %v473
    %v2204 = vunpack.c.l.b16 %v474
    %v2205 = vunpack.c.h.b16 %v474
    %v2206 = vunpack.c.l.b16 %v475
    %v2207 = vunpack.c.h.b16 %v475
    %v2208 = vunpack.c.l.b16 %v476
    %v2209 = vunpack.c.h.b16 %v476
    %v2210 = vunpack.c.l.b16 %v477
    %v2211 = vunpack.c.l.b16 %v478
    %v2212 = vunpack.c.h.b16 %v478
    %v2213 = vunpack.c.l.b16 %v479
    %v2214 = vunpack.c.h.b16 %v479
    %v2215 = vunpack.c.l.b16 %v480
    %v2216 = vunpack.c.h.b16 %v480
    %v2217 = vunpack.c.l.b16 %v481
    %v2218 = vunpack.c.h.b16 %v481
    %v2219 = vunpack.c.l.b16 %v482
    %v2220 = vunpack.c.h.b16 %v482
    %v2221 = vunpack.c.l.b16 %v483
    %v2222 = vunpack.c.h.b16 %v483
    %v2223 = vunpack.c.l.b16 %v484
    %v2224 = vunpack.c.l.b16 %v485
    %v2225 = vunpack.c.h.b16 %v485
    %v2226 = vunpack.c.l.b16 %v486
    %v2227 = vunpack.c.h.b16 %v486
    %v2228 = vunpack.c.l.b16 %v487
    %v2229 = vunpack.c.h.b16 %v487
    %v2230 = vunpack.c.l.b16 %v488
    %v2231 = vunpack.c.h.b16 %v488
    %v2232 = vunpack.c.l.b16 %v489
    %v2233 = vunpack.c.h.b16 %v489
    %v2234 = vunpack.c.l.b16 %v490
    %v2235 = vunpack.c.h.b16 %v490
    %v2236 = vunpack.c.l.b16 %v491
    %v2237 = vunpack.c.l.b16 %v492
    %v2238 = vunpack.c.h.b16 %v492
    %v2239 = vunpack.c.l.b16 %v493
    %v2240 = vunpack.c.h.b16 %v493
    %v2241 = vunpack.c.l.b16 %v494
    %v2242 = vunpack.c.h.b16 %v494
    %v2243 = vunpack.c.l.b16 %v495
    %v2244 = vunpack.c.h.b16 %v495
    %v2245 = vunpack.c.l.b16 %v496
    %v2246 = vunpack.c.h.b16 %v496
    %v2247 = vunpack.c.l.b16 %v497
    %v2248 = vunpack.c.h.b16 %v497
    %v2249 = vunpack.c.l.b16 %v498
    %v2250 = vunpack.c.l.b16 %v499
    %v2251 = vunpack.c.h.b16 %v499
    %v2252 = vunpack.c.l.b16 %v500
    %v2253 = vunpack.c.h.b16 %v500
    %v2254 = vunpack.c.l.b16 %v501
    %v2255 = vunpack.c.h.b16 %v501
    %v2256 = vunpack.c.l.b16 %v502
    %v2257 = vunpack.c.h.b16 %v502
    %v2258 = vunpack.c.l.b16 %v503
    %v2259 = vunpack.c.h.b16 %v503
    %v2260 = vunpack.c.l.b16 %v504
    %v2261 = vunpack.c.h.b16 %v504
    %v2262 = vunpack.c.l.b16 %v505
    %v2263 = vunpack.c.l.b16 %v506
    %v2264 = vunpack.c.h.b16 %v506
    %v2265 = vunpack.c.l.b16 %v507
    %v2266 = vunpack.c.h.b16 %v507
    %v2267 = vunpack.c.l.b16 %v508
    %v2268 = vunpack.c.h.b16 %v508
    %v2269 = vunpack.c.l.b16 %v509
    %v2270 = vunpack.c.h.b16 %v509
    %v2271 = vunpack.c.l.b16 %v510
    %v2272 = vunpack.c.h.b16 %v510
    %v2273 = vunpack.c.l.b16 %v511
    %v2274 = vunpack.c.h.b16 %v511
    %v2275 = vunpack.c.l.b16 %v512
    %v2276 = vunpack.c.l.b16 %v513
    %v2277 = vunpack.c.h.b16 %v513
    %v2278 = vunpack.c.l.b16 %v514
    %v2279 = vunpack.c.h.b16 %v514
    %v2280 = vunpack.c.l.b16 %v515
    %v2281 = vunpack.c.h.b16 %v515
    %v2282 = vunpack.c.l.b16 %v516
    %v2283 = vunpack.c.h.b16 %v516
    %v2284 = vunpack.c.l.b16 %v517
    %v2285 = vunpack.c.h.b16 %v517
    %v2286 = vunpack.c.l.b16 %v518
    %v2287 = vunpack.c.h.b16 %v518
    %v2288 = vunpack.c.l.b16 %v519
    %v2289 = vunpack.c.l.b16 %v520
    %v2290 = vunpack.c.h.b16 %v520
    %v2291 = vunpack.c.l.b16 %v521
    %v2292 = vunpack.c.h.b16 %v521
    %v2293 = vunpack.c.l.b16 %v522
    %v2294 = vunpack.c.h.b16 %v522
    %v2295 = vunpack.c.l.b16 %v523
    %v2296 = vunpack.c.h.b16 %v523
    %v2297 = vunpack.c.l.b16 %v524
    %v2298 = vunpack.c.h.b16 %v524
    %v2299 = vunpack.c.l.b16 %v525
    %v2300 = vunpack.c.h.b16 %v525
    %v2301 = vunpack.c.l.b16 %v526
    %v2302 = vunpack.c.l.b16 %v527
    %v2303 = vunpack.c.h.b16 %v527
    %v2304 = vunpack.c.l.b16 %v528
    %v2305 = vunpack.c.h.b16 %v528
    %v2306 = vunpack.c.l.b16 %v529
    %v2307 = vunpack.c.h.b16 %v529
    %v2308 = vunpack.c.l.b16 %v530
    %v2309 = vunpack.c.h.b16 %v530
    %v2310 = vunpack.c.l.b16 %v531
    %v2311 = vunpack.c.h.b16 %v531
    %v2312 = vunpack.c.l.b16 %v532
    %v2313 = vunpack.c.h.b16 %v532
    %v2314 = vunpack.c.l.b16 %v533
    %v2315 = vunpack.c.l.b16 %v534
    %v2316 = vunpack.c.h.b16 %v534
    %v2317 = vunpack.c.l.b16 %v535
    %v2318 = vunpack.c.h.b16 %v535
    %v2319 = vunpack.c.l.b16 %v536
    %v2320 = vunpack.c.h.b16 %v536
    %v2321 = vunpack.c.l.b16 %v537
    %v2322 = vunpack.c.h.b16 %v537
    %v2323 = vunpack.c.l.b16 %v538
    %v2324 = vunpack.c.h.b16 %v538
    %v2325 = vunpack.c.l.b16 %v539
    %v2326 = vunpack.c.h.b16 %v539
    %v2327 = vunpack.c.l.b16 %v540
    %v2328 = vunpack.c.l.b16 %v541
    %v2329 = vunpack.c.h.b16 %v541
    %v2330 = vunpack.c.l.b16 %v542
    %v2331 = vunpack.c.h.b16 %v542
    %v2332 = vunpack.c.l.b16 %v543
    %v2333 = vunpack.c.h.b16 %v543
    %v2334 = vunpack.c.l.b16 %v544
    %v2335 = vunpack.c.h.b16 %v544
    %v2336 = vunpack.c.l.b16 %v545
    %v2337 = vunpack.c.h.b16 %v545
    %v2338 = vunpack.c.l.b16 %v546
    %v2339 = vunpack.c.h.b16 %v546
    %v2340 = vunpack.c.l.b16 %v547
    %v2341 = vunpack.c.l.b16 %v548
    %v2342 = vunpack.c.h.b16 %v548
    %v2343 = vunpack.c.l.b16 %v549
    %v2344 = vunpack.c.h.b16 %v549
    %v2345 = vunpack.c.l.b16 %v550
    %v2346 = vunpack.c.h.b16 %v550
    %v2347 = vunpack.c.l.b16 %v551
    %v2348 = vunpack.c.h.b16 %v551
    %v2349 = vunpack.c.l.b16 %v552
    %v2350 = vunpack.c.h.b16 %v552
    %v2351 = vunpack.c.l.b16 %v553
    %v2352 = vunpack.c.h.b16 %v553
    %v2353 = vunpack.c.l.b16 %v554
    %v2354 = vunpack.c.l.b16 %v555
    %v2355 = vunpack.c.h.b16 %v555
    %v2356 = vunpack.c.l.b16 %v556
    %v2357 = vunpack.c.h.b16 %v556
    %v2358 = vunpack.c.l.b16 %v557
    %v2359 = vunpack.c.h.b16 %v557
    %v2360 = vunpack.c.l.b16 %v558
    %v2361 = vunpack.c.h.b16 %v558
    %v2362 = vunpack.c.l.b16 %v559
    %v2363 = vunpack.c.h.b16 %v559
    %v2364 = vunpack.c.l.b16 %v560
    %v2365 = vunpack.c.h.b16 %v560
    %v2366 = vunpack.c.l.b16 %v561
    %v2367 = vunpack.c.l.b16 %v562
    %v2368 = vunpack.c.h.b16 %v562
    %v2369 = vunpack.c.l.b16 %v563
    %v2370 = vunpack.c.h.b16 %v563
    %v2371 = vunpack.c.l.b16 %v564
    %v2372 = vunpack.c.h.b16 %v564
    %v2373 = vunpack.c.l.b16 %v565
    %v2374 = vunpack.c.h.b16 %v565
    %v2375 = vunpack.c.l.b16 %v566
    %v2376 = vunpack.c.h.b16 %v566
    %v2377 = vunpack.c.l.b16 %v567
    %v2378 = vunpack.c.h.b16 %v567
    %v2379 = vunpack.c.l.b16 %v568
    %v2380 = vunpack.c.l.b16 %v569
    %v2381 = vunpack.c.h.b16 %v569
    %v2382 = vunpack.c.l.b16 %v570
    %v2383 = vunpack.c.h.b16 %v570
    %v2384 = vunpack.c.l.b16 %v571
    %v2385 = vunpack.c.h.b16 %v571
    %v2386 = vunpack.c.l.b16 %v572
    %v2387 = vunpack.c.h.b16 %v572
    %v2388 = vunpack.c.l.b16 %v573
    %v2389 = vunpack.c.h.b16 %v573
    %v2390 = vunpack.c.l.b16 %v574
    %v2391 = vunpack.c.h.b16 %v574
    %v2392 = vunpack.c.l.b16 %v575
    %v2393 = vunpack.c.l.b16 %v576
    %v2394 = vunpack.c.h.b16 %v576
    %v2395 = vunpack.c.l.b16 %v577
    %v2396 = vunpack.c.h.b16 %v577
    %v2397 = vunpack.c.l.b16 %v578
    %v2398 = vunpack.c.h.b16 %v578
    %v2399 = vunpack.c.l.b16 %v579
    %v2400 = vunpack.c.h.b16 %v579
    %v2401 = vunpack.c.l.b16 %v580
    %v2402 = vunpack.c.h.b16 %v580
    %v2403 = vunpack.c.l.b16 %v581
    %v2404 = vunpack.c.h.b16 %v581
    %v2405 = vunpack.c.l.b16 %v582
    %v2406 = vunpack.c.l.b16 %v583
    %v2407 = vunpack.c.h.b16 %v583
    %v2408 = vunpack.c.l.b16 %v584
    %v2409 = vunpack.c.h.b16 %v584
    %v2410 = vunpack.c.l.b16 %v585
    %v2411 = vunpack.c.h.b16 %v585
    %v2412 = vunpack.c.l.b16 %v586
    %v2413 = vunpack.c.h.b16 %v586
    %v2414 = vunpack.c.l.b16 %v587
    %v2415 = vunpack.c.h.b16 %v587
    %v2416 = vunpack.c.l.b16 %v588
    %v2417 = vunpack.c.h.b16 %v588
    %v2418 = vunpack.c.l.b16 %v589
    %v2419 = vunpack.c.l.b16 %v590
    %v2420 = vunpack.c.h.b16 %v590
    %v2421 = vunpack.c.l.b16 %v591
    %v2422 = vunpack.c.h.b16 %v591
    %v2423 = vunpack.c.l.b16 %v592
    %v2424 = vunpack.c.h.b16 %v592
    %v2425 = vunpack.c.l.b16 %v593
    %v2426 = vunpack.c.h.b16 %v593
    %v2427 = vunpack.c.l.b16 %v594
    %v2428 = vunpack.c.h.b16 %v594
    %v2429 = vunpack.c.l.b16 %v595
    %v2430 = vunpack.c.h.b16 %v595
    %v2431 = vunpack.c.l.b16 %v596
    %v2432 = vunpack.c.l.b16 %v597
    %v2433 = vunpack.c.h.b16 %v597
    %v2434 = vunpack.c.l.b16 %v598
    %v2435 = vunpack.c.h.b16 %v598
    %v2436 = vunpack.c.l.b16 %v599
    %v2437 = vunpack.c.h.b16 %v599
    %v2438 = vunpack.c.l.b16 %v600
    %v2439 = vunpack.c.h.b16 %v600
    %v2440 = vunpack.c.l.b16 %v601
    %v2441 = vunpack.c.h.b16 %v601
    %v2442 = vunpack.c.l.b16 %v602
    %v2443 = vunpack.c.h.b16 %v602
    %v2444 = vunpack.c.l.b16 %v603
    %v2445 = vunpack.c.l.b16 %v604
    %v2446 = vunpack.c.h.b16 %v604
    %v2447 = vunpack.c.l.b16 %v605
    %v2448 = vunpack.c.h.b16 %v605
    %v2449 = vunpack.c.l.b16 %v606
    %v2450 = vunpack.c.h.b16 %v606
    %v2451 = vunpack.c.l.b16 %v607
    %v2452 = vunpack.c.h.b16 %v607
    %v2453 = vunpack.c.l.b16 %v608
    %v2454 = vunpack.c.h.b16 %v608
    %v2455 = vunpack.c.l.b16 %v609
    %v2456 = vunpack.c.h.b16 %v609
    %v2457 = vunpack.c.l.b16 %v610
    %v2458 = vunpack.c.l.b16 %v611
    %v2459 = vunpack.c.h.b16 %v611
    %v2460 = vunpack.c.l.b16 %v612
    %v2461 = vunpack.c.h.b16 %v612
    %v2462 = vunpack.c.l.b16 %v613
    %v2463 = vunpack.c.h.b16 %v613
    %v2464 = vunpack.c.l.b16 %v614
    %v2465 = vunpack.c.h.b16 %v614
    %v2466 = vunpack.c.l.b16 %v615
    %v2467 = vunpack.c.h.b16 %v615
    %v2468 = vunpack.c.l.b16 %v616
    %v2469 = vunpack.c.h.b16 %v616
    %v2470 = vunpack.c.l.b16 %v617
    %v2471 = vunpack.c.l.b16 %v618
    %v2472 = vunpack.c.h.b16 %v618
    %v2473 = vunpack.c.l.b16 %v619
    %v2474 = vunpack.c.h.b16 %v619
    %v2475 = vunpack.c.l.b16 %v620
    %v2476 = vunpack.c.h.b16 %v620
    %v2477 = vunpack.c.l.b16 %v621
    %v2478 = vunpack.c.h.b16 %v621
    %v2479 = vunpack.c.l.b16 %v622
    %v2480 = vunpack.c.h.b16 %v622
    %v2481 = vunpack.c.l.b16 %v623
    %v2482 = vunpack.c.h.b16 %v623
    %v2483 = vunpack.c.l.b16 %v624
    %v2484 = vunpack.c.l.b16 %v625
    %v2485 = vunpack.c.h.b16 %v625
    %v2486 = vunpack.c.l.b16 %v626
    %v2487 = vunpack.c.h.b16 %v626
    %v2488 = vunpack.c.l.b16 %v627
    %v2489 = vunpack.c.h.b16 %v627
    %v2490 = vunpack.c.l.b16 %v628
    %v2491 = vunpack.c.h.b16 %v628
    %v2492 = vunpack.c.l.b16 %v629
    %v2493 = vunpack.c.h.b16 %v629
    %v2494 = vunpack.c.l.b16 %v630
    %v2495 = vunpack.c.h.b16 %v630
    %v2496 = vunpack.c.l.b16 %v631
    %v2497 = vunpack.c.l.b16 %v632
    %v2498 = vunpack.c.h.b16 %v632
    %v2499 = vunpack.c.l.b16 %v633
    %v2500 = vunpack.c.h.b16 %v633
    %v2501 = vunpack.c.l.b16 %v634
    %v2502 = vunpack.c.h.b16 %v634
    %v2503 = vunpack.c.l.b16 %v635
    %v2504 = vunpack.c.h.b16 %v635
    %v2505 = vunpack.c.l.b16 %v636
    %v2506 = vunpack.c.h.b16 %v636
    %v2507 = vunpack.c.l.b16 %v637
    %v2508 = vunpack.c.h.b16 %v637
    %v2509 = vunpack.c.l.b16 %v638
    %v2510 = vunpack.c.l.b16 %v639
    %v2511 = vunpack.c.h.b16 %v639
    %v2512 = vunpack.c.l.b16 %v640
    %v2513 = vunpack.c.h.b16 %v640
    %v2514 = vunpack.c.l.b16 %v641
    %v2515 = vunpack.c.h.b16 %v641
    %v2516 = vunpack.c.l.b16 %v642
    %v2517 = vunpack.c.h.b16 %v642
    %v2518 = vunpack.c.l.b16 %v643
    %v2519 = vunpack.c.h.b16 %v643
    %v2520 = vunpack.c.l.b16 %v644
    %v2521 = vunpack.c.h.b16 %v644
    %v2522 = vunpack.c.l.b16 %v645
    %v2523 = vunpack.c.l.b16 %v646
    %v2524 = vunpack.c.h.b16 %v646
    %v2525 = vunpack.c.l.b16 %v647
    %v2526 = vunpack.c.h.b16 %v647
    %v2527 = vunpack.c.l.b16 %v648
    %v2528 = vunpack.c.h.b16 %v648
    %v2529 = vunpack.c.l.b16 %v649
    %v2530 = vunpack.c.h.b16 %v649
    %v2531 = vunpack.c.l.b16 %v650
    %v2532 = vunpack.c.h.b16 %v650
    %v2533 = vunpack.c.l.b16 %v651
    %v2534 = vunpack.c.h.b16 %v651
    %v2535 = vunpack.c.l.b16 %v652
    %v2536 = vunpack.c.l.b16 %v653
    %v2537 = vunpack.c.h.b16 %v653
    %v2538 = vunpack.c.l.b16 %v654
    %v2539 = vunpack.c.h.b16 %v654
    %v2540 = vunpack.c.l.b16 %v655
    %v2541 = vunpack.c.h.b16 %v655
    %v2542 = vunpack.c.l.b16 %v656
    %v2543 = vunpack.c.h.b16 %v656
    %v2544 = vunpack.c.l.b16 %v657
    %v2545 = vunpack.c.h.b16 %v657
    %v2546 = vunpack.c.l.b16 %v658
    %v2547 = vunpack.c.h.b16 %v658
    %v2548 = vunpack.c.l.b16 %v659
    %v2549 = vunpack.c.l.b16 %v660
    %v2550 = vunpack.c.h.b16 %v660
    %v2551 = vunpack.c.l.b16 %v661
    %v2552 = vunpack.c.h.b16 %v661
    %v2553 = vunpack.c.l.b16 %v662
    %v2554 = vunpack.c.h.b16 %v662
    %v2555 = vunpack.c.l.b16 %v663
    %v2556 = vunpack.c.h.b16 %v663
    %v2557 = vunpack.c.l.b16 %v664
    %v2558 = vunpack.c.h.b16 %v664
    %v2559 = vunpack.c.l.b16 %v665
    %v2560 = vunpack.c.h.b16 %v665
    %v2561 = vunpack.c.l.b16 %v666
    %v2562 = vunpack.c.l.b16 %v667
    %v2563 = vunpack.c.h.b16 %v667
    %v2564 = vunpack.c.l.b16 %v668
    %v2565 = vunpack.c.h.b16 %v668
    %v2566 = vunpack.c.l.b16 %v669
    %v2567 = vunpack.c.h.b16 %v669
    %v2568 = vunpack.c.l.b16 %v670
    %v2569 = vunpack.c.h.b16 %v670
    %v2570 = vunpack.c.l.b16 %v671
    %v2571 = vunpack.c.h.b16 %v671
    %v2572 = vunpack.c.l.b16 %v672
    %v2573 = vunpack.c.h.b16 %v672
    %v2574 = vunpack.c.l.b16 %v673
    %v2575 = vunpack.c.l.b16 %v674
    %v2576 = vunpack.c.h.b16 %v674
    %v2577 = vunpack.c.l.b16 %v675
    %v2578 = vunpack.c.h.b16 %v675
    %v2579 = vunpack.c.l.b16 %v676
    %v2580 = vunpack.c.h.b16 %v676
    %v2581 = vunpack.c.l.b16 %v677
    %v2582 = vunpack.c.h.b16 %v677
    %v2583 = vunpack.c.l.b16 %v678
    %v2584 = vunpack.c.h.b16 %v678
    %v2585 = vunpack.c.l.b16 %v679
    %v2586 = vunpack.c.h.b16 %v679
    %v2587 = vunpack.c.l.b16 %v680
    %v2588 = vunpack.c.l.b16 %v681
    %v2589 = vunpack.c.h.b16 %v681
    %v2590 = vunpack.c.l.b16 %v682
    %v2591 = vunpack.c.h.b16 %v682
    %v2592 = vunpack.c.l.b16 %v683
    %v2593 = vunpack.c.h.b16 %v683
    %v2594 = vunpack.c.l.b16 %v684
    %v2595 = vunpack.c.h.b16 %v684
    %v2596 = vunpack.c.l.b16 %v685
    %v2597 = vunpack.c.h.b16 %v685
    %v2598 = vunpack.c.l.b16 %v686
    %v2599 = vunpack.c.h.b16 %v686
    %v2600 = vunpack.c.l.b16 %v687
    %v2601 = vunpack.c.l.b16 %v688
    %v2602 = vunpack.c.h.b16 %v688
    %v2603 = vunpack.c.l.b16 %v689
    %v2604 = vunpack.c.h.b16 %v689
    %v2605 = vunpack.c.l.b16 %v690
    %v2606 = vunpack.c.h.b16 %v690
    %v2607 = vunpack.c.l.b16 %v691
    %v2608 = vunpack.c.h.b16 %v691
    %v2609 = vunpack.c.l.b16 %v692
    %v2610 = vunpack.c.h.b16 %v692
    %v2611 = vunpack.c.l.b16 %v693
    %v2612 = vunpack.c.h.b16 %v693
    %v2613 = vunpack.c.l.b16 %v694
    %v2614 = vunpack.c.l.b16 %v695
    %v2615 = vunpack.c.h.b16 %v695
    %v2616 = vunpack.c.l.b16 %v696
    %v2617 = vunpack.c.h.b16 %v696
    %v2618 = vunpack.c.l.b16 %v697
    %v2619 = vunpack.c.h.b16 %v697
    %v2620 = vunpack.c.l.b16 %v698
    %v2621 = vunpack.c.h.b16 %v698
    %v2622 = vunpack.c.l.b16 %v699
    %v2623 = vunpack.c.h.b16 %v699
    %v2624 = vunpack.c.l.b16 %v700
    %v2625 = vunpack.c.h.b16 %v700
    %v2626 = vunpack.c.l.b16 %v701
    %v2627 = vunpack.c.l.b16 %v702
    %v2628 = vunpack.c.h.b16 %v702
    %v2629 = vunpack.c.l.b16 %v703
    %v2630 = vunpack.c.h.b16 %v703
    %v2631 = vunpack.c.l.b16 %v704
    %v2632 = vunpack.c.h.b16 %v704
    %v2633 = vunpack.c.l.b16 %v705
    %v2634 = vunpack.c.h.b16 %v705
    %v2635 = vunpack.c.l.b16 %v706
    %v2636 = vunpack.c.h.b16 %v706
    %v2637 = vunpack.c.l.b16 %v707
    %v2638 = vunpack.c.h.b16 %v707
    %v2639 = vunpack.c.l.b16 %v708
    %v2640 = vunpack.c.l.b16 %v709
    %v2641 = vunpack.c.h.b16 %v709
    %v2642 = vunpack.c.l.b16 %v710
    %v2643 = vunpack.c.h.b16 %v710
    %v2644 = vunpack.c.l.b16 %v711
    %v2645 = vunpack.c.h.b16 %v711
    %v2646 = vunpack.c.l.b16 %v712
    %v2647 = vunpack.c.h.b16 %v712
    %v2648 = vunpack.c.l.b16 %v713
    %v2649 = vunpack.c.h.b16 %v713
    %v2650 = vunpack.c.l.b16 %v714
    %v2651 = vunpack.c.h.b16 %v714
    %v2652 = vunpack.c.l.b16 %v715
    %v2653 = vunpack.c.l.b16 %v716
    %v2654 = vunpack.c.h.b16 %v716
    %v2655 = vunpack.c.l.b16 %v717
    %v2656 = vunpack.c.h.b16 %v717
    %v2657 = vunpack.c.l.b16 %v718
    %v2658 = vunpack.c.h.b16 %v718
    %v2659 = vunpack.c.l.b16 %v719
    %v2660 = vunpack.c.h.b16 %v719
    %v2661 = vunpack.c.l.b16 %v720
    %v2662 = vunpack.c.h.b16 %v720
    %v2663 = vunpack.c.l.b16 %v721
    %v2664 = vunpack.c.h.b16 %v721
    %v2665 = vunpack.c.l.b16 %v722
    %v2666 = vunpack.c.l.b16 %v723
    %v2667 = vunpack.c.h.b16 %v723
    %v2668 = vunpack.c.l.b16 %v724
    %v2669 = vunpack.c.h.b16 %v724
    %v2670 = vunpack.c.l.b16 %v725
    %v2671 = vunpack.c.h.b16 %v725
    %v2672 = vunpack.c.l.b16 %v726
    %v2673 = vunpack.c.h.b16 %v726
    %v2674 = vunpack.c.l.b16 %v727
    %v2675 = vunpack.c.h.b16 %v727
    %v2676 = vunpack.c.l.b16 %v728
    %v2677 = vunpack.c.h.b16 %v728
    %v2678 = vunpack.c.l.b16 %v729
    %v2679 = vunpack.c.l.b16 %v730
    %v2680 = vunpack.c.h.b16 %v730
    %v2681 = vunpack.c.l.b16 %v731
    %v2682 = vunpack.c.h.b16 %v731
    %v2683 = vunpack.c.l.b16 %v732
    %v2684 = vunpack.c.h.b16 %v732
    %v2685 = vunpack.c.l.b16 %v733
    %v2686 = vunpack.c.h.b16 %v733
    %v2687 = vunpack.c.l.b16 %v734
    %v2688 = vunpack.c.h.b16 %v734
    %v2689 = vunpack.c.l.b16 %v735
    %v2690 = vunpack.c.h.b16 %v735
    %v2691 = vunpack.c.l.b16 %v736
    %v2692 = vunpack.c.l.b16 %v737
    %v2693 = vunpack.c.h.b16 %v737
    %v2694 = vunpack.c.l.b16 %v738
    %v2695 = vunpack.c.h.b16 %v738
    %v2696 = vunpack.c.l.b16 %v739
    %v2697 = vunpack.c.h.b16 %v739
    %v2698 = vunpack.c.l.b16 %v740
    %v2699 = vunpack.c.h.b16 %v740
    %v2700 = vunpack.c.l.b16 %v741
    %v2701 = vunpack.c.h.b16 %v741
    %v2702 = vunpack.c.l.b16 %v742
    %v2703 = vunpack.c.h.b16 %v742
    %v2704 = vunpack.c.l.b16 %v743
    %v2705 = vunpack.c.l.b16 %v744
    %v2706 = vunpack.c.h.b16 %v744
    %v2707 = vunpack.c.l.b16 %v745
    %v2708 = vunpack.c.h.b16 %v745
    %v2709 = vunpack.c.l.b16 %v746
    %v2710 = vunpack.c.h.b16 %v746
    %v2711 = vunpack.c.l.b16 %v747
    %v2712 = vunpack.c.h.b16 %v747
    %v2713 = vunpack.c.l.b16 %v748
    %v2714 = vunpack.c.h.b16 %v748
    %v2715 = vunpack.c.l.b16 %v749
    %v2716 = vunpack.c.h.b16 %v749
    %v2717 = vunpack.c.l.b16 %v750
    %v2718 = vunpack.c.l.b16 %v751
    %v2719 = vunpack.c.h.b16 %v751
    %v2720 = vunpack.c.l.b16 %v752
    %v2721 = vunpack.c.h.b16 %v752
    %v2722 = vunpack.c.l.b16 %v753
    %v2723 = vunpack.c.h.b16 %v753
    %v2724 = vunpack.c.l.b16 %v754
    %v2725 = vunpack.c.h.b16 %v754
    %v2726 = vunpack.c.l.b16 %v755
    %v2727 = vunpack.c.h.b16 %v755
    %v2728 = vunpack.c.l.b16 %v756
    %v2729 = vunpack.c.h.b16 %v756
    %v2730 = vunpack.c.l.b16 %v757
    %v2731 = vunpack.c.l.b16 %v758
    %v2732 = vunpack.c.h.b16 %v758
    %v2733 = vunpack.c.l.b16 %v759
    %v2734 = vunpack.c.h.b16 %v759
    %v2735 = vunpack.c.l.b16 %v760
    %v2736 = vunpack.c.h.b16 %v760
    %v2737 = vunpack.c.l.b16 %v761
    %v2738 = vunpack.c.h.b16 %v761
    %v2739 = vunpack.c.l.b16 %v762
    %v2740 = vunpack.c.h.b16 %v762
    %v2741 = vunpack.c.l.b16 %v763
    %v2742 = vunpack.c.h.b16 %v763
    %v2743 = vunpack.c.l.b16 %v764
    %v2744 = vunpack.c.l.b16 %v765
    %v2745 = vunpack.c.h.b16 %v765
    %v2746 = vunpack.c.l.b16 %v766
    %v2747 = vunpack.c.h.b16 %v766
    %v2748 = vunpack.c.l.b16 %v767
    %v2749 = vunpack.c.h.b16 %v767
    %v2750 = vunpack.c.l.b16 %v768
    %v2751 = vunpack.c.h.b16 %v768
    %v2752 = vunpack.c.l.b16 %v769
    %v2753 = vunpack.c.h.b16 %v769
    %v2754 = vunpack.c.l.b16 %v770
    %v2755 = vunpack.c.h.b16 %v770
    %v2756 = vunpack.c.l.b16 %v771
    %v2757 = vunpack.c.l.b16 %v772
    %v2758 = vunpack.c.h.b16 %v772
    %v2759 = vunpack.c.l.b16 %v773
    %v2760 = vunpack.c.h.b16 %v773
    %v2761 = vunpack.c.l.b16 %v774
    %v2762 = vunpack.c.h.b16 %v774
    %v2763 = vunpack.c.l.b16 %v775
    %v2764 = vunpack.c.h.b16 %v775
    %v2765 = vunpack.c.l.b16 %v776
    %v2766 = vunpack.c.h.b16 %v776
    %v2767 = vunpack.c.l.b16 %v777
    %v2768 = vunpack.c.h.b16 %v777
    %v2769 = vunpack.c.l.b16 %v778
    %v2770 = vunpack.c.l.b16 %v779
    %v2771 = vunpack.c.h.b16 %v779
    %v2772 = vunpack.c.l.b16 %v780
    %v2773 = vunpack.c.h.b16 %v780
    %v2774 = vunpack.c.l.b16 %v781
    %v2775 = vunpack.c.h.b16 %v781
    %v2776 = vunpack.c.l.b16 %v782
    %v2777 = vunpack.c.h.b16 %v782
    %v2778 = vunpack.c.l.b16 %v783
    %v2779 = vunpack.c.h.b16 %v783
    %v2780 = vunpack.c.l.b16 %v784
    %v2781 = vunpack.c.h.b16 %v784
    %v2782 = vunpack.c.l.b16 %v785
    %v2783 = vunpack.c.l.b16 %v786
    %v2784 = vunpack.c.h.b16 %v786
    %v2785 = vunpack.c.l.b16 %v787
    %v2786 = vunpack.c.h.b16 %v787
    %v2787 = vunpack.c.l.b16 %v788
    %v2788 = vunpack.c.h.b16 %v788
    %v2789 = vunpack.c.l.b16 %v789
    %v2790 = vunpack.c.h.b16 %v789
    %v2791 = vunpack.c.l.b16 %v790
    %v2792 = vunpack.c.h.b16 %v790
    %v2793 = vunpack.c.l.b16 %v791
    %v2794 = vunpack.c.h.b16 %v791
    %v2795 = vunpack.c.l.b16 %v792
    %v2796 = vunpack.c.l.b16 %v793
    %v2797 = vunpack.c.h.b16 %v793
    %v2798 = vunpack.c.l.b16 %v794
    %v2799 = vunpack.c.h.b16 %v794
    %v2800 = vunpack.c.l.b16 %v795
    %v2801 = vunpack.c.h.b16 %v795
    %v2802 = vunpack.c.l.b16 %v796
    %v2803 = vunpack.c.h.b16 %v796
    %v2804 = vunpack.c.l.b16 %v797
    %v2805 = vunpack.c.h.b16 %v797
    %v2806 = vunpack.c.l.b16 %v798
    %v2807 = vunpack.c.h.b16 %v798
    %v2808 = vunpack.c.l.b16 %v799
    %v2809 = vunpack.c.l.b16 %v800
    %v2810 = vunpack.c.h.b16 %v800
    %v2811 = vunpack.c.l.b16 %v801
    %v2812 = vunpack.c.h.b16 %v801
    %v2813 = vunpack.c.l.b16 %v802
    %v2814 = vunpack.c.h.b16 %v802
    %v2815 = vunpack.c.l.b16 %v803
    %v2816 = vunpack.c.h.b16 %v803
    %v2817 = vunpack.c.l.b16 %v804
    %v2818 = vunpack.c.h.b16 %v804
    %v2819 = vunpack.c.l.b16 %v805
    %v2820 = vunpack.c.h.b16 %v805
    %v2821 = vunpack.c.l.b16 %v806
    %v2822 = vunpack.c.l.b16 %v807
    %v2823 = vunpack.c.h.b16 %v807
    %v2824 = vunpack.c.l.b16 %v808
    %v2825 = vunpack.c.h.b16 %v808
    %v2826 = vunpack.c.l.b16 %v809
    %v2827 = vunpack.c.h.b16 %v809
    %v2828 = vunpack.c.l.b16 %v810
    %v2829 = vunpack.c.h.b16 %v810
    %v2830 = vunpack.c.l.b16 %v811
    %v2831 = vunpack.c.h.b16 %v811
    %v2832 = vunpack.c.l.b16 %v812
    %v2833 = vunpack.c.h.b16 %v812
    %v2834 = vunpack.c.l.b16 %v813
    %v2835 = vunpack.c.l.b16 %v814
    %v2836 = vunpack.c.h.b16 %v814
    %v2837 = vunpack.c.l.b16 %v815
    %v2838 = vunpack.c.h.b16 %v815
    %v2839 = vunpack.c.l.b16 %v816
    %v2840 = vunpack.c.h.b16 %v816
    %v2841 = vunpack.c.l.b16 %v817
    %v2842 = vunpack.c.h.b16 %v817
    %v2843 = vunpack.c.l.b16 %v818
    %v2844 = vunpack.c.h.b16 %v818
    %v2845 = vunpack.c.l.b16 %v819
    %v2846 = vunpack.c.h.b16 %v819
    %v2847 = vunpack.c.l.b16 %v820
    %v2848 = vunpack.c.l.b16 %v821
    %v2849 = vunpack.c.h.b16 %v821
    %v2850 = vunpack.c.l.b16 %v822
    %v2851 = vunpack.c.h.b16 %v822
    %v2852 = vunpack.c.l.b16 %v823
    %v2853 = vunpack.c.h.b16 %v823
    %v2854 = vunpack.c.l.b16 %v824
    %v2855 = vunpack.c.h.b16 %v824
    %v2856 = vunpack.c.l.b16 %v825
    %v2857 = vunpack.c.h.b16 %v825
    %v2858 = vunpack.c.l.b16 %v826
    %v2859 = vunpack.c.h.b16 %v826
    %v2860 = vunpack.c.l.b16 %v827
    %v2861 = vunpack.c.l.b16 %v828
    %v2862 = vunpack.c.h.b16 %v828
    %v2863 = vunpack.c.l.b16 %v829
    %v2864 = vunpack.c.h.b16 %v829
    %v2865 = vunpack.c.l.b16 %v830
    %v2866 = vunpack.c.h.b16 %v830
    %v2867 = vunpack.c.l.b16 %v831
    %v2868 = vunpack.c.h.b16 %v831
    %v2869 = vunpack.c.l.b16 %v832
    %v2870 = vunpack.c.h.b16 %v832
    %v2871 = vunpack.c.l.b16 %v833
    %v2872 = vunpack.c.h.b16 %v833
    %v2873 = vunpack.c.l.b16 %v834
    %v2874 = vunpack.c.l.b16 %v835
    %v2875 = vunpack.c.h.b16 %v835
    %v2876 = vunpack.c.l.b16 %v836
    %v2877 = vunpack.c.h.b16 %v836
    %v2878 = vunpack.c.l.b16 %v837
    %v2879 = vunpack.c.h.b16 %v837
    %v2880 = vunpack.c.l.b16 %v838
    %v2881 = vunpack.c.h.b16 %v838
    %v2882 = vunpack.c.l.b16 %v839
    %v2883 = vunpack.c.h.b16 %v839
    %v2884 = vunpack.c.l.b16 %v840
    %v2885 = vunpack.c.h.b16 %v840
    %v2886 = vunpack.c.l.b16 %v841
    %v2887 = vunpack.c.l.b16 %v842
    %v2888 = vunpack.c.h.b16 %v842
    %v2889 = vunpack.c.l.b16 %v843
    %v2890 = vunpack.c.h.b16 %v843
    %v2891 = vunpack.c.l.b16 %v844
    %v2892 = vunpack.c.h.b16 %v844
    %v2893 = vunpack.c.l.b16 %v845
    %v2894 = vunpack.c.h.b16 %v845
    %v2895 = vunpack.c.l.b16 %v846
    %v2896 = vunpack.c.h.b16 %v846
    %v2897 = vunpack.c.l.b16 %v847
    %v2898 = vunpack.c.h.b16 %v847
    %v2899 = vunpack.c.l.b16 %v848
    %v2900 = vunpack.c.l.b16 %v849
    %v2901 = vunpack.c.h.b16 %v849
    %v2902 = vunpack.c.l.b16 %v850
    %v2903 = vunpack.c.h.b16 %v850
    %v2904 = vunpack.c.l.b16 %v851
    %v2905 = vunpack.c.h.b16 %v851
    %v2906 = vunpack.c.l.b16 %v852
    %v2907 = vunpack.c.h.b16 %v852
    %v2908 = vunpack.c.l.b16 %v853
    %v2909 = vunpack.c.h.b16 %v853
    %v2910 = vunpack.c.l.b16 %v854
    %v2911 = vunpack.c.h.b16 %v854
    %v2912 = vunpack.c.l.b16 %v855
    %v2913 = vunpack.c.l.b16 %v856
    %v2914 = vunpack.c.h.b16 %v856
    %v2915 = vunpack.c.l.b16 %v857
    %v2916 = vunpack.c.h.b16 %v857
    %v2917 = vunpack.c.l.b16 %v858
    %v2918 = vunpack.c.h.b16 %v858
    %v2919 = vunpack.c.l.b16 %v859
    %v2920 = vunpack.c.h.b16 %v859
    %v2921 = vunpack.c.l.b16 %v860
    %v2922 = vunpack.c.h.b16 %v860
    %v2923 = vunpack.c.l.b16 %v861
    %v2924 = vunpack.c.h.b16 %v861
    %v2925 = vunpack.c.l.b16 %v862
    %v2926 = vunpack.c.l.b16 %v863
    %v2927 = vunpack.c.h.b16 %v863
    %v2928 = vunpack.c.l.b16 %v864
    %v2929 = vunpack.c.h.b16 %v864
    %v2930 = vunpack.c.l.b16 %v865
    %v2931 = vunpack.c.h.b16 %v865
    %v2932 = vunpack.c.l.b16 %v866
    %v2933 = vunpack.c.h.b16 %v866
    %v2934 = vunpack.c.l.b16 %v867
    %v2935 = vunpack.c.h.b16 %v867
    %v2936 = vunpack.c.l.b16 %v868
    %v2937 = vunpack.c.h.b16 %v868
    %v2938 = vunpack.c.l.b16 %v869
    %v2939 = vunpack.c.l.b16 %v870
    %v2940 = vunpack.c.h.b16 %v870
    %v2941 = vunpack.c.l.b16 %v871
    %v2942 = vunpack.c.h.b16 %v871
    %v2943 = vunpack.c.l.b16 %v872
    %v2944 = vunpack.c.h.b16 %v872
    %v2945 = vunpack.c.l.b16 %v873
    %v2946 = vunpack.c.h.b16 %v873
    %v2947 = vunpack.c.l.b16 %v874
    %v2948 = vunpack.c.h.b16 %v874
    %v2949 = vunpack.c.l.b16 %v875
    %v2950 = vunpack.c.h.b16 %v875
    %v2951 = vunpack.c.l.b16 %v876
    %v2952 = vunpack.c.l.b16 %v877
    %v2953 = vunpack.c.h.b16 %v877
    %v2954 = vunpack.c.l.b16 %v878
    %v2955 = vunpack.c.h.b16 %v878
    %v2956 = vunpack.c.l.b16 %v879
    %v2957 = vunpack.c.h.b16 %v879
    %v2958 = vunpack.c.l.b16 %v880
    %v2959 = vunpack.c.h.b16 %v880
    %v2960 = vunpack.c.l.b16 %v881
    %v2961 = vunpack.c.h.b16 %v881
    %v2962 = vunpack.c.l.b16 %v882
    %v2963 = vunpack.c.h.b16 %v882
    %v2964 = vunpack.c.l.b16 %v883
    %v2965 = vunpack.c.l.b16 %v884
    %v2966 = vunpack.c.h.b16 %v884
    %v2967 = vunpack.c.l.b16 %v885
    %v2968 = vunpack.c.h.b16 %v885
    %v2969 = vunpack.c.l.b16 %v886
    %v2970 = vunpack.c.h.b16 %v886
    %v2971 = vunpack.c.l.b16 %v887
    %v2972 = vunpack.c.h.b16 %v887
    %v2973 = vunpack.c.l.b16 %v888
    %v2974 = vunpack.c.h.b16 %v888
    %v2975 = vunpack.c.l.b16 %v889
    %v2976 = vunpack.c.h.b16 %v889
    %v2977 = vunpack.c.l.b16 %v890
    %v2978 = vunpack.c.l.b16 %v891
    %v2979 = vunpack.c.h.b16 %v891
    %v2980 = vunpack.c.l.b16 %v892
    %v2981 = vunpack.c.h.b16 %v892
    %v2982 = vunpack.c.l.b16 %v893
    %v2983 = vunpack.c.h.b16 %v893
    %v2984 = vunpack.c.l.b16 %v894
    %v2985 = vunpack.c.h.b16 %v894
    %v2986 = vunpack.c.l.b16 %v895
    %v2987 = vunpack.c.h.b16 %v895
    %v2988 = vunpack.c.l.b16 %v896
    %v2989 = vunpack.c.h.b16 %v896
    %v2990 = vunpack.c.l.b16 %v897
    %v2991 = vunpack.c.l.b16 %v898
    %v2992 = vunpack.c.h.b16 %v898
    %v2993 = vunpack.c.l.b16 %v899
    %v2994 = vunpack.c.h.b16 %v899
    %v2995 = vunpack.c.l.b16 %v900
    %v2996 = vunpack.c.h.b16 %v900
    %v2997 = vunpack.c.l.b16 %v901
    %v2998 = vunpack.c.h.b16 %v901
    %v2999 = vunpack.c.l.b16 %v902
    %v3000 = vunpack.c.h.b16 %v902
    %v3001 = vunpack.c.l.b16 %v903
    %v3002 = vunpack.c.h.b16 %v903
    %v3003 = vunpack.c.l.b16 %v904
    %v3004 = vunpack.c.l.b16 %v905
    %v3005 = vunpack.c.h.b16 %v905
    %v3006 = vunpack.c.l.b16 %v906
    %v3007 = vunpack.c.h.b16 %v906
    %v3008 = vunpack.c.l.b16 %v907
    %v3009 = vunpack.c.h.b16 %v907
    %v3010 = vunpack.c.l.b16 %v908
    %v3011 = vunpack.c.h.b16 %v908
    %v3012 = vunpack.c.l.b16 %v909
    %v3013 = vunpack.c.h.b16 %v909
    %v3014 = vunpack.c.l.b16 %v910
    %v3015 = vunpack.c.h.b16 %v910
    %v3016 = vunpack.c.l.b16 %v911
    %v3017 = vunpack.c.l.b16 %v912
    %v3018 = vunpack.c.h.b16 %v912
    %v3019 = vunpack.c.l.b16 %v913
    %v3020 = vunpack.c.h.b16 %v913
    %v3021 = vunpack.c.l.b16 %v914
    %v3022 = vunpack.c.h.b16 %v914
    %v3023 = vunpack.c.l.b16 %v915
    %v3024 = vunpack.c.h.b16 %v915
    %v3025 = vunpack.c.l.b16 %v916
    %v3026 = vunpack.c.h.b16 %v916
    %v3027 = vunpack.c.l.b16 %v917
    %v3028 = vunpack.c.h.b16 %v917
    %v3029 = vunpack.c.l.b16 %v918
    %v3030 = vunpack.c.l.b16 %v919
    %v3031 = vunpack.c.h.b16 %v919
    %v3032 = vunpack.c.l.b16 %v920
    %v3033 = vunpack.c.h.b16 %v920
    %v3034 = vunpack.c.l.b16 %v921
    %v3035 = vunpack.c.h.b16 %v921
    %v3036 = vunpack.c.l.b16 %v922
    %v3037 = vunpack.c.h.b16 %v922
    %v3038 = vunpack.c.l.b16 %v923
    %v3039 = vunpack.c.h.b16 %v923
    %v3040 = vunpack.c.l.b16 %v924
    %v3041 = vunpack.c.h.b16 %v924
    %v3042 = vunpack.c.l.b16 %v925
    %v3043 = vunpack.c.l.b16 %v926
    %v3044 = vunpack.c.h.b16 %v926
    %v3045 = vunpack.c.l.b16 %v927
    %v3046 = vunpack.c.h.b16 %v927
    %v3047 = vunpack.c.l.b16 %v928
    %v3048 = vunpack.c.h.b16 %v928
    %v3049 = vunpack.c.l.b16 %v929
    %v3050 = vunpack.c.h.b16 %v929
    %v3051 = vunpack.c.l.b16 %v930
    %v3052 = vunpack.c.h.b16 %v930
    %v3053 = vunpack.c.l.b16 %v931
    %v3054 = vunpack.c.h.b16 %v931
    %v3055 = vunpack.c.l.b16 %v932
    %v3056 = vunpack.c.l.b16 %v933
    %v3057 = vunpack.c.h.b16 %v933
    %v3058 = vunpack.c.l.b16 %v934
    %v3059 = vunpack.c.h.b16 %v934
    %v3060 = vunpack.c.l.b16 %v935
    %v3061 = vunpack.c.h.b16 %v935
    %v3062 = vunpack.c.l.b16 %v936
    %v3063 = vunpack.c.h.b16 %v936
    %v3064 = vunpack.c.l.b16 %v937
    %v3065 = vunpack.c.h.b16 %v937
    %v3066 = vunpack.c.l.b16 %v938
    %v3067 = vunpack.c.h.b16 %v938
    %v3068 = vunpack.c.l.b16 %v939
    %v3069 = vunpack.c.l.b16 %v940
    %v3070 = vunpack.c.h.b16 %v940
    %v3071 = vunpack.c.l.b16 %v941
    %v3072 = vunpack.c.h.b16 %v941
    %v3073 = vunpack.c.l.b16 %v942
    %v3074 = vunpack.c.h.b16 %v942
    %v3075 = vunpack.c.l.b16 %v943
    %v3076 = vunpack.c.h.b16 %v943
    %v3077 = vunpack.c.l.b16 %v944
    %v3078 = vunpack.c.h.b16 %v944
    %v3079 = vunpack.c.l.b16 %v945
    %v3080 = vunpack.c.h.b16 %v945
    %v3081 = vunpack.c.l.b16 %v946
    %v3082 = vunpack.c.l.b16 %v947
    %v3083 = vunpack.c.h.b16 %v947
    %v3084 = vunpack.c.l.b16 %v948
    %v3085 = vunpack.c.h.b16 %v948
    %v3086 = vunpack.c.l.b16 %v949
    %v3087 = vunpack.c.h.b16 %v949
    %v3088 = vunpack.c.l.b16 %v950
    %v3089 = vunpack.c.h.b16 %v950
    %v3090 = vunpack.c.l.b16 %v951
    %v3091 = vunpack.c.h.b16 %v951
    %v3092 = vunpack.c.l.b16 %v952
    %v3093 = vunpack.c.h.b16 %v952
    %v3094 = vunpack.c.l.b16 %v953
    %v3095 = vunpack.c.l.b16 %v954
    %v3096 = vunpack.c.h.b16 %v954
    %v3097 = vunpack.c.l.b16 %v955
    %v3098 = vunpack.c.h.b16 %v955
    %v3099 = vunpack.c.l.b16 %v956
    %v3100 = vunpack.c.h.b16 %v956
    %v3101 = vunpack.c.l.b16 %v957
    %v3102 = vunpack.c.h.b16 %v957
    %v3103 = vunpack.c.l.b16 %v958
    %v3104 = vunpack.c.h.b16 %v958
    %v3105 = vunpack.c.l.b16 %v959
    %v3106 = vunpack.c.h.b16 %v959
    %v3107 = vunpack.c.l.b16 %v960
    %v3108 = vunpack.c.l.b16 %v961
    %v3109 = vunpack.c.h.b16 %v961
    %v3110 = vunpack.c.l.b16 %v962
    %v3111 = vunpack.c.h.b16 %v962
    %v3112 = vunpack.c.l.b16 %v963
    %v3113 = vunpack.c.h.b16 %v963
    %v3114 = vunpack.c.l.b16 %v964
    %v3115 = vunpack.c.h.b16 %v964
    %v3116 = vunpack.c.l.b16 %v965
    %v3117 = vunpack.c.h.b16 %v965
    %v3118 = vunpack.c.l.b16 %v966
    %v3119 = vunpack.c.h.b16 %v966
    %v3120 = vunpack.c.l.b16 %v967
    %v3121 = vunpack.c.l.b16 %v968
    %v3122 = vunpack.c.h.b16 %v968
    %v3123 = vunpack.c.l.b16 %v969
    %v3124 = vunpack.c.h.b16 %v969
    %v3125 = vunpack.c.l.b16 %v970
    %v3126 = vunpack.c.h.b16 %v970
    %v3127 = vunpack.c.l.b16 %v971
    %v3128 = vunpack.c.h.b16 %v971
    %v3129 = vunpack.c.l.b16 %v972
    %v3130 = vunpack.c.h.b16 %v972
    %v3131 = vunpack.c.l.b16 %v973
    %v3132 = vunpack.c.h.b16 %v973
    %v3133 = vunpack.c.l.b16 %v974
    %v3134 = vunpack.c.l.b16 %v975
    %v3135 = vunpack.c.h.b16 %v975
    %v3136 = vunpack.c.l.b16 %v976
    %v3137 = vunpack.c.h.b16 %v976
    %v3138 = vunpack.c.l.b16 %v977
    %v3139 = vunpack.c.h.b16 %v977
    %v3140 = vunpack.c.l.b16 %v978
    %v3141 = vunpack.c.h.b16 %v978
    %v3142 = vunpack.c.l.b16 %v979
    %v3143 = vunpack.c.h.b16 %v979
    %v3144 = vunpack.c.l.b16 %v980
    %v3145 = vunpack.c.h.b16 %v980
    %v3146 = vunpack.c.l.b16 %v981
    %v3147 = vunpack.c.l.b16 %v982
    %v3148 = vunpack.c.h.b16 %v982
    %v3149 = vunpack.c.l.b16 %v983
    %v3150 = vunpack.c.h.b16 %v983
    %v3151 = vunpack.c.l.b16 %v984
    %v3152 = vunpack.c.h.b16 %v984
    %v3153 = vunpack.c.l.b16 %v985
    %v3154 = vunpack.c.h.b16 %v985
    %v3155 = vunpack.c.l.b16 %v986
    %v3156 = vunpack.c.h.b16 %v986
    %v3157 = vunpack.c.l.b16 %v987
    %v3158 = vunpack.c.h.b16 %v987
    %v3159 = vunpack.c.l.b16 %v988
    %v3160 = vunpack.c.l.b16 %v989
    %v3161 = vunpack.c.h.b16 %v989
    %v3162 = vunpack.c.l.b16 %v990
    %v3163 = vunpack.c.h.b16 %v990
    %v3164 = vunpack.c.l.b16 %v991
    %v3165 = vunpack.c.h.b16 %v991
    %v3166 = vunpack.c.l.b16 %v992
    %v3167 = vunpack.c.h.b16 %v992
    %v3168 = vunpack.c.l.b16 %v993
    %v3169 = vunpack.c.h.b16 %v993
    %v3170 = vunpack.c.l.b16 %v994
    %v3171 = vunpack.c.h.b16 %v994
    %v3172 = vunpack.c.l.b16 %v995
    %v3173 = vunpack.c.l.b16 %v996
    %v3174 = vunpack.c.h.b16 %v996
    %v3175 = vunpack.c.l.b16 %v997
    %v3176 = vunpack.c.h.b16 %v997
    %v3177 = vunpack.c.l.b16 %v998
    %v3178 = vunpack.c.h.b16 %v998
    %v3179 = vunpack.c.l.b16 %v999
    %v3180 = vunpack.c.h.b16 %v999
    %v3181 = vunpack.c.l.b16 %v1000
    %v3182 = vunpack.c.h.b16 %v1000
    %v3183 = vunpack.c.l.b16 %v1001
    %v3184 = vunpack.c.h.b16 %v1001
    %v3185 = vunpack.c.l.b16 %v1002
    %v3186 = vunpack.c.l.b16 %v1003
    %v3187 = vunpack.c.h.b16 %v1003
    %v3188 = vunpack.c.l.b16 %v1004
    %v3189 = vunpack.c.h.b16 %v1004
    %v3190 = vunpack.c.l.b16 %v1005
    %v3191 = vunpack.c.h.b16 %v1005
    %v3192 = vunpack.c.l.b16 %v1006
    %v3193 = vunpack.c.h.b16 %v1006
    %v3194 = vunpack.c.l.b16 %v1007
    %v3195 = vunpack.c.h.b16 %v1007
    %v3196 = vunpack.c.l.b16 %v1008
    %v3197 = vunpack.c.h.b16 %v1008
    %v3198 = vunpack.c.l.b16 %v1009
    %v3199 = vunpack.c.l.b16 %v1010
    %v3200 = vunpack.c.h.b16 %v1010
    %v3201 = vunpack.c.l.b16 %v1011
    %v3202 = vunpack.c.h.b16 %v1011
    %v3203 = vunpack.c.l.b16 %v1012
    %v3204 = vunpack.c.h.b16 %v1012
    %v3205 = vunpack.c.l.b16 %v1013
    %v3206 = vunpack.c.h.b16 %v1013
    %v3207 = vunpack.c.l.b16 %v1014
    %v3208 = vunpack.c.h.b16 %v1014
    %v3209 = vunpack.c.l.b16 %v1015
    %v3210 = vunpack.c.h.b16 %v1015
    %v3211 = vunpack.c.l.b16 %v1016
    %v3212 = vunpack.c.l.b16 %v1017
    %v3213 = vunpack.c.h.b16 %v1017
    %v3214 = vunpack.c.l.b16 %v1018
    %v3215 = vunpack.c.h.b16 %v1018
    %v3216 = vunpack.c.l.b16 %v1019
    %v3217 = vunpack.c.h.b16 %v1019
    %v3218 = vunpack.c.l.b16 %v1020
    %v3219 = vunpack.c.h.b16 %v1020
    %v3220 = vunpack.c.l.b16 %v1021
    %v3221 = vunpack.c.h.b16 %v1021
    %v3222 = vunpack.c.l.b16 %v1022
    %v3223 = vunpack.c.h.b16 %v1022
    %v3224 = vunpack.c.l.b16 %v1023
    %v3225 = vunpack.c.l.b16 %v1024
    %v3226 = vunpack.c.h.b16 %v1024
    %v3227 = vunpack.c.l.b16 %v1025
    %v3228 = vunpack.c.h.b16 %v1025
    %v3229 = vunpack.c.l.b16 %v1026
    %v3230 = vunpack.c.h.b16 %v1026
    %v3231 = vunpack.c.l.b16 %v1027
    %v3232 = vunpack.c.h.b16 %v1027
    %v3233 = vunpack.c.l.b16 %v1028
    %v3234 = vunpack.c.h.b16 %v1028
    %v3235 = vunpack.c.l.b16 %v1029
    %v3236 = vunpack.c.h.b16 %v1029
    %v3237 = vunpack.c.l.b16 %v1030
    %v3238 = vunpack.c.l.b16 %v1031
    %v3239 = vunpack.c.h.b16 %v1031
    %v3240 = vunpack.c.l.b16 %v1032
    %v3241 = vunpack.c.h.b16 %v1032
    %v3242 = vunpack.c.l.b16 %v1033
    %v3243 = vunpack.c.h.b16 %v1033
    %v3244 = vunpack.c.l.b16 %v1034
    %v3245 = vunpack.c.h.b16 %v1034
    %v3246 = vunpack.c.l.b16 %v1035
    %v3247 = vunpack.c.h.b16 %v1035
    %v3248 = vunpack.c.l.b16 %v1036
    %v3249 = vunpack.c.h.b16 %v1036
    %v3250 = vunpack.c.l.b16 %v1037
    %v3251 = vunpack.c.l.b16 %v1038
    %v3252 = vunpack.c.h.b16 %v1038
    %v3253 = vunpack.c.l.b16 %v1039
    %v3254 = vunpack.c.h.b16 %v1039
    %v3255 = vunpack.c.l.b16 %v1040
    %v3256 = vunpack.c.h.b16 %v1040
    %v3257 = vunpack.c.l.b16 %v1041
    %v3258 = vunpack.c.h.b16 %v1041
    %v3259 = vunpack.c.l.b16 %v1042
    %v3260 = vunpack.c.h.b16 %v1042
    %v3261 = vunpack.c.l.b16 %v1043
    %v3262 = vunpack.c.h.b16 %v1043
    %v3263 = vunpack.c.l.b16 %v1044
    %v3264 = vunpack.c.l.b16 %v1045
    %v3265 = vunpack.c.h.b16 %v1045
    %v3266 = vunpack.c.l.b16 %v1046
    %v3267 = vunpack.c.h.b16 %v1046
    %v3268 = vunpack.c.l.b16 %v1047
    %v3269 = vunpack.c.h.b16 %v1047
    %v3270 = vunpack.c.l.b16 %v1048
    %v3271 = vunpack.c.h.b16 %v1048
    %v3272 = vunpack.c.l.b16 %v1049
    %v3273 = vunpack.c.h.b16 %v1049
    %v3274 = vunpack.c.l.b16 %v1050
    %v3275 = vunpack.c.h.b16 %v1050
    %v3276 = vunpack.c.l.b16 %v1051
    %v3277 = vunpack.c.l.b16 %v1052
    %v3278 = vunpack.c.h.b16 %v1052
    %v3279 = vunpack.c.l.b16 %v1053
    %v3280 = vunpack.c.h.b16 %v1053
    %v3281 = vunpack.c.l.b16 %v1054
    %v3282 = vunpack.c.h.b16 %v1054
    %v3283 = vunpack.c.l.b16 %v1055
    %v3284 = vunpack.c.h.b16 %v1055
    %v3285 = vunpack.c.l.b16 %v1056
    %v3286 = vunpack.c.h.b16 %v1056
    %v3287 = vunpack.c.l.b16 %v1057
    %v3288 = vunpack.c.h.b16 %v1057
    %v3289 = vunpack.c.l.b16 %v1058
    %v3290 = vunpack.c.l.b16 %v1059
    %v3291 = vunpack.c.h.b16 %v1059
    %v3292 = vunpack.c.l.b16 %v1060
    %v3293 = vunpack.c.h.b16 %v1060
    %v3294 = vunpack.c.l.b16 %v1061
    %v3295 = vunpack.c.h.b16 %v1061
    %v3296 = vunpack.c.l.b16 %v1062
    %v3297 = vunpack.c.h.b16 %v1062
    %v3298 = vunpack.c.l.b16 %v1063
    %v3299 = vunpack.c.h.b16 %v1063
    %v3300 = vunpack.c.l.b16 %v1064
    %v3301 = vunpack.c.h.b16 %v1064
    %v3302 = vunpack.c.l.b16 %v1065
    %v3303 = vunpack.c.l.b16 %v1066
    %v3304 = vunpack.c.h.b16 %v1066
    %v3305 = vunpack.c.l.b16 %v1067
    %v3306 = vunpack.c.h.b16 %v1067
    %v3307 = vunpack.c.l.b16 %v1068
    %v3308 = vunpack.c.h.b16 %v1068
    %v3309 = vunpack.c.l.b16 %v1069
    %v3310 = vunpack.c.h.b16 %v1069
    %v3311 = vunpack.c.l.b16 %v1070
    %v3312 = vunpack.c.h.b16 %v1070
    %v3313 = vunpack.c.l.b16 %v1071
    %v3314 = vunpack.c.h.b16 %v1071
    %v3315 = vunpack.c.l.b16 %v1072
    %v3316 = vunpack.c.l.b16 %v1073
    %v3317 = vunpack.c.h.b16 %v1073
    %v3318 = vunpack.c.l.b16 %v1074
    %v3319 = vunpack.c.h.b16 %v1074
    %v3320 = vunpack.c.l.b16 %v1075
    %v3321 = vunpack.c.h.b16 %v1075
    %v3322 = vunpack.c.l.b16 %v1076
    %v3323 = vunpack.c.h.b16 %v1076
    %v3324 = vunpack.c.l.b16 %v1077
    %v3325 = vunpack.c.h.b16 %v1077
    %v3326 = vunpack.c.l.b16 %v1078
    %v3327 = vunpack.c.h.b16 %v1078
    %v3328 = vunpack.c.l.b16 %v1079
    %v3329 = vunpack.c.l.b16 %v1080
    %v3330 = vunpack.c.h.b16 %v1080
    %v3331 = vunpack.c.l.b16 %v1081
    %v3332 = vunpack.c.h.b16 %v1081
    %v3333 = vunpack.c.l.b16 %v1082
    %v3334 = vunpack.c.h.b16 %v1082
    %v3335 = vunpack.c.l.b16 %v1083
    %v3336 = vunpack.c.h.b16 %v1083
    %v3337 = vunpack.c.l.b16 %v1084
    %v3338 = vunpack.c.h.b16 %v1084
    %v3339 = vunpack.c.l.b16 %v1085
    %v3340 = vunpack.c.h.b16 %v1085
    %v3341 = vunpack.c.l.b16 %v1086
    %v3342 = vunpack.c.l.b16 %v1087
    %v3343 = vunpack.c.h.b16 %v1087
    %v3344 = vunpack.c.l.b16 %v1088
    %v3345 = vunpack.c.h.b16 %v1088
    %v3346 = vunpack.c.l.b16 %v1089
    %v3347 = vunpack.c.h.b16 %v1089
    %v3348 = vunpack.c.l.b16 %v1090
    %v3349 = vunpack.c.h.b16 %v1090
    %v3350 = vunpack.c.l.b16 %v1091
    %v3351 = vunpack.c.h.b16 %v1091
    %v3352 = vunpack.c.l.b16 %v1092
    %v3353 = vunpack.c.h.b16 %v1092
    %v3354 = vunpack.c.l.b16 %v1093
    %v3355 = vunpack.c.l.b16 %v1094
    %v3356 = vunpack.c.h.b16 %v1094
    %v3357 = vunpack.c.l.b16 %v1095
    %v3358 = vunpack.c.h.b16 %v1095
    %v3359 = vunpack.c.l.b16 %v1096
    %v3360 = vunpack.c.h.b16 %v1096
    %v3361 = vunpack.c.l.b16 %v1097
    %v3362 = vunpack.c.h.b16 %v1097
    %v3363 = vunpack.c.l.b16 %v1098
    %v3364 = vunpack.c.h.b16 %v1098
    %v3365 = vunpack.c.l.b16 %v1099
    %v3366 = vunpack.c.h.b16 %v1099
    %v3367 = vunpack.c.l.b16 %v1100
    %v3368 = vunpack.c.l.b16 %v1101
    %v3369 = vunpack.c.h.b16 %v1101
    %v3370 = vunpack.c.l.b16 %v1102
    %v3371 = vunpack.c.h.b16 %v1102
    %v3372 = vunpack.c.l.b16 %v1103
    %v3373 = vunpack.c.h.b16 %v1103
    %v3374 = vunpack.c.l.b16 %v1104
    %v3375 = vunpack.c.h.b16 %v1104
    %v3376 = vunpack.c.l.b16 %v1105
    %v3377 = vunpack.c.h.b16 %v1105
    %v3378 = vunpack.c.l.b16 %v1106
    %v3379 = vunpack.c.h.b16 %v1106
    %v3380 = vunpack.c.l.b16 %v1107
    %v3381 = vunpack.c.l.b16 %v1108
    %v3382 = vunpack.c.h.b16 %v1108
    %v3383 = vunpack.c.l.b16 %v1109
    %v3384 = vunpack.c.h.b16 %v1109
    %v3385 = vunpack.c.l.b16 %v1110
    %v3386 = vunpack.c.h.b16 %v1110
    %v3387 = vunpack.c.l.b16 %v1111
    %v3388 = vunpack.c.h.b16 %v1111
    %v3389 = vunpack.c.l.b16 %v1112
    %v3390 = vunpack.c.h.b16 %v1112
    %v3391 = vunpack.c.l.b16 %v1113
    %v3392 = vunpack.c.h.b16 %v1113
    %v3393 = vunpack.c.l.b16 %v1114
    %v3394 = vunpack.c.l.b16 %v1115
    %v3395 = vunpack.c.h.b16 %v1115
    %v3396 = vunpack.c.l.b16 %v1116
    %v3397 = vunpack.c.h.b16 %v1116
    %v3398 = vunpack.c.l.b16 %v1117
    %v3399 = vunpack.c.h.b16 %v1117
    %v3400 = vunpack.c.l.b16 %v1118
    %v3401 = vunpack.c.h.b16 %v1118
    %v3402 = vunpack.c.l.b16 %v1119
    %v3403 = vunpack.c.h.b16 %v1119
    %v3404 = vunpack.c.l.b16 %v1120
    %v3405 = vunpack.c.h.b16 %v1120
    %v3406 = vunpack.c.l.b16 %v1121
    %v3407 = vunpack.c.l.b16 %v1122
    %v3408 = vunpack.c.h.b16 %v1122
    %v3409 = vunpack.c.l.b16 %v1123
    %v3410 = vunpack.c.h.b16 %v1123
    %v3411 = vunpack.c.l.b16 %v1124
    %v3412 = vunpack.c.h.b16 %v1124
    %v3413 = vunpack.c.l.b16 %v1125
    %v3414 = vunpack.c.h.b16 %v1125
    %v3415 = vunpack.c.l.b16 %v1126
    %v3416 = vunpack.c.h.b16 %v1126
    %v3417 = vunpack.c.l.b16 %v1127
    %v3418 = vunpack.c.h.b16 %v1127
    %v3419 = vunpack.c.l.b16 %v1128
    %v3420 = vunpack.c.l.b16 %v1129
    %v3421 = vunpack.c.h.b16 %v1129
    %v3422 = vunpack.c.l.b16 %v1130
    %v3423 = vunpack.c.h.b16 %v1130
    %v3424 = vunpack.c.l.b16 %v1131
    %v3425 = vunpack.c.h.b16 %v1131
    %v3426 = vunpack.c.l.b16 %v1132
    %v3427 = vunpack.c.h.b16 %v1132
    %v3428 = vunpack.c.l.b16 %v1133
    %v3429 = vunpack.c.h.b16 %v1133
    %v3430 = vunpack.c.l.b16 %v1134
    %v3431 = vunpack.c.h.b16 %v1134
    %v3432 = vunpack.c.l.b16 %v1135
    %v3433 = vunpack.c.l.b16 %v1136
    %v3434 = vunpack.c.h.b16 %v1136
    %v3435 = vunpack.c.l.b16 %v1137
    %v3436 = vunpack.c.h.b16 %v1137
    %v3437 = vunpack.c.l.b16 %v1138
    %v3438 = vunpack.c.h.b16 %v1138
    %v3439 = vunpack.c.l.b16 %v1139
    %v3440 = vunpack.c.h.b16 %v1139
    %v3441 = vunpack.c.l.b16 %v1140
    %v3442 = vunpack.c.h.b16 %v1140
    %v3443 = vunpack.c.l.b16 %v1141
    %v3444 = vunpack.c.h.b16 %v1141
    %v3445 = vunpack.c.l.b16 %v1142
    %v3446 = vunpack.c.l.b16 %v1143
    %v3447 = vunpack.c.h.b16 %v1143
    %v3448 = vunpack.c.l.b16 %v1144
    %v3449 = vunpack.c.h.b16 %v1144
    %v3450 = vunpack.c.l.b16 %v1145
    %v3451 = vunpack.c.h.b16 %v1145
    %v3452 = vunpack.c.l.b16 %v1146
    %v3453 = vunpack.c.h.b16 %v1146
    %v3454 = vunpack.c.l.b16 %v1147
    %v3455 = vunpack.c.h.b16 %v1147
    %v3456 = vunpack.c.l.b16 %v1148
    %v3457 = vunpack.c.h.b16 %v1148
    %v3458 = vunpack.c.l.b16 %v1149
    %v3459 = vpack.c.b16 %v2016, %v2003
    %v3460 = vpack.c.b16 %v2017, %v2004
    %v3461 = vpack.c.b16 %v2018, %v2005
    %v3462 = vpack.c.b16 %v2019, %v2006
    %v3463 = vpack.c.b16 %v2020, %v2007
    %v3464 = vpack.c.b16 %v2021, %v2008
    %v3465 = vpack.c.b16 %v2022, %v2009
    %v3466 = vpack.c.b16 %v2023, %v2010
    %v3467 = vpack.c.b16 %v2024, %v2011
    %v3468 = vpack.c.b16 %v2025, %v2012
    %v3469 = vpack.c.b16 %v2026, %v2013
    %v3470 = vpack.c.b16 %v2027, %v2014
    %v3471 = vpack.c.b16 %v2028, %v2015
    %v3472 = vpack.c.b16 %v2042, %v2029
    %v3473 = vpack.c.b16 %v2043, %v2030
    %v3474 = vpack.c.b16 %v2044, %v2031
    %v3475 = vpack.c.b16 %v2045, %v2032
    %v3476 = vpack.c.b16 %v2046, %v2033
    %v3477 = vpack.c.b16 %v2047, %v2034
    %v3478 = vpack.c.b16 %v2048, %v2035
    %v3479 = vpack.c.b16 %v2049, %v2036
    %v3480 = vpack.c.b16 %v2050, %v2037
    %v3481 = vpack.c.b16 %v2051, %v2038
    %v3482 = vpack.c.b16 %v2052, %v2039
    %v3483 = vpack.c.b16 %v2053, %v2040
    %v3484 = vpack.c.b16 %v2054, %v2041
    %v3485 = vpack.c.b16 %v2068, %v2055
    %v3486 = vpack.c.b16 %v2069, %v2056
    %v3487 = vpack.c.b16 %v2070, %v2057
    %v3488 = vpack.c.b16 %v2071, %v2058
    %v3489 = vpack.c.b16 %v2072, %v2059
    %v3490 = vpack.c.b16 %v2073, %v2060
    %v3491 = vpack.c.b16 %v2074, %v2061
    %v3492 = vpack.c.b16 %v2075, %v2062
    %v3493 = vpack.c.b16 %v2076, %v2063
    %v3494 = vpack.c.b16 %v2077, %v2064
    %v3495 = vpack.c.b16 %v2078, %v2065
    %v3496 = vpack.c.b16 %v2079, %v2066
    %v3497 = vpack.c.b16 %v2080, %v2067
    %v3498 = vpack.c.b16 %v2094, %v2081
    %v3499 = vpack.c.b16 %v2095, %v2082
    %v3500 = vpack.c.b16 %v2096, %v2083
    %v3501 = vpack.c.b16 %v2097, %v2084
    %v3502 = vpack.c.b16 %v2098, %v2085
    %v3503 = vpack.c.b16 %v2099, %v2086
    %v3504 = vpack.c.b16 %v2100, %v2087
    %v3505 = vpack.c.b16 %v2101, %v2088
    %v3506 = vpack.c.b16 %v2102, %v2089
    %v3507 = vpack.c.b16 %v2103, %v2090
    %v3508 = vpack.c.b16 %v2104, %v2091
    %v3509 = vpack.c.b16 %v2105, %v2092
    %v3510 = vpack.c.b16 %v2106, %v2093
    %v3511 = vpack.c.b16 %v2120, %v2107
    %v3512 = vpack.c.b16 %v2121, %v2108
    %v3513 = vpack.c.b16 %v2122, %v2109
    %v3514 = vpack.c.b16 %v2123, %v2110
    %v3515 = vpack.c.b16 %v2124, %v2111
    %v3516 = vpack.c.b16 %v2125, %v2112
    %v3517 = vpack.c.b16 %v2126, %v2113
    %v3518 = vpack.c.b16 %v2127, %v2114
    %v3519 = vpack.c.b16 %v2128, %v2115
    %v3520 = vpack.c.b16 %v2129, %v2116
    %v3521 = vpack.c.b16 %v2130, %v2117
    %v3522 = vpack.c.b16 %v2131, %v2118
    %v3523 = vpack.c.b16 %v2132, %v2119
    %v3524 = vpack.c.b16 %v2146, %v2133
    %v3525 = vpack.c.b16 %v2147, %v2134
    %v3526 = vpack.c.b16 %v2148, %v2135
    %v3527 = vpack.c.b16 %v2149, %v2136
    %v3528 = vpack.c.b16 %v2150, %v2137
    %v3529 = vpack.c.b16 %v2151, %v2138
    %v3530 = vpack.c.b16 %v2152, %v2139
    %v3531 = vpack.c.b16 %v2153, %v2140
    %v3532 = vpack.c.b16 %v2154, %v2141
    %v3533 = vpack.c.b16 %v2155, %v2142
    %v3534 = vpack.c.b16 %v2156, %v2143
    %v3535 = vpack.c.b16 %v2157, %v2144
    %v3536 = vpack.c.b16 %v2158, %v2145
    %v3537 = vpack.c.b16 %v2172, %v2159
    %v3538 = vpack.c.b16 %v2173, %v2160
    %v3539 = vpack.c.b16 %v2174, %v2161
    %v3540 = vpack.c.b16 %v2175, %v2162
    %v3541 = vpack.c.b16 %v2176, %v2163
    %v3542 = vpack.c.b16 %v2177, %v2164
    %v3543 = vpack.c.b16 %v2178, %v2165
    %v3544 = vpack.c.b16 %v2179, %v2166
    %v3545 = vpack.c.b16 %v2180, %v2167
    %v3546 = vpack.c.b16 %v2181, %v2168
    %v3547 = vpack.c.b16 %v2182, %v2169
    %v3548 = vpack.c.b16 %v2183, %v2170
    %v3549 = vpack.c.b16 %v2184, %v2171
    %v3550 = vpack.c.b16 %v2198, %v2185
    %v3551 = vpack.c.b16 %v2199, %v2186
    %v3552 = vpack.c.b16 %v2200, %v2187
    %v3553 = vpack.c.b16 %v2201, %v2188
    %v3554 = vpack.c.b16 %v2202, %v2189
    %v3555 = vpack.c.b16 %v2203, %v2190
    %v3556 = vpack.c.b16 %v2204, %v2191
    %v3557 = vpack.c.b16 %v2205, %v2192
    %v3558 = vpack.c.b16 %v2206, %v2193
    %v3559 = vpack.c.b16 %v2207, %v2194
    %v3560 = vpack.c.b16 %v2208, %v2195
    %v3561 = vpack.c.b16 %v2209, %v2196
    %v3562 = vpack.c.b16 %v2210, %v2197
    %v3563 = vpack.c.b16 %v2224, %v2211
    %v3564 = vpack.c.b16 %v2225, %v2212
    %v3565 = vpack.c.b16 %v2226, %v2213
    %v3566 = vpack.c.b16 %v2227, %v2214
    %v3567 = vpack.c.b16 %v2228, %v2215
    %v3568 = vpack.c.b16 %v2229, %v2216
    %v3569 = vpack.c.b16 %v2230, %v2217
    %v3570 = vpack.c.b16 %v2231, %v2218
    %v3571 = vpack.c.b16 %v2232, %v2219
    %v3572 = vpack.c.b16 %v2233, %v2220
    %v3573 = vpack.c.b16 %v2234, %v2221
    %v3574 = vpack.c.b16 %v2235, %v2222
    %v3575 = vpack.c.b16 %v2236, %v2223
    %v3576 = vpack.c.b16 %v2250, %v2237
    %v3577 = vpack.c.b16 %v2251, %v2238
    %v3578 = vpack.c.b16 %v2252, %v2239
    %v3579 = vpack.c.b16 %v2253, %v2240
    %v3580 = vpack.c.b16 %v2254, %v2241
    %v3581 = vpack.c.b16 %v2255, %v2242
    %v3582 = vpack.c.b16 %v2256, %v2243
    %v3583 = vpack.c.b16 %v2257, %v2244
    %v3584 = vpack.c.b16 %v2258, %v2245
    %v3585 = vpack.c.b16 %v2259, %v2246
    %v3586 = vpack.c.b16 %v2260, %v2247
    %v3587 = vpack.c.b16 %v2261, %v2248
    %v3588 = vpack.c.b16 %v2262, %v2249
    %v3589 = vpack.c.b16 %v2276, %v2263
    %v3590 = vpack.c.b16 %v2277, %v2264
    %v3591 = vpack.c.b16 %v2278, %v2265
    %v3592 = vpack.c.b16 %v2279, %v2266
    %v3593 = vpack.c.b16 %v2280, %v2267
    %v3594 = vpack.c.b16 %v2281, %v2268
    %v3595 = vpack.c.b16 %v2282, %v2269
    %v3596 = vpack.c.b16 %v2283, %v2270
    %v3597 = vpack.c.b16 %v2284, %v2271
    %v3598 = vpack.c.b16 %v2285, %v2272
    %v3599 = vpack.c.b16 %v2286, %v2273
    %v3600 = vpack.c.b16 %v2287, %v2274
    %v3601 = vpack.c.b16 %v2288, %v2275
    %v3602 = vpack.c.b16 %v2302, %v2289
    %v3603 = vpack.c.b16 %v2303, %v2290
    %v3604 = vpack.c.b16 %v2304, %v2291
    %v3605 = vpack.c.b16 %v2305, %v2292
    %v3606 = vpack.c.b16 %v2306, %v2293
    %v3607 = vpack.c.b16 %v2307, %v2294
    %v3608 = vpack.c.b16 %v2308, %v2295
    %v3609 = vpack.c.b16 %v2309, %v2296
    %v3610 = vpack.c.b16 %v2310, %v2297
    %v3611 = vpack.c.b16 %v2311, %v2298
    %v3612 = vpack.c.b16 %v2312, %v2299
    %v3613 = vpack.c.b16 %v2313, %v2300
    %v3614 = vpack.c.b16 %v2314, %v2301
    %v3615 = vpack.c.b16 %v2328, %v2315
    %v3616 = vpack.c.b16 %v2329, %v2316
    %v3617 = vpack.c.b16 %v2330, %v2317
    %v3618 = vpack.c.b16 %v2331, %v2318
    %v3619 = vpack.c.b16 %v2332, %v2319
    %v3620 = vpack.c.b16 %v2333, %v2320
    %v3621 = vpack.c.b16 %v2334, %v2321
    %v3622 = vpack.c.b16 %v2335, %v2322
    %v3623 = vpack.c.b16 %v2336, %v2323
    %v3624 = vpack.c.b16 %v2337, %v2324
    %v3625 = vpack.c.b16 %v2338, %v2325
    %v3626 = vpack.c.b16 %v2339, %v2326
    %v3627 = vpack.c.b16 %v2340, %v2327
    %v3628 = vpack.c.b16 %v2354, %v2341
    %v3629 = vpack.c.b16 %v2355, %v2342
    %v3630 = vpack.c.b16 %v2356, %v2343
    %v3631 = vpack.c.b16 %v2357, %v2344
    %v3632 = vpack.c.b16 %v2358, %v2345
    %v3633 = vpack.c.b16 %v2359, %v2346
    %v3634 = vpack.c.b16 %v2360, %v2347
    %v3635 = vpack.c.b16 %v2361, %v2348
    %v3636 = vpack.c.b16 %v2362, %v2349
    %v3637 = vpack.c.b16 %v2363, %v2350
    %v3638 = vpack.c.b16 %v2364, %v2351
    %v3639 = vpack.c.b16 %v2365, %v2352
    %v3640 = vpack.c.b16 %v2366, %v2353
    %v3641 = vpack.c.b16 %v2380, %v2367
    %v3642 = vpack.c.b16 %v2381, %v2368
    %v3643 = vpack.c.b16 %v2382, %v2369
    %v3644 = vpack.c.b16 %v2383, %v2370
    %v3645 = vpack.c.b16 %v2384, %v2371
    %v3646 = vpack.c.b16 %v2385, %v2372
    %v3647 = vpack.c.b16 %v2386, %v2373
    %v3648 = vpack.c.b16 %v2387, %v2374
    %v3649 = vpack.c.b16 %v2388, %v2375
    %v3650 = vpack.c.b16 %v2389, %v2376
    %v3651 = vpack.c.b16 %v2390, %v2377
    %v3652 = vpack.c.b16 %v2391, %v2378
    %v3653 = vpack.c.b16 %v2392, %v2379
    %v3654 = vpack.c.b16 %v2406, %v2393
    %v3655 = vpack.c.b16 %v2407, %v2394
    %v3656 = vpack.c.b16 %v2408, %v2395
    %v3657 = vpack.c.b16 %v2409, %v2396
    %v3658 = vpack.c.b16 %v2410, %v2397
    %v3659 = vpack.c.b16 %v2411, %v2398
    %v3660 = vpack.c.b16 %v2412, %v2399
    %v3661 = vpack.c.b16 %v2413, %v2400
    %v3662 = vpack.c.b16 %v2414, %v2401
    %v3663 = vpack.c.b16 %v2415, %v2402
    %v3664 = vpack.c.b16 %v2416, %v2403
    %v3665 = vpack.c.b16 %v2417, %v2404
    %v3666 = vpack.c.b16 %v2418, %v2405
    %v3667 = vpack.c.b16 %v2432, %v2419
    %v3668 = vpack.c.b16 %v2433, %v2420
    %v3669 = vpack.c.b16 %v2434, %v2421
    %v3670 = vpack.c.b16 %v2435, %v2422
    %v3671 = vpack.c.b16 %v2436, %v2423
    %v3672 = vpack.c.b16 %v2437, %v2424
    %v3673 = vpack.c.b16 %v2438, %v2425
    %v3674 = vpack.c.b16 %v2439, %v2426
    %v3675 = vpack.c.b16 %v2440, %v2427
    %v3676 = vpack.c.b16 %v2441, %v2428
    %v3677 = vpack.c.b16 %v2442, %v2429
    %v3678 = vpack.c.b16 %v2443, %v2430
    %v3679 = vpack.c.b16 %v2444, %v2431
    %v3680 = vpack.c.b16 %v2458, %v2445
    %v3681 = vpack.c.b16 %v2459, %v2446
    %v3682 = vpack.c.b16 %v2460, %v2447
    %v3683 = vpack.c.b16 %v2461, %v2448
    %v3684 = vpack.c.b16 %v2462, %v2449
    %v3685 = vpack.c.b16 %v2463, %v2450
    %v3686 = vpack.c.b16 %v2464, %v2451
    %v3687 = vpack.c.b16 %v2465, %v2452
    %v3688 = vpack.c.b16 %v2466, %v2453
    %v3689 = vpack.c.b16 %v2467, %v2454
    %v3690 = vpack.c.b16 %v2468, %v2455
    %v3691 = vpack.c.b16 %v2469, %v2456
    %v3692 = vpack.c.b16 %v2470, %v2457
    %v3693 = vpack.c.b16 %v2484, %v2471
    %v3694 = vpack.c.b16 %v2485, %v2472
    %v3695 = vpack.c.b16 %v2486, %v2473
    %v3696 = vpack.c.b16 %v2487, %v2474
    %v3697 = vpack.c.b16 %v2488, %v2475
    %v3698 = vpack.c.b16 %v2489, %v2476
    %v3699 = vpack.c.b16 %v2490, %v2477
    %v3700 = vpack.c.b16 %v2491, %v2478
    %v3701 = vpack.c.b16 %v2492, %v2479
    %v3702 = vpack.c.b16 %v2493, %v2480
    %v3703 = vpack.c.b16 %v2494, %v2481
    %v3704 = vpack.c.b16 %v2495, %v2482
    %v3705 = vpack.c.b16 %v2496, %v2483
    %v3706 = vpack.c.b16 %v2510, %v2497
    %v3707 = vpack.c.b16 %v2511, %v2498
    %v3708 = vpack.c.b16 %v2512, %v2499
    %v3709 = vpack.c.b16 %v2513, %v2500
    %v3710 = vpack.c.b16 %v2514, %v2501
    %v3711 = vpack.c.b16 %v2515, %v2502
    %v3712 = vpack.c.b16 %v2516, %v2503
    %v3713 = vpack.c.b16 %v2517, %v2504
    %v3714 = vpack.c.b16 %v2518, %v2505
    %v3715 = vpack.c.b16 %v2519, %v2506
    %v3716 = vpack.c.b16 %v2520, %v2507
    %v3717 = vpack.c.b16 %v2521, %v2508
    %v3718 = vpack.c.b16 %v2522, %v2509
    %v3719 = vpack.c.b16 %v2536, %v2523
    %v3720 = vpack.c.b16 %v2537, %v2524
    %v3721 = vpack.c.b16 %v2538, %v2525
    %v3722 = vpack.c.b16 %v2539, %v2526
    %v3723 = vpack.c.b16 %v2540, %v2527
    %v3724 = vpack.c.b16 %v2541, %v2528
    %v3725 = vpack.c.b16 %v2542, %v2529
    %v3726 = vpack.c.b16 %v2543, %v2530
    %v3727 = vpack.c.b16 %v2544, %v2531
    %v3728 = vpack.c.b16 %v2545, %v2532
    %v3729 = vpack.c.b16 %v2546, %v2533
    %v3730 = vpack.c.b16 %v2547, %v2534
    %v3731 = vpack.c.b16 %v2548, %v2535
    %v3732 = vpack.c.b16 %v2562, %v2549
    %v3733 = vpack.c.b16 %v2563, %v2550
    %v3734 = vpack.c.b16 %v2564, %v2551
    %v3735 = vpack.c.b16 %v2565, %v2552
    %v3736 = vpack.c.b16 %v2566, %v2553
    %v3737 = vpack.c.b16 %v2567, %v2554
    %v3738 = vpack.c.b16 %v2568, %v2555
    %v3739 = vpack.c.b16 %v2569, %v2556
    %v3740 = vpack.c.b16 %v2570, %v2557
    %v3741 = vpack.c.b16 %v2571, %v2558
    %v3742 = vpack.c.b16 %v2572, %v2559
    %v3743 = vpack.c.b16 %v2573, %v2560
    %v3744 = vpack.c.b16 %v2574, %v2561
    %v3745 = vpack.c.b16 %v2588, %v2575
    %v3746 = vpack.c.b16 %v2589, %v2576
    %v3747 = vpack.c.b16 %v2590, %v2577
    %v3748 = vpack.c.b16 %v2591, %v2578
    %v3749 = vpack.c.b16 %v2592, %v2579
    %v3750 = vpack.c.b16 %v2593, %v2580
    %v3751 = vpack.c.b16 %v2594, %v2581
    %v3752 = vpack.c.b16 %v2595, %v2582
    %v3753 = vpack.c.b16 %v2596, %v2583
    %v3754 = vpack.c.b16 %v2597, %v2584
    %v3755 = vpack.c.b16 %v2598, %v2585
    %v3756 = vpack.c.b16 %v2599, %v2586
    %v3757 = vpack.c.b16 %v2600, %v2587
    %v3758 = vpack.c.b16 %v2614, %v2601
    %v3759 = vpack.c.b16 %v2615, %v2602
    %v3760 = vpack.c.b16 %v2616, %v2603
    %v3761 = vpack.c.b16 %v2617, %v2604
    %v3762 = vpack.c.b16 %v2618, %v2605
    %v3763 = vpack.c.b16 %v2619, %v2606
    %v3764 = vpack.c.b16 %v2620, %v2607
    %v3765 = vpack.c.b16 %v2621, %v2608
    %v3766 = vpack.c.b16 %v2622, %v2609
    %v3767 = vpack.c.b16 %v2623, %v2610
    %v3768 = vpack.c.b16 %v2624, %v2611
    %v3769 = vpack.c.b16 %v2625, %v2612
    %v3770 = vpack.c.b16 %v2626, %v2613
    %v3771 = vpack.c.b16 %v2640, %v2627
    %v3772 = vpack.c.b16 %v2641, %v2628
    %v3773 = vpack.c.b16 %v2642, %v2629
    %v3774 = vpack.c.b16 %v2643, %v2630
    %v3775 = vpack.c.b16 %v2644, %v2631
    %v3776 = vpack.c.b16 %v2645, %v2632
    %v3777 = vpack.c.b16 %v2646, %v2633
    %v3778 = vpack.c.b16 %v2647, %v2634
    %v3779 = vpack.c.b16 %v2648, %v2635
    %v3780 = vpack.c.b16 %v2649, %v2636
    %v3781 = vpack.c.b16 %v2650, %v2637
    %v3782 = vpack.c.b16 %v2651, %v2638
    %v3783 = vpack.c.b16 %v2652, %v2639
    %v3784 = vpack.c.b16 %v2666, %v2653
    %v3785 = vpack.c.b16 %v2667, %v2654
    %v3786 = vpack.c.b16 %v2668, %v2655
    %v3787 = vpack.c.b16 %v2669, %v2656
    %v3788 = vpack.c.b16 %v2670, %v2657
    %v3789 = vpack.c.b16 %v2671, %v2658
    %v3790 = vpack.c.b16 %v2672, %v2659
    %v3791 = vpack.c.b16 %v2673, %v2660
    %v3792 = vpack.c.b16 %v2674, %v2661
    %v3793 = vpack.c.b16 %v2675, %v2662
    %v3794 = vpack.c.b16 %v2676, %v2663
    %v3795 = vpack.c.b16 %v2677, %v2664
    %v3796 = vpack.c.b16 %v2678, %v2665
    %v3797 = vpack.c.b16 %v2692, %v2679
    %v3798 = vpack.c.b16 %v2693, %v2680
    %v3799 = vpack.c.b16 %v2694, %v2681
    %v3800 = vpack.c.b16 %v2695, %v2682
    %v3801 = vpack.c.b16 %v2696, %v2683
    %v3802 = vpack.c.b16 %v2697, %v2684
    %v3803 = vpack.c.b16 %v2698, %v2685
    %v3804 = vpack.c.b16 %v2699, %v2686
    %v3805 = vpack.c.b16 %v2700, %v2687
    %v3806 = vpack.c.b16 %v2701, %v2688
    %v3807 = vpack.c.b16 %v2702, %v2689
    %v3808 = vpack.c.b16 %v2703, %v2690
    %v3809 = vpack.c.b16 %v2704, %v2691
    %v3810 = vpack.c.b16 %v2718, %v2705
    %v3811 = vpack.c.b16 %v2719, %v2706
    %v3812 = vpack.c.b16 %v2720, %v2707
    %v3813 = vpack.c.b16 %v2721, %v2708
    %v3814 = vpack.c.b16 %v2722, %v2709
    %v3815 = vpack.c.b16 %v2723, %v2710
    %v3816 = vpack.c.b16 %v2724, %v2711
    %v3817 = vpack.c.b16 %v2725, %v2712
    %v3818 = vpack.c.b16 %v2726, %v2713
    %v3819 = vpack.c.b16 %v2727, %v2714
    %v3820 = vpack.c.b16 %v2728, %v2715
    %v3821 = vpack.c.b16 %v2729, %v2716
    %v3822 = vpack.c.b16 %v2730, %v2717
    %v3823 = vpack.c.b16 %v2744, %v2731
    %v3824 = vpack.c.b16 %v2745, %v2732
    %v3825 = vpack.c.b16 %v2746, %v2733
    %v3826 = vpack.c.b16 %v2747, %v2734
    %v3827 = vpack.c.b16 %v2748, %v2735
    %v3828 = vpack.c.b16 %v2749, %v2736
    %v3829 = vpack.c.b16 %v2750, %v2737
    %v3830 = vpack.c.b16 %v2751, %v2738
    %v3831 = vpack.c.b16 %v2752, %v2739
    %v3832 = vpack.c.b16 %v2753, %v2740
    %v3833 = vpack.c.b16 %v2754, %v2741
    %v3834 = vpack.c.b16 %v2755, %v2742
    %v3835 = vpack.c.b16 %v2756, %v2743
    %v3836 = vpack.c.b16 %v2770, %v2757
    %v3837 = vpack.c.b16 %v2771, %v2758
    %v3838 = vpack.c.b16 %v2772, %v2759
    %v3839 = vpack.c.b16 %v2773, %v2760
    %v3840 = vpack.c.b16 %v2774, %v2761
    %v3841 = vpack.c.b16 %v2775, %v2762
    %v3842 = vpack.c.b16 %v2776, %v2763
    %v3843 = vpack.c.b16 %v2777, %v2764
    %v3844 = vpack.c.b16 %v2778, %v2765
    %v3845 = vpack.c.b16 %v2779, %v2766
    %v3846 = vpack.c.b16 %v2780, %v2767
    %v3847 = vpack.c.b16 %v2781, %v2768
    %v3848 = vpack.c.b16 %v2782, %v2769
    %v3849 = vpack.c.b16 %v2796, %v2783
    %v3850 = vpack.c.b16 %v2797, %v2784
    %v3851 = vpack.c.b16 %v2798, %v2785
    %v3852 = vpack.c.b16 %v2799, %v2786
    %v3853 = vpack.c.b16 %v2800, %v2787
    %v3854 = vpack.c.b16 %v2801, %v2788
    %v3855 = vpack.c.b16 %v2802, %v2789
    %v3856 = vpack.c.b16 %v2803, %v2790
    %v3857 = vpack.c.b16 %v2804, %v2791
    %v3858 = vpack.c.b16 %v2805, %v2792
    %v3859 = vpack.c.b16 %v2806, %v2793
    %v3860 = vpack.c.b16 %v2807, %v2794
    %v3861 = vpack.c.b16 %v2808, %v2795
    %v3862 = vpack.c.b16 %v2822, %v2809
    %v3863 = vpack.c.b16 %v2823, %v2810
    %v3864 = vpack.c.b16 %v2824, %v2811
    %v3865 = vpack.c.b16 %v2825, %v2812
    %v3866 = vpack.c.b16 %v2826, %v2813
    %v3867 = vpack.c.b16 %v2827, %v2814
    %v3868 = vpack.c.b16 %v2828, %v2815
    %v3869 = vpack.c.b16 %v2829, %v2816
    %v3870 = vpack.c.b16 %v2830, %v2817
    %v3871 = vpack.c.b16 %v2831, %v2818
    %v3872 = vpack.c.b16 %v2832, %v2819
    %v3873 = vpack.c.b16 %v2833, %v2820
    %v3874 = vpack.c.b16 %v2834, %v2821
    %v3875 = vpack.c.b16 %v2848, %v2835
    %v3876 = vpack.c.b16 %v2849, %v2836
    %v3877 = vpack.c.b16 %v2850, %v2837
    %v3878 = vpack.c.b16 %v2851, %v2838
    %v3879 = vpack.c.b16 %v2852, %v2839
    %v3880 = vpack.c.b16 %v2853, %v2840
    %v3881 = vpack.c.b16 %v2854, %v2841
    %v3882 = vpack.c.b16 %v2855, %v2842
    %v3883 = vpack.c.b16 %v2856, %v2843
    %v3884 = vpack.c.b16 %v2857, %v2844
    %v3885 = vpack.c.b16 %v2858, %v2845
    %v3886 = vpack.c.b16 %v2859, %v2846
    %v3887 = vpack.c.b16 %v2860, %v2847
    %v3888 = vpack.c.b16 %v2874, %v2861
    %v3889 = vpack.c.b16 %v2875, %v2862
    %v3890 = vpack.c.b16 %v2876, %v2863
    %v3891 = vpack.c.b16 %v2877, %v2864
    %v3892 = vpack.c.b16 %v2878, %v2865
    %v3893 = vpack.c.b16 %v2879, %v2866
    %v3894 = vpack.c.b16 %v2880, %v2867
    %v3895 = vpack.c.b16 %v2881, %v2868
    %v3896 = vpack.c.b16 %v2882, %v2869
    %v3897 = vpack.c.b16 %v2883, %v2870
    %v3898 = vpack.c.b16 %v2884, %v2871
    %v3899 = vpack.c.b16 %v2885, %v2872
    %v3900 = vpack.c.b16 %v2886, %v2873
    %v3901 = vpack.c.b16 %v2900, %v2887
    %v3902 = vpack.c.b16 %v2901, %v2888
    %v3903 = vpack.c.b16 %v2902, %v2889
    %v3904 = vpack.c.b16 %v2903, %v2890
    %v3905 = vpack.c.b16 %v2904, %v2891
    %v3906 = vpack.c.b16 %v2905, %v2892
    %v3907 = vpack.c.b16 %v2906, %v2893
    %v3908 = vpack.c.b16 %v2907, %v2894
    %v3909 = vpack.c.b16 %v2908, %v2895
    %v3910 = vpack.c.b16 %v2909, %v2896
    %v3911 = vpack.c.b16 %v2910, %v2897
    %v3912 = vpack.c.b16 %v2911, %v2898
    %v3913 = vpack.c.b16 %v2912, %v2899
    %v3914 = vpack.c.b16 %v2926, %v2913
    %v3915 = vpack.c.b16 %v2927, %v2914
    %v3916 = vpack.c.b16 %v2928, %v2915
    %v3917 = vpack.c.b16 %v2929, %v2916
    %v3918 = vpack.c.b16 %v2930, %v2917
    %v3919 = vpack.c.b16 %v2931, %v2918
    %v3920 = vpack.c.b16 %v2932, %v2919
    %v3921 = vpack.c.b16 %v2933, %v2920
    %v3922 = vpack.c.b16 %v2934, %v2921
    %v3923 = vpack.c.b16 %v2935, %v2922
    %v3924 = vpack.c.b16 %v2936, %v2923
    %v3925 = vpack.c.b16 %v2937, %v2924
    %v3926 = vpack.c.b16 %v2938, %v2925
    %v3927 = vpack.c.b16 %v2952, %v2939
    %v3928 = vpack.c.b16 %v2953, %v2940
    %v3929 = vpack.c.b16 %v2954, %v2941
    %v3930 = vpack.c.b16 %v2955, %v2942
    %v3931 = vpack.c.b16 %v2956, %v2943
    %v3932 = vpack.c.b16 %v2957, %v2944
    %v3933 = vpack.c.b16 %v2958, %v2945
    %v3934 = vpack.c.b16 %v2959, %v2946
    %v3935 = vpack.c.b16 %v2960, %v2947
    %v3936 = vpack.c.b16 %v2961, %v2948
    %v3937 = vpack.c.b16 %v2962, %v2949
    %v3938 = vpack.c.b16 %v2963, %v2950
    %v3939 = vpack.c.b16 %v2964, %v2951
    %v3940 = vpack.c.b16 %v2978, %v2965
    %v3941 = vpack.c.b16 %v2979, %v2966
    %v3942 = vpack.c.b16 %v2980, %v2967
    %v3943 = vpack.c.b16 %v2981, %v2968
    %v3944 = vpack.c.b16 %v2982, %v2969
    %v3945 = vpack.c.b16 %v2983, %v2970
    %v3946 = vpack.c.b16 %v2984, %v2971
    %v3947 = vpack.c.b16 %v2985, %v2972
    %v3948 = vpack.c.b16 %v2986, %v2973
    %v3949 = vpack.c.b16 %v2987, %v2974
    %v3950 = vpack.c.b16 %v2988, %v2975
    %v3951 = vpack.c.b16 %v2989, %v2976
    %v3952 = vpack.c.b16 %v2990, %v2977
    %v3953 = vpack.c.b16 %v3004, %v2991
    %v3954 = vpack.c.b16 %v3005, %v2992
    %v3955 = vpack.c.b16 %v3006, %v2993
    %v3956 = vpack.c.b16 %v3007, %v2994
    %v3957 = vpack.c.b16 %v3008, %v2995
    %v3958 = vpack.c.b16 %v3009, %v2996
    %v3959 = vpack.c.b16 %v3010, %v2997
    %v3960 = vpack.c.b16 %v3011, %v2998
    %v3961 = vpack.c.b16 %v3012, %v2999
    %v3962 = vpack.c.b16 %v3013, %v3000
    %v3963 = vpack.c.b16 %v3014, %v3001
    %v3964 = vpack.c.b16 %v3015, %v3002
    %v3965 = vpack.c.b16 %v3016, %v3003
    %v3966 = vpack.c.b16 %v3030, %v3017
    %v3967 = vpack.c.b16 %v3031, %v3018
    %v3968 = vpack.c.b16 %v3032, %v3019
    %v3969 = vpack.c.b16 %v3033, %v3020
    %v3970 = vpack.c.b16 %v3034, %v3021
    %v3971 = vpack.c.b16 %v3035, %v3022
    %v3972 = vpack.c.b16 %v3036, %v3023
    %v3973 = vpack.c.b16 %v3037, %v3024
    %v3974 = vpack.c.b16 %v3038, %v3025
    %v3975 = vpack.c.b16 %v3039, %v3026
    %v3976 = vpack.c.b16 %v3040, %v3027
    %v3977 = vpack.c.b16 %v3041, %v3028
    %v3978 = vpack.c.b16 %v3042, %v3029
    %v3979 = vpack.c.b16 %v3056, %v3043
    %v3980 = vpack.c.b16 %v3057, %v3044
    %v3981 = vpack.c.b16 %v3058, %v3045
    %v3982 = vpack.c.b16 %v3059, %v3046
    %v3983 = vpack.c.b16 %v3060, %v3047
    %v3984 = vpack.c.b16 %v3061, %v3048
    %v3985 = vpack.c.b16 %v3062, %v3049
    %v3986 = vpack.c.b16 %v3063, %v3050
    %v3987 = vpack.c.b16 %v3064, %v3051
    %v3988 = vpack.c.b16 %v3065, %v3052
    %v3989 = vpack.c.b16 %v3066, %v3053
    %v3990 = vpack.c.b16 %v3067, %v3054
    %v3991 = vpack.c.b16 %v3068, %v3055
    %v3992 = vpack.c.b16 %v3082, %v3069
    %v3993 = vpack.c.b16 %v3083, %v3070
    %v3994 = vpack.c.b16 %v3084, %v3071
    %v3995 = vpack.c.b16 %v3085, %v3072
    %v3996 = vpack.c.b16 %v3086, %v3073
    %v3997 = vpack.c.b16 %v3087, %v3074
    %v3998 = vpack.c.b16 %v3088, %v3075
    %v3999 = vpack.c.b16 %v3089, %v3076
    %v4000 = vpack.c.b16 %v3090, %v3077
    %v4001 = vpack.c.b16 %v3091, %v3078
    %v4002 = vpack.c.b16 %v3092, %v3079
    %v4003 = vpack.c.b16 %v3093, %v3080
    %v4004 = vpack.c.b16 %v3094, %v3081
    %v4005 = vpack.c.b16 %v3108, %v3095
    %v4006 = vpack.c.b16 %v3109, %v3096
    %v4007 = vpack.c.b16 %v3110, %v3097
    %v4008 = vpack.c.b16 %v3111, %v3098
    %v4009 = vpack.c.b16 %v3112, %v3099
    %v4010 = vpack.c.b16 %v3113, %v3100
    %v4011 = vpack.c.b16 %v3114, %v3101
    %v4012 = vpack.c.b16 %v3115, %v3102
    %v4013 = vpack.c.b16 %v3116, %v3103
    %v4014 = vpack.c.b16 %v3117, %v3104
    %v4015 = vpack.c.b16 %v3118, %v3105
    %v4016 = vpack.c.b16 %v3119, %v3106
    %v4017 = vpack.c.b16 %v3120, %v3107
    %v4018 = vpack.c.b16 %v3134, %v3121
    %v4019 = vpack.c.b16 %v3135, %v3122
    %v4020 = vpack.c.b16 %v3136, %v3123
    %v4021 = vpack.c.b16 %v3137, %v3124
    %v4022 = vpack.c.b16 %v3138, %v3125
    %v4023 = vpack.c.b16 %v3139, %v3126
    %v4024 = vpack.c.b16 %v3140, %v3127
    %v4025 = vpack.c.b16 %v3141, %v3128
    %v4026 = vpack.c.b16 %v3142, %v3129
    %v4027 = vpack.c.b16 %v3143, %v3130
    %v4028 = vpack.c.b16 %v3144, %v3131
    %v4029 = vpack.c.b16 %v3145, %v3132
    %v4030 = vpack.c.b16 %v3146, %v3133
    %v4031 = vpack.c.b16 %v3160, %v3147
    %v4032 = vpack.c.b16 %v3161, %v3148
    %v4033 = vpack.c.b16 %v3162, %v3149
    %v4034 = vpack.c.b16 %v3163, %v3150
    %v4035 = vpack.c.b16 %v3164, %v3151
    %v4036 = vpack.c.b16 %v3165, %v3152
    %v4037 = vpack.c.b16 %v3166, %v3153
    %v4038 = vpack.c.b16 %v3167, %v3154
    %v4039 = vpack.c.b16 %v3168, %v3155
    %v4040 = vpack.c.b16 %v3169, %v3156
    %v4041 = vpack.c.b16 %v3170, %v3157
    %v4042 = vpack.c.b16 %v3171, %v3158
    %v4043 = vpack.c.b16 %v3172, %v3159
    %v4044 = vpack.c.b16 %v3186, %v3173
    %v4045 = vpack.c.b16 %v3187, %v3174
    %v4046 = vpack.c.b16 %v3188, %v3175
    %v4047 = vpack.c.b16 %v3189, %v3176
    %v4048 = vpack.c.b16 %v3190, %v3177
    %v4049 = vpack.c.b16 %v3191, %v3178
    %v4050 = vpack.c.b16 %v3192, %v3179
    %v4051 = vpack.c.b16 %v3193, %v3180
    %v4052 = vpack.c.b16 %v3194, %v3181
    %v4053 = vpack.c.b16 %v3195, %v3182
    %v4054 = vpack.c.b16 %v3196, %v3183
    %v4055 = vpack.c.b16 %v3197, %v3184
    %v4056 = vpack.c.b16 %v3198, %v3185
    %v4057 = vpack.c.b16 %v3212, %v3199
    %v4058 = vpack.c.b16 %v3213, %v3200
    %v4059 = vpack.c.b16 %v3214, %v3201
    %v4060 = vpack.c.b16 %v3215, %v3202
    %v4061 = vpack.c.b16 %v3216, %v3203
    %v4062 = vpack.c.b16 %v3217, %v3204
    %v4063 = vpack.c.b16 %v3218, %v3205
    %v4064 = vpack.c.b16 %v3219, %v3206
    %v4065 = vpack.c.b16 %v3220, %v3207
    %v4066 = vpack.c.b16 %v3221, %v3208
    %v4067 = vpack.c.b16 %v3222, %v3209
    %v4068 = vpack.c.b16 %v3223, %v3210
    %v4069 = vpack.c.b16 %v3224, %v3211
    %v4070 = vpack.c.b16 %v3238, %v3225
    %v4071 = vpack.c.b16 %v3239, %v3226
    %v4072 = vpack.c.b16 %v3240, %v3227
    %v4073 = vpack.c.b16 %v3241, %v3228
    %v4074 = vpack.c.b16 %v3242, %v3229
    %v4075 = vpack.c.b16 %v3243, %v3230
    %v4076 = vpack.c.b16 %v3244, %v3231
    %v4077 = vpack.c.b16 %v3245, %v3232
    %v4078 = vpack.c.b16 %v3246, %v3233
    %v4079 = vpack.c.b16 %v3247, %v3234
    %v4080 = vpack.c.b16 %v3248, %v3235
    %v4081 = vpack.c.b16 %v3249, %v3236
    %v4082 = vpack.c.b16 %v3250, %v3237
    %v4083 = vpack.c.b16 %v3264, %v3251
    %v4084 = vpack.c.b16 %v3265, %v3252
    %v4085 = vpack.c.b16 %v3266, %v3253
    %v4086 = vpack.c.b16 %v3267, %v3254
    %v4087 = vpack.c.b16 %v3268, %v3255
    %v4088 = vpack.c.b16 %v3269, %v3256
    %v4089 = vpack.c.b16 %v3270, %v3257
    %v4090 = vpack.c.b16 %v3271, %v3258
    %v4091 = vpack.c.b16 %v3272, %v3259
    %v4092 = vpack.c.b16 %v3273, %v3260
    %v4093 = vpack.c.b16 %v3274, %v3261
    %v4094 = vpack.c.b16 %v3275, %v3262
    %v4095 = vpack.c.b16 %v3276, %v3263
    %v4096 = vpack.c.b16 %v3290, %v3277
    %v4097 = vpack.c.b16 %v3291, %v3278
    %v4098 = vpack.c.b16 %v3292, %v3279
    %v4099 = vpack.c.b16 %v3293, %v3280
    %v4100 = vpack.c.b16 %v3294, %v3281
    %v4101 = vpack.c.b16 %v3295, %v3282
    %v4102 = vpack.c.b16 %v3296, %v3283
    %v4103 = vpack.c.b16 %v3297, %v3284
    %v4104 = vpack.c.b16 %v3298, %v3285
    %v4105 = vpack.c.b16 %v3299, %v3286
    %v4106 = vpack.c.b16 %v3300, %v3287
    %v4107 = vpack.c.b16 %v3301, %v3288
    %v4108 = vpack.c.b16 %v3302, %v3289
    %v4109 = vpack.c.b16 %v3316, %v3303
    %v4110 = vpack.c.b16 %v3317, %v3304
    %v4111 = vpack.c.b16 %v3318, %v3305
    %v4112 = vpack.c.b16 %v3319, %v3306
    %v4113 = vpack.c.b16 %v3320, %v3307
    %v4114 = vpack.c.b16 %v3321, %v3308
    %v4115 = vpack.c.b16 %v3322, %v3309
    %v4116 = vpack.c.b16 %v3323, %v3310
    %v4117 = vpack.c.b16 %v3324, %v3311
    %v4118 = vpack.c.b16 %v3325, %v3312
    %v4119 = vpack.c.b16 %v3326, %v3313
    %v4120 = vpack.c.b16 %v3327, %v3314
    %v4121 = vpack.c.b16 %v3328, %v3315
    %v4122 = vpack.c.b16 %v3342, %v3329
    %v4123 = vpack.c.b16 %v3343, %v3330
    %v4124 = vpack.c.b16 %v3344, %v3331
    %v4125 = vpack.c.b16 %v3345, %v3332
    %v4126 = vpack.c.b16 %v3346, %v3333
    %v4127 = vpack.c.b16 %v3347, %v3334
    %v4128 = vpack.c.b16 %v3348, %v3335
    %v4129 = vpack.c.b16 %v3349, %v3336
    %v4130 = vpack.c.b16 %v3350, %v3337
    %v4131 = vpack.c.b16 %v3351, %v3338
    %v4132 = vpack.c.b16 %v3352, %v3339
    %v4133 = vpack.c.b16 %v3353, %v3340
    %v4134 = vpack.c.b16 %v3354, %v3341
    %v4135 = vpack.c.b16 %v3368, %v3355
    %v4136 = vpack.c.b16 %v3369, %v3356
    %v4137 = vpack.c.b16 %v3370, %v3357
    %v4138 = vpack.c.b16 %v3371, %v3358
    %v4139 = vpack.c.b16 %v3372, %v3359
    %v4140 = vpack.c.b16 %v3373, %v3360
    %v4141 = vpack.c.b16 %v3374, %v3361
    %v4142 = vpack.c.b16 %v3375, %v3362
    %v4143 = vpack.c.b16 %v3376, %v3363
    %v4144 = vpack.c.b16 %v3377, %v3364
    %v4145 = vpack.c.b16 %v3378, %v3365
    %v4146 = vpack.c.b16 %v3379, %v3366
    %v4147 = vpack.c.b16 %v3380, %v3367
    %v4148 = vpack.c.b16 %v3394, %v3381
    %v4149 = vpack.c.b16 %v3395, %v3382
    %v4150 = vpack.c.b16 %v3396, %v3383
    %v4151 = vpack.c.b16 %v3397, %v3384
    %v4152 = vpack.c.b16 %v3398, %v3385
    %v4153 = vpack.c.b16 %v3399, %v3386
    %v4154 = vpack.c.b16 %v3400, %v3387
    %v4155 = vpack.c.b16 %v3401, %v3388
    %v4156 = vpack.c.b16 %v3402, %v3389
    %v4157 = vpack.c.b16 %v3403, %v3390
    %v4158 = vpack.c.b16 %v3404, %v3391
    %v4159 = vpack.c.b16 %v3405, %v3392
    %v4160 = vpack.c.b16 %v3406, %v3393
    %v4161 = vpack.c.b16 %v3420, %v3407
    %v4162 = vpack.c.b16 %v3421, %v3408
    %v4163 = vpack.c.b16 %v3422, %v3409
    %v4164 = vpack.c.b16 %v3423, %v3410
    %v4165 = vpack.c.b16 %v3424, %v3411
    %v4166 = vpack.c.b16 %v3425, %v3412
    %v4167 = vpack.c.b16 %v3426, %v3413
    %v4168 = vpack.c.b16 %v3427, %v3414
    %v4169 = vpack.c.b16 %v3428, %v3415
    %v4170 = vpack.c.b16 %v3429, %v3416
    %v4171 = vpack.c.b16 %v3430, %v3417
    %v4172 = vpack.c.b16 %v3431, %v3418
    %v4173 = vpack.c.b16 %v3432, %v3419
    %v4174 = vpack.c.b16 %v3446, %v3433
    %v4175 = vpack.c.b16 %v3447, %v3434
    %v4176 = vpack.c.b16 %v3448, %v3435
    %v4177 = vpack.c.b16 %v3449, %v3436
    %v4178 = vpack.c.b16 %v3450, %v3437
    %v4179 = vpack.c.b16 %v3451, %v3438
    %v4180 = vpack.c.b16 %v3452, %v3439
    %v4181 = vpack.c.b16 %v3453, %v3440
    %v4182 = vpack.c.b16 %v3454, %v3441
    %v4183 = vpack.c.b16 %v3455, %v3442
    %v4184 = vpack.c.b16 %v3456, %v3443
    %v4185 = vpack.c.b16 %v3457, %v3444
    %v4186 = vpack.c.b16 %v3458, %v3445
    %4915 = vmatprep.subr.bf16.mxu0 %v3551
    %4916 = vmatpush1.bf16.msra.mxu0 %v3550
    %4917 = vmatprep.subr.bf16.mxu0 %v3538
    %4918 = vmatpush1.bf16.msra.mxu0 %v3537
    %4919 = vmatprep.subr.bf16.mxu0 %v3525
    %4920 = vmatpush1.bf16.msra.mxu0 %v3524
    %4921 = vmatprep.subr.bf16.mxu0 %v3512
    %4922 = vmatpush1.bf16.msra.mxu0 %v3511
    %4923 = vmatprep.subr.bf16.mxu0 %v3499
    %4924 = vmatpush1.bf16.msra.mxu0 %v3498
    %4925 = vmatprep.subr.bf16.mxu0 %v3486
    %4926 = vmatpush1.bf16.msra.mxu0 %v3485
    %4927 = vmatprep.subr.bf16.mxu0 %v3473
    %4928 = vmatpush1.bf16.msra.mxu0 %v3472
    %4929 = vmatprep.subr.bf16.mxu0 %v3460
    %4930 = vmatpush1.bf16.msra.mxu0 %v3459
    %4931 = vmatprep.subr.bf16.mxu0 %v3655
    %4932 = vmatpush2.bf16.msra.mxu0 %v3654
    %4933 = vmatprep.subr.bf16.mxu0 %v3642
    %4934 = vmatpush2.bf16.msra.mxu0 %v3641
    %4935 = vmatprep.subr.bf16.mxu0 %v3629
    %4936 = vmatpush2.bf16.msra.mxu0 %v3628
    %4937 = vmatprep.subr.bf16.mxu0 %v3616
    %4938 = vmatpush2.bf16.msra.mxu0 %v3615
    %4939 = vmatprep.subr.bf16.mxu0 %v3603
    %4940 = vmatpush2.bf16.msra.mxu0 %v3602
    %4941 = vmatprep.subr.bf16.mxu0 %v3590
    %4942 = vmatpush2.bf16.msra.mxu0 %v3589
    %4943 = vmatprep.subr.bf16.mxu0 %v3577
    %4944 = vmatpush2.bf16.msra.mxu0 %v3576
    %4945 = vmatprep.subr.bf16.mxu0 %v3564
    %4946 = vmatpush2.bf16.msra.mxu0 %v3563
    %4947 = vmatprep.mubr.bf16.mxu0 %v360
    %4948 = vmatmul.mubr.bf16.gmra.mxu0 %v359
    %v4949 = vpop.f32.mrf.mxu0
    %v4950 = vadd.f32 %v1157, %v4949
    %v4951 = vpop.f32.mrf.mxu0
    %v4952 = vadd.f32 %v1161, %v4951
    %v4953 = vpop.f32.mrf.mxu0
    %v4954 = vpop.f32.mrf.mxu0
    %4955 = vdwg.mxu0
    %4956 = vmatprep.subr.bf16.mxu0 %v3759
    %4957 = vmatpush1.bf16.msra.mxu0 %v3758
    %4958 = vmatprep.subr.bf16.mxu0 %v3746
    %4959 = vmatpush1.bf16.msra.mxu0 %v3745
    %4960 = vmatprep.subr.bf16.mxu0 %v3733
    %4961 = vmatpush1.bf16.msra.mxu0 %v3732
    %4962 = vmatprep.subr.bf16.mxu0 %v3720
    %4963 = vmatpush1.bf16.msra.mxu0 %v3719
    %4964 = vmatprep.subr.bf16.mxu0 %v3707
    %4965 = vmatpush1.bf16.msra.mxu0 %v3706
    %4966 = vmatprep.subr.bf16.mxu0 %v3694
    %4967 = vmatpush1.bf16.msra.mxu0 %v3693
    %4968 = vmatprep.subr.bf16.mxu0 %v3681
    %4969 = vmatpush1.bf16.msra.mxu0 %v3680
    %4970 = vmatprep.subr.bf16.mxu0 %v3668
    %4971 = vmatpush1.bf16.msra.mxu0 %v3667
    %4972 = vmatprep.subr.bf16.mxu0 %v3863
    %4973 = vmatpush2.bf16.msra.mxu0 %v3862
    %4974 = vmatprep.subr.bf16.mxu0 %v3850
    %4975 = vmatpush2.bf16.msra.mxu0 %v3849
    %4976 = vmatprep.subr.bf16.mxu0 %v3837
    %4977 = vmatpush2.bf16.msra.mxu0 %v3836
    %4978 = vmatprep.subr.bf16.mxu0 %v3824
    %4979 = vmatpush2.bf16.msra.mxu0 %v3823
    %4980 = vmatprep.subr.bf16.mxu0 %v3811
    %4981 = vmatpush2.bf16.msra.mxu0 %v3810
    %4982 = vmatprep.subr.bf16.mxu0 %v3798
    %4983 = vmatpush2.bf16.msra.mxu0 %v3797
    %4984 = vmatprep.subr.bf16.mxu0 %v3785
    %4985 = vmatpush2.bf16.msra.mxu0 %v3784
    %4986 = vmatprep.subr.bf16.mxu0 %v3772
    %4987 = vmatpush2.bf16.msra.mxu0 %v3771
    %4988 = vmatprep.mubr.bf16.mxu0 %v362
    %4989 = vmatmul.mubr.bf16.gmra.mxu0 %v361
    %v4990 = vpop.f32.mrf.mxu0
    %v4991 = vadd.f32 %v4950, %v4990
    %v4992 = vpop.f32.mrf.mxu0
    %v4993 = vadd.f32 %v4952, %v4992
    %v4994 = vpop.f32.mrf.mxu0
    %v4995 = vpop.f32.mrf.mxu0
    %4996 = vdwg.mxu0
    %4997 = vmatprep.subr.bf16.mxu0 %v3967
    %4998 = vmatpush1.bf16.msra.mxu0 %v3966
    %4999 = vmatprep.subr.bf16.mxu0 %v3954
    %5000 = vmatpush1.bf16.msra.mxu0 %v3953
    %5001 = vmatprep.subr.bf16.mxu0 %v3941
    %5002 = vmatpush1.bf16.msra.mxu0 %v3940
    %5003 = vmatprep.subr.bf16.mxu0 %v3928
    %5004 = vmatpush1.bf16.msra.mxu0 %v3927
    %5005 = vmatprep.subr.bf16.mxu0 %v3915
    %5006 = vmatpush1.bf16.msra.mxu0 %v3914
    %5007 = vmatprep.subr.bf16.mxu0 %v3902
    %5008 = vmatpush1.bf16.msra.mxu0 %v3901
    %5009 = vmatprep.subr.bf16.mxu0 %v3889
    %5010 = vmatpush1.bf16.msra.mxu0 %v3888
    %5011 = vmatprep.subr.bf16.mxu0 %v3876
    %5012 = vmatpush1.bf16.msra.mxu0 %v3875
    %5013 = vmatprep.subr.bf16.mxu0 %v4071
    %5014 = vmatpush2.bf16.msra.mxu0 %v4070
    %5015 = vmatprep.subr.bf16.mxu0 %v4058
    %5016 = vmatpush2.bf16.msra.mxu0 %v4057
    %5017 = vmatprep.subr.bf16.mxu0 %v4045
    %5018 = vmatpush2.bf16.msra.mxu0 %v4044
    %5019 = vmatprep.subr.bf16.mxu0 %v4032
    %5020 = vmatpush2.bf16.msra.mxu0 %v4031
    %5021 = vmatprep.subr.bf16.mxu0 %v4019
    %5022 = vmatpush2.bf16.msra.mxu0 %v4018
    %5023 = vmatprep.subr.bf16.mxu0 %v4006
    %5024 = vmatpush2.bf16.msra.mxu0 %v4005
    %5025 = vmatprep.subr.bf16.mxu0 %v3993
    %5026 = vmatpush2.bf16.msra.mxu0 %v3992
    %5027 = vmatprep.subr.bf16.mxu0 %v3980
    %5028 = vmatpush2.bf16.msra.mxu0 %v3979
    %5029 = vmatprep.mubr.bf16.mxu0 %v364
    %5030 = vmatmul.mubr.bf16.gmra.mxu0 %v363
    %v5031 = vpop.f32.mrf.mxu0
    %v5032 = vadd.f32 %v4991, %v5031
    %v5033 = vpop.f32.mrf.mxu0
    %v5034 = vadd.f32 %v4993, %v5033
    %v5035 = vpop.f32.mrf.mxu0
    %v5036 = vpop.f32.mrf.mxu0
    %5037 = vdwg.mxu0
    %5038 = vmatprep.subr.bf16.mxu0 %v4175
    %5039 = vmatpush1.bf16.msra.mxu0 %v4174
    %5040 = vmatprep.subr.bf16.mxu0 %v4162
    %5041 = vmatpush1.bf16.msra.mxu0 %v4161
    %5042 = vmatprep.subr.bf16.mxu0 %v4149
    %5043 = vmatpush1.bf16.msra.mxu0 %v4148
    %5044 = vmatprep.subr.bf16.mxu0 %v4136
    %5045 = vmatpush1.bf16.msra.mxu0 %v4135
    %5046 = vmatprep.subr.bf16.mxu0 %v4123
    %5047 = vmatpush1.bf16.msra.mxu0 %v4122
    %5048 = vmatprep.subr.bf16.mxu0 %v4110
    %5049 = vmatpush1.bf16.msra.mxu0 %v4109
    %5050 = vmatprep.subr.bf16.mxu0 %v4097
    %5051 = vmatpush1.bf16.msra.mxu0 %v4096
    %5052 = vmatprep.subr.bf16.mxu0 %v4084
    %5053 = vmatpush1.bf16.msra.mxu0 %v4083
    %5054 = vmatprep.subr.bf16.mxu0 0
    %5055 = vmatpush2.bf16.msra.mxu0 0
    %5056 = vmatprep.subr.bf16.mxu0 0
    %5057 = vmatpush2.bf16.msra.mxu0 0
    %5058 = vmatprep.subr.bf16.mxu0 0
    %5059 = vmatpush2.bf16.msra.mxu0 0
    %5060 = vmatprep.subr.bf16.mxu0 0
    %5061 = vmatpush2.bf16.msra.mxu0 0
    %5062 = vmatprep.subr.bf16.mxu0 0
    %5063 = vmatpush2.bf16.msra.mxu0 0
    %5064 = vmatprep.subr.bf16.mxu0 0
    %5065 = vmatpush2.bf16.msra.mxu0 0
    %5066 = vmatprep.subr.bf16.mxu0 0
    %5067 = vmatpush2.bf16.msra.mxu0 0
    %5068 = vmatprep.subr.bf16.mxu0 0
    %5069 = vmatpush2.bf16.msra.mxu0 0
    %5070 = vmatprep.mubr.bf16.mxu0 0
    %5071 = vmatmul.mubr.bf16.gmra.mxu0 %v365
    %v5072 = vpop.f32.mrf.mxu0
    %v5073 = vadd.f32 %v5032, %v5072
    %v5074 = vpop.f32.mrf.mxu0
    %v5075 = vadd.f32 %v5034, %v5074
    %v5076 = vpop.f32.mrf.mxu0
    %v5077 = vpop.f32.mrf.mxu0
    %5078 = vdwg.mxu0
    %5079 = vmatprep.subr.bf16.mxu0 %v3553
    %5080 = vmatpush1.bf16.msra.mxu0 %v3552
    %5081 = vmatprep.subr.bf16.mxu0 %v3540
    %5082 = vmatpush1.bf16.msra.mxu0 %v3539
    %5083 = vmatprep.subr.bf16.mxu0 %v3527
    %5084 = vmatpush1.bf16.msra.mxu0 %v3526
    %5085 = vmatprep.subr.bf16.mxu0 %v3514
    %5086 = vmatpush1.bf16.msra.mxu0 %v3513
    %5087 = vmatprep.subr.bf16.mxu0 %v3501
    %5088 = vmatpush1.bf16.msra.mxu0 %v3500
    %5089 = vmatprep.subr.bf16.mxu0 %v3488
    %5090 = vmatpush1.bf16.msra.mxu0 %v3487
    %5091 = vmatprep.subr.bf16.mxu0 %v3475
    %5092 = vmatpush1.bf16.msra.mxu0 %v3474
    %5093 = vmatprep.subr.bf16.mxu0 %v3462
    %5094 = vmatpush1.bf16.msra.mxu0 %v3461
    %5095 = vmatprep.subr.bf16.mxu0 %v3657
    %5096 = vmatpush2.bf16.msra.mxu0 %v3656
    %5097 = vmatprep.subr.bf16.mxu0 %v3644
    %5098 = vmatpush2.bf16.msra.mxu0 %v3643
    %5099 = vmatprep.subr.bf16.mxu0 %v3631
    %5100 = vmatpush2.bf16.msra.mxu0 %v3630
    %5101 = vmatprep.subr.bf16.mxu0 %v3618
    %5102 = vmatpush2.bf16.msra.mxu0 %v3617
    %5103 = vmatprep.subr.bf16.mxu0 %v3605
    %5104 = vmatpush2.bf16.msra.mxu0 %v3604
    %5105 = vmatprep.subr.bf16.mxu0 %v3592
    %5106 = vmatpush2.bf16.msra.mxu0 %v3591
    %5107 = vmatprep.subr.bf16.mxu0 %v3579
    %5108 = vmatpush2.bf16.msra.mxu0 %v3578
    %5109 = vmatprep.subr.bf16.mxu0 %v3566
    %5110 = vmatpush2.bf16.msra.mxu0 %v3565
    %5111 = vmatprep.mubr.bf16.mxu0 %v360
    %5112 = vmatmul.mubr.bf16.gmra.mxu0 %v359
    %v5113 = vpop.f32.mrf.mxu0
    %v5114 = vadd.f32 %v1165, %v5113
    %v5115 = vpop.f32.mrf.mxu0
    %v5116 = vadd.f32 %v1169, %v5115
    %v5117 = vpop.f32.mrf.mxu0
    %v5118 = vpop.f32.mrf.mxu0
    %5119 = vdwg.mxu0
    %5120 = vmatprep.subr.bf16.mxu0 %v3761
    %5121 = vmatpush1.bf16.msra.mxu0 %v3760
    %5122 = vmatprep.subr.bf16.mxu0 %v3748
    %5123 = vmatpush1.bf16.msra.mxu0 %v3747
    %5124 = vmatprep.subr.bf16.mxu0 %v3735
    %5125 = vmatpush1.bf16.msra.mxu0 %v3734
    %5126 = vmatprep.subr.bf16.mxu0 %v3722
    %5127 = vmatpush1.bf16.msra.mxu0 %v3721
    %5128 = vmatprep.subr.bf16.mxu0 %v3709
    %5129 = vmatpush1.bf16.msra.mxu0 %v3708
    %5130 = vmatprep.subr.bf16.mxu0 %v3696
    %5131 = vmatpush1.bf16.msra.mxu0 %v3695
    %5132 = vmatprep.subr.bf16.mxu0 %v3683
    %5133 = vmatpush1.bf16.msra.mxu0 %v3682
    %5134 = vmatprep.subr.bf16.mxu0 %v3670
    %5135 = vmatpush1.bf16.msra.mxu0 %v3669
    %5136 = vmatprep.subr.bf16.mxu0 %v3865
    %5137 = vmatpush2.bf16.msra.mxu0 %v3864
    %5138 = vmatprep.subr.bf16.mxu0 %v3852
    %5139 = vmatpush2.bf16.msra.mxu0 %v3851
    %5140 = vmatprep.subr.bf16.mxu0 %v3839
    %5141 = vmatpush2.bf16.msra.mxu0 %v3838
    %5142 = vmatprep.subr.bf16.mxu0 %v3826
    %5143 = vmatpush2.bf16.msra.mxu0 %v3825
    %5144 = vmatprep.subr.bf16.mxu0 %v3813
    %5145 = vmatpush2.bf16.msra.mxu0 %v3812
    %5146 = vmatprep.subr.bf16.mxu0 %v3800
    %5147 = vmatpush2.bf16.msra.mxu0 %v3799
    %5148 = vmatprep.subr.bf16.mxu0 %v3787
    %5149 = vmatpush2.bf16.msra.mxu0 %v3786
    %5150 = vmatprep.subr.bf16.mxu0 %v3774
    %5151 = vmatpush2.bf16.msra.mxu0 %v3773
    %5152 = vmatprep.mubr.bf16.mxu0 %v362
    %5153 = vmatmul.mubr.bf16.gmra.mxu0 %v361
    %v5154 = vpop.f32.mrf.mxu0
    %v5155 = vadd.f32 %v5114, %v5154
    %v5156 = vpop.f32.mrf.mxu0
    %v5157 = vadd.f32 %v5116, %v5156
    %v5158 = vpop.f32.mrf.mxu0
    %v5159 = vpop.f32.mrf.mxu0
    %5160 = vdwg.mxu0
    %5161 = vmatprep.subr.bf16.mxu0 %v3969
    %5162 = vmatpush1.bf16.msra.mxu0 %v3968
    %5163 = vmatprep.subr.bf16.mxu0 %v3956
    %5164 = vmatpush1.bf16.msra.mxu0 %v3955
    %5165 = vmatprep.subr.bf16.mxu0 %v3943
    %5166 = vmatpush1.bf16.msra.mxu0 %v3942
    %5167 = vmatprep.subr.bf16.mxu0 %v3930
    %5168 = vmatpush1.bf16.msra.mxu0 %v3929
    %5169 = vmatprep.subr.bf16.mxu0 %v3917
    %5170 = vmatpush1.bf16.msra.mxu0 %v3916
    %5171 = vmatprep.subr.bf16.mxu0 %v3904
    %5172 = vmatpush1.bf16.msra.mxu0 %v3903
    %5173 = vmatprep.subr.bf16.mxu0 %v3891
    %5174 = vmatpush1.bf16.msra.mxu0 %v3890
    %5175 = vmatprep.subr.bf16.mxu0 %v3878
    %5176 = vmatpush1.bf16.msra.mxu0 %v3877
    %5177 = vmatprep.subr.bf16.mxu0 %v4073
    %5178 = vmatpush2.bf16.msra.mxu0 %v4072
    %5179 = vmatprep.subr.bf16.mxu0 %v4060
    %5180 = vmatpush2.bf16.msra.mxu0 %v4059
    %5181 = vmatprep.subr.bf16.mxu0 %v4047
    %5182 = vmatpush2.bf16.msra.mxu0 %v4046
    %5183 = vmatprep.subr.bf16.mxu0 %v4034
    %5184 = vmatpush2.bf16.msra.mxu0 %v4033
    %5185 = vmatprep.subr.bf16.mxu0 %v4021
    %5186 = vmatpush2.bf16.msra.mxu0 %v4020
    %5187 = vmatprep.subr.bf16.mxu0 %v4008
    %5188 = vmatpush2.bf16.msra.mxu0 %v4007
    %5189 = vmatprep.subr.bf16.mxu0 %v3995
    %5190 = vmatpush2.bf16.msra.mxu0 %v3994
    %5191 = vmatprep.subr.bf16.mxu0 %v3982
    %5192 = vmatpush2.bf16.msra.mxu0 %v3981
    %5193 = vmatprep.mubr.bf16.mxu0 %v364
    %5194 = vmatmul.mubr.bf16.gmra.mxu0 %v363
    %v5195 = vpop.f32.mrf.mxu0
    %v5196 = vadd.f32 %v5155, %v5195
    %v5197 = vpop.f32.mrf.mxu0
    %v5198 = vadd.f32 %v5157, %v5197
    %v5199 = vpop.f32.mrf.mxu0
    %v5200 = vpop.f32.mrf.mxu0
    %5201 = vdwg.mxu0
    %5202 = vmatprep.subr.bf16.mxu0 %v4177
    %5203 = vmatpush1.bf16.msra.mxu0 %v4176
    %5204 = vmatprep.subr.bf16.mxu0 %v4164
    %5205 = vmatpush1.bf16.msra.mxu0 %v4163
    %5206 = vmatprep.subr.bf16.mxu0 %v4151
    %5207 = vmatpush1.bf16.msra.mxu0 %v4150
    %5208 = vmatprep.subr.bf16.mxu0 %v4138
    %5209 = vmatpush1.bf16.msra.mxu0 %v4137
    %5210 = vmatprep.subr.bf16.mxu0 %v4125
    %5211 = vmatpush1.bf16.msra.mxu0 %v4124
    %5212 = vmatprep.subr.bf16.mxu0 %v4112
    %5213 = vmatpush1.bf16.msra.mxu0 %v4111
    %5214 = vmatprep.subr.bf16.mxu0 %v4099
    %5215 = vmatpush1.bf16.msra.mxu0 %v4098
    %5216 = vmatprep.subr.bf16.mxu0 %v4086
    %5217 = vmatpush1.bf16.msra.mxu0 %v4085
    %5218 = vmatprep.subr.bf16.mxu0 0
    %5219 = vmatpush2.bf16.msra.mxu0 0
    %5220 = vmatprep.subr.bf16.mxu0 0
    %5221 = vmatpush2.bf16.msra.mxu0 0
    %5222 = vmatprep.subr.bf16.mxu0 0
    %5223 = vmatpush2.bf16.msra.mxu0 0
    %5224 = vmatprep.subr.bf16.mxu0 0
    %5225 = vmatpush2.bf16.msra.mxu0 0
    %5226 = vmatprep.subr.bf16.mxu0 0
    %5227 = vmatpush2.bf16.msra.mxu0 0
    %5228 = vmatprep.subr.bf16.mxu0 0
    %5229 = vmatpush2.bf16.msra.mxu0 0
    %5230 = vmatprep.subr.bf16.mxu0 0
    %5231 = vmatpush2.bf16.msra.mxu0 0
    %5232 = vmatprep.subr.bf16.mxu0 0
    %5233 = vmatpush2.bf16.msra.mxu0 0
    %5234 = vmatprep.mubr.bf16.mxu0 0
    %5235 = vmatmul.mubr.bf16.gmra.mxu0 %v365
    %v5236 = vpop.f32.mrf.mxu0
    %v5237 = vadd.f32 %v5196, %v5236
    %v5238 = vpop.f32.mrf.mxu0
    %v5239 = vadd.f32 %v5198, %v5238
    %v5240 = vpop.f32.mrf.mxu0
    %v5241 = vpop.f32.mrf.mxu0
    %5242 = vdwg.mxu0
    %5243 = vmatprep.subr.bf16.mxu0 %v3555
    %5244 = vmatpush1.bf16.msra.mxu0 %v3554
    %5245 = vmatprep.subr.bf16.mxu0 %v3542
    %5246 = vmatpush1.bf16.msra.mxu0 %v3541
    %5247 = vmatprep.subr.bf16.mxu0 %v3529
    %5248 = vmatpush1.bf16.msra.mxu0 %v3528
    %5249 = vmatprep.subr.bf16.mxu0 %v3516
    %5250 = vmatpush1.bf16.msra.mxu0 %v3515
    %5251 = vmatprep.subr.bf16.mxu0 %v3503
    %5252 = vmatpush1.bf16.msra.mxu0 %v3502
    %5253 = vmatprep.subr.bf16.mxu0 %v3490
    %5254 = vmatpush1.bf16.msra.mxu0 %v3489
    %5255 = vmatprep.subr.bf16.mxu0 %v3477
    %5256 = vmatpush1.bf16.msra.mxu0 %v3476
    %5257 = vmatprep.subr.bf16.mxu0 %v3464
    %5258 = vmatpush1.bf16.msra.mxu0 %v3463
    %5259 = vmatprep.subr.bf16.mxu0 %v3659
    %5260 = vmatpush2.bf16.msra.mxu0 %v3658
    %5261 = vmatprep.subr.bf16.mxu0 %v3646
    %5262 = vmatpush2.bf16.msra.mxu0 %v3645
    %5263 = vmatprep.subr.bf16.mxu0 %v3633
    %5264 = vmatpush2.bf16.msra.mxu0 %v3632
    %5265 = vmatprep.subr.bf16.mxu0 %v3620
    %5266 = vmatpush2.bf16.msra.mxu0 %v3619
    %5267 = vmatprep.subr.bf16.mxu0 %v3607
    %5268 = vmatpush2.bf16.msra.mxu0 %v3606
    %5269 = vmatprep.subr.bf16.mxu0 %v3594
    %5270 = vmatpush2.bf16.msra.mxu0 %v3593
    %5271 = vmatprep.subr.bf16.mxu0 %v3581
    %5272 = vmatpush2.bf16.msra.mxu0 %v3580
    %5273 = vmatprep.subr.bf16.mxu0 %v3568
    %5274 = vmatpush2.bf16.msra.mxu0 %v3567
    %5275 = vmatprep.mubr.bf16.mxu0 %v360
    %5276 = vmatmul.mubr.bf16.gmra.mxu0 %v359
    %v5277 = vpop.f32.mrf.mxu0
    %v5278 = vadd.f32 %v1173, %v5277
    %v5279 = vpop.f32.mrf.mxu0
    %v5280 = vadd.f32 %v1177, %v5279
    %v5281 = vpop.f32.mrf.mxu0
    %v5282 = vpop.f32.mrf.mxu0
    %5283 = vdwg.mxu0
    %5284 = vmatprep.subr.bf16.mxu0 %v3763
    %5285 = vmatpush1.bf16.msra.mxu0 %v3762
    %5286 = vmatprep.subr.bf16.mxu0 %v3750
    %5287 = vmatpush1.bf16.msra.mxu0 %v3749
    %5288 = vmatprep.subr.bf16.mxu0 %v3737
    %5289 = vmatpush1.bf16.msra.mxu0 %v3736
    %5290 = vmatprep.subr.bf16.mxu0 %v3724
    %5291 = vmatpush1.bf16.msra.mxu0 %v3723
    %5292 = vmatprep.subr.bf16.mxu0 %v3711
    %5293 = vmatpush1.bf16.msra.mxu0 %v3710
    %5294 = vmatprep.subr.bf16.mxu0 %v3698
    %5295 = vmatpush1.bf16.msra.mxu0 %v3697
    %5296 = vmatprep.subr.bf16.mxu0 %v3685
    %5297 = vmatpush1.bf16.msra.mxu0 %v3684
    %5298 = vmatprep.subr.bf16.mxu0 %v3672
    %5299 = vmatpush1.bf16.msra.mxu0 %v3671
    %5300 = vmatprep.subr.bf16.mxu0 %v3867
    %5301 = vmatpush2.bf16.msra.mxu0 %v3866
    %5302 = vmatprep.subr.bf16.mxu0 %v3854
    %5303 = vmatpush2.bf16.msra.mxu0 %v3853
    %5304 = vmatprep.subr.bf16.mxu0 %v3841
    %5305 = vmatpush2.bf16.msra.mxu0 %v3840
    %5306 = vmatprep.subr.bf16.mxu0 %v3828
    %5307 = vmatpush2.bf16.msra.mxu0 %v3827
    %5308 = vmatprep.subr.bf16.mxu0 %v3815
    %5309 = vmatpush2.bf16.msra.mxu0 %v3814
    %5310 = vmatprep.subr.bf16.mxu0 %v3802
    %5311 = vmatpush2.bf16.msra.mxu0 %v3801
    %5312 = vmatprep.subr.bf16.mxu0 %v3789
    %5313 = vmatpush2.bf16.msra.mxu0 %v3788
    %5314 = vmatprep.subr.bf16.mxu0 %v3776
    %5315 = vmatpush2.bf16.msra.mxu0 %v3775
    %5316 = vmatprep.mubr.bf16.mxu0 %v362
    %5317 = vmatmul.mubr.bf16.gmra.mxu0 %v361
    %v5318 = vpop.f32.mrf.mxu0
    %v5319 = vadd.f32 %v5278, %v5318
    %v5320 = vpop.f32.mrf.mxu0
    %v5321 = vadd.f32 %v5280, %v5320
    %v5322 = vpop.f32.mrf.mxu0
    %v5323 = vpop.f32.mrf.mxu0
    %5324 = vdwg.mxu0
    %5325 = vmatprep.subr.bf16.mxu0 %v3971
    %5326 = vmatpush1.bf16.msra.mxu0 %v3970
    %5327 = vmatprep.subr.bf16.mxu0 %v3958
    %5328 = vmatpush1.bf16.msra.mxu0 %v3957
    %5329 = vmatprep.subr.bf16.mxu0 %v3945
    %5330 = vmatpush1.bf16.msra.mxu0 %v3944
    %5331 = vmatprep.subr.bf16.mxu0 %v3932
    %5332 = vmatpush1.bf16.msra.mxu0 %v3931
    %5333 = vmatprep.subr.bf16.mxu0 %v3919
    %5334 = vmatpush1.bf16.msra.mxu0 %v3918
    %5335 = vmatprep.subr.bf16.mxu0 %v3906
    %5336 = vmatpush1.bf16.msra.mxu0 %v3905
    %5337 = vmatprep.subr.bf16.mxu0 %v3893
    %5338 = vmatpush1.bf16.msra.mxu0 %v3892
    %5339 = vmatprep.subr.bf16.mxu0 %v3880
    %5340 = vmatpush1.bf16.msra.mxu0 %v3879
    %5341 = vmatprep.subr.bf16.mxu0 %v4075
    %5342 = vmatpush2.bf16.msra.mxu0 %v4074
    %5343 = vmatprep.subr.bf16.mxu0 %v4062
    %5344 = vmatpush2.bf16.msra.mxu0 %v4061
    %5345 = vmatprep.subr.bf16.mxu0 %v4049
    %5346 = vmatpush2.bf16.msra.mxu0 %v4048
    %5347 = vmatprep.subr.bf16.mxu0 %v4036
    %5348 = vmatpush2.bf16.msra.mxu0 %v4035
    %5349 = vmatprep.subr.bf16.mxu0 %v4023
    %5350 = vmatpush2.bf16.msra.mxu0 %v4022
    %5351 = vmatprep.subr.bf16.mxu0 %v4010
    %5352 = vmatpush2.bf16.msra.mxu0 %v4009
    %5353 = vmatprep.subr.bf16.mxu0 %v3997
    %5354 = vmatpush2.bf16.msra.mxu0 %v3996
    %5355 = vmatprep.subr.bf16.mxu0 %v3984
    %5356 = vmatpush2.bf16.msra.mxu0 %v3983
    %5357 = vmatprep.mubr.bf16.mxu0 %v364
    %5358 = vmatmul.mubr.bf16.gmra.mxu0 %v363
    %v5359 = vpop.f32.mrf.mxu0
    %v5360 = vadd.f32 %v5319, %v5359
    %v5361 = vpop.f32.mrf.mxu0
    %v5362 = vadd.f32 %v5321, %v5361
    %v5363 = vpop.f32.mrf.mxu0
    %v5364 = vpop.f32.mrf.mxu0
    %5365 = vdwg.mxu0
    %5366 = vmatprep.subr.bf16.mxu0 %v4179
    %5367 = vmatpush1.bf16.msra.mxu0 %v4178
    %5368 = vmatprep.subr.bf16.mxu0 %v4166
    %5369 = vmatpush1.bf16.msra.mxu0 %v4165
    %5370 = vmatprep.subr.bf16.mxu0 %v4153
    %5371 = vmatpush1.bf16.msra.mxu0 %v4152
    %5372 = vmatprep.subr.bf16.mxu0 %v4140
    %5373 = vmatpush1.bf16.msra.mxu0 %v4139
    %5374 = vmatprep.subr.bf16.mxu0 %v4127
    %5375 = vmatpush1.bf16.msra.mxu0 %v4126
    %5376 = vmatprep.subr.bf16.mxu0 %v4114
    %5377 = vmatpush1.bf16.msra.mxu0 %v4113
    %5378 = vmatprep.subr.bf16.mxu0 %v4101
    %5379 = vmatpush1.bf16.msra.mxu0 %v4100
    %5380 = vmatprep.subr.bf16.mxu0 %v4088
    %5381 = vmatpush1.bf16.msra.mxu0 %v4087
    %5382 = vmatprep.subr.bf16.mxu0 0
    %5383 = vmatpush2.bf16.msra.mxu0 0
    %5384 = vmatprep.subr.bf16.mxu0 0
    %5385 = vmatpush2.bf16.msra.mxu0 0
    %5386 = vmatprep.subr.bf16.mxu0 0
    %5387 = vmatpush2.bf16.msra.mxu0 0
    %5388 = vmatprep.subr.bf16.mxu0 0
    %5389 = vmatpush2.bf16.msra.mxu0 0
    %5390 = vmatprep.subr.bf16.mxu0 0
    %5391 = vmatpush2.bf16.msra.mxu0 0
    %5392 = vmatprep.subr.bf16.mxu0 0
    %5393 = vmatpush2.bf16.msra.mxu0 0
    %5394 = vmatprep.subr.bf16.mxu0 0
    %5395 = vmatpush2.bf16.msra.mxu0 0
    %5396 = vmatprep.subr.bf16.mxu0 0
    %5397 = vmatpush2.bf16.msra.mxu0 0
    %5398 = vmatprep.mubr.bf16.mxu0 0
    %5399 = vmatmul.mubr.bf16.gmra.mxu0 %v365
    %v5400 = vpop.f32.mrf.mxu0
    %v5401 = vadd.f32 %v5360, %v5400
    %v5402 = vpop.f32.mrf.mxu0
    %v5403 = vadd.f32 %v5362, %v5402
    %v5404 = vpop.f32.mrf.mxu0
    %v5405 = vpop.f32.mrf.mxu0
    %5406 = vdwg.mxu0
    %5407 = vmatprep.subr.bf16.mxu0 %v3557
    %5408 = vmatpush1.bf16.msra.mxu0 %v3556
    %5409 = vmatprep.subr.bf16.mxu0 %v3544
    %5410 = vmatpush1.bf16.msra.mxu0 %v3543
    %5411 = vmatprep.subr.bf16.mxu0 %v3531
    %5412 = vmatpush1.bf16.msra.mxu0 %v3530
    %5413 = vmatprep.subr.bf16.mxu0 %v3518
    %5414 = vmatpush1.bf16.msra.mxu0 %v3517
    %5415 = vmatprep.subr.bf16.mxu0 %v3505
    %5416 = vmatpush1.bf16.msra.mxu0 %v3504
    %5417 = vmatprep.subr.bf16.mxu0 %v3492
    %5418 = vmatpush1.bf16.msra.mxu0 %v3491
    %5419 = vmatprep.subr.bf16.mxu0 %v3479
    %5420 = vmatpush1.bf16.msra.mxu0 %v3478
    %5421 = vmatprep.subr.bf16.mxu0 %v3466
    %5422 = vmatpush1.bf16.msra.mxu0 %v3465
    %5423 = vmatprep.subr.bf16.mxu0 %v3661
    %5424 = vmatpush2.bf16.msra.mxu0 %v3660
    %5425 = vmatprep.subr.bf16.mxu0 %v3648
    %5426 = vmatpush2.bf16.msra.mxu0 %v3647
    %5427 = vmatprep.subr.bf16.mxu0 %v3635
    %5428 = vmatpush2.bf16.msra.mxu0 %v3634
    %5429 = vmatprep.subr.bf16.mxu0 %v3622
    %5430 = vmatpush2.bf16.msra.mxu0 %v3621
    %5431 = vmatprep.subr.bf16.mxu0 %v3609
    %5432 = vmatpush2.bf16.msra.mxu0 %v3608
    %5433 = vmatprep.subr.bf16.mxu0 %v3596
    %5434 = vmatpush2.bf16.msra.mxu0 %v3595
    %5435 = vmatprep.subr.bf16.mxu0 %v3583
    %5436 = vmatpush2.bf16.msra.mxu0 %v3582
    %5437 = vmatprep.subr.bf16.mxu0 %v3570
    %5438 = vmatpush2.bf16.msra.mxu0 %v3569
    %5439 = vmatprep.mubr.bf16.mxu0 %v360
    %5440 = vmatmul.mubr.bf16.gmra.mxu0 %v359
    %v5441 = vpop.f32.mrf.mxu0
    %v5442 = vadd.f32 %v1181, %v5441
    %v5443 = vpop.f32.mrf.mxu0
    %v5444 = vadd.f32 %v1185, %v5443
    %v5445 = vpop.f32.mrf.mxu0
    %v5446 = vpop.f32.mrf.mxu0
    %5447 = vdwg.mxu0
    %5448 = vmatprep.subr.bf16.mxu0 %v3765
    %5449 = vmatpush1.bf16.msra.mxu0 %v3764
    %5450 = vmatprep.subr.bf16.mxu0 %v3752
    %5451 = vmatpush1.bf16.msra.mxu0 %v3751
    %5452 = vmatprep.subr.bf16.mxu0 %v3739
    %5453 = vmatpush1.bf16.msra.mxu0 %v3738
    %5454 = vmatprep.subr.bf16.mxu0 %v3726
    %5455 = vmatpush1.bf16.msra.mxu0 %v3725
    %5456 = vmatprep.subr.bf16.mxu0 %v3713
    %5457 = vmatpush1.bf16.msra.mxu0 %v3712
    %5458 = vmatprep.subr.bf16.mxu0 %v3700
    %5459 = vmatpush1.bf16.msra.mxu0 %v3699
    %5460 = vmatprep.subr.bf16.mxu0 %v3687
    %5461 = vmatpush1.bf16.msra.mxu0 %v3686
    %5462 = vmatprep.subr.bf16.mxu0 %v3674
    %5463 = vmatpush1.bf16.msra.mxu0 %v3673
    %5464 = vmatprep.subr.bf16.mxu0 %v3869
    %5465 = vmatpush2.bf16.msra.mxu0 %v3868
    %5466 = vmatprep.subr.bf16.mxu0 %v3856
    %5467 = vmatpush2.bf16.msra.mxu0 %v3855
    %5468 = vmatprep.subr.bf16.mxu0 %v3843
    %5469 = vmatpush2.bf16.msra.mxu0 %v3842
    %5470 = vmatprep.subr.bf16.mxu0 %v3830
    %5471 = vmatpush2.bf16.msra.mxu0 %v3829
    %5472 = vmatprep.subr.bf16.mxu0 %v3817
    %5473 = vmatpush2.bf16.msra.mxu0 %v3816
    %5474 = vmatprep.subr.bf16.mxu0 %v3804
    %5475 = vmatpush2.bf16.msra.mxu0 %v3803
    %5476 = vmatprep.subr.bf16.mxu0 %v3791
    %5477 = vmatpush2.bf16.msra.mxu0 %v3790
    %5478 = vmatprep.subr.bf16.mxu0 %v3778
    %5479 = vmatpush2.bf16.msra.mxu0 %v3777
    %5480 = vmatprep.mubr.bf16.mxu0 %v362
    %5481 = vmatmul.mubr.bf16.gmra.mxu0 %v361
    %v5482 = vpop.f32.mrf.mxu0
    %v5483 = vadd.f32 %v5442, %v5482
    %v5484 = vpop.f32.mrf.mxu0
    %v5485 = vadd.f32 %v5444, %v5484
    %v5486 = vpop.f32.mrf.mxu0
    %v5487 = vpop.f32.mrf.mxu0
    %5488 = vdwg.mxu0
    %5489 = vmatprep.subr.bf16.mxu0 %v3973
    %5490 = vmatpush1.bf16.msra.mxu0 %v3972
    %5491 = vmatprep.subr.bf16.mxu0 %v3960
    %5492 = vmatpush1.bf16.msra.mxu0 %v3959
    %5493 = vmatprep.subr.bf16.mxu0 %v3947
    %5494 = vmatpush1.bf16.msra.mxu0 %v3946
    %5495 = vmatprep.subr.bf16.mxu0 %v3934
    %5496 = vmatpush1.bf16.msra.mxu0 %v3933
    %5497 = vmatprep.subr.bf16.mxu0 %v3921
    %5498 = vmatpush1.bf16.msra.mxu0 %v3920
    %5499 = vmatprep.subr.bf16.mxu0 %v3908
    %5500 = vmatpush1.bf16.msra.mxu0 %v3907
    %5501 = vmatprep.subr.bf16.mxu0 %v3895
    %5502 = vmatpush1.bf16.msra.mxu0 %v3894
    %5503 = vmatprep.subr.bf16.mxu0 %v3882
    %5504 = vmatpush1.bf16.msra.mxu0 %v3881
    %5505 = vmatprep.subr.bf16.mxu0 %v4077
    %5506 = vmatpush2.bf16.msra.mxu0 %v4076
    %5507 = vmatprep.subr.bf16.mxu0 %v4064
    %5508 = vmatpush2.bf16.msra.mxu0 %v4063
    %5509 = vmatprep.subr.bf16.mxu0 %v4051
    %5510 = vmatpush2.bf16.msra.mxu0 %v4050
    %5511 = vmatprep.subr.bf16.mxu0 %v4038
    %5512 = vmatpush2.bf16.msra.mxu0 %v4037
    %5513 = vmatprep.subr.bf16.mxu0 %v4025
    %5514 = vmatpush2.bf16.msra.mxu0 %v4024
    %5515 = vmatprep.subr.bf16.mxu0 %v4012
    %5516 = vmatpush2.bf16.msra.mxu0 %v4011
    %5517 = vmatprep.subr.bf16.mxu0 %v3999
    %5518 = vmatpush2.bf16.msra.mxu0 %v3998
    %5519 = vmatprep.subr.bf16.mxu0 %v3986
    %5520 = vmatpush2.bf16.msra.mxu0 %v3985
    %5521 = vmatprep.mubr.bf16.mxu0 %v364
    %5522 = vmatmul.mubr.bf16.gmra.mxu0 %v363
    %v5523 = vpop.f32.mrf.mxu0
    %v5524 = vadd.f32 %v5483, %v5523
    %v5525 = vpop.f32.mrf.mxu0
    %v5526 = vadd.f32 %v5485, %v5525
    %v5527 = vpop.f32.mrf.mxu0
    %v5528 = vpop.f32.mrf.mxu0
    %5529 = vdwg.mxu0
    %5530 = vmatprep.subr.bf16.mxu0 %v4181
    %5531 = vmatpush1.bf16.msra.mxu0 %v4180
    %5532 = vmatprep.subr.bf16.mxu0 %v4168
    %5533 = vmatpush1.bf16.msra.mxu0 %v4167
    %5534 = vmatprep.subr.bf16.mxu0 %v4155
    %5535 = vmatpush1.bf16.msra.mxu0 %v4154
    %5536 = vmatprep.subr.bf16.mxu0 %v4142
    %5537 = vmatpush1.bf16.msra.mxu0 %v4141
    %5538 = vmatprep.subr.bf16.mxu0 %v4129
    %5539 = vmatpush1.bf16.msra.mxu0 %v4128
    %5540 = vmatprep.subr.bf16.mxu0 %v4116
    %5541 = vmatpush1.bf16.msra.mxu0 %v4115
    %5542 = vmatprep.subr.bf16.mxu0 %v4103
    %5543 = vmatpush1.bf16.msra.mxu0 %v4102
    %5544 = vmatprep.subr.bf16.mxu0 %v4090
    %5545 = vmatpush1.bf16.msra.mxu0 %v4089
    %5546 = vmatprep.subr.bf16.mxu0 0
    %5547 = vmatpush2.bf16.msra.mxu0 0
    %5548 = vmatprep.subr.bf16.mxu0 0
    %5549 = vmatpush2.bf16.msra.mxu0 0
    %5550 = vmatprep.subr.bf16.mxu0 0
    %5551 = vmatpush2.bf16.msra.mxu0 0
    %5552 = vmatprep.subr.bf16.mxu0 0
    %5553 = vmatpush2.bf16.msra.mxu0 0
    %5554 = vmatprep.subr.bf16.mxu0 0
    %5555 = vmatpush2.bf16.msra.mxu0 0
    %5556 = vmatprep.subr.bf16.mxu0 0
    %5557 = vmatpush2.bf16.msra.mxu0 0
    %5558 = vmatprep.subr.bf16.mxu0 0
    %5559 = vmatpush2.bf16.msra.mxu0 0
    %5560 = vmatprep.subr.bf16.mxu0 0
    %5561 = vmatpush2.bf16.msra.mxu0 0
    %5562 = vmatprep.mubr.bf16.mxu0 0
    %5563 = vmatmul.mubr.bf16.gmra.mxu0 %v365
    %v5564 = vpop.f32.mrf.mxu0
    %v5565 = vadd.f32 %v5524, %v5564
    %v5566 = vpop.f32.mrf.mxu0
    %v5567 = vadd.f32 %v5526, %v5566
    %v5568 = vpop.f32.mrf.mxu0
    %v5569 = vpop.f32.mrf.mxu0
    %5570 = vdwg.mxu0
    %5571 = vmatprep.subr.bf16.mxu0 %v3559
    %5572 = vmatpush1.bf16.msra.mxu0 %v3558
    %5573 = vmatprep.subr.bf16.mxu0 %v3546
    %5574 = vmatpush1.bf16.msra.mxu0 %v3545
    %5575 = vmatprep.subr.bf16.mxu0 %v3533
    %5576 = vmatpush1.bf16.msra.mxu0 %v3532
    %5577 = vmatprep.subr.bf16.mxu0 %v3520
    %5578 = vmatpush1.bf16.msra.mxu0 %v3519
    %5579 = vmatprep.subr.bf16.mxu0 %v3507
    %5580 = vmatpush1.bf16.msra.mxu0 %v3506
    %5581 = vmatprep.subr.bf16.mxu0 %v3494
    %5582 = vmatpush1.bf16.msra.mxu0 %v3493
    %5583 = vmatprep.subr.bf16.mxu0 %v3481
    %5584 = vmatpush1.bf16.msra.mxu0 %v3480
    %5585 = vmatprep.subr.bf16.mxu0 %v3468
    %5586 = vmatpush1.bf16.msra.mxu0 %v3467
    %5587 = vmatprep.subr.bf16.mxu0 %v3663
    %5588 = vmatpush2.bf16.msra.mxu0 %v3662
    %5589 = vmatprep.subr.bf16.mxu0 %v3650
    %5590 = vmatpush2.bf16.msra.mxu0 %v3649
    %5591 = vmatprep.subr.bf16.mxu0 %v3637
    %5592 = vmatpush2.bf16.msra.mxu0 %v3636
    %5593 = vmatprep.subr.bf16.mxu0 %v3624
    %5594 = vmatpush2.bf16.msra.mxu0 %v3623
    %5595 = vmatprep.subr.bf16.mxu0 %v3611
    %5596 = vmatpush2.bf16.msra.mxu0 %v3610
    %5597 = vmatprep.subr.bf16.mxu0 %v3598
    %5598 = vmatpush2.bf16.msra.mxu0 %v3597
    %5599 = vmatprep.subr.bf16.mxu0 %v3585
    %5600 = vmatpush2.bf16.msra.mxu0 %v3584
    %5601 = vmatprep.subr.bf16.mxu0 %v3572
    %5602 = vmatpush2.bf16.msra.mxu0 %v3571
    %5603 = vmatprep.mubr.bf16.mxu0 %v360
    %5604 = vmatmul.mubr.bf16.gmra.mxu0 %v359
    %v5605 = vpop.f32.mrf.mxu0
    %v5606 = vadd.f32 %v1189, %v5605
    %v5607 = vpop.f32.mrf.mxu0
    %v5608 = vadd.f32 %v1193, %v5607
    %v5609 = vpop.f32.mrf.mxu0
    %v5610 = vpop.f32.mrf.mxu0
    %5611 = vdwg.mxu0
    %5612 = vmatprep.subr.bf16.mxu0 %v3767
    %5613 = vmatpush1.bf16.msra.mxu0 %v3766
    %5614 = vmatprep.subr.bf16.mxu0 %v3754
    %5615 = vmatpush1.bf16.msra.mxu0 %v3753
    %5616 = vmatprep.subr.bf16.mxu0 %v3741
    %5617 = vmatpush1.bf16.msra.mxu0 %v3740
    %5618 = vmatprep.subr.bf16.mxu0 %v3728
    %5619 = vmatpush1.bf16.msra.mxu0 %v3727
    %5620 = vmatprep.subr.bf16.mxu0 %v3715
    %5621 = vmatpush1.bf16.msra.mxu0 %v3714
    %5622 = vmatprep.subr.bf16.mxu0 %v3702
    %5623 = vmatpush1.bf16.msra.mxu0 %v3701
    %5624 = vmatprep.subr.bf16.mxu0 %v3689
    %5625 = vmatpush1.bf16.msra.mxu0 %v3688
    %5626 = vmatprep.subr.bf16.mxu0 %v3676
    %5627 = vmatpush1.bf16.msra.mxu0 %v3675
    %5628 = vmatprep.subr.bf16.mxu0 %v3871
    %5629 = vmatpush2.bf16.msra.mxu0 %v3870
    %5630 = vmatprep.subr.bf16.mxu0 %v3858
    %5631 = vmatpush2.bf16.msra.mxu0 %v3857
    %5632 = vmatprep.subr.bf16.mxu0 %v3845
    %5633 = vmatpush2.bf16.msra.mxu0 %v3844
    %5634 = vmatprep.subr.bf16.mxu0 %v3832
    %5635 = vmatpush2.bf16.msra.mxu0 %v3831
    %5636 = vmatprep.subr.bf16.mxu0 %v3819
    %5637 = vmatpush2.bf16.msra.mxu0 %v3818
    %5638 = vmatprep.subr.bf16.mxu0 %v3806
    %5639 = vmatpush2.bf16.msra.mxu0 %v3805
    %5640 = vmatprep.subr.bf16.mxu0 %v3793
    %5641 = vmatpush2.bf16.msra.mxu0 %v3792
    %5642 = vmatprep.subr.bf16.mxu0 %v3780
    %5643 = vmatpush2.bf16.msra.mxu0 %v3779
    %5644 = vmatprep.mubr.bf16.mxu0 %v362
    %5645 = vmatmul.mubr.bf16.gmra.mxu0 %v361
    %v5646 = vpop.f32.mrf.mxu0
    %v5647 = vadd.f32 %v5606, %v5646
    %v5648 = vpop.f32.mrf.mxu0
    %v5649 = vadd.f32 %v5608, %v5648
    %v5650 = vpop.f32.mrf.mxu0
    %v5651 = vpop.f32.mrf.mxu0
    %5652 = vdwg.mxu0
    %5653 = vmatprep.subr.bf16.mxu0 %v3975
    %5654 = vmatpush1.bf16.msra.mxu0 %v3974
    %5655 = vmatprep.subr.bf16.mxu0 %v3962
    %5656 = vmatpush1.bf16.msra.mxu0 %v3961
    %5657 = vmatprep.subr.bf16.mxu0 %v3949
    %5658 = vmatpush1.bf16.msra.mxu0 %v3948
    %5659 = vmatprep.subr.bf16.mxu0 %v3936
    %5660 = vmatpush1.bf16.msra.mxu0 %v3935
    %5661 = vmatprep.subr.bf16.mxu0 %v3923
    %5662 = vmatpush1.bf16.msra.mxu0 %v3922
    %5663 = vmatprep.subr.bf16.mxu0 %v3910
    %5664 = vmatpush1.bf16.msra.mxu0 %v3909
    %5665 = vmatprep.subr.bf16.mxu0 %v3897
    %5666 = vmatpush1.bf16.msra.mxu0 %v3896
    %5667 = vmatprep.subr.bf16.mxu0 %v3884
    %5668 = vmatpush1.bf16.msra.mxu0 %v3883
    %5669 = vmatprep.subr.bf16.mxu0 %v4079
    %5670 = vmatpush2.bf16.msra.mxu0 %v4078
    %5671 = vmatprep.subr.bf16.mxu0 %v4066
    %5672 = vmatpush2.bf16.msra.mxu0 %v4065
    %5673 = vmatprep.subr.bf16.mxu0 %v4053
    %5674 = vmatpush2.bf16.msra.mxu0 %v4052
    %5675 = vmatprep.subr.bf16.mxu0 %v4040
    %5676 = vmatpush2.bf16.msra.mxu0 %v4039
    %5677 = vmatprep.subr.bf16.mxu0 %v4027
    %5678 = vmatpush2.bf16.msra.mxu0 %v4026
    %5679 = vmatprep.subr.bf16.mxu0 %v4014
    %5680 = vmatpush2.bf16.msra.mxu0 %v4013
    %5681 = vmatprep.subr.bf16.mxu0 %v4001
    %5682 = vmatpush2.bf16.msra.mxu0 %v4000
    %5683 = vmatprep.subr.bf16.mxu0 %v3988
    %5684 = vmatpush2.bf16.msra.mxu0 %v3987
    %5685 = vmatprep.mubr.bf16.mxu0 %v364
    %5686 = vmatmul.mubr.bf16.gmra.mxu0 %v363
    %v5687 = vpop.f32.mrf.mxu0
    %v5688 = vadd.f32 %v5647, %v5687
    %v5689 = vpop.f32.mrf.mxu0
    %v5690 = vadd.f32 %v5649, %v5689
    %v5691 = vpop.f32.mrf.mxu0
    %v5692 = vpop.f32.mrf.mxu0
    %5693 = vdwg.mxu0
    %5694 = vmatprep.subr.bf16.mxu0 %v4183
    %5695 = vmatpush1.bf16.msra.mxu0 %v4182
    %5696 = vmatprep.subr.bf16.mxu0 %v4170
    %5697 = vmatpush1.bf16.msra.mxu0 %v4169
    %5698 = vmatprep.subr.bf16.mxu0 %v4157
    %5699 = vmatpush1.bf16.msra.mxu0 %v4156
    %5700 = vmatprep.subr.bf16.mxu0 %v4144
    %5701 = vmatpush1.bf16.msra.mxu0 %v4143
    %5702 = vmatprep.subr.bf16.mxu0 %v4131
    %5703 = vmatpush1.bf16.msra.mxu0 %v4130
    %5704 = vmatprep.subr.bf16.mxu0 %v4118
    %5705 = vmatpush1.bf16.msra.mxu0 %v4117
    %5706 = vmatprep.subr.bf16.mxu0 %v4105
    %5707 = vmatpush1.bf16.msra.mxu0 %v4104
    %5708 = vmatprep.subr.bf16.mxu0 %v4092
    %5709 = vmatpush1.bf16.msra.mxu0 %v4091
    %5710 = vmatprep.subr.bf16.mxu0 0
    %5711 = vmatpush2.bf16.msra.mxu0 0
    %5712 = vmatprep.subr.bf16.mxu0 0
    %5713 = vmatpush2.bf16.msra.mxu0 0
    %5714 = vmatprep.subr.bf16.mxu0 0
    %5715 = vmatpush2.bf16.msra.mxu0 0
    %5716 = vmatprep.subr.bf16.mxu0 0
    %5717 = vmatpush2.bf16.msra.mxu0 0
    %5718 = vmatprep.subr.bf16.mxu0 0
    %5719 = vmatpush2.bf16.msra.mxu0 0
    %5720 = vmatprep.subr.bf16.mxu0 0
    %5721 = vmatpush2.bf16.msra.mxu0 0
    %5722 = vmatprep.subr.bf16.mxu0 0
    %5723 = vmatpush2.bf16.msra.mxu0 0
    %5724 = vmatprep.subr.bf16.mxu0 0
    %5725 = vmatpush2.bf16.msra.mxu0 0
    %5726 = vmatprep.mubr.bf16.mxu0 0
    %5727 = vmatmul.mubr.bf16.gmra.mxu0 %v365
    %v5728 = vpop.f32.mrf.mxu0
    %v5729 = vadd.f32 %v5688, %v5728
    %v5730 = vpop.f32.mrf.mxu0
    %v5731 = vadd.f32 %v5690, %v5730
    %v5732 = vpop.f32.mrf.mxu0
    %v5733 = vpop.f32.mrf.mxu0
    %5734 = vdwg.mxu0
    %5735 = vmatprep.subr.bf16.mxu0 %v3561
    %5736 = vmatpush1.bf16.msra.mxu0 %v3560
    %5737 = vmatprep.subr.bf16.mxu0 %v3548
    %5738 = vmatpush1.bf16.msra.mxu0 %v3547
    %5739 = vmatprep.subr.bf16.mxu0 %v3535
    %5740 = vmatpush1.bf16.msra.mxu0 %v3534
    %5741 = vmatprep.subr.bf16.mxu0 %v3522
    %5742 = vmatpush1.bf16.msra.mxu0 %v3521
    %5743 = vmatprep.subr.bf16.mxu0 %v3509
    %5744 = vmatpush1.bf16.msra.mxu0 %v3508
    %5745 = vmatprep.subr.bf16.mxu0 %v3496
    %5746 = vmatpush1.bf16.msra.mxu0 %v3495
    %5747 = vmatprep.subr.bf16.mxu0 %v3483
    %5748 = vmatpush1.bf16.msra.mxu0 %v3482
    %5749 = vmatprep.subr.bf16.mxu0 %v3470
    %5750 = vmatpush1.bf16.msra.mxu0 %v3469
    %5751 = vmatprep.subr.bf16.mxu0 %v3665
    %5752 = vmatpush2.bf16.msra.mxu0 %v3664
    %5753 = vmatprep.subr.bf16.mxu0 %v3652
    %5754 = vmatpush2.bf16.msra.mxu0 %v3651
    %5755 = vmatprep.subr.bf16.mxu0 %v3639
    %5756 = vmatpush2.bf16.msra.mxu0 %v3638
    %5757 = vmatprep.subr.bf16.mxu0 %v3626
    %5758 = vmatpush2.bf16.msra.mxu0 %v3625
    %5759 = vmatprep.subr.bf16.mxu0 %v3613
    %5760 = vmatpush2.bf16.msra.mxu0 %v3612
    %5761 = vmatprep.subr.bf16.mxu0 %v3600
    %5762 = vmatpush2.bf16.msra.mxu0 %v3599
    %5763 = vmatprep.subr.bf16.mxu0 %v3587
    %5764 = vmatpush2.bf16.msra.mxu0 %v3586
    %5765 = vmatprep.subr.bf16.mxu0 %v3574
    %5766 = vmatpush2.bf16.msra.mxu0 %v3573
    %5767 = vmatprep.mubr.bf16.mxu0 %v360
    %5768 = vmatmul.mubr.bf16.gmra.mxu0 %v359
    %v5769 = vpop.f32.mrf.mxu0
    %v5770 = vadd.f32 %v1197, %v5769
    %v5771 = vpop.f32.mrf.mxu0
    %v5772 = vadd.f32 %v1201, %v5771
    %v5773 = vpop.f32.mrf.mxu0
    %v5774 = vpop.f32.mrf.mxu0
    %5775 = vdwg.mxu0
    %5776 = vmatprep.subr.bf16.mxu0 %v3769
    %5777 = vmatpush1.bf16.msra.mxu0 %v3768
    %5778 = vmatprep.subr.bf16.mxu0 %v3756
    %5779 = vmatpush1.bf16.msra.mxu0 %v3755
    %5780 = vmatprep.subr.bf16.mxu0 %v3743
    %5781 = vmatpush1.bf16.msra.mxu0 %v3742
    %5782 = vmatprep.subr.bf16.mxu0 %v3730
    %5783 = vmatpush1.bf16.msra.mxu0 %v3729
    %5784 = vmatprep.subr.bf16.mxu0 %v3717
    %5785 = vmatpush1.bf16.msra.mxu0 %v3716
    %5786 = vmatprep.subr.bf16.mxu0 %v3704
    %5787 = vmatpush1.bf16.msra.mxu0 %v3703
    %5788 = vmatprep.subr.bf16.mxu0 %v3691
    %5789 = vmatpush1.bf16.msra.mxu0 %v3690
    %5790 = vmatprep.subr.bf16.mxu0 %v3678
    %5791 = vmatpush1.bf16.msra.mxu0 %v3677
    %5792 = vmatprep.subr.bf16.mxu0 %v3873
    %5793 = vmatpush2.bf16.msra.mxu0 %v3872
    %5794 = vmatprep.subr.bf16.mxu0 %v3860
    %5795 = vmatpush2.bf16.msra.mxu0 %v3859
    %5796 = vmatprep.subr.bf16.mxu0 %v3847
    %5797 = vmatpush2.bf16.msra.mxu0 %v3846
    %5798 = vmatprep.subr.bf16.mxu0 %v3834
    %5799 = vmatpush2.bf16.msra.mxu0 %v3833
    %5800 = vmatprep.subr.bf16.mxu0 %v3821
    %5801 = vmatpush2.bf16.msra.mxu0 %v3820
    %5802 = vmatprep.subr.bf16.mxu0 %v3808
    %5803 = vmatpush2.bf16.msra.mxu0 %v3807
    %5804 = vmatprep.subr.bf16.mxu0 %v3795
    %5805 = vmatpush2.bf16.msra.mxu0 %v3794
    %5806 = vmatprep.subr.bf16.mxu0 %v3782
    %5807 = vmatpush2.bf16.msra.mxu0 %v3781
    %5808 = vmatprep.mubr.bf16.mxu0 %v362
    %5809 = vmatmul.mubr.bf16.gmra.mxu0 %v361
    %v5810 = vpop.f32.mrf.mxu0
    %v5811 = vadd.f32 %v5770, %v5810
    %v5812 = vpop.f32.mrf.mxu0
    %v5813 = vadd.f32 %v5772, %v5812
    %v5814 = vpop.f32.mrf.mxu0
    %v5815 = vpop.f32.mrf.mxu0
    %5816 = vdwg.mxu0
    %5817 = vmatprep.subr.bf16.mxu0 %v3977
    %5818 = vmatpush1.bf16.msra.mxu0 %v3976
    %5819 = vmatprep.subr.bf16.mxu0 %v3964
    %5820 = vmatpush1.bf16.msra.mxu0 %v3963
    %5821 = vmatprep.subr.bf16.mxu0 %v3951
    %5822 = vmatpush1.bf16.msra.mxu0 %v3950
    %5823 = vmatprep.subr.bf16.mxu0 %v3938
    %5824 = vmatpush1.bf16.msra.mxu0 %v3937
    %5825 = vmatprep.subr.bf16.mxu0 %v3925
    %5826 = vmatpush1.bf16.msra.mxu0 %v3924
    %5827 = vmatprep.subr.bf16.mxu0 %v3912
    %5828 = vmatpush1.bf16.msra.mxu0 %v3911
    %5829 = vmatprep.subr.bf16.mxu0 %v3899
    %5830 = vmatpush1.bf16.msra.mxu0 %v3898
    %5831 = vmatprep.subr.bf16.mxu0 %v3886
    %5832 = vmatpush1.bf16.msra.mxu0 %v3885
    %5833 = vmatprep.subr.bf16.mxu0 %v4081
    %5834 = vmatpush2.bf16.msra.mxu0 %v4080
    %5835 = vmatprep.subr.bf16.mxu0 %v4068
    %5836 = vmatpush2.bf16.msra.mxu0 %v4067
    %5837 = vmatprep.subr.bf16.mxu0 %v4055
    %5838 = vmatpush2.bf16.msra.mxu0 %v4054
    %5839 = vmatprep.subr.bf16.mxu0 %v4042
    %5840 = vmatpush2.bf16.msra.mxu0 %v4041
    %5841 = vmatprep.subr.bf16.mxu0 %v4029
    %5842 = vmatpush2.bf16.msra.mxu0 %v4028
    %5843 = vmatprep.subr.bf16.mxu0 %v4016
    %5844 = vmatpush2.bf16.msra.mxu0 %v4015
    %5845 = vmatprep.subr.bf16.mxu0 %v4003
    %5846 = vmatpush2.bf16.msra.mxu0 %v4002
    %5847 = vmatprep.subr.bf16.mxu0 %v3990
    %5848 = vmatpush2.bf16.msra.mxu0 %v3989
    %5849 = vmatprep.mubr.bf16.mxu0 %v364
    %5850 = vmatmul.mubr.bf16.gmra.mxu0 %v363
    %v5851 = vpop.f32.mrf.mxu0
    %v5852 = vadd.f32 %v5811, %v5851
    %v5853 = vpop.f32.mrf.mxu0
    %v5854 = vadd.f32 %v5813, %v5853
    %v5855 = vpop.f32.mrf.mxu0
    %v5856 = vpop.f32.mrf.mxu0
    %5857 = vdwg.mxu0
    %5858 = vmatprep.subr.bf16.mxu0 %v4185
    %5859 = vmatpush1.bf16.msra.mxu0 %v4184
    %5860 = vmatprep.subr.bf16.mxu0 %v4172
    %5861 = vmatpush1.bf16.msra.mxu0 %v4171
    %5862 = vmatprep.subr.bf16.mxu0 %v4159
    %5863 = vmatpush1.bf16.msra.mxu0 %v4158
    %5864 = vmatprep.subr.bf16.mxu0 %v4146
    %5865 = vmatpush1.bf16.msra.mxu0 %v4145
    %5866 = vmatprep.subr.bf16.mxu0 %v4133
    %5867 = vmatpush1.bf16.msra.mxu0 %v4132
    %5868 = vmatprep.subr.bf16.mxu0 %v4120
    %5869 = vmatpush1.bf16.msra.mxu0 %v4119
    %5870 = vmatprep.subr.bf16.mxu0 %v4107
    %5871 = vmatpush1.bf16.msra.mxu0 %v4106
    %5872 = vmatprep.subr.bf16.mxu0 %v4094
    %5873 = vmatpush1.bf16.msra.mxu0 %v4093
    %5874 = vmatprep.subr.bf16.mxu0 0
    %5875 = vmatpush2.bf16.msra.mxu0 0
    %5876 = vmatprep.subr.bf16.mxu0 0
    %5877 = vmatpush2.bf16.msra.mxu0 0
    %5878 = vmatprep.subr.bf16.mxu0 0
    %5879 = vmatpush2.bf16.msra.mxu0 0
    %5880 = vmatprep.subr.bf16.mxu0 0
    %5881 = vmatpush2.bf16.msra.mxu0 0
    %5882 = vmatprep.subr.bf16.mxu0 0
    %5883 = vmatpush2.bf16.msra.mxu0 0
    %5884 = vmatprep.subr.bf16.mxu0 0
    %5885 = vmatpush2.bf16.msra.mxu0 0
    %5886 = vmatprep.subr.bf16.mxu0 0
    %5887 = vmatpush2.bf16.msra.mxu0 0
    %5888 = vmatprep.subr.bf16.mxu0 0
    %5889 = vmatpush2.bf16.msra.mxu0 0
    %5890 = vmatprep.mubr.bf16.mxu0 0
    %5891 = vmatmul.mubr.bf16.gmra.mxu0 %v365
    %v5892 = vpop.f32.mrf.mxu0
    %v5893 = vadd.f32 %v5852, %v5892
    %v5894 = vpop.f32.mrf.mxu0
    %v5895 = vadd.f32 %v5854, %v5894
    %v5896 = vpop.f32.mrf.mxu0
    %v5897 = vpop.f32.mrf.mxu0
    %5898 = vdwg.mxu0
    %5899 = vmatprep.subr.bf16.mxu0 0
    %5900 = vmatpush1.bf16.msra.mxu0 %v3562
    %5901 = vmatprep.subr.bf16.mxu0 0
    %5902 = vmatpush1.bf16.msra.mxu0 %v3549
    %5903 = vmatprep.subr.bf16.mxu0 0
    %5904 = vmatpush1.bf16.msra.mxu0 %v3536
    %5905 = vmatprep.subr.bf16.mxu0 0
    %5906 = vmatpush1.bf16.msra.mxu0 %v3523
    %5907 = vmatprep.subr.bf16.mxu0 0
    %5908 = vmatpush1.bf16.msra.mxu0 %v3510
    %5909 = vmatprep.subr.bf16.mxu0 0
    %5910 = vmatpush1.bf16.msra.mxu0 %v3497
    %5911 = vmatprep.subr.bf16.mxu0 0
    %5912 = vmatpush1.bf16.msra.mxu0 %v3484
    %5913 = vmatprep.subr.bf16.mxu0 0
    %5914 = vmatpush1.bf16.msra.mxu0 %v3471
    %5915 = vmatprep.subr.bf16.mxu0 0
    %5916 = vmatpush2.bf16.msra.mxu0 %v3666
    %5917 = vmatprep.subr.bf16.mxu0 0
    %5918 = vmatpush2.bf16.msra.mxu0 %v3653
    %5919 = vmatprep.subr.bf16.mxu0 0
    %5920 = vmatpush2.bf16.msra.mxu0 %v3640
    %5921 = vmatprep.subr.bf16.mxu0 0
    %5922 = vmatpush2.bf16.msra.mxu0 %v3627
    %5923 = vmatprep.subr.bf16.mxu0 0
    %5924 = vmatpush2.bf16.msra.mxu0 %v3614
    %5925 = vmatprep.subr.bf16.mxu0 0
    %5926 = vmatpush2.bf16.msra.mxu0 %v3601
    %5927 = vmatprep.subr.bf16.mxu0 0
    %5928 = vmatpush2.bf16.msra.mxu0 %v3588
    %5929 = vmatprep.subr.bf16.mxu0 0
    %5930 = vmatpush2.bf16.msra.mxu0 %v3575
    %5931 = vmatprep.mubr.bf16.mxu0 %v360
    %5932 = vmatmul.mubr.bf16.gmra.mxu0 %v359
    %v5933 = vpop.f32.mrf.mxu0
    %v5934 = vadd.f32 %v1205, %v5933
    %v5935 = vpop.f32.mrf.mxu0
    %v5936 = vpop.f32.mrf.mxu0
    %v5937 = vpop.f32.mrf.mxu0
    %5938 = vdwg.mxu0
    %5939 = vmatprep.subr.bf16.mxu0 0
    %5940 = vmatpush1.bf16.msra.mxu0 %v3770
    %5941 = vmatprep.subr.bf16.mxu0 0
    %5942 = vmatpush1.bf16.msra.mxu0 %v3757
    %5943 = vmatprep.subr.bf16.mxu0 0
    %5944 = vmatpush1.bf16.msra.mxu0 %v3744
    %5945 = vmatprep.subr.bf16.mxu0 0
    %5946 = vmatpush1.bf16.msra.mxu0 %v3731
    %5947 = vmatprep.subr.bf16.mxu0 0
    %5948 = vmatpush1.bf16.msra.mxu0 %v3718
    %5949 = vmatprep.subr.bf16.mxu0 0
    %5950 = vmatpush1.bf16.msra.mxu0 %v3705
    %5951 = vmatprep.subr.bf16.mxu0 0
    %5952 = vmatpush1.bf16.msra.mxu0 %v3692
    %5953 = vmatprep.subr.bf16.mxu0 0
    %5954 = vmatpush1.bf16.msra.mxu0 %v3679
    %5955 = vmatprep.subr.bf16.mxu0 0
    %5956 = vmatpush2.bf16.msra.mxu0 %v3874
    %5957 = vmatprep.subr.bf16.mxu0 0
    %5958 = vmatpush2.bf16.msra.mxu0 %v3861
    %5959 = vmatprep.subr.bf16.mxu0 0
    %5960 = vmatpush2.bf16.msra.mxu0 %v3848
    %5961 = vmatprep.subr.bf16.mxu0 0
    %5962 = vmatpush2.bf16.msra.mxu0 %v3835
    %5963 = vmatprep.subr.bf16.mxu0 0
    %5964 = vmatpush2.bf16.msra.mxu0 %v3822
    %5965 = vmatprep.subr.bf16.mxu0 0
    %5966 = vmatpush2.bf16.msra.mxu0 %v3809
    %5967 = vmatprep.subr.bf16.mxu0 0
    %5968 = vmatpush2.bf16.msra.mxu0 %v3796
    %5969 = vmatprep.subr.bf16.mxu0 0
    %5970 = vmatpush2.bf16.msra.mxu0 %v3783
    %5971 = vmatprep.mubr.bf16.mxu0 %v362
    %5972 = vmatmul.mubr.bf16.gmra.mxu0 %v361
    %v5973 = vpop.f32.mrf.mxu0
    %v5974 = vadd.f32 %v5934, %v5973
    %v5975 = vpop.f32.mrf.mxu0
    %v5976 = vpop.f32.mrf.mxu0
    %v5977 = vpop.f32.mrf.mxu0
    %5978 = vdwg.mxu0
    %5979 = vmatprep.subr.bf16.mxu0 0
    %5980 = vmatpush1.bf16.msra.mxu0 %v3978
    %5981 = vmatprep.subr.bf16.mxu0 0
    %5982 = vmatpush1.bf16.msra.mxu0 %v3965
    %5983 = vmatprep.subr.bf16.mxu0 0
    %5984 = vmatpush1.bf16.msra.mxu0 %v3952
    %5985 = vmatprep.subr.bf16.mxu0 0
    %5986 = vmatpush1.bf16.msra.mxu0 %v3939
    %5987 = vmatprep.subr.bf16.mxu0 0
    %5988 = vmatpush1.bf16.msra.mxu0 %v3926
    %5989 = vmatprep.subr.bf16.mxu0 0
    %5990 = vmatpush1.bf16.msra.mxu0 %v3913
    %5991 = vmatprep.subr.bf16.mxu0 0
    %5992 = vmatpush1.bf16.msra.mxu0 %v3900
    %5993 = vmatprep.subr.bf16.mxu0 0
    %5994 = vmatpush1.bf16.msra.mxu0 %v3887
    %5995 = vmatprep.subr.bf16.mxu0 0
    %5996 = vmatpush2.bf16.msra.mxu0 %v4082
    %5997 = vmatprep.subr.bf16.mxu0 0
    %5998 = vmatpush2.bf16.msra.mxu0 %v4069
    %5999 = vmatprep.subr.bf16.mxu0 0
    %6000 = vmatpush2.bf16.msra.mxu0 %v4056
    %6001 = vmatprep.subr.bf16.mxu0 0
    %6002 = vmatpush2.bf16.msra.mxu0 %v4043
    %6003 = vmatprep.subr.bf16.mxu0 0
    %6004 = vmatpush2.bf16.msra.mxu0 %v4030
    %6005 = vmatprep.subr.bf16.mxu0 0
    %6006 = vmatpush2.bf16.msra.mxu0 %v4017
    %6007 = vmatprep.subr.bf16.mxu0 0
    %6008 = vmatpush2.bf16.msra.mxu0 %v4004
    %6009 = vmatprep.subr.bf16.mxu0 0
    %6010 = vmatpush2.bf16.msra.mxu0 %v3991
    %6011 = vmatprep.mubr.bf16.mxu0 %v364
    %6012 = vmatmul.mubr.bf16.gmra.mxu0 %v363
    %v6013 = vpop.f32.mrf.mxu0
    %v6014 = vadd.f32 %v5974, %v6013
    %v6015 = vpop.f32.mrf.mxu0
    %v6016 = vpop.f32.mrf.mxu0
    %v6017 = vpop.f32.mrf.mxu0
    %6018 = vdwg.mxu0
    %6019 = vmatprep.subr.bf16.mxu0 0
    %6020 = vmatpush1.bf16.msra.mxu0 %v4186
    %6021 = vmatprep.subr.bf16.mxu0 0
    %6022 = vmatpush1.bf16.msra.mxu0 %v4173
    %6023 = vmatprep.subr.bf16.mxu0 0
    %6024 = vmatpush1.bf16.msra.mxu0 %v4160
    %6025 = vmatprep.subr.bf16.mxu0 0
    %6026 = vmatpush1.bf16.msra.mxu0 %v4147
    %6027 = vmatprep.subr.bf16.mxu0 0
    %6028 = vmatpush1.bf16.msra.mxu0 %v4134
    %6029 = vmatprep.subr.bf16.mxu0 0
    %6030 = vmatpush1.bf16.msra.mxu0 %v4121
    %6031 = vmatprep.subr.bf16.mxu0 0
    %6032 = vmatpush1.bf16.msra.mxu0 %v4108
    %6033 = vmatprep.subr.bf16.mxu0 0
    %6034 = vmatpush1.bf16.msra.mxu0 %v4095
    %6035 = vmatprep.subr.bf16.mxu0 0
    %6036 = vmatpush2.bf16.msra.mxu0 0
    %6037 = vmatprep.subr.bf16.mxu0 0
    %6038 = vmatpush2.bf16.msra.mxu0 0
    %6039 = vmatprep.subr.bf16.mxu0 0
    %6040 = vmatpush2.bf16.msra.mxu0 0
    %6041 = vmatprep.subr.bf16.mxu0 0
    %6042 = vmatpush2.bf16.msra.mxu0 0
    %6043 = vmatprep.subr.bf16.mxu0 0
    %6044 = vmatpush2.bf16.msra.mxu0 0
    %6045 = vmatprep.subr.bf16.mxu0 0
    %6046 = vmatpush2.bf16.msra.mxu0 0
    %6047 = vmatprep.subr.bf16.mxu0 0
    %6048 = vmatpush2.bf16.msra.mxu0 0
    %6049 = vmatprep.subr.bf16.mxu0 0
    %6050 = vmatpush2.bf16.msra.mxu0 0
    %6051 = vmatprep.mubr.bf16.mxu0 0
    %6052 = vmatmul.mubr.bf16.gmra.mxu0 %v365
    %v6053 = vpop.f32.mrf.mxu0
    %v6054 = vadd.f32 %v6014, %v6053
    %v6055 = vpop.f32.mrf.mxu0
    %v6056 = vpop.f32.mrf.mxu0
    %v6057 = vpop.f32.mrf.mxu0
    %6058 = vdwg.mxu0
    %v6059 = vmax.f32 %v5073, 0.0
    %v6060 = vmax.f32 %v5075, 0.0
    %v6061 = vmax.f32 %v5237, 0.0
    %v6062 = vmax.f32 %v5239, 0.0
    %v6063 = vmax.f32 %v5401, 0.0
    %v6064 = vmax.f32 %v5403, 0.0
    %v6065 = vmax.f32 %v5565, 0.0
    %v6066 = vmax.f32 %v5567, 0.0
    %v6067 = vmax.f32 %v5729, 0.0
    %v6068 = vmax.f32 %v5731, 0.0
    %v6069 = vmax.f32 %v5893, 0.0
    %v6070 = vmax.f32 %v5895, 0.0
    %v6071 = vmax.f32 %v6054, 0.0
    %v6072 = vpack.c.bf16 %v6059, %v6059
    %v6073 = vpack.c.bf16 %v6060, %v6060
    %v6074 = vpack.c.bf16 %v6061, %v6061
    %v6075 = vpack.c.bf16 %v6062, %v6062
    %v6076 = vpack.c.bf16 %v6063, %v6063
    %v6077 = vpack.c.bf16 %v6064, %v6064
    %v6078 = vpack.c.bf16 %v6065, %v6065
    %v6079 = vpack.c.bf16 %v6066, %v6066
    %v6080 = vpack.c.bf16 %v6067, %v6067
    %v6081 = vpack.c.bf16 %v6068, %v6068
    %v6082 = vpack.c.bf16 %v6069, %v6069
    %v6083 = vpack.c.bf16 %v6070, %v6070
    %v6084 = vpack.c.bf16 %v6071, %v6071
    %v6085 = vld [vmem:[#allocation9] sm:$0xff]
    %v6086 = vld [vmem:[#allocation9 + $0x8] sm:$0xff]
    %v6087 = vld [vmem:[#allocation9 + $0x10] sm:$0xff]
    %v6088 = vld [vmem:[#allocation9 + $0x18] sm:$0xf]
    %v6089 = vld [vmem:[#allocation9 + $0x1c] sm:$0xff]
    %v6090 = vld [vmem:[#allocation9 + $0x24] sm:$0xff]
    %v6091 = vld [vmem:[#allocation9 + $0x2c] sm:$0xff]
    %v6092 = vld [vmem:[#allocation9 + $0x34] sm:$0xf]
    %v6093 = vld [vmem:[#allocation9 + $0x38] sm:$0xff]
    %v6094 = vld [vmem:[#allocation9 + $0x40] sm:$0xff]
    %v6095 = vld [vmem:[#allocation9 + $0x48] sm:$0xff]
    %v6096 = vld [vmem:[#allocation9 + $0x50] sm:$0xf]
    %v6097 = vld [vmem:[#allocation9 + $0x54] sm:$0xff]
    %v6098 = vld [vmem:[#allocation9 + $0x5c] sm:$0xff]
    %v6099 = vld [vmem:[#allocation9 + $0x64] sm:$0xff]
    %v6100 = vld [vmem:[#allocation9 + $0x6c] sm:$0xf]
    %v6101 = vld [vmem:[#allocation9 + $0x70] sm:$0xff]
    %v6102 = vld [vmem:[#allocation9 + $0x78] sm:$0xff]
    %v6103 = vld [vmem:[#allocation9 + $0x80] sm:$0xff]
    %v6104 = vld [vmem:[#allocation9 + $0x88] sm:$0xf]
    %v6105 = vld [vmem:[#allocation9 + $0x8c] sm:$0xff]
    %v6106 = vld [vmem:[#allocation9 + $0x94] sm:$0xff]
    %v6107 = vld [vmem:[#allocation9 + $0x9c] sm:$0xff]
    %v6108 = vld [vmem:[#allocation9 + $0xa4] sm:$0xf]
    %v6109 = vld [vmem:[#allocation9 + $0xa8] sm:$0xff]
    %v6110 = vld [vmem:[#allocation9 + $0xb0] sm:$0xff]
    %v6111 = vld [vmem:[#allocation9 + $0xb8] sm:$0xff]
    %v6112 = vld [vmem:[#allocation9 + $0xc0] sm:$0xf]
    %v6113 = vld [vmem:[#allocation9 + $0xc4] sm:$0xff]
    %v6114 = vld [vmem:[#allocation9 + $0xcc] sm:$0xff]
    %v6115 = vld [vmem:[#allocation9 + $0xd4] sm:$0xff]
    %v6116 = vld [vmem:[#allocation9 + $0xdc] sm:$0xf]
    %v6117 = vld [vmem:[#allocation9 + $0xe0] sm:$0xff]
    %v6118 = vld [vmem:[#allocation9 + $0xe8] sm:$0xff]
    %v6119 = vld [vmem:[#allocation9 + $0xf0] sm:$0xff]
    %v6120 = vld [vmem:[#allocation9 + $0xf8] sm:$0xf]
    %v6121 = vld [vmem:[#allocation9 + $0xfc] sm:$0xff]
    %v6122 = vld [vmem:[#allocation9 + $0x104] sm:$0xff]
    %v6123 = vld [vmem:[#allocation9 + $0x10c] sm:$0xff]
    %v6124 = vld [vmem:[#allocation9 + $0x114] sm:$0xf]
    %v6125 = vld [vmem:[#allocation9 + $0x118] sm:$0xff]
    %v6126 = vld [vmem:[#allocation9 + $0x120] sm:$0xff]
    %v6127 = vld [vmem:[#allocation9 + $0x128] sm:$0xff]
    %v6128 = vld [vmem:[#allocation9 + $0x130] sm:$0xf]
    %v6129 = vld [vmem:[#allocation9 + $0x134] sm:$0xff]
    %v6130 = vld [vmem:[#allocation9 + $0x13c] sm:$0xff]
    %v6131 = vld [vmem:[#allocation9 + $0x144] sm:$0xff]
    %v6132 = vld [vmem:[#allocation9 + $0x14c] sm:$0xf]
    %v6133 = vld [vmem:[#allocation9 + $0x150] sm:$0xff]
    %v6134 = vld [vmem:[#allocation9 + $0x158] sm:$0xff]
    %v6135 = vld [vmem:[#allocation9 + $0x160] sm:$0xff]
    %v6136 = vld [vmem:[#allocation9 + $0x168] sm:$0xf]
    %v6137 = vld [vmem:[#allocation9 + $0x16c] sm:$0xff]
    %v6138 = vld [vmem:[#allocation9 + $0x174] sm:$0xff]
    %v6139 = vld [vmem:[#allocation9 + $0x17c] sm:$0xff]
    %v6140 = vld [vmem:[#allocation9 + $0x184] sm:$0xf]
    %v6141 = vld [vmem:[#allocation9 + $0x188] sm:$0xff]
    %v6142 = vld [vmem:[#allocation9 + $0x190] sm:$0xff]
    %v6143 = vld [vmem:[#allocation9 + $0x198] sm:$0xff]
    %v6144 = vld [vmem:[#allocation9 + $0x1a0] sm:$0xf]
    %v6145 = vld [vmem:[#allocation9 + $0x1a4] sm:$0xff]
    %v6146 = vld [vmem:[#allocation9 + $0x1ac] sm:$0xff]
    %v6147 = vld [vmem:[#allocation9 + $0x1b4] sm:$0xff]
    %v6148 = vld [vmem:[#allocation9 + $0x1bc] sm:$0xf]
    %v6149 = vld [vmem:[#allocation9 + $0x1c0] sm:$0xff]
    %v6150 = vld [vmem:[#allocation9 + $0x1c8] sm:$0xff]
    %v6151 = vld [vmem:[#allocation9 + $0x1d0] sm:$0xff]
    %v6152 = vld [vmem:[#allocation9 + $0x1d8] sm:$0xf]
    %v6153 = vld [vmem:[#allocation9 + $0x1dc] sm:$0xff]
    %v6154 = vld [vmem:[#allocation9 + $0x1e4] sm:$0xff]
    %v6155 = vld [vmem:[#allocation9 + $0x1ec] sm:$0xff]
    %v6156 = vld [vmem:[#allocation9 + $0x1f4] sm:$0xf]
    %v6157 = vld [vmem:[#allocation9 + $0x1f8] sm:$0xff]
    %v6158 = vld [vmem:[#allocation9 + $0x200] sm:$0xff]
    %v6159 = vld [vmem:[#allocation9 + $0x208] sm:$0xff]
    %v6160 = vld [vmem:[#allocation9 + $0x210] sm:$0xf]
    %v6161 = vld [vmem:[#allocation9 + $0x214] sm:$0xff]
    %v6162 = vld [vmem:[#allocation9 + $0x21c] sm:$0xff]
    %v6163 = vld [vmem:[#allocation9 + $0x224] sm:$0xff]
    %v6164 = vld [vmem:[#allocation9 + $0x22c] sm:$0xf]
    %v6165 = vld [vmem:[#allocation9 + $0x230] sm:$0xff]
    %v6166 = vld [vmem:[#allocation9 + $0x238] sm:$0xff]
    %v6167 = vld [vmem:[#allocation9 + $0x240] sm:$0xff]
    %v6168 = vld [vmem:[#allocation9 + $0x248] sm:$0xf]
    %v6169 = vld [vmem:[#allocation9 + $0x24c] sm:$0xff]
    %v6170 = vld [vmem:[#allocation9 + $0x254] sm:$0xff]
    %v6171 = vld [vmem:[#allocation9 + $0x25c] sm:$0xff]
    %v6172 = vld [vmem:[#allocation9 + $0x264] sm:$0xf]
    %v6173 = vld [vmem:[#allocation9 + $0x268] sm:$0xff]
    %v6174 = vld [vmem:[#allocation9 + $0x270] sm:$0xff]
    %v6175 = vld [vmem:[#allocation9 + $0x278] sm:$0xff]
    %v6176 = vld [vmem:[#allocation9 + $0x280] sm:$0xf]
    %v6177 = vld [vmem:[#allocation9 + $0x284] sm:$0xff]
    %v6178 = vld [vmem:[#allocation9 + $0x28c] sm:$0xff]
    %v6179 = vld [vmem:[#allocation9 + $0x294] sm:$0xff]
    %v6180 = vld [vmem:[#allocation9 + $0x29c] sm:$0xf]
    %v6181 = vld [vmem:[#allocation9 + $0x2a0] sm:$0xff]
    %v6182 = vld [vmem:[#allocation9 + $0x2a8] sm:$0xff]
    %v6183 = vld [vmem:[#allocation9 + $0x2b0] sm:$0xff]
    %v6184 = vld [vmem:[#allocation9 + $0x2b8] sm:$0xf]
    %v6185 = vld [vmem:[#allocation9 + $0x2bc] sm:$0xff]
    %v6186 = vld [vmem:[#allocation9 + $0x2c4] sm:$0xff]
    %v6187 = vld [vmem:[#allocation9 + $0x2cc] sm:$0xff]
    %v6188 = vld [vmem:[#allocation9 + $0x2d4] sm:$0xf]
    %v6189 = vld [vmem:[#allocation9 + $0x2d8] sm:$0xff]
    %v6190 = vld [vmem:[#allocation9 + $0x2e0] sm:$0xff]
    %v6191 = vld [vmem:[#allocation9 + $0x2e8] sm:$0xff]
    %v6192 = vld [vmem:[#allocation9 + $0x2f0] sm:$0xf]
    %v6193 = vld [vmem:[#allocation9 + $0x2f4] sm:$0xff]
    %v6194 = vld [vmem:[#allocation9 + $0x2fc] sm:$0xff]
    %v6195 = vld [vmem:[#allocation9 + $0x304] sm:$0xff]
    %v6196 = vld [vmem:[#allocation9 + $0x30c] sm:$0xf]
    %v6197 = vld [vmem:[#allocation9 + $0x310] sm:$0xff]
    %v6198 = vld [vmem:[#allocation9 + $0x318] sm:$0xff]
    %v6199 = vld [vmem:[#allocation9 + $0x320] sm:$0xff]
    %v6200 = vld [vmem:[#allocation9 + $0x328] sm:$0xf]
    %v6201 = vld [vmem:[#allocation9 + $0x32c] sm:$0xff]
    %v6202 = vld [vmem:[#allocation9 + $0x334] sm:$0xff]
    %v6203 = vld [vmem:[#allocation9 + $0x33c] sm:$0xff]
    %v6204 = vld [vmem:[#allocation9 + $0x344] sm:$0xf]
    %v6205 = vld [vmem:[#allocation9 + $0x348] sm:$0xff]
    %v6206 = vld [vmem:[#allocation9 + $0x350] sm:$0xff]
    %v6207 = vld [vmem:[#allocation9 + $0x358] sm:$0xff]
    %v6208 = vld [vmem:[#allocation9 + $0x360] sm:$0xf]
    %v6209 = vld [vmem:[#allocation9 + $0x364] sm:$0xff]
    %v6210 = vld [vmem:[#allocation9 + $0x36c] sm:$0xff]
    %v6211 = vld [vmem:[#allocation9 + $0x374] sm:$0xff]
    %v6212 = vld [vmem:[#allocation9 + $0x37c] sm:$0xf]
    %v6213 = vld [vmem:[#allocation9 + $0x380] sm:$0xff]
    %v6214 = vld [vmem:[#allocation9 + $0x388] sm:$0xff]
    %v6215 = vld [vmem:[#allocation9 + $0x390] sm:$0xff]
    %v6216 = vld [vmem:[#allocation9 + $0x398] sm:$0xf]
    %v6217 = vld [vmem:[#allocation9 + $0x39c] sm:$0xff]
    %v6218 = vld [vmem:[#allocation9 + $0x3a4] sm:$0xff]
    %v6219 = vld [vmem:[#allocation9 + $0x3ac] sm:$0xff]
    %v6220 = vld [vmem:[#allocation9 + $0x3b4] sm:$0xf]
    %v6221 = vld [vmem:[#allocation9 + $0x3b8] sm:$0xff]
    %v6222 = vld [vmem:[#allocation9 + $0x3c0] sm:$0xff]
    %v6223 = vld [vmem:[#allocation9 + $0x3c8] sm:$0xff]
    %v6224 = vld [vmem:[#allocation9 + $0x3d0] sm:$0xf]
    %v6225 = vld [vmem:[#allocation9 + $0x3d4] sm:$0xff]
    %v6226 = vld [vmem:[#allocation9 + $0x3dc] sm:$0xff]
    %v6227 = vld [vmem:[#allocation9 + $0x3e4] sm:$0xff]
    %v6228 = vld [vmem:[#allocation9 + $0x3ec] sm:$0xf]
    %v6229 = vld [vmem:[#allocation9 + $0x3f0] sm:$0xff]
    %v6230 = vld [vmem:[#allocation9 + $0x3f8] sm:$0xff]
    %v6231 = vld [vmem:[#allocation9 + $0x400] sm:$0xff]
    %v6232 = vld [vmem:[#allocation9 + $0x408] sm:$0xf]
    %v6233 = vld [vmem:[#allocation9 + $0x40c] sm:$0xff]
    %v6234 = vld [vmem:[#allocation9 + $0x414] sm:$0xff]
    %v6235 = vld [vmem:[#allocation9 + $0x41c] sm:$0xff]
    %v6236 = vld [vmem:[#allocation9 + $0x424] sm:$0xf]
    %v6237 = vld [vmem:[#allocation9 + $0x428] sm:$0xff]
    %v6238 = vld [vmem:[#allocation9 + $0x430] sm:$0xff]
    %v6239 = vld [vmem:[#allocation9 + $0x438] sm:$0xff]
    %v6240 = vld [vmem:[#allocation9 + $0x440] sm:$0xf]
    %v6241 = vld [vmem:[#allocation9 + $0x444] sm:$0xff]
    %v6242 = vld [vmem:[#allocation9 + $0x44c] sm:$0xff]
    %v6243 = vld [vmem:[#allocation9 + $0x454] sm:$0xff]
    %v6244 = vld [vmem:[#allocation9 + $0x45c] sm:$0xf]
    %v6245 = vld [vmem:[#allocation9 + $0x460] sm:$0xff]
    %v6246 = vld [vmem:[#allocation9 + $0x468] sm:$0xff]
    %v6247 = vld [vmem:[#allocation9 + $0x470] sm:$0xff]
    %v6248 = vld [vmem:[#allocation9 + $0x478] sm:$0xf]
    %v6249 = vld [vmem:[#allocation9 + $0x47c] sm:$0xff]
    %v6250 = vld [vmem:[#allocation9 + $0x484] sm:$0xff]
    %v6251 = vld [vmem:[#allocation9 + $0x48c] sm:$0xff]
    %v6252 = vld [vmem:[#allocation9 + $0x494] sm:$0xf]
    %v6253 = vld [vmem:[#allocation9 + $0x498] sm:$0xff]
    %v6254 = vld [vmem:[#allocation9 + $0x4a0] sm:$0xff]
    %v6255 = vld [vmem:[#allocation9 + $0x4a8] sm:$0xff]
    %v6256 = vld [vmem:[#allocation9 + $0x4b0] sm:$0xf]
    %v6257 = vld [vmem:[#allocation9 + $0x4b4] sm:$0xff]
    %v6258 = vld [vmem:[#allocation9 + $0x4bc] sm:$0xff]
    %v6259 = vld [vmem:[#allocation9 + $0x4c4] sm:$0xff]
    %v6260 = vld [vmem:[#allocation9 + $0x4cc] sm:$0xf]
    %v6261 = vld [vmem:[#allocation9 + $0x4d0] sm:$0xff]
    %v6262 = vld [vmem:[#allocation9 + $0x4d8] sm:$0xff]
    %v6263 = vld [vmem:[#allocation9 + $0x4e0] sm:$0xff]
    %v6264 = vld [vmem:[#allocation9 + $0x4e8] sm:$0xf]
    %v6265 = vld [vmem:[#allocation9 + $0x4ec] sm:$0xff]
    %v6266 = vld [vmem:[#allocation9 + $0x4f4] sm:$0xff]
    %v6267 = vld [vmem:[#allocation9 + $0x4fc] sm:$0xff]
    %v6268 = vld [vmem:[#allocation9 + $0x504] sm:$0xf]
    %v6269 = vld [vmem:[#allocation9 + $0x508] sm:$0xff]
    %v6270 = vld [vmem:[#allocation9 + $0x510] sm:$0xff]
    %v6271 = vld [vmem:[#allocation9 + $0x518] sm:$0xff]
    %v6272 = vld [vmem:[#allocation9 + $0x520] sm:$0xf]
    %v6273 = vld [vmem:[#allocation9 + $0x524] sm:$0xff]
    %v6274 = vld [vmem:[#allocation9 + $0x52c] sm:$0xff]
    %v6275 = vld [vmem:[#allocation9 + $0x534] sm:$0xff]
    %v6276 = vld [vmem:[#allocation9 + $0x53c] sm:$0xf]
    %v6277 = vld [vmem:[#allocation9 + $0x540] sm:$0xff]
    %v6278 = vld [vmem:[#allocation9 + $0x548] sm:$0xff]
    %v6279 = vld [vmem:[#allocation9 + $0x550] sm:$0xff]
    %v6280 = vld [vmem:[#allocation9 + $0x558] sm:$0xf]
    %v6281 = vld [vmem:[#allocation9 + $0x55c] sm:$0xff]
    %v6282 = vld [vmem:[#allocation9 + $0x564] sm:$0xff]
    %v6283 = vld [vmem:[#allocation9 + $0x56c] sm:$0xff]
    %v6284 = vld [vmem:[#allocation9 + $0x574] sm:$0xf]
    %v6285 = vld [vmem:[#allocation9 + $0x578] sm:$0xff]
    %v6286 = vld [vmem:[#allocation9 + $0x580] sm:$0xff]
    %v6287 = vld [vmem:[#allocation9 + $0x588] sm:$0xff]
    %v6288 = vld [vmem:[#allocation9 + $0x590] sm:$0xf]
    %v6289 = vld [vmem:[#allocation9 + $0x594] sm:$0xff]
    %v6290 = vld [vmem:[#allocation9 + $0x59c] sm:$0xff]
    %v6291 = vld [vmem:[#allocation9 + $0x5a4] sm:$0xff]
    %v6292 = vld [vmem:[#allocation9 + $0x5ac] sm:$0xf]
    %v6293 = vld [vmem:[#allocation9 + $0x5b0] sm:$0xff]
    %v6294 = vld [vmem:[#allocation9 + $0x5b8] sm:$0xff]
    %v6295 = vld [vmem:[#allocation9 + $0x5c0] sm:$0xff]
    %v6296 = vld [vmem:[#allocation9 + $0x5c8] sm:$0xf]
    %v6297 = vld [vmem:[#allocation9 + $0x5cc] sm:$0xff]
    %v6298 = vld [vmem:[#allocation9 + $0x5d4] sm:$0xff]
    %v6299 = vld [vmem:[#allocation9 + $0x5dc] sm:$0xff]
    %v6300 = vld [vmem:[#allocation9 + $0x5e4] sm:$0xf]
    %v6301 = vld [vmem:[#allocation9 + $0x5e8] sm:$0xff]
    %v6302 = vld [vmem:[#allocation9 + $0x5f0] sm:$0xff]
    %v6303 = vld [vmem:[#allocation9 + $0x5f8] sm:$0xff]
    %v6304 = vld [vmem:[#allocation9 + $0x600] sm:$0xf]
    %v6305 = vld [vmem:[#allocation9 + $0x604] sm:$0xff]
    %v6306 = vld [vmem:[#allocation9 + $0x60c] sm:$0xff]
    %v6307 = vld [vmem:[#allocation9 + $0x614] sm:$0xff]
    %v6308 = vld [vmem:[#allocation9 + $0x61c] sm:$0xf]
    %v6309 = vld [vmem:[#allocation9 + $0x620] sm:$0xff]
    %v6310 = vld [vmem:[#allocation9 + $0x628] sm:$0xff]
    %v6311 = vld [vmem:[#allocation9 + $0x630] sm:$0xff]
    %v6312 = vld [vmem:[#allocation9 + $0x638] sm:$0xf]
    %v6313 = vld [vmem:[#allocation9 + $0x63c] sm:$0xff]
    %v6314 = vld [vmem:[#allocation9 + $0x644] sm:$0xff]
    %v6315 = vld [vmem:[#allocation9 + $0x64c] sm:$0xff]
    %v6316 = vld [vmem:[#allocation9 + $0x654] sm:$0xf]
    %v6317 = vld [vmem:[#allocation9 + $0x658] sm:$0xff]
    %v6318 = vld [vmem:[#allocation9 + $0x660] sm:$0xff]
    %v6319 = vld [vmem:[#allocation9 + $0x668] sm:$0xff]
    %v6320 = vld [vmem:[#allocation9 + $0x670] sm:$0xf]
    %v6321 = vld [vmem:[#allocation9 + $0x674] sm:$0xff]
    %v6322 = vld [vmem:[#allocation9 + $0x67c] sm:$0xff]
    %v6323 = vld [vmem:[#allocation9 + $0x684] sm:$0xff]
    %v6324 = vld [vmem:[#allocation9 + $0x68c] sm:$0xf]
    %v6325 = vld [vmem:[#allocation9 + $0x690] sm:$0xff]
    %v6326 = vld [vmem:[#allocation9 + $0x698] sm:$0xff]
    %v6327 = vld [vmem:[#allocation9 + $0x6a0] sm:$0xff]
    %v6328 = vld [vmem:[#allocation9 + $0x6a8] sm:$0xf]
    %v6329 = vld [vmem:[#allocation9 + $0x6ac] sm:$0xff]
    %v6330 = vld [vmem:[#allocation9 + $0x6b4] sm:$0xff]
    %v6331 = vld [vmem:[#allocation9 + $0x6bc] sm:$0xff]
    %v6332 = vld [vmem:[#allocation9 + $0x6c4] sm:$0xf]
    %v6333 = vld [vmem:[#allocation9 + $0x6c8] sm:$0xff]
    %v6334 = vld [vmem:[#allocation9 + $0x6d0] sm:$0xff]
    %v6335 = vld [vmem:[#allocation9 + $0x6d8] sm:$0xff]
    %v6336 = vld [vmem:[#allocation9 + $0x6e0] sm:$0xf]
    %v6337 = vld [vmem:[#allocation9 + $0x6e4] sm:$0xff]
    %v6338 = vld [vmem:[#allocation9 + $0x6ec] sm:$0xff]
    %v6339 = vld [vmem:[#allocation9 + $0x6f4] sm:$0xff]
    %v6340 = vld [vmem:[#allocation9 + $0x6fc] sm:$0xf]
    %v6341 = vld [vmem:[#allocation9 + $0x700] sm:$0xff]
    %v6342 = vld [vmem:[#allocation9 + $0x708] sm:$0xff]
    %v6343 = vld [vmem:[#allocation9 + $0x710] sm:$0xff]
    %v6344 = vld [vmem:[#allocation9 + $0x718] sm:$0xf]
    %v6345 = vld [vmem:[#allocation9 + $0x71c] sm:$0xff]
    %v6346 = vld [vmem:[#allocation9 + $0x724] sm:$0xff]
    %v6347 = vld [vmem:[#allocation9 + $0x72c] sm:$0xff]
    %v6348 = vld [vmem:[#allocation9 + $0x734] sm:$0xf]
    %v6349 = vld [vmem:[#allocation9 + $0x738] sm:$0xff]
    %v6350 = vld [vmem:[#allocation9 + $0x740] sm:$0xff]
    %v6351 = vld [vmem:[#allocation9 + $0x748] sm:$0xff]
    %v6352 = vld [vmem:[#allocation9 + $0x750] sm:$0xf]
    %v6353 = vld [vmem:[#allocation9 + $0x754] sm:$0xff]
    %v6354 = vld [vmem:[#allocation9 + $0x75c] sm:$0xff]
    %v6355 = vld [vmem:[#allocation9 + $0x764] sm:$0xff]
    %v6356 = vld [vmem:[#allocation9 + $0x76c] sm:$0xf]
    %v6357 = vld [vmem:[#allocation9 + $0x770] sm:$0xff]
    %v6358 = vld [vmem:[#allocation9 + $0x778] sm:$0xff]
    %v6359 = vld [vmem:[#allocation9 + $0x780] sm:$0xff]
    %v6360 = vld [vmem:[#allocation9 + $0x788] sm:$0xf]
    %v6361 = vld [vmem:[#allocation9 + $0x78c] sm:$0xff]
    %v6362 = vld [vmem:[#allocation9 + $0x794] sm:$0xff]
    %v6363 = vld [vmem:[#allocation9 + $0x79c] sm:$0xff]
    %v6364 = vld [vmem:[#allocation9 + $0x7a4] sm:$0xf]
    %v6365 = vld [vmem:[#allocation9 + $0x7a8] sm:$0xff]
    %v6366 = vld [vmem:[#allocation9 + $0x7b0] sm:$0xff]
    %v6367 = vld [vmem:[#allocation9 + $0x7b8] sm:$0xff]
    %v6368 = vld [vmem:[#allocation9 + $0x7c0] sm:$0xf]
    %v6369 = vld [vmem:[#allocation9 + $0x7c4] sm:$0xff]
    %v6370 = vld [vmem:[#allocation9 + $0x7cc] sm:$0xff]
    %v6371 = vld [vmem:[#allocation9 + $0x7d4] sm:$0xff]
    %v6372 = vld [vmem:[#allocation9 + $0x7dc] sm:$0xf]
    %v6373 = vld [vmem:[#allocation9 + $0x7e0] sm:$0xff]
    %v6374 = vld [vmem:[#allocation9 + $0x7e8] sm:$0xff]
    %v6375 = vld [vmem:[#allocation9 + $0x7f0] sm:$0xff]
    %v6376 = vld [vmem:[#allocation9 + $0x7f8] sm:$0xf]
    %v6377 = vld [vmem:[#allocation9 + $0x7fc] sm:$0xff]
    %v6378 = vld [vmem:[#allocation9 + $0x804] sm:$0xff]
    %v6379 = vld [vmem:[#allocation9 + $0x80c] sm:$0xff]
    %v6380 = vld [vmem:[#allocation9 + $0x814] sm:$0xf]
    %v6381 = vld [vmem:[#allocation9 + $0x818] sm:$0xff]
    %v6382 = vld [vmem:[#allocation9 + $0x820] sm:$0xff]
    %v6383 = vld [vmem:[#allocation9 + $0x828] sm:$0xff]
    %v6384 = vld [vmem:[#allocation9 + $0x830] sm:$0xf]
    %v6385 = vld [vmem:[#allocation9 + $0x834] sm:$0xff]
    %v6386 = vld [vmem:[#allocation9 + $0x83c] sm:$0xff]
    %v6387 = vld [vmem:[#allocation9 + $0x844] sm:$0xff]
    %v6388 = vld [vmem:[#allocation9 + $0x84c] sm:$0xf]
    %v6389 = vld [vmem:[#allocation9 + $0x850] sm:$0xff]
    %v6390 = vld [vmem:[#allocation9 + $0x858] sm:$0xff]
    %v6391 = vld [vmem:[#allocation9 + $0x860] sm:$0xff]
    %v6392 = vld [vmem:[#allocation9 + $0x868] sm:$0xf]
    %v6393 = vld [vmem:[#allocation9 + $0x86c] sm:$0xff]
    %v6394 = vld [vmem:[#allocation9 + $0x874] sm:$0xff]
    %v6395 = vld [vmem:[#allocation9 + $0x87c] sm:$0xff]
    %v6396 = vld [vmem:[#allocation9 + $0x884] sm:$0xf]
    %v6397 = vld [vmem:[#allocation9 + $0x888] sm:$0xff]
    %v6398 = vld [vmem:[#allocation9 + $0x890] sm:$0xff]
    %v6399 = vld [vmem:[#allocation9 + $0x898] sm:$0xff]
    %v6400 = vld [vmem:[#allocation9 + $0x8a0] sm:$0xf]
    %v6401 = vld [vmem:[#allocation9 + $0x8a4] sm:$0xff]
    %v6402 = vld [vmem:[#allocation9 + $0x8ac] sm:$0xff]
    %v6403 = vld [vmem:[#allocation9 + $0x8b4] sm:$0xff]
    %v6404 = vld [vmem:[#allocation9 + $0x8bc] sm:$0xf]
    %v6405 = vld [vmem:[#allocation9 + $0x8c0] sm:$0xff]
    %v6406 = vld [vmem:[#allocation9 + $0x8c8] sm:$0xff]
    %v6407 = vld [vmem:[#allocation9 + $0x8d0] sm:$0xff]
    %v6408 = vld [vmem:[#allocation9 + $0x8d8] sm:$0xf]
    %v6409 = vld [vmem:[#allocation9 + $0x8dc] sm:$0xff]
    %v6410 = vld [vmem:[#allocation9 + $0x8e4] sm:$0xff]
    %v6411 = vld [vmem:[#allocation9 + $0x8ec] sm:$0xff]
    %v6412 = vld [vmem:[#allocation9 + $0x8f4] sm:$0xf]
    %v6413 = vld [vmem:[#allocation9 + $0x8f8] sm:$0xff]
    %v6414 = vld [vmem:[#allocation9 + $0x900] sm:$0xff]
    %v6415 = vld [vmem:[#allocation9 + $0x908] sm:$0xff]
    %v6416 = vld [vmem:[#allocation9 + $0x910] sm:$0xf]
    %v6417 = vld [vmem:[#allocation9 + $0x914] sm:$0xff]
    %v6418 = vld [vmem:[#allocation9 + $0x91c] sm:$0xff]
    %v6419 = vld [vmem:[#allocation9 + $0x924] sm:$0xff]
    %v6420 = vld [vmem:[#allocation9 + $0x92c] sm:$0xf]
    %v6421 = vld [vmem:[#allocation9 + $0x930] sm:$0xff]
    %v6422 = vld [vmem:[#allocation9 + $0x938] sm:$0xff]
    %v6423 = vld [vmem:[#allocation9 + $0x940] sm:$0xff]
    %v6424 = vld [vmem:[#allocation9 + $0x948] sm:$0xf]
    %v6425 = vld [vmem:[#allocation9 + $0x94c] sm:$0xff]
    %v6426 = vld [vmem:[#allocation9 + $0x954] sm:$0xff]
    %v6427 = vld [vmem:[#allocation9 + $0x95c] sm:$0xff]
    %v6428 = vld [vmem:[#allocation9 + $0x964] sm:$0xf]
    %v6429 = vld [vmem:[#allocation9 + $0x968] sm:$0xff]
    %v6430 = vld [vmem:[#allocation9 + $0x970] sm:$0xff]
    %v6431 = vld [vmem:[#allocation9 + $0x978] sm:$0xff]
    %v6432 = vld [vmem:[#allocation9 + $0x980] sm:$0xf]
    %v6433 = vld [vmem:[#allocation9 + $0x984] sm:$0xff]
    %v6434 = vld [vmem:[#allocation9 + $0x98c] sm:$0xff]
    %v6435 = vld [vmem:[#allocation9 + $0x994] sm:$0xff]
    %v6436 = vld [vmem:[#allocation9 + $0x99c] sm:$0xf]
    %v6437 = vld [vmem:[#allocation9 + $0x9a0] sm:$0xff]
    %v6438 = vld [vmem:[#allocation9 + $0x9a8] sm:$0xff]
    %v6439 = vld [vmem:[#allocation9 + $0x9b0] sm:$0xff]
    %v6440 = vld [vmem:[#allocation9 + $0x9b8] sm:$0xf]
    %v6441 = vld [vmem:[#allocation9 + $0x9bc] sm:$0xff]
    %v6442 = vld [vmem:[#allocation9 + $0x9c4] sm:$0xff]
    %v6443 = vld [vmem:[#allocation9 + $0x9cc] sm:$0xff]
    %v6444 = vld [vmem:[#allocation9 + $0x9d4] sm:$0xf]
    %v6445 = vld [vmem:[#allocation9 + $0x9d8] sm:$0xff]
    %v6446 = vld [vmem:[#allocation9 + $0x9e0] sm:$0xff]
    %v6447 = vld [vmem:[#allocation9 + $0x9e8] sm:$0xff]
    %v6448 = vld [vmem:[#allocation9 + $0x9f0] sm:$0xf]
    %v6449 = vld [vmem:[#allocation9 + $0x9f4] sm:$0xff]
    %v6450 = vld [vmem:[#allocation9 + $0x9fc] sm:$0xff]
    %v6451 = vld [vmem:[#allocation9 + $0xa04] sm:$0xff]
    %v6452 = vld [vmem:[#allocation9 + $0xa0c] sm:$0xf]
    %v6453 = vld [vmem:[#allocation9 + $0xa10] sm:$0xff]
    %v6454 = vld [vmem:[#allocation9 + $0xa18] sm:$0xff]
    %v6455 = vld [vmem:[#allocation9 + $0xa20] sm:$0xff]
    %v6456 = vld [vmem:[#allocation9 + $0xa28] sm:$0xf]
    %v6457 = vld [vmem:[#allocation9 + $0xa2c] sm:$0xff]
    %v6458 = vld [vmem:[#allocation9 + $0xa34] sm:$0xff]
    %v6459 = vld [vmem:[#allocation9 + $0xa3c] sm:$0xff]
    %v6460 = vld [vmem:[#allocation9 + $0xa44] sm:$0xf]
    %v6461 = vld [vmem:[#allocation9 + $0xa48] sm:$0xff]
    %v6462 = vld [vmem:[#allocation9 + $0xa50] sm:$0xff]
    %v6463 = vld [vmem:[#allocation9 + $0xa58] sm:$0xff]
    %v6464 = vld [vmem:[#allocation9 + $0xa60] sm:$0xf]
    %v6465 = vld [vmem:[#allocation9 + $0xa64] sm:$0xff]
    %v6466 = vld [vmem:[#allocation9 + $0xa6c] sm:$0xff]
    %v6467 = vld [vmem:[#allocation9 + $0xa74] sm:$0xff]
    %v6468 = vld [vmem:[#allocation9 + $0xa7c] sm:$0xf]
    %v6469 = vld [vmem:[#allocation9 + $0xa80] sm:$0xff]
    %v6470 = vld [vmem:[#allocation9 + $0xa88] sm:$0xff]
    %v6471 = vld [vmem:[#allocation9 + $0xa90] sm:$0xff]
    %v6472 = vld [vmem:[#allocation9 + $0xa98] sm:$0xf]
    %v6473 = vld [vmem:[#allocation9 + $0xa9c] sm:$0xff]
    %v6474 = vld [vmem:[#allocation9 + $0xaa4] sm:$0xff]
    %v6475 = vld [vmem:[#allocation9 + $0xaac] sm:$0xff]
    %v6476 = vld [vmem:[#allocation9 + $0xab4] sm:$0xf]
    %v6477 = vld [vmem:[#allocation9 + $0xab8] sm:$0xff]
    %v6478 = vld [vmem:[#allocation9 + $0xac0] sm:$0xff]
    %v6479 = vld [vmem:[#allocation9 + $0xac8] sm:$0xff]
    %v6480 = vld [vmem:[#allocation9 + $0xad0] sm:$0xf]
    %v6481 = vld [vmem:[#allocation9 + $0xad4] sm:$0xff]
    %v6482 = vld [vmem:[#allocation9 + $0xadc] sm:$0xff]
    %v6483 = vld [vmem:[#allocation9 + $0xae4] sm:$0xff]
    %v6484 = vld [vmem:[#allocation9 + $0xaec] sm:$0xf]
    %v6485 = vld [vmem:[#allocation9 + $0xaf0] sm:$0xff]
    %v6486 = vld [vmem:[#allocation9 + $0xaf8] sm:$0xff]
    %v6487 = vld [vmem:[#allocation9 + $0xb00] sm:$0xff]
    %v6488 = vld [vmem:[#allocation9 + $0xb08] sm:$0xf]
    %v6489 = vld [vmem:[#allocation9 + $0xb0c] sm:$0xff]
    %v6490 = vld [vmem:[#allocation9 + $0xb14] sm:$0xff]
    %v6491 = vld [vmem:[#allocation9 + $0xb1c] sm:$0xff]
    %v6492 = vld [vmem:[#allocation9 + $0xb24] sm:$0xf]
    %v6493 = vld [vmem:[#allocation9 + $0xb28] sm:$0xff]
    %v6494 = vld [vmem:[#allocation9 + $0xb30] sm:$0xff]
    %v6495 = vld [vmem:[#allocation9 + $0xb38] sm:$0xff]
    %v6496 = vld [vmem:[#allocation9 + $0xb40] sm:$0xf]
    %v6497 = vld [vmem:[#allocation9 + $0xb44] sm:$0xff]
    %v6498 = vld [vmem:[#allocation9 + $0xb4c] sm:$0xff]
    %v6499 = vld [vmem:[#allocation9 + $0xb54] sm:$0xff]
    %v6500 = vld [vmem:[#allocation9 + $0xb5c] sm:$0xf]
    %v6501 = vld [vmem:[#allocation9 + $0xb60] sm:$0xff]
    %v6502 = vld [vmem:[#allocation9 + $0xb68] sm:$0xff]
    %v6503 = vld [vmem:[#allocation9 + $0xb70] sm:$0xff]
    %v6504 = vld [vmem:[#allocation9 + $0xb78] sm:$0xf]
    %v6505 = vld [vmem:[#allocation9 + $0xb7c] sm:$0xff]
    %v6506 = vld [vmem:[#allocation9 + $0xb84] sm:$0xff]
    %v6507 = vld [vmem:[#allocation9 + $0xb8c] sm:$0xff]
    %v6508 = vld [vmem:[#allocation9 + $0xb94] sm:$0xf]
    %v6509 = vld [vmem:[#allocation9 + $0xb98] sm:$0xff]
    %v6510 = vld [vmem:[#allocation9 + $0xba0] sm:$0xff]
    %v6511 = vld [vmem:[#allocation9 + $0xba8] sm:$0xff]
    %v6512 = vld [vmem:[#allocation9 + $0xbb0] sm:$0xf]
    %v6513 = vld [vmem:[#allocation9 + $0xbb4] sm:$0xff]
    %v6514 = vld [vmem:[#allocation9 + $0xbbc] sm:$0xff]
    %v6515 = vld [vmem:[#allocation9 + $0xbc4] sm:$0xff]
    %v6516 = vld [vmem:[#allocation9 + $0xbcc] sm:$0xf]
    %v6517 = vld [vmem:[#allocation9 + $0xbd0] sm:$0xff]
    %v6518 = vld [vmem:[#allocation9 + $0xbd8] sm:$0xff]
    %v6519 = vld [vmem:[#allocation9 + $0xbe0] sm:$0xff]
    %v6520 = vld [vmem:[#allocation9 + $0xbe8] sm:$0xf]
    %v6521 = vld [vmem:[#allocation9 + $0xbec] sm:$0xff]
    %v6522 = vld [vmem:[#allocation9 + $0xbf4] sm:$0xff]
    %v6523 = vld [vmem:[#allocation9 + $0xbfc] sm:$0xff]
    %v6524 = vld [vmem:[#allocation9 + $0xc04] sm:$0xf]
    %v6525 = vld [vmem:[#allocation9 + $0xc08] sm:$0xff]
    %v6526 = vld [vmem:[#allocation9 + $0xc10] sm:$0xff]
    %v6527 = vld [vmem:[#allocation9 + $0xc18] sm:$0xff]
    %v6528 = vld [vmem:[#allocation9 + $0xc20] sm:$0xf]
    %v6529 = vld [vmem:[#allocation9 + $0xc24] sm:$0xff]
    %v6530 = vld [vmem:[#allocation9 + $0xc2c] sm:$0xff]
    %v6531 = vld [vmem:[#allocation9 + $0xc34] sm:$0xff]
    %v6532 = vld [vmem:[#allocation9 + $0xc3c] sm:$0xf]
    %v6533 = vld [vmem:[#allocation9 + $0xc40] sm:$0xff]
    %v6534 = vld [vmem:[#allocation9 + $0xc48] sm:$0xff]
    %v6535 = vld [vmem:[#allocation9 + $0xc50] sm:$0xff]
    %v6536 = vld [vmem:[#allocation9 + $0xc58] sm:$0xf]
    %v6537 = vld [vmem:[#allocation9 + $0xc5c] sm:$0xff]
    %v6538 = vld [vmem:[#allocation9 + $0xc64] sm:$0xff]
    %v6539 = vld [vmem:[#allocation9 + $0xc6c] sm:$0xff]
    %v6540 = vld [vmem:[#allocation9 + $0xc74] sm:$0xf]
    %v6541 = vld [vmem:[#allocation9 + $0xc78] sm:$0xff]
    %v6542 = vld [vmem:[#allocation9 + $0xc80] sm:$0xff]
    %v6543 = vld [vmem:[#allocation9 + $0xc88] sm:$0xff]
    %v6544 = vld [vmem:[#allocation9 + $0xc90] sm:$0xf]
    %v6545 = vld [vmem:[#allocation9 + $0xc94] sm:$0xff]
    %v6546 = vld [vmem:[#allocation9 + $0xc9c] sm:$0xff]
    %v6547 = vld [vmem:[#allocation9 + $0xca4] sm:$0xff]
    %v6548 = vld [vmem:[#allocation9 + $0xcac] sm:$0xf]
    %v6549 = vld [vmem:[#allocation9 + $0xcb0] sm:$0xff]
    %v6550 = vld [vmem:[#allocation9 + $0xcb8] sm:$0xff]
    %v6551 = vld [vmem:[#allocation9 + $0xcc0] sm:$0xff]
    %v6552 = vld [vmem:[#allocation9 + $0xcc8] sm:$0xf]
    %v6553 = vld [vmem:[#allocation9 + $0xccc] sm:$0xff]
    %v6554 = vld [vmem:[#allocation9 + $0xcd4] sm:$0xff]
    %v6555 = vld [vmem:[#allocation9 + $0xcdc] sm:$0xff]
    %v6556 = vld [vmem:[#allocation9 + $0xce4] sm:$0xf]
    %v6557 = vld [vmem:[#allocation9 + $0xce8] sm:$0xff]
    %v6558 = vld [vmem:[#allocation9 + $0xcf0] sm:$0xff]
    %v6559 = vld [vmem:[#allocation9 + $0xcf8] sm:$0xff]
    %v6560 = vld [vmem:[#allocation9 + $0xd00] sm:$0xf]
    %v6561 = vld [vmem:[#allocation9 + $0xd04] sm:$0xff]
    %v6562 = vld [vmem:[#allocation9 + $0xd0c] sm:$0xff]
    %v6563 = vld [vmem:[#allocation9 + $0xd14] sm:$0xff]
    %v6564 = vld [vmem:[#allocation9 + $0xd1c] sm:$0xf]
    %v6565 = vld [vmem:[#allocation9 + $0xd20] sm:$0xff]
    %v6566 = vld [vmem:[#allocation9 + $0xd28] sm:$0xff]
    %v6567 = vld [vmem:[#allocation9 + $0xd30] sm:$0xff]
    %v6568 = vld [vmem:[#allocation9 + $0xd38] sm:$0xf]
    %v6569 = vld [vmem:[#allocation9 + $0xd3c] sm:$0xff]
    %v6570 = vld [vmem:[#allocation9 + $0xd44] sm:$0xff]
    %v6571 = vld [vmem:[#allocation9 + $0xd4c] sm:$0xff]
    %v6572 = vld [vmem:[#allocation9 + $0xd54] sm:$0xf]
    %v6573 = vld [vmem:[#allocation9 + $0xd58] sm:$0xff]
    %v6574 = vld [vmem:[#allocation9 + $0xd60] sm:$0xff]
    %v6575 = vld [vmem:[#allocation9 + $0xd68] sm:$0xff]
    %v6576 = vld [vmem:[#allocation9 + $0xd70] sm:$0xf]
    %v6577 = vld [vmem:[#allocation9 + $0xd74] sm:$0xff]
    %v6578 = vld [vmem:[#allocation9 + $0xd7c] sm:$0xff]
    %v6579 = vld [vmem:[#allocation9 + $0xd84] sm:$0xff]
    %v6580 = vld [vmem:[#allocation9 + $0xd8c] sm:$0xf]
    %v6581 = vld [vmem:[#allocation9 + $0xd90] sm:$0xff]
    %v6582 = vld [vmem:[#allocation9 + $0xd98] sm:$0xff]
    %v6583 = vld [vmem:[#allocation9 + $0xda0] sm:$0xff]
    %v6584 = vld [vmem:[#allocation9 + $0xda8] sm:$0xf]
    %v6585 = vld [vmem:[#allocation9 + $0xdac] sm:$0xff]
    %v6586 = vld [vmem:[#allocation9 + $0xdb4] sm:$0xff]
    %v6587 = vld [vmem:[#allocation9 + $0xdbc] sm:$0xff]
    %v6588 = vld [vmem:[#allocation9 + $0xdc4] sm:$0xf]
    %v6589 = vld [vmem:[#allocation9 + $0xdc8] sm:$0xff]
    %v6590 = vld [vmem:[#allocation9 + $0xdd0] sm:$0xff]
    %v6591 = vld [vmem:[#allocation9 + $0xdd8] sm:$0xff]
    %v6592 = vld [vmem:[#allocation9 + $0xde0] sm:$0xf]
    %v6593 = vld [vmem:[#allocation9 + $0xde4] sm:$0xff]
    %v6594 = vld [vmem:[#allocation9 + $0xdec] sm:$0xff]
    %v6595 = vld [vmem:[#allocation9 + $0xdf4] sm:$0xff]
    %v6596 = vld [vmem:[#allocation9 + $0xdfc] sm:$0xf]
    %v6597 = vld [vmem:[#allocation9 + $0xe00] sm:$0xff]
    %v6598 = vld [vmem:[#allocation9 + $0xe08] sm:$0xff]
    %v6599 = vld [vmem:[#allocation9 + $0xe10] sm:$0xff]
    %v6600 = vld [vmem:[#allocation9 + $0xe18] sm:$0xf]
    %v6601 = vld [vmem:[#allocation9 + $0xe1c] sm:$0xff]
    %v6602 = vld [vmem:[#allocation9 + $0xe24] sm:$0xff]
    %v6603 = vld [vmem:[#allocation9 + $0xe2c] sm:$0xff]
    %v6604 = vld [vmem:[#allocation9 + $0xe34] sm:$0xf]
    %v6605 = vld [vmem:[#allocation9 + $0xe38] sm:$0xff]
    %v6606 = vld [vmem:[#allocation9 + $0xe40] sm:$0xff]
    %v6607 = vld [vmem:[#allocation9 + $0xe48] sm:$0xff]
    %v6608 = vld [vmem:[#allocation9 + $0xe50] sm:$0xf]
    %v6609 = vld [vmem:[#allocation9 + $0xe54] sm:$0xff]
    %v6610 = vld [vmem:[#allocation9 + $0xe5c] sm:$0xff]
    %v6611 = vld [vmem:[#allocation9 + $0xe64] sm:$0xff]
    %v6612 = vld [vmem:[#allocation9 + $0xe6c] sm:$0xf]
    %v6613 = vld [vmem:[#allocation9 + $0xe70] sm:$0xff]
    %v6614 = vld [vmem:[#allocation9 + $0xe78] sm:$0xff]
    %v6615 = vld [vmem:[#allocation9 + $0xe80] sm:$0xff]
    %v6616 = vld [vmem:[#allocation9 + $0xe88] sm:$0xf]
    %v6617 = vld [vmem:[#allocation9 + $0xe8c] sm:$0xff]
    %v6618 = vld [vmem:[#allocation9 + $0xe94] sm:$0xff]
    %v6619 = vld [vmem:[#allocation9 + $0xe9c] sm:$0xff]
    %v6620 = vld [vmem:[#allocation9 + $0xea4] sm:$0xf]
    %v6621 = vld [vmem:[#allocation9 + $0xea8] sm:$0xff]
    %v6622 = vld [vmem:[#allocation9 + $0xeb0] sm:$0xff]
    %v6623 = vld [vmem:[#allocation9 + $0xeb8] sm:$0xff]
    %v6624 = vld [vmem:[#allocation9 + $0xec0] sm:$0xf]
    %v6625 = vld [vmem:[#allocation9 + $0xec4] sm:$0xff]
    %v6626 = vld [vmem:[#allocation9 + $0xecc] sm:$0xff]
    %v6627 = vld [vmem:[#allocation9 + $0xed4] sm:$0xff]
    %v6628 = vld [vmem:[#allocation9 + $0xedc] sm:$0xf]
    %v6629 = vld [vmem:[#allocation9 + $0xee0] sm:$0xff]
    %v6630 = vld [vmem:[#allocation9 + $0xee8] sm:$0xff]
    %v6631 = vld [vmem:[#allocation9 + $0xef0] sm:$0xff]
    %v6632 = vld [vmem:[#allocation9 + $0xef8] sm:$0xf]
    %v6633 = vld [vmem:[#allocation9 + $0xefc] sm:$0xff]
    %v6634 = vld [vmem:[#allocation9 + $0xf04] sm:$0xff]
    %v6635 = vld [vmem:[#allocation9 + $0xf0c] sm:$0xff]
    %v6636 = vld [vmem:[#allocation9 + $0xf14] sm:$0xf]
    %v6637 = vld [vmem:[#allocation9 + $0xf18] sm:$0xff]
    %v6638 = vld [vmem:[#allocation9 + $0xf20] sm:$0xff]
    %v6639 = vld [vmem:[#allocation9 + $0xf28] sm:$0xff]
    %v6640 = vld [vmem:[#allocation9 + $0xf30] sm:$0xf]
    %v6641 = vld [vmem:[#allocation9 + $0xf34] sm:$0xff]
    %v6642 = vld [vmem:[#allocation9 + $0xf3c] sm:$0xff]
    %v6643 = vld [vmem:[#allocation9 + $0xf44] sm:$0xff]
    %v6644 = vld [vmem:[#allocation9 + $0xf4c] sm:$0xf]
    %v6645 = vld [vmem:[#allocation9 + $0xf50] sm:$0xff]
    %v6646 = vld [vmem:[#allocation9 + $0xf58] sm:$0xff]
    %v6647 = vld [vmem:[#allocation9 + $0xf60] sm:$0xff]
    %v6648 = vld [vmem:[#allocation9 + $0xf68] sm:$0xf]
    %v6649 = vld [vmem:[#allocation9 + $0xf6c] sm:$0xff]
    %v6650 = vld [vmem:[#allocation9 + $0xf74] sm:$0xff]
    %v6651 = vld [vmem:[#allocation9 + $0xf7c] sm:$0xff]
    %v6652 = vld [vmem:[#allocation9 + $0xf84] sm:$0xf]
    %v6653 = vld [vmem:[#allocation9 + $0xf88] sm:$0xff]
    %v6654 = vld [vmem:[#allocation9 + $0xf90] sm:$0xff]
    %v6655 = vld [vmem:[#allocation9 + $0xf98] sm:$0xff]
    %v6656 = vld [vmem:[#allocation9 + $0xfa0] sm:$0xf]
    %v6657 = vld [vmem:[#allocation9 + $0xfa4] sm:$0xff]
    %v6658 = vld [vmem:[#allocation9 + $0xfac] sm:$0xff]
    %v6659 = vld [vmem:[#allocation9 + $0xfb4] sm:$0xff]
    %v6660 = vld [vmem:[#allocation9 + $0xfbc] sm:$0xf]
    %v6661 = vld [vmem:[#allocation9 + $0xfc0] sm:$0xff]
    %v6662 = vld [vmem:[#allocation9 + $0xfc8] sm:$0xff]
    %v6663 = vld [vmem:[#allocation9 + $0xfd0] sm:$0xff]
    %v6664 = vld [vmem:[#allocation9 + $0xfd8] sm:$0xf]
    %v6665 = vld [vmem:[#allocation9 + $0xfdc] sm:$0xff]
    %v6666 = vld [vmem:[#allocation9 + $0xfe4] sm:$0xff]
    %v6667 = vld [vmem:[#allocation9 + $0xfec] sm:$0xff]
    %v6668 = vld [vmem:[#allocation9 + $0xff4] sm:$0xf]
    %v6669 = vld [vmem:[#allocation9 + $0xff8] sm:$0xff]
    %v6670 = vld [vmem:[#allocation9 + $0x1000] sm:$0xff]
    %v6671 = vld [vmem:[#allocation9 + $0x1008] sm:$0xff]
    %v6672 = vld [vmem:[#allocation9 + $0x1010] sm:$0xf]
    %v6673 = vld [vmem:[#allocation9 + $0x1014] sm:$0xff]
    %v6674 = vld [vmem:[#allocation9 + $0x101c] sm:$0xff]
    %v6675 = vld [vmem:[#allocation9 + $0x1024] sm:$0xff]
    %v6676 = vld [vmem:[#allocation9 + $0x102c] sm:$0xf]
    %v6677 = vld [vmem:[#allocation9 + $0x1030] sm:$0xff]
    %v6678 = vld [vmem:[#allocation9 + $0x1038] sm:$0xff]
    %v6679 = vld [vmem:[#allocation9 + $0x1040] sm:$0xff]
    %v6680 = vld [vmem:[#allocation9 + $0x1048] sm:$0xf]
    %v6681 = vld [vmem:[#allocation9 + $0x104c] sm:$0xff]
    %v6682 = vld [vmem:[#allocation9 + $0x1054] sm:$0xff]
    %v6683 = vld [vmem:[#allocation9 + $0x105c] sm:$0xff]
    %v6684 = vld [vmem:[#allocation9 + $0x1064] sm:$0xf]
    %v6685 = vld [vmem:[#allocation9 + $0x1068] sm:$0xff]
    %v6686 = vld [vmem:[#allocation9 + $0x1070] sm:$0xff]
    %v6687 = vld [vmem:[#allocation9 + $0x1078] sm:$0xff]
    %v6688 = vld [vmem:[#allocation9 + $0x1080] sm:$0xf]
    %v6689 = vld [vmem:[#allocation9 + $0x1084] sm:$0xff]
    %v6690 = vld [vmem:[#allocation9 + $0x108c] sm:$0xff]
    %v6691 = vld [vmem:[#allocation9 + $0x1094] sm:$0xff]
    %v6692 = vld [vmem:[#allocation9 + $0x109c] sm:$0xf]
    %v6693 = vld [vmem:[#allocation9 + $0x10a0] sm:$0xff]
    %v6694 = vld [vmem:[#allocation9 + $0x10a8] sm:$0xff]
    %v6695 = vld [vmem:[#allocation9 + $0x10b0] sm:$0xff]
    %v6696 = vld [vmem:[#allocation9 + $0x10b8] sm:$0xf]
    %v6697 = vld [vmem:[#allocation9 + $0x10bc] sm:$0xff]
    %v6698 = vld [vmem:[#allocation9 + $0x10c4] sm:$0xff]
    %v6699 = vld [vmem:[#allocation9 + $0x10cc] sm:$0xff]
    %v6700 = vld [vmem:[#allocation9 + $0x10d4] sm:$0xf]
    %v6701 = vld [vmem:[#allocation9 + $0x10d8] sm:$0xff]
    %v6702 = vld [vmem:[#allocation9 + $0x10e0] sm:$0xff]
    %v6703 = vld [vmem:[#allocation9 + $0x10e8] sm:$0xff]
    %v6704 = vld [vmem:[#allocation9 + $0x10f0] sm:$0xf]
    %v6705 = vld [vmem:[#allocation9 + $0x10f4] sm:$0xff]
    %v6706 = vld [vmem:[#allocation9 + $0x10fc] sm:$0xff]
    %v6707 = vld [vmem:[#allocation9 + $0x1104] sm:$0xff]
    %v6708 = vld [vmem:[#allocation9 + $0x110c] sm:$0xf]
    %v6709 = vld [vmem:[#allocation9 + $0x1110] sm:$0xff]
    %v6710 = vld [vmem:[#allocation9 + $0x1118] sm:$0xff]
    %v6711 = vld [vmem:[#allocation9 + $0x1120] sm:$0xff]
    %v6712 = vld [vmem:[#allocation9 + $0x1128] sm:$0xf]
    %v6713 = vld [vmem:[#allocation9 + $0x112c] sm:$0xff]
    %v6714 = vld [vmem:[#allocation9 + $0x1134] sm:$0xff]
    %v6715 = vld [vmem:[#allocation9 + $0x113c] sm:$0xff]
    %v6716 = vld [vmem:[#allocation9 + $0x1144] sm:$0xf]
    %v6717 = vld [vmem:[#allocation9 + $0x1148] sm:$0xff]
    %v6718 = vld [vmem:[#allocation9 + $0x1150] sm:$0xff]
    %v6719 = vld [vmem:[#allocation9 + $0x1158] sm:$0xff]
    %v6720 = vld [vmem:[#allocation9 + $0x1160] sm:$0xf]
    %v6721 = vld [vmem:[#allocation9 + $0x1164] sm:$0xff]
    %v6722 = vld [vmem:[#allocation9 + $0x116c] sm:$0xff]
    %v6723 = vld [vmem:[#allocation9 + $0x1174] sm:$0xff]
    %v6724 = vld [vmem:[#allocation9 + $0x117c] sm:$0xf]
    %v6725 = vld [vmem:[#allocation9 + $0x1180] sm:$0xff]
    %v6726 = vld [vmem:[#allocation9 + $0x1188] sm:$0xff]
    %v6727 = vld [vmem:[#allocation9 + $0x1190] sm:$0xff]
    %v6728 = vld [vmem:[#allocation9 + $0x1198] sm:$0xf]
    %v6729 = vld [vmem:[#allocation9 + $0x119c] sm:$0xff]
    %v6730 = vld [vmem:[#allocation9 + $0x11a4] sm:$0xff]
    %v6731 = vld [vmem:[#allocation9 + $0x11ac] sm:$0xff]
    %v6732 = vld [vmem:[#allocation9 + $0x11b4] sm:$0xf]
    %v6733 = vld [vmem:[#allocation9 + $0x11b8] sm:$0xff]
    %v6734 = vld [vmem:[#allocation9 + $0x11c0] sm:$0xff]
    %v6735 = vld [vmem:[#allocation9 + $0x11c8] sm:$0xff]
    %v6736 = vld [vmem:[#allocation9 + $0x11d0] sm:$0xf]
    %v6737 = vld [vmem:[#allocation9 + $0x11d4] sm:$0xff]
    %v6738 = vld [vmem:[#allocation9 + $0x11dc] sm:$0xff]
    %v6739 = vld [vmem:[#allocation9 + $0x11e4] sm:$0xff]
    %v6740 = vld [vmem:[#allocation9 + $0x11ec] sm:$0xf]
    %v6741 = vld [vmem:[#allocation9 + $0x11f0] sm:$0xff]
    %v6742 = vld [vmem:[#allocation9 + $0x11f8] sm:$0xff]
    %v6743 = vld [vmem:[#allocation9 + $0x1200] sm:$0xff]
    %v6744 = vld [vmem:[#allocation9 + $0x1208] sm:$0xf]
    %v6745 = vld [vmem:[#allocation9 + $0x120c] sm:$0xff]
    %v6746 = vld [vmem:[#allocation9 + $0x1214] sm:$0xff]
    %v6747 = vld [vmem:[#allocation9 + $0x121c] sm:$0xff]
    %v6748 = vld [vmem:[#allocation9 + $0x1224] sm:$0xf]
    %v6749 = vld [vmem:[#allocation9 + $0x1228] sm:$0xff]
    %v6750 = vld [vmem:[#allocation9 + $0x1230] sm:$0xff]
    %v6751 = vld [vmem:[#allocation9 + $0x1238] sm:$0xff]
    %v6752 = vld [vmem:[#allocation9 + $0x1240] sm:$0xf]
    %v6753 = vld [vmem:[#allocation9 + $0x1244] sm:$0xff]
    %v6754 = vld [vmem:[#allocation9 + $0x124c] sm:$0xff]
    %v6755 = vld [vmem:[#allocation9 + $0x1254] sm:$0xff]
    %v6756 = vld [vmem:[#allocation9 + $0x125c] sm:$0xf]
    %v6757 = vld [vmem:[#allocation9 + $0x1260] sm:$0xff]
    %v6758 = vld [vmem:[#allocation9 + $0x1268] sm:$0xff]
    %v6759 = vld [vmem:[#allocation9 + $0x1270] sm:$0xff]
    %v6760 = vld [vmem:[#allocation9 + $0x1278] sm:$0xf]
    %v6761 = vld [vmem:[#allocation9 + $0x127c] sm:$0xff]
    %v6762 = vld [vmem:[#allocation9 + $0x1284] sm:$0xff]
    %v6763 = vld [vmem:[#allocation9 + $0x128c] sm:$0xff]
    %v6764 = vld [vmem:[#allocation9 + $0x1294] sm:$0xf]
    %v6765 = vld [vmem:[#allocation9 + $0x1298] sm:$0xff]
    %v6766 = vld [vmem:[#allocation9 + $0x12a0] sm:$0xff]
    %v6767 = vld [vmem:[#allocation9 + $0x12a8] sm:$0xff]
    %v6768 = vld [vmem:[#allocation9 + $0x12b0] sm:$0xf]
    %v6769 = vld [vmem:[#allocation9 + $0x12b4] sm:$0xff]
    %v6770 = vld [vmem:[#allocation9 + $0x12bc] sm:$0xff]
    %v6771 = vld [vmem:[#allocation9 + $0x12c4] sm:$0xff]
    %v6772 = vld [vmem:[#allocation9 + $0x12cc] sm:$0xf]
    %v6773 = vld [vmem:[#allocation9 + $0x12d0] sm:$0xff]
    %v6774 = vld [vmem:[#allocation9 + $0x12d8] sm:$0xff]
    %v6775 = vld [vmem:[#allocation9 + $0x12e0] sm:$0xff]
    %v6776 = vld [vmem:[#allocation9 + $0x12e8] sm:$0xf]
    %v6777 = vld [vmem:[#allocation9 + $0x12ec] sm:$0xff]
    %v6778 = vld [vmem:[#allocation9 + $0x12f4] sm:$0xff]
    %v6779 = vld [vmem:[#allocation9 + $0x12fc] sm:$0xff]
    %v6780 = vld [vmem:[#allocation9 + $0x1304] sm:$0xf]
    %v6781 = vld [vmem:[#allocation9 + $0x1308] sm:$0xff]
    %v6782 = vld [vmem:[#allocation9 + $0x1310] sm:$0xff]
    %v6783 = vld [vmem:[#allocation9 + $0x1318] sm:$0xff]
    %v6784 = vld [vmem:[#allocation9 + $0x1320] sm:$0xf]
    %v6785 = vld [vmem:[#allocation9 + $0x1324] sm:$0xff]
    %v6786 = vld [vmem:[#allocation9 + $0x132c] sm:$0xff]
    %v6787 = vld [vmem:[#allocation9 + $0x1334] sm:$0xff]
    %v6788 = vld [vmem:[#allocation9 + $0x133c] sm:$0xf]
    %v6789 = vld [vmem:[#allocation9 + $0x1340] sm:$0xff]
    %v6790 = vld [vmem:[#allocation9 + $0x1348] sm:$0xff]
    %v6791 = vld [vmem:[#allocation9 + $0x1350] sm:$0xff]
    %v6792 = vld [vmem:[#allocation9 + $0x1358] sm:$0xf]
    %v6793 = vld [vmem:[#allocation9 + $0x135c] sm:$0xff]
    %v6794 = vld [vmem:[#allocation9 + $0x1364] sm:$0xff]
    %v6795 = vld [vmem:[#allocation9 + $0x136c] sm:$0xff]
    %v6796 = vld [vmem:[#allocation9 + $0x1374] sm:$0xf]
    %v6797 = vld [vmem:[#allocation9 + $0x1378] sm:$0xff]
    %v6798 = vld [vmem:[#allocation9 + $0x1380] sm:$0xff]
    %v6799 = vld [vmem:[#allocation9 + $0x1388] sm:$0xff]
    %v6800 = vld [vmem:[#allocation9 + $0x1390] sm:$0xf]
    %v6801 = vld [vmem:[#allocation9 + $0x1394] sm:$0xff]
    %v6802 = vld [vmem:[#allocation9 + $0x139c] sm:$0xff]
    %v6803 = vld [vmem:[#allocation9 + $0x13a4] sm:$0xff]
    %v6804 = vld [vmem:[#allocation9 + $0x13ac] sm:$0xf]
    %v6805 = vld [vmem:[#allocation9 + $0x13b0] sm:$0xff]
    %v6806 = vld [vmem:[#allocation9 + $0x13b8] sm:$0xff]
    %v6807 = vld [vmem:[#allocation9 + $0x13c0] sm:$0xff]
    %v6808 = vld [vmem:[#allocation9 + $0x13c8] sm:$0xf]
    %v6809 = vld [vmem:[#allocation9 + $0x13cc] sm:$0xff]
    %v6810 = vld [vmem:[#allocation9 + $0x13d4] sm:$0xff]
    %v6811 = vld [vmem:[#allocation9 + $0x13dc] sm:$0xff]
    %v6812 = vld [vmem:[#allocation9 + $0x13e4] sm:$0xf]
    %v6813 = vld [vmem:[#allocation9 + $0x13e8] sm:$0xff]
    %v6814 = vld [vmem:[#allocation9 + $0x13f0] sm:$0xff]
    %v6815 = vld [vmem:[#allocation9 + $0x13f8] sm:$0xff]
    %v6816 = vld [vmem:[#allocation9 + $0x1400] sm:$0xf]
    %v6817 = vld [vmem:[#allocation9 + $0x1404] sm:$0xff]
    %v6818 = vld [vmem:[#allocation9 + $0x140c] sm:$0xff]
    %v6819 = vld [vmem:[#allocation9 + $0x1414] sm:$0xff]
    %v6820 = vld [vmem:[#allocation9 + $0x141c] sm:$0xf]
    %v6821 = vld [vmem:[#allocation9 + $0x1420] sm:$0xff]
    %v6822 = vld [vmem:[#allocation9 + $0x1428] sm:$0xff]
    %v6823 = vld [vmem:[#allocation9 + $0x1430] sm:$0xff]
    %v6824 = vld [vmem:[#allocation9 + $0x1438] sm:$0xf]
    %v6825 = vld [vmem:[#allocation9 + $0x143c] sm:$0xff]
    %v6826 = vld [vmem:[#allocation9 + $0x1444] sm:$0xff]
    %v6827 = vld [vmem:[#allocation9 + $0x144c] sm:$0xff]
    %v6828 = vld [vmem:[#allocation9 + $0x1454] sm:$0xf]
    %v6829 = vld [vmem:[#allocation9 + $0x1458] sm:$0xff]
    %v6830 = vld [vmem:[#allocation9 + $0x1460] sm:$0xff]
    %v6831 = vld [vmem:[#allocation9 + $0x1468] sm:$0xff]
    %v6832 = vld [vmem:[#allocation9 + $0x1470] sm:$0xf]
    %v6833 = vld [vmem:[#allocation9 + $0x1474] sm:$0xff]
    %v6834 = vld [vmem:[#allocation9 + $0x147c] sm:$0xff]
    %v6835 = vld [vmem:[#allocation9 + $0x1484] sm:$0xff]
    %v6836 = vld [vmem:[#allocation9 + $0x148c] sm:$0xf]
    %v6837 = vld [vmem:[#allocation9 + $0x1490] sm:$0xff]
    %v6838 = vld [vmem:[#allocation9 + $0x1498] sm:$0xff]
    %v6839 = vld [vmem:[#allocation9 + $0x14a0] sm:$0xff]
    %v6840 = vld [vmem:[#allocation9 + $0x14a8] sm:$0xf]
    %v6841 = vld [vmem:[#allocation9 + $0x14ac] sm:$0xff]
    %v6842 = vld [vmem:[#allocation9 + $0x14b4] sm:$0xff]
    %v6843 = vld [vmem:[#allocation9 + $0x14bc] sm:$0xff]
    %v6844 = vld [vmem:[#allocation9 + $0x14c4] sm:$0xf]
    %v6845 = vld [vmem:[#allocation9 + $0x14c8] sm:$0xff]
    %v6846 = vld [vmem:[#allocation9 + $0x14d0] sm:$0xff]
    %v6847 = vld [vmem:[#allocation9 + $0x14d8] sm:$0xff]
    %v6848 = vld [vmem:[#allocation9 + $0x14e0] sm:$0xf]
    %v6849 = vld [vmem:[#allocation9 + $0x14e4] sm:$0xff]
    %v6850 = vld [vmem:[#allocation9 + $0x14ec] sm:$0xff]
    %v6851 = vld [vmem:[#allocation9 + $0x14f4] sm:$0xff]
    %v6852 = vld [vmem:[#allocation9 + $0x14fc] sm:$0xf]
    %v6853 = vld [vmem:[#allocation9 + $0x1500] sm:$0xff]
    %v6854 = vld [vmem:[#allocation9 + $0x1508] sm:$0xff]
    %v6855 = vld [vmem:[#allocation9 + $0x1510] sm:$0xff]
    %v6856 = vld [vmem:[#allocation9 + $0x1518] sm:$0xf]
    %v6857 = vld [vmem:[#allocation9 + $0x151c] sm:$0xff]
    %v6858 = vld [vmem:[#allocation9 + $0x1524] sm:$0xff]
    %v6859 = vld [vmem:[#allocation9 + $0x152c] sm:$0xff]
    %v6860 = vld [vmem:[#allocation9 + $0x1534] sm:$0xf]
    %v6861 = vld [vmem:[#allocation9 + $0x1538] sm:$0xff]
    %v6862 = vld [vmem:[#allocation9 + $0x1540] sm:$0xff]
    %v6863 = vld [vmem:[#allocation9 + $0x1548] sm:$0xff]
    %v6864 = vld [vmem:[#allocation9 + $0x1550] sm:$0xf]
    %v6865 = vld [vmem:[#allocation9 + $0x1554] sm:$0xff]
    %v6866 = vld [vmem:[#allocation9 + $0x155c] sm:$0xff]
    %v6867 = vld [vmem:[#allocation9 + $0x1564] sm:$0xff]
    %v6868 = vld [vmem:[#allocation9 + $0x156c] sm:$0xf]
    %v6869 = vld [vmem:[#allocation9 + $0x1570] sm:$0xff]
    %v6870 = vld [vmem:[#allocation9 + $0x1578] sm:$0xff]
    %v6871 = vld [vmem:[#allocation9 + $0x1580] sm:$0xff]
    %v6872 = vld [vmem:[#allocation9 + $0x1588] sm:$0xf]
    %v6873 = vld [vmem:[#allocation9 + $0x158c] sm:$0xff]
    %v6874 = vld [vmem:[#allocation9 + $0x1594] sm:$0xff]
    %v6875 = vld [vmem:[#allocation9 + $0x159c] sm:$0xff]
    %v6876 = vld [vmem:[#allocation9 + $0x15a4] sm:$0xf]
    %v6877 = vld [vmem:[#allocation9 + $0x15a8] sm:$0xff]
    %v6878 = vld [vmem:[#allocation9 + $0x15b0] sm:$0xff]
    %v6879 = vld [vmem:[#allocation9 + $0x15b8] sm:$0xff]
    %v6880 = vld [vmem:[#allocation9 + $0x15c0] sm:$0xf]
    %v6881 = vld [vmem:[#allocation9 + $0x15c4] sm:$0xff]
    %v6882 = vld [vmem:[#allocation9 + $0x15cc] sm:$0xff]
    %v6883 = vld [vmem:[#allocation9 + $0x15d4] sm:$0xff]
    %v6884 = vld [vmem:[#allocation9 + $0x15dc] sm:$0xf]
    %v6885 = vld [vmem:[#allocation9 + $0x15e0] sm:$0xff]
    %v6886 = vld [vmem:[#allocation9 + $0x15e8] sm:$0xff]
    %v6887 = vld [vmem:[#allocation9 + $0x15f0] sm:$0xff]
    %v6888 = vld [vmem:[#allocation9 + $0x15f8] sm:$0xf]
    %v6889 = vld [vmem:[#allocation9 + $0x15fc] sm:$0xff]
    %v6890 = vld [vmem:[#allocation9 + $0x1604] sm:$0xff]
    %v6891 = vld [vmem:[#allocation9 + $0x160c] sm:$0xff]
    %v6892 = vld [vmem:[#allocation9 + $0x1614] sm:$0xf]
    %v6893 = vld [vmem:[#allocation9 + $0x1618] sm:$0xff]
    %v6894 = vld [vmem:[#allocation9 + $0x1620] sm:$0xff]
    %v6895 = vld [vmem:[#allocation9 + $0x1628] sm:$0xff]
    %v6896 = vld [vmem:[#allocation9 + $0x1630] sm:$0xf]
    %v6897 = vld [vmem:[#allocation9 + $0x1634] sm:$0xff]
    %v6898 = vld [vmem:[#allocation9 + $0x163c] sm:$0xff]
    %v6899 = vld [vmem:[#allocation9 + $0x1644] sm:$0xff]
    %v6900 = vld [vmem:[#allocation9 + $0x164c] sm:$0xf]
    %v6901 = vld [vmem:[#allocation9 + $0x1650] sm:$0xff]
    %v6902 = vld [vmem:[#allocation9 + $0x1658] sm:$0xff]
    %v6903 = vld [vmem:[#allocation9 + $0x1660] sm:$0xff]
    %v6904 = vld [vmem:[#allocation9 + $0x1668] sm:$0xf]
    %v6905 = vld [vmem:[#allocation9 + $0x166c] sm:$0xff]
    %v6906 = vld [vmem:[#allocation9 + $0x1674] sm:$0xff]
    %v6907 = vld [vmem:[#allocation9 + $0x167c] sm:$0xff]
    %v6908 = vld [vmem:[#allocation9 + $0x1684] sm:$0xf]
    %v6909 = vld [vmem:[#allocation9 + $0x1688] sm:$0xff]
    %v6910 = vld [vmem:[#allocation9 + $0x1690] sm:$0xff]
    %v6911 = vld [vmem:[#allocation9 + $0x1698] sm:$0xff]
    %v6912 = vld [vmem:[#allocation9 + $0x16a0] sm:$0xf]
    %v6913 = vld [vmem:[#allocation9 + $0x16a4] sm:$0xff]
    %v6914 = vld [vmem:[#allocation9 + $0x16ac] sm:$0xff]
    %v6915 = vld [vmem:[#allocation9 + $0x16b4] sm:$0xff]
    %v6916 = vld [vmem:[#allocation9 + $0x16bc] sm:$0xf]
    %v6917 = vld [vmem:[#allocation10] sm:$0xff]
    %v6919 = vlaneseq
    %v6920 = vshrl.u32 %v6919, 7
    %v6921 = vsub.s32 0, %v6920
    %v6922 = vrot.slane %v6917, %v6921
    %v6923 = vlaneseq
    %v6924 = vshrl.u32 %v6923, 7
    %v6925 = vsub.s32 1, %v6924
    %v6926 = vrot.slane %v6917, %v6925
    %v6927 = vlaneseq
    %v6928 = vshrl.u32 %v6927, 7
    %v6929 = vsub.s32 2, %v6928
    %v6930 = vrot.slane %v6917, %v6929
    %v6931 = vlaneseq
    %v6932 = vshrl.u32 %v6931, 7
    %v6933 = vsub.s32 3, %v6932
    %v6934 = vrot.slane %v6917, %v6933
    %v6935 = vlaneseq
    %v6936 = vshrl.u32 %v6935, 7
    %v6937 = vsub.s32 4, %v6936
    %v6938 = vrot.slane %v6917, %v6937
    %v6939 = vlaneseq
    %v6940 = vshrl.u32 %v6939, 7
    %v6941 = vsub.s32 5, %v6940
    %v6942 = vrot.slane %v6917, %v6941
    %v6943 = vlaneseq
    %v6944 = vshrl.u32 %v6943, 7
    %v6945 = vsub.s32 6, %v6944
    %v6946 = vrot.slane %v6917, %v6945
    %v7786 = vunpack.c.l.b16 %v6085
    %v7787 = vunpack.c.h.b16 %v6085
    %v7788 = vunpack.c.l.b16 %v6086
    %v7789 = vunpack.c.h.b16 %v6086
    %v7790 = vunpack.c.l.b16 %v6087
    %v7791 = vunpack.c.h.b16 %v6087
    %v7792 = vunpack.c.l.b16 %v6088
    %v7793 = vunpack.c.l.b16 %v6089
    %v7794 = vunpack.c.h.b16 %v6089
    %v7795 = vunpack.c.l.b16 %v6090
    %v7796 = vunpack.c.h.b16 %v6090
    %v7797 = vunpack.c.l.b16 %v6091
    %v7798 = vunpack.c.h.b16 %v6091
    %v7799 = vunpack.c.l.b16 %v6092
    %v7800 = vunpack.c.l.b16 %v6093
    %v7801 = vunpack.c.h.b16 %v6093
    %v7802 = vunpack.c.l.b16 %v6094
    %v7803 = vunpack.c.h.b16 %v6094
    %v7804 = vunpack.c.l.b16 %v6095
    %v7805 = vunpack.c.h.b16 %v6095
    %v7806 = vunpack.c.l.b16 %v6096
    %v7807 = vunpack.c.l.b16 %v6097
    %v7808 = vunpack.c.h.b16 %v6097
    %v7809 = vunpack.c.l.b16 %v6098
    %v7810 = vunpack.c.h.b16 %v6098
    %v7811 = vunpack.c.l.b16 %v6099
    %v7812 = vunpack.c.h.b16 %v6099
    %v7813 = vunpack.c.l.b16 %v6100
    %v7814 = vunpack.c.l.b16 %v6101
    %v7815 = vunpack.c.h.b16 %v6101
    %v7816 = vunpack.c.l.b16 %v6102
    %v7817 = vunpack.c.h.b16 %v6102
    %v7818 = vunpack.c.l.b16 %v6103
    %v7819 = vunpack.c.h.b16 %v6103
    %v7820 = vunpack.c.l.b16 %v6104
    %v7821 = vunpack.c.l.b16 %v6105
    %v7822 = vunpack.c.h.b16 %v6105
    %v7823 = vunpack.c.l.b16 %v6106
    %v7824 = vunpack.c.h.b16 %v6106
    %v7825 = vunpack.c.l.b16 %v6107
    %v7826 = vunpack.c.h.b16 %v6107
    %v7827 = vunpack.c.l.b16 %v6108
    %v7828 = vunpack.c.l.b16 %v6109
    %v7829 = vunpack.c.h.b16 %v6109
    %v7830 = vunpack.c.l.b16 %v6110
    %v7831 = vunpack.c.h.b16 %v6110
    %v7832 = vunpack.c.l.b16 %v6111
    %v7833 = vunpack.c.h.b16 %v6111
    %v7834 = vunpack.c.l.b16 %v6112
    %v7835 = vunpack.c.l.b16 %v6113
    %v7836 = vunpack.c.h.b16 %v6113
    %v7837 = vunpack.c.l.b16 %v6114
    %v7838 = vunpack.c.h.b16 %v6114
    %v7839 = vunpack.c.l.b16 %v6115
    %v7840 = vunpack.c.h.b16 %v6115
    %v7841 = vunpack.c.l.b16 %v6116
    %v7842 = vunpack.c.l.b16 %v6117
    %v7843 = vunpack.c.h.b16 %v6117
    %v7844 = vunpack.c.l.b16 %v6118
    %v7845 = vunpack.c.h.b16 %v6118
    %v7846 = vunpack.c.l.b16 %v6119
    %v7847 = vunpack.c.h.b16 %v6119
    %v7848 = vunpack.c.l.b16 %v6120
    %v7849 = vunpack.c.l.b16 %v6121
    %v7850 = vunpack.c.h.b16 %v6121
    %v7851 = vunpack.c.l.b16 %v6122
    %v7852 = vunpack.c.h.b16 %v6122
    %v7853 = vunpack.c.l.b16 %v6123
    %v7854 = vunpack.c.h.b16 %v6123
    %v7855 = vunpack.c.l.b16 %v6124
    %v7856 = vunpack.c.l.b16 %v6125
    %v7857 = vunpack.c.h.b16 %v6125
    %v7858 = vunpack.c.l.b16 %v6126
    %v7859 = vunpack.c.h.b16 %v6126
    %v7860 = vunpack.c.l.b16 %v6127
    %v7861 = vunpack.c.h.b16 %v6127
    %v7862 = vunpack.c.l.b16 %v6128
    %v7863 = vunpack.c.l.b16 %v6129
    %v7864 = vunpack.c.h.b16 %v6129
    %v7865 = vunpack.c.l.b16 %v6130
    %v7866 = vunpack.c.h.b16 %v6130
    %v7867 = vunpack.c.l.b16 %v6131
    %v7868 = vunpack.c.h.b16 %v6131
    %v7869 = vunpack.c.l.b16 %v6132
    %v7870 = vunpack.c.l.b16 %v6133
    %v7871 = vunpack.c.h.b16 %v6133
    %v7872 = vunpack.c.l.b16 %v6134
    %v7873 = vunpack.c.h.b16 %v6134
    %v7874 = vunpack.c.l.b16 %v6135
    %v7875 = vunpack.c.h.b16 %v6135
    %v7876 = vunpack.c.l.b16 %v6136
    %v7877 = vunpack.c.l.b16 %v6137
    %v7878 = vunpack.c.h.b16 %v6137
    %v7879 = vunpack.c.l.b16 %v6138
    %v7880 = vunpack.c.h.b16 %v6138
    %v7881 = vunpack.c.l.b16 %v6139
    %v7882 = vunpack.c.h.b16 %v6139
    %v7883 = vunpack.c.l.b16 %v6140
    %v7884 = vunpack.c.l.b16 %v6141
    %v7885 = vunpack.c.h.b16 %v6141
    %v7886 = vunpack.c.l.b16 %v6142
    %v7887 = vunpack.c.h.b16 %v6142
    %v7888 = vunpack.c.l.b16 %v6143
    %v7889 = vunpack.c.h.b16 %v6143
    %v7890 = vunpack.c.l.b16 %v6144
    %v7891 = vunpack.c.l.b16 %v6145
    %v7892 = vunpack.c.h.b16 %v6145
    %v7893 = vunpack.c.l.b16 %v6146
    %v7894 = vunpack.c.h.b16 %v6146
    %v7895 = vunpack.c.l.b16 %v6147
    %v7896 = vunpack.c.h.b16 %v6147
    %v7897 = vunpack.c.l.b16 %v6148
    %v7898 = vunpack.c.l.b16 %v6149
    %v7899 = vunpack.c.h.b16 %v6149
    %v7900 = vunpack.c.l.b16 %v6150
    %v7901 = vunpack.c.h.b16 %v6150
    %v7902 = vunpack.c.l.b16 %v6151
    %v7903 = vunpack.c.h.b16 %v6151
    %v7904 = vunpack.c.l.b16 %v6152
    %v7905 = vunpack.c.l.b16 %v6153
    %v7906 = vunpack.c.h.b16 %v6153
    %v7907 = vunpack.c.l.b16 %v6154
    %v7908 = vunpack.c.h.b16 %v6154
    %v7909 = vunpack.c.l.b16 %v6155
    %v7910 = vunpack.c.h.b16 %v6155
    %v7911 = vunpack.c.l.b16 %v6156
    %v7912 = vunpack.c.l.b16 %v6157
    %v7913 = vunpack.c.h.b16 %v6157
    %v7914 = vunpack.c.l.b16 %v6158
    %v7915 = vunpack.c.h.b16 %v6158
    %v7916 = vunpack.c.l.b16 %v6159
    %v7917 = vunpack.c.h.b16 %v6159
    %v7918 = vunpack.c.l.b16 %v6160
    %v7919 = vunpack.c.l.b16 %v6161
    %v7920 = vunpack.c.h.b16 %v6161
    %v7921 = vunpack.c.l.b16 %v6162
    %v7922 = vunpack.c.h.b16 %v6162
    %v7923 = vunpack.c.l.b16 %v6163
    %v7924 = vunpack.c.h.b16 %v6163
    %v7925 = vunpack.c.l.b16 %v6164
    %v7926 = vunpack.c.l.b16 %v6165
    %v7927 = vunpack.c.h.b16 %v6165
    %v7928 = vunpack.c.l.b16 %v6166
    %v7929 = vunpack.c.h.b16 %v6166
    %v7930 = vunpack.c.l.b16 %v6167
    %v7931 = vunpack.c.h.b16 %v6167
    %v7932 = vunpack.c.l.b16 %v6168
    %v7933 = vunpack.c.l.b16 %v6169
    %v7934 = vunpack.c.h.b16 %v6169
    %v7935 = vunpack.c.l.b16 %v6170
    %v7936 = vunpack.c.h.b16 %v6170
    %v7937 = vunpack.c.l.b16 %v6171
    %v7938 = vunpack.c.h.b16 %v6171
    %v7939 = vunpack.c.l.b16 %v6172
    %v7940 = vunpack.c.l.b16 %v6173
    %v7941 = vunpack.c.h.b16 %v6173
    %v7942 = vunpack.c.l.b16 %v6174
    %v7943 = vunpack.c.h.b16 %v6174
    %v7944 = vunpack.c.l.b16 %v6175
    %v7945 = vunpack.c.h.b16 %v6175
    %v7946 = vunpack.c.l.b16 %v6176
    %v7947 = vunpack.c.l.b16 %v6177
    %v7948 = vunpack.c.h.b16 %v6177
    %v7949 = vunpack.c.l.b16 %v6178
    %v7950 = vunpack.c.h.b16 %v6178
    %v7951 = vunpack.c.l.b16 %v6179
    %v7952 = vunpack.c.h.b16 %v6179
    %v7953 = vunpack.c.l.b16 %v6180
    %v7954 = vunpack.c.l.b16 %v6181
    %v7955 = vunpack.c.h.b16 %v6181
    %v7956 = vunpack.c.l.b16 %v6182
    %v7957 = vunpack.c.h.b16 %v6182
    %v7958 = vunpack.c.l.b16 %v6183
    %v7959 = vunpack.c.h.b16 %v6183
    %v7960 = vunpack.c.l.b16 %v6184
    %v7961 = vunpack.c.l.b16 %v6185
    %v7962 = vunpack.c.h.b16 %v6185
    %v7963 = vunpack.c.l.b16 %v6186
    %v7964 = vunpack.c.h.b16 %v6186
    %v7965 = vunpack.c.l.b16 %v6187
    %v7966 = vunpack.c.h.b16 %v6187
    %v7967 = vunpack.c.l.b16 %v6188
    %v7968 = vunpack.c.l.b16 %v6189
    %v7969 = vunpack.c.h.b16 %v6189
    %v7970 = vunpack.c.l.b16 %v6190
    %v7971 = vunpack.c.h.b16 %v6190
    %v7972 = vunpack.c.l.b16 %v6191
    %v7973 = vunpack.c.h.b16 %v6191
    %v7974 = vunpack.c.l.b16 %v6192
    %v7975 = vunpack.c.l.b16 %v6193
    %v7976 = vunpack.c.h.b16 %v6193
    %v7977 = vunpack.c.l.b16 %v6194
    %v7978 = vunpack.c.h.b16 %v6194
    %v7979 = vunpack.c.l.b16 %v6195
    %v7980 = vunpack.c.h.b16 %v6195
    %v7981 = vunpack.c.l.b16 %v6196
    %v7982 = vunpack.c.l.b16 %v6197
    %v7983 = vunpack.c.h.b16 %v6197
    %v7984 = vunpack.c.l.b16 %v6198
    %v7985 = vunpack.c.h.b16 %v6198
    %v7986 = vunpack.c.l.b16 %v6199
    %v7987 = vunpack.c.h.b16 %v6199
    %v7988 = vunpack.c.l.b16 %v6200
    %v7989 = vunpack.c.l.b16 %v6201
    %v7990 = vunpack.c.h.b16 %v6201
    %v7991 = vunpack.c.l.b16 %v6202
    %v7992 = vunpack.c.h.b16 %v6202
    %v7993 = vunpack.c.l.b16 %v6203
    %v7994 = vunpack.c.h.b16 %v6203
    %v7995 = vunpack.c.l.b16 %v6204
    %v7996 = vunpack.c.l.b16 %v6205
    %v7997 = vunpack.c.h.b16 %v6205
    %v7998 = vunpack.c.l.b16 %v6206
    %v7999 = vunpack.c.h.b16 %v6206
    %v8000 = vunpack.c.l.b16 %v6207
    %v8001 = vunpack.c.h.b16 %v6207
    %v8002 = vunpack.c.l.b16 %v6208
    %v8003 = vunpack.c.l.b16 %v6209
    %v8004 = vunpack.c.h.b16 %v6209
    %v8005 = vunpack.c.l.b16 %v6210
    %v8006 = vunpack.c.h.b16 %v6210
    %v8007 = vunpack.c.l.b16 %v6211
    %v8008 = vunpack.c.h.b16 %v6211
    %v8009 = vunpack.c.l.b16 %v6212
    %v8010 = vunpack.c.l.b16 %v6213
    %v8011 = vunpack.c.h.b16 %v6213
    %v8012 = vunpack.c.l.b16 %v6214
    %v8013 = vunpack.c.h.b16 %v6214
    %v8014 = vunpack.c.l.b16 %v6215
    %v8015 = vunpack.c.h.b16 %v6215
    %v8016 = vunpack.c.l.b16 %v6216
    %v8017 = vunpack.c.l.b16 %v6217
    %v8018 = vunpack.c.h.b16 %v6217
    %v8019 = vunpack.c.l.b16 %v6218
    %v8020 = vunpack.c.h.b16 %v6218
    %v8021 = vunpack.c.l.b16 %v6219
    %v8022 = vunpack.c.h.b16 %v6219
    %v8023 = vunpack.c.l.b16 %v6220
    %v8024 = vunpack.c.l.b16 %v6221
    %v8025 = vunpack.c.h.b16 %v6221
    %v8026 = vunpack.c.l.b16 %v6222
    %v8027 = vunpack.c.h.b16 %v6222
    %v8028 = vunpack.c.l.b16 %v6223
    %v8029 = vunpack.c.h.b16 %v6223
    %v8030 = vunpack.c.l.b16 %v6224
    %v8031 = vunpack.c.l.b16 %v6225
    %v8032 = vunpack.c.h.b16 %v6225
    %v8033 = vunpack.c.l.b16 %v6226
    %v8034 = vunpack.c.h.b16 %v6226
    %v8035 = vunpack.c.l.b16 %v6227
    %v8036 = vunpack.c.h.b16 %v6227
    %v8037 = vunpack.c.l.b16 %v6228
    %v8038 = vunpack.c.l.b16 %v6229
    %v8039 = vunpack.c.h.b16 %v6229
    %v8040 = vunpack.c.l.b16 %v6230
    %v8041 = vunpack.c.h.b16 %v6230
    %v8042 = vunpack.c.l.b16 %v6231
    %v8043 = vunpack.c.h.b16 %v6231
    %v8044 = vunpack.c.l.b16 %v6232
    %v8045 = vunpack.c.l.b16 %v6233
    %v8046 = vunpack.c.h.b16 %v6233
    %v8047 = vunpack.c.l.b16 %v6234
    %v8048 = vunpack.c.h.b16 %v6234
    %v8049 = vunpack.c.l.b16 %v6235
    %v8050 = vunpack.c.h.b16 %v6235
    %v8051 = vunpack.c.l.b16 %v6236
    %v8052 = vunpack.c.l.b16 %v6237
    %v8053 = vunpack.c.h.b16 %v6237
    %v8054 = vunpack.c.l.b16 %v6238
    %v8055 = vunpack.c.h.b16 %v6238
    %v8056 = vunpack.c.l.b16 %v6239
    %v8057 = vunpack.c.h.b16 %v6239
    %v8058 = vunpack.c.l.b16 %v6240
    %v8059 = vunpack.c.l.b16 %v6241
    %v8060 = vunpack.c.h.b16 %v6241
    %v8061 = vunpack.c.l.b16 %v6242
    %v8062 = vunpack.c.h.b16 %v6242
    %v8063 = vunpack.c.l.b16 %v6243
    %v8064 = vunpack.c.h.b16 %v6243
    %v8065 = vunpack.c.l.b16 %v6244
    %v8066 = vunpack.c.l.b16 %v6245
    %v8067 = vunpack.c.h.b16 %v6245
    %v8068 = vunpack.c.l.b16 %v6246
    %v8069 = vunpack.c.h.b16 %v6246
    %v8070 = vunpack.c.l.b16 %v6247
    %v8071 = vunpack.c.h.b16 %v6247
    %v8072 = vunpack.c.l.b16 %v6248
    %v8073 = vunpack.c.l.b16 %v6249
    %v8074 = vunpack.c.h.b16 %v6249
    %v8075 = vunpack.c.l.b16 %v6250
    %v8076 = vunpack.c.h.b16 %v6250
    %v8077 = vunpack.c.l.b16 %v6251
    %v8078 = vunpack.c.h.b16 %v6251
    %v8079 = vunpack.c.l.b16 %v6252
    %v8080 = vunpack.c.l.b16 %v6253
    %v8081 = vunpack.c.h.b16 %v6253
    %v8082 = vunpack.c.l.b16 %v6254
    %v8083 = vunpack.c.h.b16 %v6254
    %v8084 = vunpack.c.l.b16 %v6255
    %v8085 = vunpack.c.h.b16 %v6255
    %v8086 = vunpack.c.l.b16 %v6256
    %v8087 = vunpack.c.l.b16 %v6257
    %v8088 = vunpack.c.h.b16 %v6257
    %v8089 = vunpack.c.l.b16 %v6258
    %v8090 = vunpack.c.h.b16 %v6258
    %v8091 = vunpack.c.l.b16 %v6259
    %v8092 = vunpack.c.h.b16 %v6259
    %v8093 = vunpack.c.l.b16 %v6260
    %v8094 = vunpack.c.l.b16 %v6261
    %v8095 = vunpack.c.h.b16 %v6261
    %v8096 = vunpack.c.l.b16 %v6262
    %v8097 = vunpack.c.h.b16 %v6262
    %v8098 = vunpack.c.l.b16 %v6263
    %v8099 = vunpack.c.h.b16 %v6263
    %v8100 = vunpack.c.l.b16 %v6264
    %v8101 = vunpack.c.l.b16 %v6265
    %v8102 = vunpack.c.h.b16 %v6265
    %v8103 = vunpack.c.l.b16 %v6266
    %v8104 = vunpack.c.h.b16 %v6266
    %v8105 = vunpack.c.l.b16 %v6267
    %v8106 = vunpack.c.h.b16 %v6267
    %v8107 = vunpack.c.l.b16 %v6268
    %v8108 = vunpack.c.l.b16 %v6269
    %v8109 = vunpack.c.h.b16 %v6269
    %v8110 = vunpack.c.l.b16 %v6270
    %v8111 = vunpack.c.h.b16 %v6270
    %v8112 = vunpack.c.l.b16 %v6271
    %v8113 = vunpack.c.h.b16 %v6271
    %v8114 = vunpack.c.l.b16 %v6272
    %v8115 = vunpack.c.l.b16 %v6273
    %v8116 = vunpack.c.h.b16 %v6273
    %v8117 = vunpack.c.l.b16 %v6274
    %v8118 = vunpack.c.h.b16 %v6274
    %v8119 = vunpack.c.l.b16 %v6275
    %v8120 = vunpack.c.h.b16 %v6275
    %v8121 = vunpack.c.l.b16 %v6276
    %v8122 = vunpack.c.l.b16 %v6277
    %v8123 = vunpack.c.h.b16 %v6277
    %v8124 = vunpack.c.l.b16 %v6278
    %v8125 = vunpack.c.h.b16 %v6278
    %v8126 = vunpack.c.l.b16 %v6279
    %v8127 = vunpack.c.h.b16 %v6279
    %v8128 = vunpack.c.l.b16 %v6280
    %v8129 = vunpack.c.l.b16 %v6281
    %v8130 = vunpack.c.h.b16 %v6281
    %v8131 = vunpack.c.l.b16 %v6282
    %v8132 = vunpack.c.h.b16 %v6282
    %v8133 = vunpack.c.l.b16 %v6283
    %v8134 = vunpack.c.h.b16 %v6283
    %v8135 = vunpack.c.l.b16 %v6284
    %v8136 = vunpack.c.l.b16 %v6285
    %v8137 = vunpack.c.h.b16 %v6285
    %v8138 = vunpack.c.l.b16 %v6286
    %v8139 = vunpack.c.h.b16 %v6286
    %v8140 = vunpack.c.l.b16 %v6287
    %v8141 = vunpack.c.h.b16 %v6287
    %v8142 = vunpack.c.l.b16 %v6288
    %v8143 = vunpack.c.l.b16 %v6289
    %v8144 = vunpack.c.h.b16 %v6289
    %v8145 = vunpack.c.l.b16 %v6290
    %v8146 = vunpack.c.h.b16 %v6290
    %v8147 = vunpack.c.l.b16 %v6291
    %v8148 = vunpack.c.h.b16 %v6291
    %v8149 = vunpack.c.l.b16 %v6292
    %v8150 = vunpack.c.l.b16 %v6293
    %v8151 = vunpack.c.h.b16 %v6293
    %v8152 = vunpack.c.l.b16 %v6294
    %v8153 = vunpack.c.h.b16 %v6294
    %v8154 = vunpack.c.l.b16 %v6295
    %v8155 = vunpack.c.h.b16 %v6295
    %v8156 = vunpack.c.l.b16 %v6296
    %v8157 = vunpack.c.l.b16 %v6297
    %v8158 = vunpack.c.h.b16 %v6297
    %v8159 = vunpack.c.l.b16 %v6298
    %v8160 = vunpack.c.h.b16 %v6298
    %v8161 = vunpack.c.l.b16 %v6299
    %v8162 = vunpack.c.h.b16 %v6299
    %v8163 = vunpack.c.l.b16 %v6300
    %v8164 = vunpack.c.l.b16 %v6301
    %v8165 = vunpack.c.h.b16 %v6301
    %v8166 = vunpack.c.l.b16 %v6302
    %v8167 = vunpack.c.h.b16 %v6302
    %v8168 = vunpack.c.l.b16 %v6303
    %v8169 = vunpack.c.h.b16 %v6303
    %v8170 = vunpack.c.l.b16 %v6304
    %v8171 = vunpack.c.l.b16 %v6305
    %v8172 = vunpack.c.h.b16 %v6305
    %v8173 = vunpack.c.l.b16 %v6306
    %v8174 = vunpack.c.h.b16 %v6306
    %v8175 = vunpack.c.l.b16 %v6307
    %v8176 = vunpack.c.h.b16 %v6307
    %v8177 = vunpack.c.l.b16 %v6308
    %v8178 = vunpack.c.l.b16 %v6309
    %v8179 = vunpack.c.h.b16 %v6309
    %v8180 = vunpack.c.l.b16 %v6310
    %v8181 = vunpack.c.h.b16 %v6310
    %v8182 = vunpack.c.l.b16 %v6311
    %v8183 = vunpack.c.h.b16 %v6311
    %v8184 = vunpack.c.l.b16 %v6312
    %v8185 = vunpack.c.l.b16 %v6313
    %v8186 = vunpack.c.h.b16 %v6313
    %v8187 = vunpack.c.l.b16 %v6314
    %v8188 = vunpack.c.h.b16 %v6314
    %v8189 = vunpack.c.l.b16 %v6315
    %v8190 = vunpack.c.h.b16 %v6315
    %v8191 = vunpack.c.l.b16 %v6316
    %v8192 = vunpack.c.l.b16 %v6317
    %v8193 = vunpack.c.h.b16 %v6317
    %v8194 = vunpack.c.l.b16 %v6318
    %v8195 = vunpack.c.h.b16 %v6318
    %v8196 = vunpack.c.l.b16 %v6319
    %v8197 = vunpack.c.h.b16 %v6319
    %v8198 = vunpack.c.l.b16 %v6320
    %v8199 = vunpack.c.l.b16 %v6321
    %v8200 = vunpack.c.h.b16 %v6321
    %v8201 = vunpack.c.l.b16 %v6322
    %v8202 = vunpack.c.h.b16 %v6322
    %v8203 = vunpack.c.l.b16 %v6323
    %v8204 = vunpack.c.h.b16 %v6323
    %v8205 = vunpack.c.l.b16 %v6324
    %v8206 = vunpack.c.l.b16 %v6325
    %v8207 = vunpack.c.h.b16 %v6325
    %v8208 = vunpack.c.l.b16 %v6326
    %v8209 = vunpack.c.h.b16 %v6326
    %v8210 = vunpack.c.l.b16 %v6327
    %v8211 = vunpack.c.h.b16 %v6327
    %v8212 = vunpack.c.l.b16 %v6328
    %v8213 = vunpack.c.l.b16 %v6329
    %v8214 = vunpack.c.h.b16 %v6329
    %v8215 = vunpack.c.l.b16 %v6330
    %v8216 = vunpack.c.h.b16 %v6330
    %v8217 = vunpack.c.l.b16 %v6331
    %v8218 = vunpack.c.h.b16 %v6331
    %v8219 = vunpack.c.l.b16 %v6332
    %v8220 = vunpack.c.l.b16 %v6333
    %v8221 = vunpack.c.h.b16 %v6333
    %v8222 = vunpack.c.l.b16 %v6334
    %v8223 = vunpack.c.h.b16 %v6334
    %v8224 = vunpack.c.l.b16 %v6335
    %v8225 = vunpack.c.h.b16 %v6335
    %v8226 = vunpack.c.l.b16 %v6336
    %v8227 = vunpack.c.l.b16 %v6337
    %v8228 = vunpack.c.h.b16 %v6337
    %v8229 = vunpack.c.l.b16 %v6338
    %v8230 = vunpack.c.h.b16 %v6338
    %v8231 = vunpack.c.l.b16 %v6339
    %v8232 = vunpack.c.h.b16 %v6339
    %v8233 = vunpack.c.l.b16 %v6340
    %v8234 = vunpack.c.l.b16 %v6341
    %v8235 = vunpack.c.h.b16 %v6341
    %v8236 = vunpack.c.l.b16 %v6342
    %v8237 = vunpack.c.h.b16 %v6342
    %v8238 = vunpack.c.l.b16 %v6343
    %v8239 = vunpack.c.h.b16 %v6343
    %v8240 = vunpack.c.l.b16 %v6344
    %v8241 = vunpack.c.l.b16 %v6345
    %v8242 = vunpack.c.h.b16 %v6345
    %v8243 = vunpack.c.l.b16 %v6346
    %v8244 = vunpack.c.h.b16 %v6346
    %v8245 = vunpack.c.l.b16 %v6347
    %v8246 = vunpack.c.h.b16 %v6347
    %v8247 = vunpack.c.l.b16 %v6348
    %v8248 = vunpack.c.l.b16 %v6349
    %v8249 = vunpack.c.h.b16 %v6349
    %v8250 = vunpack.c.l.b16 %v6350
    %v8251 = vunpack.c.h.b16 %v6350
    %v8252 = vunpack.c.l.b16 %v6351
    %v8253 = vunpack.c.h.b16 %v6351
    %v8254 = vunpack.c.l.b16 %v6352
    %v8255 = vunpack.c.l.b16 %v6353
    %v8256 = vunpack.c.h.b16 %v6353
    %v8257 = vunpack.c.l.b16 %v6354
    %v8258 = vunpack.c.h.b16 %v6354
    %v8259 = vunpack.c.l.b16 %v6355
    %v8260 = vunpack.c.h.b16 %v6355
    %v8261 = vunpack.c.l.b16 %v6356
    %v8262 = vunpack.c.l.b16 %v6357
    %v8263 = vunpack.c.h.b16 %v6357
    %v8264 = vunpack.c.l.b16 %v6358
    %v8265 = vunpack.c.h.b16 %v6358
    %v8266 = vunpack.c.l.b16 %v6359
    %v8267 = vunpack.c.h.b16 %v6359
    %v8268 = vunpack.c.l.b16 %v6360
    %v8269 = vunpack.c.l.b16 %v6361
    %v8270 = vunpack.c.h.b16 %v6361
    %v8271 = vunpack.c.l.b16 %v6362
    %v8272 = vunpack.c.h.b16 %v6362
    %v8273 = vunpack.c.l.b16 %v6363
    %v8274 = vunpack.c.h.b16 %v6363
    %v8275 = vunpack.c.l.b16 %v6364
    %v8276 = vunpack.c.l.b16 %v6365
    %v8277 = vunpack.c.h.b16 %v6365
    %v8278 = vunpack.c.l.b16 %v6366
    %v8279 = vunpack.c.h.b16 %v6366
    %v8280 = vunpack.c.l.b16 %v6367
    %v8281 = vunpack.c.h.b16 %v6367
    %v8282 = vunpack.c.l.b16 %v6368
    %v8283 = vunpack.c.l.b16 %v6369
    %v8284 = vunpack.c.h.b16 %v6369
    %v8285 = vunpack.c.l.b16 %v6370
    %v8286 = vunpack.c.h.b16 %v6370
    %v8287 = vunpack.c.l.b16 %v6371
    %v8288 = vunpack.c.h.b16 %v6371
    %v8289 = vunpack.c.l.b16 %v6372
    %v8290 = vunpack.c.l.b16 %v6373
    %v8291 = vunpack.c.h.b16 %v6373
    %v8292 = vunpack.c.l.b16 %v6374
    %v8293 = vunpack.c.h.b16 %v6374
    %v8294 = vunpack.c.l.b16 %v6375
    %v8295 = vunpack.c.h.b16 %v6375
    %v8296 = vunpack.c.l.b16 %v6376
    %v8297 = vunpack.c.l.b16 %v6377
    %v8298 = vunpack.c.h.b16 %v6377
    %v8299 = vunpack.c.l.b16 %v6378
    %v8300 = vunpack.c.h.b16 %v6378
    %v8301 = vunpack.c.l.b16 %v6379
    %v8302 = vunpack.c.h.b16 %v6379
    %v8303 = vunpack.c.l.b16 %v6380
    %v8304 = vunpack.c.l.b16 %v6381
    %v8305 = vunpack.c.h.b16 %v6381
    %v8306 = vunpack.c.l.b16 %v6382
    %v8307 = vunpack.c.h.b16 %v6382
    %v8308 = vunpack.c.l.b16 %v6383
    %v8309 = vunpack.c.h.b16 %v6383
    %v8310 = vunpack.c.l.b16 %v6384
    %v8311 = vunpack.c.l.b16 %v6385
    %v8312 = vunpack.c.h.b16 %v6385
    %v8313 = vunpack.c.l.b16 %v6386
    %v8314 = vunpack.c.h.b16 %v6386
    %v8315 = vunpack.c.l.b16 %v6387
    %v8316 = vunpack.c.h.b16 %v6387
    %v8317 = vunpack.c.l.b16 %v6388
    %v8318 = vunpack.c.l.b16 %v6389
    %v8319 = vunpack.c.h.b16 %v6389
    %v8320 = vunpack.c.l.b16 %v6390
    %v8321 = vunpack.c.h.b16 %v6390
    %v8322 = vunpack.c.l.b16 %v6391
    %v8323 = vunpack.c.h.b16 %v6391
    %v8324 = vunpack.c.l.b16 %v6392
    %v8325 = vunpack.c.l.b16 %v6393
    %v8326 = vunpack.c.h.b16 %v6393
    %v8327 = vunpack.c.l.b16 %v6394
    %v8328 = vunpack.c.h.b16 %v6394
    %v8329 = vunpack.c.l.b16 %v6395
    %v8330 = vunpack.c.h.b16 %v6395
    %v8331 = vunpack.c.l.b16 %v6396
    %v8332 = vunpack.c.l.b16 %v6397
    %v8333 = vunpack.c.h.b16 %v6397
    %v8334 = vunpack.c.l.b16 %v6398
    %v8335 = vunpack.c.h.b16 %v6398
    %v8336 = vunpack.c.l.b16 %v6399
    %v8337 = vunpack.c.h.b16 %v6399
    %v8338 = vunpack.c.l.b16 %v6400
    %v8339 = vunpack.c.l.b16 %v6401
    %v8340 = vunpack.c.h.b16 %v6401
    %v8341 = vunpack.c.l.b16 %v6402
    %v8342 = vunpack.c.h.b16 %v6402
    %v8343 = vunpack.c.l.b16 %v6403
    %v8344 = vunpack.c.h.b16 %v6403
    %v8345 = vunpack.c.l.b16 %v6404
    %v8346 = vunpack.c.l.b16 %v6405
    %v8347 = vunpack.c.h.b16 %v6405
    %v8348 = vunpack.c.l.b16 %v6406
    %v8349 = vunpack.c.h.b16 %v6406
    %v8350 = vunpack.c.l.b16 %v6407
    %v8351 = vunpack.c.h.b16 %v6407
    %v8352 = vunpack.c.l.b16 %v6408
    %v8353 = vunpack.c.l.b16 %v6409
    %v8354 = vunpack.c.h.b16 %v6409
    %v8355 = vunpack.c.l.b16 %v6410
    %v8356 = vunpack.c.h.b16 %v6410
    %v8357 = vunpack.c.l.b16 %v6411
    %v8358 = vunpack.c.h.b16 %v6411
    %v8359 = vunpack.c.l.b16 %v6412
    %v8360 = vunpack.c.l.b16 %v6413
    %v8361 = vunpack.c.h.b16 %v6413
    %v8362 = vunpack.c.l.b16 %v6414
    %v8363 = vunpack.c.h.b16 %v6414
    %v8364 = vunpack.c.l.b16 %v6415
    %v8365 = vunpack.c.h.b16 %v6415
    %v8366 = vunpack.c.l.b16 %v6416
    %v8367 = vunpack.c.l.b16 %v6417
    %v8368 = vunpack.c.h.b16 %v6417
    %v8369 = vunpack.c.l.b16 %v6418
    %v8370 = vunpack.c.h.b16 %v6418
    %v8371 = vunpack.c.l.b16 %v6419
    %v8372 = vunpack.c.h.b16 %v6419
    %v8373 = vunpack.c.l.b16 %v6420
    %v8374 = vunpack.c.l.b16 %v6421
    %v8375 = vunpack.c.h.b16 %v6421
    %v8376 = vunpack.c.l.b16 %v6422
    %v8377 = vunpack.c.h.b16 %v6422
    %v8378 = vunpack.c.l.b16 %v6423
    %v8379 = vunpack.c.h.b16 %v6423
    %v8380 = vunpack.c.l.b16 %v6424
    %v8381 = vunpack.c.l.b16 %v6425
    %v8382 = vunpack.c.h.b16 %v6425
    %v8383 = vunpack.c.l.b16 %v6426
    %v8384 = vunpack.c.h.b16 %v6426
    %v8385 = vunpack.c.l.b16 %v6427
    %v8386 = vunpack.c.h.b16 %v6427
    %v8387 = vunpack.c.l.b16 %v6428
    %v8388 = vunpack.c.l.b16 %v6429
    %v8389 = vunpack.c.h.b16 %v6429
    %v8390 = vunpack.c.l.b16 %v6430
    %v8391 = vunpack.c.h.b16 %v6430
    %v8392 = vunpack.c.l.b16 %v6431
    %v8393 = vunpack.c.h.b16 %v6431
    %v8394 = vunpack.c.l.b16 %v6432
    %v8395 = vunpack.c.l.b16 %v6433
    %v8396 = vunpack.c.h.b16 %v6433
    %v8397 = vunpack.c.l.b16 %v6434
    %v8398 = vunpack.c.h.b16 %v6434
    %v8399 = vunpack.c.l.b16 %v6435
    %v8400 = vunpack.c.h.b16 %v6435
    %v8401 = vunpack.c.l.b16 %v6436
    %v8402 = vunpack.c.l.b16 %v6437
    %v8403 = vunpack.c.h.b16 %v6437
    %v8404 = vunpack.c.l.b16 %v6438
    %v8405 = vunpack.c.h.b16 %v6438
    %v8406 = vunpack.c.l.b16 %v6439
    %v8407 = vunpack.c.h.b16 %v6439
    %v8408 = vunpack.c.l.b16 %v6440
    %v8409 = vunpack.c.l.b16 %v6441
    %v8410 = vunpack.c.h.b16 %v6441
    %v8411 = vunpack.c.l.b16 %v6442
    %v8412 = vunpack.c.h.b16 %v6442
    %v8413 = vunpack.c.l.b16 %v6443
    %v8414 = vunpack.c.h.b16 %v6443
    %v8415 = vunpack.c.l.b16 %v6444
    %v8416 = vunpack.c.l.b16 %v6445
    %v8417 = vunpack.c.h.b16 %v6445
    %v8418 = vunpack.c.l.b16 %v6446
    %v8419 = vunpack.c.h.b16 %v6446
    %v8420 = vunpack.c.l.b16 %v6447
    %v8421 = vunpack.c.h.b16 %v6447
    %v8422 = vunpack.c.l.b16 %v6448
    %v8423 = vunpack.c.l.b16 %v6449
    %v8424 = vunpack.c.h.b16 %v6449
    %v8425 = vunpack.c.l.b16 %v6450
    %v8426 = vunpack.c.h.b16 %v6450
    %v8427 = vunpack.c.l.b16 %v6451
    %v8428 = vunpack.c.h.b16 %v6451
    %v8429 = vunpack.c.l.b16 %v6452
    %v8430 = vunpack.c.l.b16 %v6453
    %v8431 = vunpack.c.h.b16 %v6453
    %v8432 = vunpack.c.l.b16 %v6454
    %v8433 = vunpack.c.h.b16 %v6454
    %v8434 = vunpack.c.l.b16 %v6455
    %v8435 = vunpack.c.h.b16 %v6455
    %v8436 = vunpack.c.l.b16 %v6456
    %v8437 = vunpack.c.l.b16 %v6457
    %v8438 = vunpack.c.h.b16 %v6457
    %v8439 = vunpack.c.l.b16 %v6458
    %v8440 = vunpack.c.h.b16 %v6458
    %v8441 = vunpack.c.l.b16 %v6459
    %v8442 = vunpack.c.h.b16 %v6459
    %v8443 = vunpack.c.l.b16 %v6460
    %v8444 = vunpack.c.l.b16 %v6461
    %v8445 = vunpack.c.h.b16 %v6461
    %v8446 = vunpack.c.l.b16 %v6462
    %v8447 = vunpack.c.h.b16 %v6462
    %v8448 = vunpack.c.l.b16 %v6463
    %v8449 = vunpack.c.h.b16 %v6463
    %v8450 = vunpack.c.l.b16 %v6464
    %v8451 = vunpack.c.l.b16 %v6465
    %v8452 = vunpack.c.h.b16 %v6465
    %v8453 = vunpack.c.l.b16 %v6466
    %v8454 = vunpack.c.h.b16 %v6466
    %v8455 = vunpack.c.l.b16 %v6467
    %v8456 = vunpack.c.h.b16 %v6467
    %v8457 = vunpack.c.l.b16 %v6468
    %v8458 = vunpack.c.l.b16 %v6469
    %v8459 = vunpack.c.h.b16 %v6469
    %v8460 = vunpack.c.l.b16 %v6470
    %v8461 = vunpack.c.h.b16 %v6470
    %v8462 = vunpack.c.l.b16 %v6471
    %v8463 = vunpack.c.h.b16 %v6471
    %v8464 = vunpack.c.l.b16 %v6472
    %v8465 = vunpack.c.l.b16 %v6473
    %v8466 = vunpack.c.h.b16 %v6473
    %v8467 = vunpack.c.l.b16 %v6474
    %v8468 = vunpack.c.h.b16 %v6474
    %v8469 = vunpack.c.l.b16 %v6475
    %v8470 = vunpack.c.h.b16 %v6475
    %v8471 = vunpack.c.l.b16 %v6476
    %v8472 = vunpack.c.l.b16 %v6477
    %v8473 = vunpack.c.h.b16 %v6477
    %v8474 = vunpack.c.l.b16 %v6478
    %v8475 = vunpack.c.h.b16 %v6478
    %v8476 = vunpack.c.l.b16 %v6479
    %v8477 = vunpack.c.h.b16 %v6479
    %v8478 = vunpack.c.l.b16 %v6480
    %v8479 = vunpack.c.l.b16 %v6481
    %v8480 = vunpack.c.h.b16 %v6481
    %v8481 = vunpack.c.l.b16 %v6482
    %v8482 = vunpack.c.h.b16 %v6482
    %v8483 = vunpack.c.l.b16 %v6483
    %v8484 = vunpack.c.h.b16 %v6483
    %v8485 = vunpack.c.l.b16 %v6484
    %v8486 = vunpack.c.l.b16 %v6485
    %v8487 = vunpack.c.h.b16 %v6485
    %v8488 = vunpack.c.l.b16 %v6486
    %v8489 = vunpack.c.h.b16 %v6486
    %v8490 = vunpack.c.l.b16 %v6487
    %v8491 = vunpack.c.h.b16 %v6487
    %v8492 = vunpack.c.l.b16 %v6488
    %v8493 = vunpack.c.l.b16 %v6489
    %v8494 = vunpack.c.h.b16 %v6489
    %v8495 = vunpack.c.l.b16 %v6490
    %v8496 = vunpack.c.h.b16 %v6490
    %v8497 = vunpack.c.l.b16 %v6491
    %v8498 = vunpack.c.h.b16 %v6491
    %v8499 = vunpack.c.l.b16 %v6492
    %v8500 = vunpack.c.l.b16 %v6493
    %v8501 = vunpack.c.h.b16 %v6493
    %v8502 = vunpack.c.l.b16 %v6494
    %v8503 = vunpack.c.h.b16 %v6494
    %v8504 = vunpack.c.l.b16 %v6495
    %v8505 = vunpack.c.h.b16 %v6495
    %v8506 = vunpack.c.l.b16 %v6496
    %v8507 = vunpack.c.l.b16 %v6497
    %v8508 = vunpack.c.h.b16 %v6497
    %v8509 = vunpack.c.l.b16 %v6498
    %v8510 = vunpack.c.h.b16 %v6498
    %v8511 = vunpack.c.l.b16 %v6499
    %v8512 = vunpack.c.h.b16 %v6499
    %v8513 = vunpack.c.l.b16 %v6500
    %v8514 = vunpack.c.l.b16 %v6501
    %v8515 = vunpack.c.h.b16 %v6501
    %v8516 = vunpack.c.l.b16 %v6502
    %v8517 = vunpack.c.h.b16 %v6502
    %v8518 = vunpack.c.l.b16 %v6503
    %v8519 = vunpack.c.h.b16 %v6503
    %v8520 = vunpack.c.l.b16 %v6504
    %v8521 = vunpack.c.l.b16 %v6505
    %v8522 = vunpack.c.h.b16 %v6505
    %v8523 = vunpack.c.l.b16 %v6506
    %v8524 = vunpack.c.h.b16 %v6506
    %v8525 = vunpack.c.l.b16 %v6507
    %v8526 = vunpack.c.h.b16 %v6507
    %v8527 = vunpack.c.l.b16 %v6508
    %v8528 = vunpack.c.l.b16 %v6509
    %v8529 = vunpack.c.h.b16 %v6509
    %v8530 = vunpack.c.l.b16 %v6510
    %v8531 = vunpack.c.h.b16 %v6510
    %v8532 = vunpack.c.l.b16 %v6511
    %v8533 = vunpack.c.h.b16 %v6511
    %v8534 = vunpack.c.l.b16 %v6512
    %v8535 = vunpack.c.l.b16 %v6513
    %v8536 = vunpack.c.h.b16 %v6513
    %v8537 = vunpack.c.l.b16 %v6514
    %v8538 = vunpack.c.h.b16 %v6514
    %v8539 = vunpack.c.l.b16 %v6515
    %v8540 = vunpack.c.h.b16 %v6515
    %v8541 = vunpack.c.l.b16 %v6516
    %v8542 = vunpack.c.l.b16 %v6517
    %v8543 = vunpack.c.h.b16 %v6517
    %v8544 = vunpack.c.l.b16 %v6518
    %v8545 = vunpack.c.h.b16 %v6518
    %v8546 = vunpack.c.l.b16 %v6519
    %v8547 = vunpack.c.h.b16 %v6519
    %v8548 = vunpack.c.l.b16 %v6520
    %v8549 = vunpack.c.l.b16 %v6521
    %v8550 = vunpack.c.h.b16 %v6521
    %v8551 = vunpack.c.l.b16 %v6522
    %v8552 = vunpack.c.h.b16 %v6522
    %v8553 = vunpack.c.l.b16 %v6523
    %v8554 = vunpack.c.h.b16 %v6523
    %v8555 = vunpack.c.l.b16 %v6524
    %v8556 = vunpack.c.l.b16 %v6525
    %v8557 = vunpack.c.h.b16 %v6525
    %v8558 = vunpack.c.l.b16 %v6526
    %v8559 = vunpack.c.h.b16 %v6526
    %v8560 = vunpack.c.l.b16 %v6527
    %v8561 = vunpack.c.h.b16 %v6527
    %v8562 = vunpack.c.l.b16 %v6528
    %v8563 = vunpack.c.l.b16 %v6529
    %v8564 = vunpack.c.h.b16 %v6529
    %v8565 = vunpack.c.l.b16 %v6530
    %v8566 = vunpack.c.h.b16 %v6530
    %v8567 = vunpack.c.l.b16 %v6531
    %v8568 = vunpack.c.h.b16 %v6531
    %v8569 = vunpack.c.l.b16 %v6532
    %v8570 = vunpack.c.l.b16 %v6533
    %v8571 = vunpack.c.h.b16 %v6533
    %v8572 = vunpack.c.l.b16 %v6534
    %v8573 = vunpack.c.h.b16 %v6534
    %v8574 = vunpack.c.l.b16 %v6535
    %v8575 = vunpack.c.h.b16 %v6535
    %v8576 = vunpack.c.l.b16 %v6536
    %v8577 = vunpack.c.l.b16 %v6537
    %v8578 = vunpack.c.h.b16 %v6537
    %v8579 = vunpack.c.l.b16 %v6538
    %v8580 = vunpack.c.h.b16 %v6538
    %v8581 = vunpack.c.l.b16 %v6539
    %v8582 = vunpack.c.h.b16 %v6539
    %v8583 = vunpack.c.l.b16 %v6540
    %v8584 = vunpack.c.l.b16 %v6541
    %v8585 = vunpack.c.h.b16 %v6541
    %v8586 = vunpack.c.l.b16 %v6542
    %v8587 = vunpack.c.h.b16 %v6542
    %v8588 = vunpack.c.l.b16 %v6543
    %v8589 = vunpack.c.h.b16 %v6543
    %v8590 = vunpack.c.l.b16 %v6544
    %v8591 = vunpack.c.l.b16 %v6545
    %v8592 = vunpack.c.h.b16 %v6545
    %v8593 = vunpack.c.l.b16 %v6546
    %v8594 = vunpack.c.h.b16 %v6546
    %v8595 = vunpack.c.l.b16 %v6547
    %v8596 = vunpack.c.h.b16 %v6547
    %v8597 = vunpack.c.l.b16 %v6548
    %v8598 = vunpack.c.l.b16 %v6549
    %v8599 = vunpack.c.h.b16 %v6549
    %v8600 = vunpack.c.l.b16 %v6550
    %v8601 = vunpack.c.h.b16 %v6550
    %v8602 = vunpack.c.l.b16 %v6551
    %v8603 = vunpack.c.h.b16 %v6551
    %v8604 = vunpack.c.l.b16 %v6552
    %v8605 = vunpack.c.l.b16 %v6553
    %v8606 = vunpack.c.h.b16 %v6553
    %v8607 = vunpack.c.l.b16 %v6554
    %v8608 = vunpack.c.h.b16 %v6554
    %v8609 = vunpack.c.l.b16 %v6555
    %v8610 = vunpack.c.h.b16 %v6555
    %v8611 = vunpack.c.l.b16 %v6556
    %v8612 = vunpack.c.l.b16 %v6557
    %v8613 = vunpack.c.h.b16 %v6557
    %v8614 = vunpack.c.l.b16 %v6558
    %v8615 = vunpack.c.h.b16 %v6558
    %v8616 = vunpack.c.l.b16 %v6559
    %v8617 = vunpack.c.h.b16 %v6559
    %v8618 = vunpack.c.l.b16 %v6560
    %v8619 = vunpack.c.l.b16 %v6561
    %v8620 = vunpack.c.h.b16 %v6561
    %v8621 = vunpack.c.l.b16 %v6562
    %v8622 = vunpack.c.h.b16 %v6562
    %v8623 = vunpack.c.l.b16 %v6563
    %v8624 = vunpack.c.h.b16 %v6563
    %v8625 = vunpack.c.l.b16 %v6564
    %v8626 = vunpack.c.l.b16 %v6565
    %v8627 = vunpack.c.h.b16 %v6565
    %v8628 = vunpack.c.l.b16 %v6566
    %v8629 = vunpack.c.h.b16 %v6566
    %v8630 = vunpack.c.l.b16 %v6567
    %v8631 = vunpack.c.h.b16 %v6567
    %v8632 = vunpack.c.l.b16 %v6568
    %v8633 = vunpack.c.l.b16 %v6569
    %v8634 = vunpack.c.h.b16 %v6569
    %v8635 = vunpack.c.l.b16 %v6570
    %v8636 = vunpack.c.h.b16 %v6570
    %v8637 = vunpack.c.l.b16 %v6571
    %v8638 = vunpack.c.h.b16 %v6571
    %v8639 = vunpack.c.l.b16 %v6572
    %v8640 = vunpack.c.l.b16 %v6573
    %v8641 = vunpack.c.h.b16 %v6573
    %v8642 = vunpack.c.l.b16 %v6574
    %v8643 = vunpack.c.h.b16 %v6574
    %v8644 = vunpack.c.l.b16 %v6575
    %v8645 = vunpack.c.h.b16 %v6575
    %v8646 = vunpack.c.l.b16 %v6576
    %v8647 = vunpack.c.l.b16 %v6577
    %v8648 = vunpack.c.h.b16 %v6577
    %v8649 = vunpack.c.l.b16 %v6578
    %v8650 = vunpack.c.h.b16 %v6578
    %v8651 = vunpack.c.l.b16 %v6579
    %v8652 = vunpack.c.h.b16 %v6579
    %v8653 = vunpack.c.l.b16 %v6580
    %v8654 = vunpack.c.l.b16 %v6581
    %v8655 = vunpack.c.h.b16 %v6581
    %v8656 = vunpack.c.l.b16 %v6582
    %v8657 = vunpack.c.h.b16 %v6582
    %v8658 = vunpack.c.l.b16 %v6583
    %v8659 = vunpack.c.h.b16 %v6583
    %v8660 = vunpack.c.l.b16 %v6584
    %v8661 = vunpack.c.l.b16 %v6585
    %v8662 = vunpack.c.h.b16 %v6585
    %v8663 = vunpack.c.l.b16 %v6586
    %v8664 = vunpack.c.h.b16 %v6586
    %v8665 = vunpack.c.l.b16 %v6587
    %v8666 = vunpack.c.h.b16 %v6587
    %v8667 = vunpack.c.l.b16 %v6588
    %v8668 = vunpack.c.l.b16 %v6589
    %v8669 = vunpack.c.h.b16 %v6589
    %v8670 = vunpack.c.l.b16 %v6590
    %v8671 = vunpack.c.h.b16 %v6590
    %v8672 = vunpack.c.l.b16 %v6591
    %v8673 = vunpack.c.h.b16 %v6591
    %v8674 = vunpack.c.l.b16 %v6592
    %v8675 = vunpack.c.l.b16 %v6593
    %v8676 = vunpack.c.h.b16 %v6593
    %v8677 = vunpack.c.l.b16 %v6594
    %v8678 = vunpack.c.h.b16 %v6594
    %v8679 = vunpack.c.l.b16 %v6595
    %v8680 = vunpack.c.h.b16 %v6595
    %v8681 = vunpack.c.l.b16 %v6596
    %v8682 = vunpack.c.l.b16 %v6597
    %v8683 = vunpack.c.h.b16 %v6597
    %v8684 = vunpack.c.l.b16 %v6598
    %v8685 = vunpack.c.h.b16 %v6598
    %v8686 = vunpack.c.l.b16 %v6599
    %v8687 = vunpack.c.h.b16 %v6599
    %v8688 = vunpack.c.l.b16 %v6600
    %v8689 = vunpack.c.l.b16 %v6601
    %v8690 = vunpack.c.h.b16 %v6601
    %v8691 = vunpack.c.l.b16 %v6602
    %v8692 = vunpack.c.h.b16 %v6602
    %v8693 = vunpack.c.l.b16 %v6603
    %v8694 = vunpack.c.h.b16 %v6603
    %v8695 = vunpack.c.l.b16 %v6604
    %v8696 = vunpack.c.l.b16 %v6605
    %v8697 = vunpack.c.h.b16 %v6605
    %v8698 = vunpack.c.l.b16 %v6606
    %v8699 = vunpack.c.h.b16 %v6606
    %v8700 = vunpack.c.l.b16 %v6607
    %v8701 = vunpack.c.h.b16 %v6607
    %v8702 = vunpack.c.l.b16 %v6608
    %v8703 = vunpack.c.l.b16 %v6609
    %v8704 = vunpack.c.h.b16 %v6609
    %v8705 = vunpack.c.l.b16 %v6610
    %v8706 = vunpack.c.h.b16 %v6610
    %v8707 = vunpack.c.l.b16 %v6611
    %v8708 = vunpack.c.h.b16 %v6611
    %v8709 = vunpack.c.l.b16 %v6612
    %v8710 = vunpack.c.l.b16 %v6613
    %v8711 = vunpack.c.h.b16 %v6613
    %v8712 = vunpack.c.l.b16 %v6614
    %v8713 = vunpack.c.h.b16 %v6614
    %v8714 = vunpack.c.l.b16 %v6615
    %v8715 = vunpack.c.h.b16 %v6615
    %v8716 = vunpack.c.l.b16 %v6616
    %v8717 = vunpack.c.l.b16 %v6617
    %v8718 = vunpack.c.h.b16 %v6617
    %v8719 = vunpack.c.l.b16 %v6618
    %v8720 = vunpack.c.h.b16 %v6618
    %v8721 = vunpack.c.l.b16 %v6619
    %v8722 = vunpack.c.h.b16 %v6619
    %v8723 = vunpack.c.l.b16 %v6620
    %v8724 = vunpack.c.l.b16 %v6621
    %v8725 = vunpack.c.h.b16 %v6621
    %v8726 = vunpack.c.l.b16 %v6622
    %v8727 = vunpack.c.h.b16 %v6622
    %v8728 = vunpack.c.l.b16 %v6623
    %v8729 = vunpack.c.h.b16 %v6623
    %v8730 = vunpack.c.l.b16 %v6624
    %v8731 = vunpack.c.l.b16 %v6625
    %v8732 = vunpack.c.h.b16 %v6625
    %v8733 = vunpack.c.l.b16 %v6626
    %v8734 = vunpack.c.h.b16 %v6626
    %v8735 = vunpack.c.l.b16 %v6627
    %v8736 = vunpack.c.h.b16 %v6627
    %v8737 = vunpack.c.l.b16 %v6628
    %v8738 = vunpack.c.l.b16 %v6629
    %v8739 = vunpack.c.h.b16 %v6629
    %v8740 = vunpack.c.l.b16 %v6630
    %v8741 = vunpack.c.h.b16 %v6630
    %v8742 = vunpack.c.l.b16 %v6631
    %v8743 = vunpack.c.h.b16 %v6631
    %v8744 = vunpack.c.l.b16 %v6632
    %v8745 = vunpack.c.l.b16 %v6633
    %v8746 = vunpack.c.h.b16 %v6633
    %v8747 = vunpack.c.l.b16 %v6634
    %v8748 = vunpack.c.h.b16 %v6634
    %v8749 = vunpack.c.l.b16 %v6635
    %v8750 = vunpack.c.h.b16 %v6635
    %v8751 = vunpack.c.l.b16 %v6636
    %v8752 = vunpack.c.l.b16 %v6637
    %v8753 = vunpack.c.h.b16 %v6637
    %v8754 = vunpack.c.l.b16 %v6638
    %v8755 = vunpack.c.h.b16 %v6638
    %v8756 = vunpack.c.l.b16 %v6639
    %v8757 = vunpack.c.h.b16 %v6639
    %v8758 = vunpack.c.l.b16 %v6640
    %v8759 = vunpack.c.l.b16 %v6641
    %v8760 = vunpack.c.h.b16 %v6641
    %v8761 = vunpack.c.l.b16 %v6642
    %v8762 = vunpack.c.h.b16 %v6642
    %v8763 = vunpack.c.l.b16 %v6643
    %v8764 = vunpack.c.h.b16 %v6643
    %v8765 = vunpack.c.l.b16 %v6644
    %v8766 = vunpack.c.l.b16 %v6645
    %v8767 = vunpack.c.h.b16 %v6645
    %v8768 = vunpack.c.l.b16 %v6646
    %v8769 = vunpack.c.h.b16 %v6646
    %v8770 = vunpack.c.l.b16 %v6647
    %v8771 = vunpack.c.h.b16 %v6647
    %v8772 = vunpack.c.l.b16 %v6648
    %v8773 = vunpack.c.l.b16 %v6649
    %v8774 = vunpack.c.h.b16 %v6649
    %v8775 = vunpack.c.l.b16 %v6650
    %v8776 = vunpack.c.h.b16 %v6650
    %v8777 = vunpack.c.l.b16 %v6651
    %v8778 = vunpack.c.h.b16 %v6651
    %v8779 = vunpack.c.l.b16 %v6652
    %v8780 = vunpack.c.l.b16 %v6653
    %v8781 = vunpack.c.h.b16 %v6653
    %v8782 = vunpack.c.l.b16 %v6654
    %v8783 = vunpack.c.h.b16 %v6654
    %v8784 = vunpack.c.l.b16 %v6655
    %v8785 = vunpack.c.h.b16 %v6655
    %v8786 = vunpack.c.l.b16 %v6656
    %v8787 = vunpack.c.l.b16 %v6657
    %v8788 = vunpack.c.h.b16 %v6657
    %v8789 = vunpack.c.l.b16 %v6658
    %v8790 = vunpack.c.h.b16 %v6658
    %v8791 = vunpack.c.l.b16 %v6659
    %v8792 = vunpack.c.h.b16 %v6659
    %v8793 = vunpack.c.l.b16 %v6660
    %v8794 = vunpack.c.l.b16 %v6661
    %v8795 = vunpack.c.h.b16 %v6661
    %v8796 = vunpack.c.l.b16 %v6662
    %v8797 = vunpack.c.h.b16 %v6662
    %v8798 = vunpack.c.l.b16 %v6663
    %v8799 = vunpack.c.h.b16 %v6663
    %v8800 = vunpack.c.l.b16 %v6664
    %v8801 = vunpack.c.l.b16 %v6665
    %v8802 = vunpack.c.h.b16 %v6665
    %v8803 = vunpack.c.l.b16 %v6666
    %v8804 = vunpack.c.h.b16 %v6666
    %v8805 = vunpack.c.l.b16 %v6667
    %v8806 = vunpack.c.h.b16 %v6667
    %v8807 = vunpack.c.l.b16 %v6668
    %v8808 = vunpack.c.l.b16 %v6669
    %v8809 = vunpack.c.h.b16 %v6669
    %v8810 = vunpack.c.l.b16 %v6670
    %v8811 = vunpack.c.h.b16 %v6670
    %v8812 = vunpack.c.l.b16 %v6671
    %v8813 = vunpack.c.h.b16 %v6671
    %v8814 = vunpack.c.l.b16 %v6672
    %v8815 = vunpack.c.l.b16 %v6673
    %v8816 = vunpack.c.h.b16 %v6673
    %v8817 = vunpack.c.l.b16 %v6674
    %v8818 = vunpack.c.h.b16 %v6674
    %v8819 = vunpack.c.l.b16 %v6675
    %v8820 = vunpack.c.h.b16 %v6675
    %v8821 = vunpack.c.l.b16 %v6676
    %v8822 = vunpack.c.l.b16 %v6677
    %v8823 = vunpack.c.h.b16 %v6677
    %v8824 = vunpack.c.l.b16 %v6678
    %v8825 = vunpack.c.h.b16 %v6678
    %v8826 = vunpack.c.l.b16 %v6679
    %v8827 = vunpack.c.h.b16 %v6679
    %v8828 = vunpack.c.l.b16 %v6680
    %v8829 = vunpack.c.l.b16 %v6681
    %v8830 = vunpack.c.h.b16 %v6681
    %v8831 = vunpack.c.l.b16 %v6682
    %v8832 = vunpack.c.h.b16 %v6682
    %v8833 = vunpack.c.l.b16 %v6683
    %v8834 = vunpack.c.h.b16 %v6683
    %v8835 = vunpack.c.l.b16 %v6684
    %v8836 = vunpack.c.l.b16 %v6685
    %v8837 = vunpack.c.h.b16 %v6685
    %v8838 = vunpack.c.l.b16 %v6686
    %v8839 = vunpack.c.h.b16 %v6686
    %v8840 = vunpack.c.l.b16 %v6687
    %v8841 = vunpack.c.h.b16 %v6687
    %v8842 = vunpack.c.l.b16 %v6688
    %v8843 = vunpack.c.l.b16 %v6689
    %v8844 = vunpack.c.h.b16 %v6689
    %v8845 = vunpack.c.l.b16 %v6690
    %v8846 = vunpack.c.h.b16 %v6690
    %v8847 = vunpack.c.l.b16 %v6691
    %v8848 = vunpack.c.h.b16 %v6691
    %v8849 = vunpack.c.l.b16 %v6692
    %v8850 = vunpack.c.l.b16 %v6693
    %v8851 = vunpack.c.h.b16 %v6693
    %v8852 = vunpack.c.l.b16 %v6694
    %v8853 = vunpack.c.h.b16 %v6694
    %v8854 = vunpack.c.l.b16 %v6695
    %v8855 = vunpack.c.h.b16 %v6695
    %v8856 = vunpack.c.l.b16 %v6696
    %v8857 = vunpack.c.l.b16 %v6697
    %v8858 = vunpack.c.h.b16 %v6697
    %v8859 = vunpack.c.l.b16 %v6698
    %v8860 = vunpack.c.h.b16 %v6698
    %v8861 = vunpack.c.l.b16 %v6699
    %v8862 = vunpack.c.h.b16 %v6699
    %v8863 = vunpack.c.l.b16 %v6700
    %v8864 = vunpack.c.l.b16 %v6701
    %v8865 = vunpack.c.h.b16 %v6701
    %v8866 = vunpack.c.l.b16 %v6702
    %v8867 = vunpack.c.h.b16 %v6702
    %v8868 = vunpack.c.l.b16 %v6703
    %v8869 = vunpack.c.h.b16 %v6703
    %v8870 = vunpack.c.l.b16 %v6704
    %v8871 = vunpack.c.l.b16 %v6705
    %v8872 = vunpack.c.h.b16 %v6705
    %v8873 = vunpack.c.l.b16 %v6706
    %v8874 = vunpack.c.h.b16 %v6706
    %v8875 = vunpack.c.l.b16 %v6707
    %v8876 = vunpack.c.h.b16 %v6707
    %v8877 = vunpack.c.l.b16 %v6708
    %v8878 = vunpack.c.l.b16 %v6709
    %v8879 = vunpack.c.h.b16 %v6709
    %v8880 = vunpack.c.l.b16 %v6710
    %v8881 = vunpack.c.h.b16 %v6710
    %v8882 = vunpack.c.l.b16 %v6711
    %v8883 = vunpack.c.h.b16 %v6711
    %v8884 = vunpack.c.l.b16 %v6712
    %v8885 = vunpack.c.l.b16 %v6713
    %v8886 = vunpack.c.h.b16 %v6713
    %v8887 = vunpack.c.l.b16 %v6714
    %v8888 = vunpack.c.h.b16 %v6714
    %v8889 = vunpack.c.l.b16 %v6715
    %v8890 = vunpack.c.h.b16 %v6715
    %v8891 = vunpack.c.l.b16 %v6716
    %v8892 = vunpack.c.l.b16 %v6717
    %v8893 = vunpack.c.h.b16 %v6717
    %v8894 = vunpack.c.l.b16 %v6718
    %v8895 = vunpack.c.h.b16 %v6718
    %v8896 = vunpack.c.l.b16 %v6719
    %v8897 = vunpack.c.h.b16 %v6719
    %v8898 = vunpack.c.l.b16 %v6720
    %v8899 = vunpack.c.l.b16 %v6721
    %v8900 = vunpack.c.h.b16 %v6721
    %v8901 = vunpack.c.l.b16 %v6722
    %v8902 = vunpack.c.h.b16 %v6722
    %v8903 = vunpack.c.l.b16 %v6723
    %v8904 = vunpack.c.h.b16 %v6723
    %v8905 = vunpack.c.l.b16 %v6724
    %v8906 = vunpack.c.l.b16 %v6725
    %v8907 = vunpack.c.h.b16 %v6725
    %v8908 = vunpack.c.l.b16 %v6726
    %v8909 = vunpack.c.h.b16 %v6726
    %v8910 = vunpack.c.l.b16 %v6727
    %v8911 = vunpack.c.h.b16 %v6727
    %v8912 = vunpack.c.l.b16 %v6728
    %v8913 = vunpack.c.l.b16 %v6729
    %v8914 = vunpack.c.h.b16 %v6729
    %v8915 = vunpack.c.l.b16 %v6730
    %v8916 = vunpack.c.h.b16 %v6730
    %v8917 = vunpack.c.l.b16 %v6731
    %v8918 = vunpack.c.h.b16 %v6731
    %v8919 = vunpack.c.l.b16 %v6732
    %v8920 = vunpack.c.l.b16 %v6733
    %v8921 = vunpack.c.h.b16 %v6733
    %v8922 = vunpack.c.l.b16 %v6734
    %v8923 = vunpack.c.h.b16 %v6734
    %v8924 = vunpack.c.l.b16 %v6735
    %v8925 = vunpack.c.h.b16 %v6735
    %v8926 = vunpack.c.l.b16 %v6736
    %v8927 = vunpack.c.l.b16 %v6737
    %v8928 = vunpack.c.h.b16 %v6737
    %v8929 = vunpack.c.l.b16 %v6738
    %v8930 = vunpack.c.h.b16 %v6738
    %v8931 = vunpack.c.l.b16 %v6739
    %v8932 = vunpack.c.h.b16 %v6739
    %v8933 = vunpack.c.l.b16 %v6740
    %v8934 = vunpack.c.l.b16 %v6741
    %v8935 = vunpack.c.h.b16 %v6741
    %v8936 = vunpack.c.l.b16 %v6742
    %v8937 = vunpack.c.h.b16 %v6742
    %v8938 = vunpack.c.l.b16 %v6743
    %v8939 = vunpack.c.h.b16 %v6743
    %v8940 = vunpack.c.l.b16 %v6744
    %v8941 = vunpack.c.l.b16 %v6745
    %v8942 = vunpack.c.h.b16 %v6745
    %v8943 = vunpack.c.l.b16 %v6746
    %v8944 = vunpack.c.h.b16 %v6746
    %v8945 = vunpack.c.l.b16 %v6747
    %v8946 = vunpack.c.h.b16 %v6747
    %v8947 = vunpack.c.l.b16 %v6748
    %v8948 = vunpack.c.l.b16 %v6749
    %v8949 = vunpack.c.h.b16 %v6749
    %v8950 = vunpack.c.l.b16 %v6750
    %v8951 = vunpack.c.h.b16 %v6750
    %v8952 = vunpack.c.l.b16 %v6751
    %v8953 = vunpack.c.h.b16 %v6751
    %v8954 = vunpack.c.l.b16 %v6752
    %v8955 = vunpack.c.l.b16 %v6753
    %v8956 = vunpack.c.h.b16 %v6753
    %v8957 = vunpack.c.l.b16 %v6754
    %v8958 = vunpack.c.h.b16 %v6754
    %v8959 = vunpack.c.l.b16 %v6755
    %v8960 = vunpack.c.h.b16 %v6755
    %v8961 = vunpack.c.l.b16 %v6756
    %v8962 = vunpack.c.l.b16 %v6757
    %v8963 = vunpack.c.h.b16 %v6757
    %v8964 = vunpack.c.l.b16 %v6758
    %v8965 = vunpack.c.h.b16 %v6758
    %v8966 = vunpack.c.l.b16 %v6759
    %v8967 = vunpack.c.h.b16 %v6759
    %v8968 = vunpack.c.l.b16 %v6760
    %v8969 = vunpack.c.l.b16 %v6761
    %v8970 = vunpack.c.h.b16 %v6761
    %v8971 = vunpack.c.l.b16 %v6762
    %v8972 = vunpack.c.h.b16 %v6762
    %v8973 = vunpack.c.l.b16 %v6763
    %v8974 = vunpack.c.h.b16 %v6763
    %v8975 = vunpack.c.l.b16 %v6764
    %v8976 = vunpack.c.l.b16 %v6765
    %v8977 = vunpack.c.h.b16 %v6765
    %v8978 = vunpack.c.l.b16 %v6766
    %v8979 = vunpack.c.h.b16 %v6766
    %v8980 = vunpack.c.l.b16 %v6767
    %v8981 = vunpack.c.h.b16 %v6767
    %v8982 = vunpack.c.l.b16 %v6768
    %v8983 = vunpack.c.l.b16 %v6769
    %v8984 = vunpack.c.h.b16 %v6769
    %v8985 = vunpack.c.l.b16 %v6770
    %v8986 = vunpack.c.h.b16 %v6770
    %v8987 = vunpack.c.l.b16 %v6771
    %v8988 = vunpack.c.h.b16 %v6771
    %v8989 = vunpack.c.l.b16 %v6772
    %v8990 = vunpack.c.l.b16 %v6773
    %v8991 = vunpack.c.h.b16 %v6773
    %v8992 = vunpack.c.l.b16 %v6774
    %v8993 = vunpack.c.h.b16 %v6774
    %v8994 = vunpack.c.l.b16 %v6775
    %v8995 = vunpack.c.h.b16 %v6775
    %v8996 = vunpack.c.l.b16 %v6776
    %v8997 = vunpack.c.l.b16 %v6777
    %v8998 = vunpack.c.h.b16 %v6777
    %v8999 = vunpack.c.l.b16 %v6778
    %v9000 = vunpack.c.h.b16 %v6778
    %v9001 = vunpack.c.l.b16 %v6779
    %v9002 = vunpack.c.h.b16 %v6779
    %v9003 = vunpack.c.l.b16 %v6780
    %v9004 = vunpack.c.l.b16 %v6781
    %v9005 = vunpack.c.h.b16 %v6781
    %v9006 = vunpack.c.l.b16 %v6782
    %v9007 = vunpack.c.h.b16 %v6782
    %v9008 = vunpack.c.l.b16 %v6783
    %v9009 = vunpack.c.h.b16 %v6783
    %v9010 = vunpack.c.l.b16 %v6784
    %v9011 = vunpack.c.l.b16 %v6785
    %v9012 = vunpack.c.h.b16 %v6785
    %v9013 = vunpack.c.l.b16 %v6786
    %v9014 = vunpack.c.h.b16 %v6786
    %v9015 = vunpack.c.l.b16 %v6787
    %v9016 = vunpack.c.h.b16 %v6787
    %v9017 = vunpack.c.l.b16 %v6788
    %v9018 = vunpack.c.l.b16 %v6789
    %v9019 = vunpack.c.h.b16 %v6789
    %v9020 = vunpack.c.l.b16 %v6790
    %v9021 = vunpack.c.h.b16 %v6790
    %v9022 = vunpack.c.l.b16 %v6791
    %v9023 = vunpack.c.h.b16 %v6791
    %v9024 = vunpack.c.l.b16 %v6792
    %v9025 = vunpack.c.l.b16 %v6793
    %v9026 = vunpack.c.h.b16 %v6793
    %v9027 = vunpack.c.l.b16 %v6794
    %v9028 = vunpack.c.h.b16 %v6794
    %v9029 = vunpack.c.l.b16 %v6795
    %v9030 = vunpack.c.h.b16 %v6795
    %v9031 = vunpack.c.l.b16 %v6796
    %v9032 = vunpack.c.l.b16 %v6797
    %v9033 = vunpack.c.h.b16 %v6797
    %v9034 = vunpack.c.l.b16 %v6798
    %v9035 = vunpack.c.h.b16 %v6798
    %v9036 = vunpack.c.l.b16 %v6799
    %v9037 = vunpack.c.h.b16 %v6799
    %v9038 = vunpack.c.l.b16 %v6800
    %v9039 = vunpack.c.l.b16 %v6801
    %v9040 = vunpack.c.h.b16 %v6801
    %v9041 = vunpack.c.l.b16 %v6802
    %v9042 = vunpack.c.h.b16 %v6802
    %v9043 = vunpack.c.l.b16 %v6803
    %v9044 = vunpack.c.h.b16 %v6803
    %v9045 = vunpack.c.l.b16 %v6804
    %v9046 = vunpack.c.l.b16 %v6805
    %v9047 = vunpack.c.h.b16 %v6805
    %v9048 = vunpack.c.l.b16 %v6806
    %v9049 = vunpack.c.h.b16 %v6806
    %v9050 = vunpack.c.l.b16 %v6807
    %v9051 = vunpack.c.h.b16 %v6807
    %v9052 = vunpack.c.l.b16 %v6808
    %v9053 = vunpack.c.l.b16 %v6809
    %v9054 = vunpack.c.h.b16 %v6809
    %v9055 = vunpack.c.l.b16 %v6810
    %v9056 = vunpack.c.h.b16 %v6810
    %v9057 = vunpack.c.l.b16 %v6811
    %v9058 = vunpack.c.h.b16 %v6811
    %v9059 = vunpack.c.l.b16 %v6812
    %v9060 = vunpack.c.l.b16 %v6813
    %v9061 = vunpack.c.h.b16 %v6813
    %v9062 = vunpack.c.l.b16 %v6814
    %v9063 = vunpack.c.h.b16 %v6814
    %v9064 = vunpack.c.l.b16 %v6815
    %v9065 = vunpack.c.h.b16 %v6815
    %v9066 = vunpack.c.l.b16 %v6816
    %v9067 = vunpack.c.l.b16 %v6817
    %v9068 = vunpack.c.h.b16 %v6817
    %v9069 = vunpack.c.l.b16 %v6818
    %v9070 = vunpack.c.h.b16 %v6818
    %v9071 = vunpack.c.l.b16 %v6819
    %v9072 = vunpack.c.h.b16 %v6819
    %v9073 = vunpack.c.l.b16 %v6820
    %v9074 = vunpack.c.l.b16 %v6821
    %v9075 = vunpack.c.h.b16 %v6821
    %v9076 = vunpack.c.l.b16 %v6822
    %v9077 = vunpack.c.h.b16 %v6822
    %v9078 = vunpack.c.l.b16 %v6823
    %v9079 = vunpack.c.h.b16 %v6823
    %v9080 = vunpack.c.l.b16 %v6824
    %v9081 = vunpack.c.l.b16 %v6825
    %v9082 = vunpack.c.h.b16 %v6825
    %v9083 = vunpack.c.l.b16 %v6826
    %v9084 = vunpack.c.h.b16 %v6826
    %v9085 = vunpack.c.l.b16 %v6827
    %v9086 = vunpack.c.h.b16 %v6827
    %v9087 = vunpack.c.l.b16 %v6828
    %v9088 = vunpack.c.l.b16 %v6829
    %v9089 = vunpack.c.h.b16 %v6829
    %v9090 = vunpack.c.l.b16 %v6830
    %v9091 = vunpack.c.h.b16 %v6830
    %v9092 = vunpack.c.l.b16 %v6831
    %v9093 = vunpack.c.h.b16 %v6831
    %v9094 = vunpack.c.l.b16 %v6832
    %v9095 = vunpack.c.l.b16 %v6833
    %v9096 = vunpack.c.h.b16 %v6833
    %v9097 = vunpack.c.l.b16 %v6834
    %v9098 = vunpack.c.h.b16 %v6834
    %v9099 = vunpack.c.l.b16 %v6835
    %v9100 = vunpack.c.h.b16 %v6835
    %v9101 = vunpack.c.l.b16 %v6836
    %v9102 = vunpack.c.l.b16 %v6837
    %v9103 = vunpack.c.h.b16 %v6837
    %v9104 = vunpack.c.l.b16 %v6838
    %v9105 = vunpack.c.h.b16 %v6838
    %v9106 = vunpack.c.l.b16 %v6839
    %v9107 = vunpack.c.h.b16 %v6839
    %v9108 = vunpack.c.l.b16 %v6840
    %v9109 = vunpack.c.l.b16 %v6841
    %v9110 = vunpack.c.h.b16 %v6841
    %v9111 = vunpack.c.l.b16 %v6842
    %v9112 = vunpack.c.h.b16 %v6842
    %v9113 = vunpack.c.l.b16 %v6843
    %v9114 = vunpack.c.h.b16 %v6843
    %v9115 = vunpack.c.l.b16 %v6844
    %v9116 = vunpack.c.l.b16 %v6845
    %v9117 = vunpack.c.h.b16 %v6845
    %v9118 = vunpack.c.l.b16 %v6846
    %v9119 = vunpack.c.h.b16 %v6846
    %v9120 = vunpack.c.l.b16 %v6847
    %v9121 = vunpack.c.h.b16 %v6847
    %v9122 = vunpack.c.l.b16 %v6848
    %v9123 = vunpack.c.l.b16 %v6849
    %v9124 = vunpack.c.h.b16 %v6849
    %v9125 = vunpack.c.l.b16 %v6850
    %v9126 = vunpack.c.h.b16 %v6850
    %v9127 = vunpack.c.l.b16 %v6851
    %v9128 = vunpack.c.h.b16 %v6851
    %v9129 = vunpack.c.l.b16 %v6852
    %v9130 = vunpack.c.l.b16 %v6853
    %v9131 = vunpack.c.h.b16 %v6853
    %v9132 = vunpack.c.l.b16 %v6854
    %v9133 = vunpack.c.h.b16 %v6854
    %v9134 = vunpack.c.l.b16 %v6855
    %v9135 = vunpack.c.h.b16 %v6855
    %v9136 = vunpack.c.l.b16 %v6856
    %v9137 = vunpack.c.l.b16 %v6857
    %v9138 = vunpack.c.h.b16 %v6857
    %v9139 = vunpack.c.l.b16 %v6858
    %v9140 = vunpack.c.h.b16 %v6858
    %v9141 = vunpack.c.l.b16 %v6859
    %v9142 = vunpack.c.h.b16 %v6859
    %v9143 = vunpack.c.l.b16 %v6860
    %v9144 = vunpack.c.l.b16 %v6861
    %v9145 = vunpack.c.h.b16 %v6861
    %v9146 = vunpack.c.l.b16 %v6862
    %v9147 = vunpack.c.h.b16 %v6862
    %v9148 = vunpack.c.l.b16 %v6863
    %v9149 = vunpack.c.h.b16 %v6863
    %v9150 = vunpack.c.l.b16 %v6864
    %v9151 = vunpack.c.l.b16 %v6865
    %v9152 = vunpack.c.h.b16 %v6865
    %v9153 = vunpack.c.l.b16 %v6866
    %v9154 = vunpack.c.h.b16 %v6866
    %v9155 = vunpack.c.l.b16 %v6867
    %v9156 = vunpack.c.h.b16 %v6867
    %v9157 = vunpack.c.l.b16 %v6868
    %v9158 = vunpack.c.l.b16 %v6869
    %v9159 = vunpack.c.h.b16 %v6869
    %v9160 = vunpack.c.l.b16 %v6870
    %v9161 = vunpack.c.h.b16 %v6870
    %v9162 = vunpack.c.l.b16 %v6871
    %v9163 = vunpack.c.h.b16 %v6871
    %v9164 = vunpack.c.l.b16 %v6872
    %v9165 = vunpack.c.l.b16 %v6873
    %v9166 = vunpack.c.h.b16 %v6873
    %v9167 = vunpack.c.l.b16 %v6874
    %v9168 = vunpack.c.h.b16 %v6874
    %v9169 = vunpack.c.l.b16 %v6875
    %v9170 = vunpack.c.h.b16 %v6875
    %v9171 = vunpack.c.l.b16 %v6876
    %v9172 = vunpack.c.l.b16 %v6877
    %v9173 = vunpack.c.h.b16 %v6877
    %v9174 = vunpack.c.l.b16 %v6878
    %v9175 = vunpack.c.h.b16 %v6878
    %v9176 = vunpack.c.l.b16 %v6879
    %v9177 = vunpack.c.h.b16 %v6879
    %v9178 = vunpack.c.l.b16 %v6880
    %v9179 = vunpack.c.l.b16 %v6881
    %v9180 = vunpack.c.h.b16 %v6881
    %v9181 = vunpack.c.l.b16 %v6882
    %v9182 = vunpack.c.h.b16 %v6882
    %v9183 = vunpack.c.l.b16 %v6883
    %v9184 = vunpack.c.h.b16 %v6883
    %v9185 = vunpack.c.l.b16 %v6884
    %v9186 = vunpack.c.l.b16 %v6885
    %v9187 = vunpack.c.h.b16 %v6885
    %v9188 = vunpack.c.l.b16 %v6886
    %v9189 = vunpack.c.h.b16 %v6886
    %v9190 = vunpack.c.l.b16 %v6887
    %v9191 = vunpack.c.h.b16 %v6887
    %v9192 = vunpack.c.l.b16 %v6888
    %v9193 = vunpack.c.l.b16 %v6889
    %v9194 = vunpack.c.h.b16 %v6889
    %v9195 = vunpack.c.l.b16 %v6890
    %v9196 = vunpack.c.h.b16 %v6890
    %v9197 = vunpack.c.l.b16 %v6891
    %v9198 = vunpack.c.h.b16 %v6891
    %v9199 = vunpack.c.l.b16 %v6892
    %v9200 = vunpack.c.l.b16 %v6893
    %v9201 = vunpack.c.h.b16 %v6893
    %v9202 = vunpack.c.l.b16 %v6894
    %v9203 = vunpack.c.h.b16 %v6894
    %v9204 = vunpack.c.l.b16 %v6895
    %v9205 = vunpack.c.h.b16 %v6895
    %v9206 = vunpack.c.l.b16 %v6896
    %v9207 = vunpack.c.l.b16 %v6897
    %v9208 = vunpack.c.h.b16 %v6897
    %v9209 = vunpack.c.l.b16 %v6898
    %v9210 = vunpack.c.h.b16 %v6898
    %v9211 = vunpack.c.l.b16 %v6899
    %v9212 = vunpack.c.h.b16 %v6899
    %v9213 = vunpack.c.l.b16 %v6900
    %v9214 = vunpack.c.l.b16 %v6901
    %v9215 = vunpack.c.h.b16 %v6901
    %v9216 = vunpack.c.l.b16 %v6902
    %v9217 = vunpack.c.h.b16 %v6902
    %v9218 = vunpack.c.l.b16 %v6903
    %v9219 = vunpack.c.h.b16 %v6903
    %v9220 = vunpack.c.l.b16 %v6904
    %v9221 = vunpack.c.l.b16 %v6905
    %v9222 = vunpack.c.h.b16 %v6905
    %v9223 = vunpack.c.l.b16 %v6906
    %v9224 = vunpack.c.h.b16 %v6906
    %v9225 = vunpack.c.l.b16 %v6907
    %v9226 = vunpack.c.h.b16 %v6907
    %v9227 = vunpack.c.l.b16 %v6908
    %v9228 = vunpack.c.l.b16 %v6909
    %v9229 = vunpack.c.h.b16 %v6909
    %v9230 = vunpack.c.l.b16 %v6910
    %v9231 = vunpack.c.h.b16 %v6910
    %v9232 = vunpack.c.l.b16 %v6911
    %v9233 = vunpack.c.h.b16 %v6911
    %v9234 = vunpack.c.l.b16 %v6912
    %v9235 = vunpack.c.l.b16 %v6913
    %v9236 = vunpack.c.h.b16 %v6913
    %v9237 = vunpack.c.l.b16 %v6914
    %v9238 = vunpack.c.h.b16 %v6914
    %v9239 = vunpack.c.l.b16 %v6915
    %v9240 = vunpack.c.h.b16 %v6915
    %v9241 = vunpack.c.l.b16 %v6916
    %v9242 = vpack.c.b16 %v7793, %v7786
    %v9243 = vpack.c.b16 %v7794, %v7787
    %v9244 = vpack.c.b16 %v7795, %v7788
    %v9245 = vpack.c.b16 %v7796, %v7789
    %v9246 = vpack.c.b16 %v7797, %v7790
    %v9247 = vpack.c.b16 %v7798, %v7791
    %v9248 = vpack.c.b16 %v7799, %v7792
    %v9249 = vpack.c.b16 %v7807, %v7800
    %v9250 = vpack.c.b16 %v7808, %v7801
    %v9251 = vpack.c.b16 %v7809, %v7802
    %v9252 = vpack.c.b16 %v7810, %v7803
    %v9253 = vpack.c.b16 %v7811, %v7804
    %v9254 = vpack.c.b16 %v7812, %v7805
    %v9255 = vpack.c.b16 %v7813, %v7806
    %v9256 = vpack.c.b16 %v7821, %v7814
    %v9257 = vpack.c.b16 %v7822, %v7815
    %v9258 = vpack.c.b16 %v7823, %v7816
    %v9259 = vpack.c.b16 %v7824, %v7817
    %v9260 = vpack.c.b16 %v7825, %v7818
    %v9261 = vpack.c.b16 %v7826, %v7819
    %v9262 = vpack.c.b16 %v7827, %v7820
    %v9263 = vpack.c.b16 %v7835, %v7828
    %v9264 = vpack.c.b16 %v7836, %v7829
    %v9265 = vpack.c.b16 %v7837, %v7830
    %v9266 = vpack.c.b16 %v7838, %v7831
    %v9267 = vpack.c.b16 %v7839, %v7832
    %v9268 = vpack.c.b16 %v7840, %v7833
    %v9269 = vpack.c.b16 %v7841, %v7834
    %v9270 = vpack.c.b16 %v7849, %v7842
    %v9271 = vpack.c.b16 %v7850, %v7843
    %v9272 = vpack.c.b16 %v7851, %v7844
    %v9273 = vpack.c.b16 %v7852, %v7845
    %v9274 = vpack.c.b16 %v7853, %v7846
    %v9275 = vpack.c.b16 %v7854, %v7847
    %v9276 = vpack.c.b16 %v7855, %v7848
    %v9277 = vpack.c.b16 %v7863, %v7856
    %v9278 = vpack.c.b16 %v7864, %v7857
    %v9279 = vpack.c.b16 %v7865, %v7858
    %v9280 = vpack.c.b16 %v7866, %v7859
    %v9281 = vpack.c.b16 %v7867, %v7860
    %v9282 = vpack.c.b16 %v7868, %v7861
    %v9283 = vpack.c.b16 %v7869, %v7862
    %v9284 = vpack.c.b16 %v7877, %v7870
    %v9285 = vpack.c.b16 %v7878, %v7871
    %v9286 = vpack.c.b16 %v7879, %v7872
    %v9287 = vpack.c.b16 %v7880, %v7873
    %v9288 = vpack.c.b16 %v7881, %v7874
    %v9289 = vpack.c.b16 %v7882, %v7875
    %v9290 = vpack.c.b16 %v7883, %v7876
    %v9291 = vpack.c.b16 %v7891, %v7884
    %v9292 = vpack.c.b16 %v7892, %v7885
    %v9293 = vpack.c.b16 %v7893, %v7886
    %v9294 = vpack.c.b16 %v7894, %v7887
    %v9295 = vpack.c.b16 %v7895, %v7888
    %v9296 = vpack.c.b16 %v7896, %v7889
    %v9297 = vpack.c.b16 %v7897, %v7890
    %v9298 = vpack.c.b16 %v7905, %v7898
    %v9299 = vpack.c.b16 %v7906, %v7899
    %v9300 = vpack.c.b16 %v7907, %v7900
    %v9301 = vpack.c.b16 %v7908, %v7901
    %v9302 = vpack.c.b16 %v7909, %v7902
    %v9303 = vpack.c.b16 %v7910, %v7903
    %v9304 = vpack.c.b16 %v7911, %v7904
    %v9305 = vpack.c.b16 %v7919, %v7912
    %v9306 = vpack.c.b16 %v7920, %v7913
    %v9307 = vpack.c.b16 %v7921, %v7914
    %v9308 = vpack.c.b16 %v7922, %v7915
    %v9309 = vpack.c.b16 %v7923, %v7916
    %v9310 = vpack.c.b16 %v7924, %v7917
    %v9311 = vpack.c.b16 %v7925, %v7918
    %v9312 = vpack.c.b16 %v7933, %v7926
    %v9313 = vpack.c.b16 %v7934, %v7927
    %v9314 = vpack.c.b16 %v7935, %v7928
    %v9315 = vpack.c.b16 %v7936, %v7929
    %v9316 = vpack.c.b16 %v7937, %v7930
    %v9317 = vpack.c.b16 %v7938, %v7931
    %v9318 = vpack.c.b16 %v7939, %v7932
    %v9319 = vpack.c.b16 %v7947, %v7940
    %v9320 = vpack.c.b16 %v7948, %v7941
    %v9321 = vpack.c.b16 %v7949, %v7942
    %v9322 = vpack.c.b16 %v7950, %v7943
    %v9323 = vpack.c.b16 %v7951, %v7944
    %v9324 = vpack.c.b16 %v7952, %v7945
    %v9325 = vpack.c.b16 %v7953, %v7946
    %v9326 = vpack.c.b16 %v7961, %v7954
    %v9327 = vpack.c.b16 %v7962, %v7955
    %v9328 = vpack.c.b16 %v7963, %v7956
    %v9329 = vpack.c.b16 %v7964, %v7957
    %v9330 = vpack.c.b16 %v7965, %v7958
    %v9331 = vpack.c.b16 %v7966, %v7959
    %v9332 = vpack.c.b16 %v7967, %v7960
    %v9333 = vpack.c.b16 %v7975, %v7968
    %v9334 = vpack.c.b16 %v7976, %v7969
    %v9335 = vpack.c.b16 %v7977, %v7970
    %v9336 = vpack.c.b16 %v7978, %v7971
    %v9337 = vpack.c.b16 %v7979, %v7972
    %v9338 = vpack.c.b16 %v7980, %v7973
    %v9339 = vpack.c.b16 %v7981, %v7974
    %v9340 = vpack.c.b16 %v7989, %v7982
    %v9341 = vpack.c.b16 %v7990, %v7983
    %v9342 = vpack.c.b16 %v7991, %v7984
    %v9343 = vpack.c.b16 %v7992, %v7985
    %v9344 = vpack.c.b16 %v7993, %v7986
    %v9345 = vpack.c.b16 %v7994, %v7987
    %v9346 = vpack.c.b16 %v7995, %v7988
    %v9347 = vpack.c.b16 %v8003, %v7996
    %v9348 = vpack.c.b16 %v8004, %v7997
    %v9349 = vpack.c.b16 %v8005, %v7998
    %v9350 = vpack.c.b16 %v8006, %v7999
    %v9351 = vpack.c.b16 %v8007, %v8000
    %v9352 = vpack.c.b16 %v8008, %v8001
    %v9353 = vpack.c.b16 %v8009, %v8002
    %v9354 = vpack.c.b16 %v8017, %v8010
    %v9355 = vpack.c.b16 %v8018, %v8011
    %v9356 = vpack.c.b16 %v8019, %v8012
    %v9357 = vpack.c.b16 %v8020, %v8013
    %v9358 = vpack.c.b16 %v8021, %v8014
    %v9359 = vpack.c.b16 %v8022, %v8015
    %v9360 = vpack.c.b16 %v8023, %v8016
    %v9361 = vpack.c.b16 %v8031, %v8024
    %v9362 = vpack.c.b16 %v8032, %v8025
    %v9363 = vpack.c.b16 %v8033, %v8026
    %v9364 = vpack.c.b16 %v8034, %v8027
    %v9365 = vpack.c.b16 %v8035, %v8028
    %v9366 = vpack.c.b16 %v8036, %v8029
    %v9367 = vpack.c.b16 %v8037, %v8030
    %v9368 = vpack.c.b16 %v8045, %v8038
    %v9369 = vpack.c.b16 %v8046, %v8039
    %v9370 = vpack.c.b16 %v8047, %v8040
    %v9371 = vpack.c.b16 %v8048, %v8041
    %v9372 = vpack.c.b16 %v8049, %v8042
    %v9373 = vpack.c.b16 %v8050, %v8043
    %v9374 = vpack.c.b16 %v8051, %v8044
    %v9375 = vpack.c.b16 %v8059, %v8052
    %v9376 = vpack.c.b16 %v8060, %v8053
    %v9377 = vpack.c.b16 %v8061, %v8054
    %v9378 = vpack.c.b16 %v8062, %v8055
    %v9379 = vpack.c.b16 %v8063, %v8056
    %v9380 = vpack.c.b16 %v8064, %v8057
    %v9381 = vpack.c.b16 %v8065, %v8058
    %v9382 = vpack.c.b16 %v8073, %v8066
    %v9383 = vpack.c.b16 %v8074, %v8067
    %v9384 = vpack.c.b16 %v8075, %v8068
    %v9385 = vpack.c.b16 %v8076, %v8069
    %v9386 = vpack.c.b16 %v8077, %v8070
    %v9387 = vpack.c.b16 %v8078, %v8071
    %v9388 = vpack.c.b16 %v8079, %v8072
    %v9389 = vpack.c.b16 %v8087, %v8080
    %v9390 = vpack.c.b16 %v8088, %v8081
    %v9391 = vpack.c.b16 %v8089, %v8082
    %v9392 = vpack.c.b16 %v8090, %v8083
    %v9393 = vpack.c.b16 %v8091, %v8084
    %v9394 = vpack.c.b16 %v8092, %v8085
    %v9395 = vpack.c.b16 %v8093, %v8086
    %v9396 = vpack.c.b16 %v8101, %v8094
    %v9397 = vpack.c.b16 %v8102, %v8095
    %v9398 = vpack.c.b16 %v8103, %v8096
    %v9399 = vpack.c.b16 %v8104, %v8097
    %v9400 = vpack.c.b16 %v8105, %v8098
    %v9401 = vpack.c.b16 %v8106, %v8099
    %v9402 = vpack.c.b16 %v8107, %v8100
    %v9403 = vpack.c.b16 %v8115, %v8108
    %v9404 = vpack.c.b16 %v8116, %v8109
    %v9405 = vpack.c.b16 %v8117, %v8110
    %v9406 = vpack.c.b16 %v8118, %v8111
    %v9407 = vpack.c.b16 %v8119, %v8112
    %v9408 = vpack.c.b16 %v8120, %v8113
    %v9409 = vpack.c.b16 %v8121, %v8114
    %v9410 = vpack.c.b16 %v8129, %v8122
    %v9411 = vpack.c.b16 %v8130, %v8123
    %v9412 = vpack.c.b16 %v8131, %v8124
    %v9413 = vpack.c.b16 %v8132, %v8125
    %v9414 = vpack.c.b16 %v8133, %v8126
    %v9415 = vpack.c.b16 %v8134, %v8127
    %v9416 = vpack.c.b16 %v8135, %v8128
    %v9417 = vpack.c.b16 %v8143, %v8136
    %v9418 = vpack.c.b16 %v8144, %v8137
    %v9419 = vpack.c.b16 %v8145, %v8138
    %v9420 = vpack.c.b16 %v8146, %v8139
    %v9421 = vpack.c.b16 %v8147, %v8140
    %v9422 = vpack.c.b16 %v8148, %v8141
    %v9423 = vpack.c.b16 %v8149, %v8142
    %v9424 = vpack.c.b16 %v8157, %v8150
    %v9425 = vpack.c.b16 %v8158, %v8151
    %v9426 = vpack.c.b16 %v8159, %v8152
    %v9427 = vpack.c.b16 %v8160, %v8153
    %v9428 = vpack.c.b16 %v8161, %v8154
    %v9429 = vpack.c.b16 %v8162, %v8155
    %v9430 = vpack.c.b16 %v8163, %v8156
    %v9431 = vpack.c.b16 %v8171, %v8164
    %v9432 = vpack.c.b16 %v8172, %v8165
    %v9433 = vpack.c.b16 %v8173, %v8166
    %v9434 = vpack.c.b16 %v8174, %v8167
    %v9435 = vpack.c.b16 %v8175, %v8168
    %v9436 = vpack.c.b16 %v8176, %v8169
    %v9437 = vpack.c.b16 %v8177, %v8170
    %v9438 = vpack.c.b16 %v8185, %v8178
    %v9439 = vpack.c.b16 %v8186, %v8179
    %v9440 = vpack.c.b16 %v8187, %v8180
    %v9441 = vpack.c.b16 %v8188, %v8181
    %v9442 = vpack.c.b16 %v8189, %v8182
    %v9443 = vpack.c.b16 %v8190, %v8183
    %v9444 = vpack.c.b16 %v8191, %v8184
    %v9445 = vpack.c.b16 %v8199, %v8192
    %v9446 = vpack.c.b16 %v8200, %v8193
    %v9447 = vpack.c.b16 %v8201, %v8194
    %v9448 = vpack.c.b16 %v8202, %v8195
    %v9449 = vpack.c.b16 %v8203, %v8196
    %v9450 = vpack.c.b16 %v8204, %v8197
    %v9451 = vpack.c.b16 %v8205, %v8198
    %v9452 = vpack.c.b16 %v8213, %v8206
    %v9453 = vpack.c.b16 %v8214, %v8207
    %v9454 = vpack.c.b16 %v8215, %v8208
    %v9455 = vpack.c.b16 %v8216, %v8209
    %v9456 = vpack.c.b16 %v8217, %v8210
    %v9457 = vpack.c.b16 %v8218, %v8211
    %v9458 = vpack.c.b16 %v8219, %v8212
    %v9459 = vpack.c.b16 %v8227, %v8220
    %v9460 = vpack.c.b16 %v8228, %v8221
    %v9461 = vpack.c.b16 %v8229, %v8222
    %v9462 = vpack.c.b16 %v8230, %v8223
    %v9463 = vpack.c.b16 %v8231, %v8224
    %v9464 = vpack.c.b16 %v8232, %v8225
    %v9465 = vpack.c.b16 %v8233, %v8226
    %v9466 = vpack.c.b16 %v8241, %v8234
    %v9467 = vpack.c.b16 %v8242, %v8235
    %v9468 = vpack.c.b16 %v8243, %v8236
    %v9469 = vpack.c.b16 %v8244, %v8237
    %v9470 = vpack.c.b16 %v8245, %v8238
    %v9471 = vpack.c.b16 %v8246, %v8239
    %v9472 = vpack.c.b16 %v8247, %v8240
    %v9473 = vpack.c.b16 %v8255, %v8248
    %v9474 = vpack.c.b16 %v8256, %v8249
    %v9475 = vpack.c.b16 %v8257, %v8250
    %v9476 = vpack.c.b16 %v8258, %v8251
    %v9477 = vpack.c.b16 %v8259, %v8252
    %v9478 = vpack.c.b16 %v8260, %v8253
    %v9479 = vpack.c.b16 %v8261, %v8254
    %v9480 = vpack.c.b16 %v8269, %v8262
    %v9481 = vpack.c.b16 %v8270, %v8263
    %v9482 = vpack.c.b16 %v8271, %v8264
    %v9483 = vpack.c.b16 %v8272, %v8265
    %v9484 = vpack.c.b16 %v8273, %v8266
    %v9485 = vpack.c.b16 %v8274, %v8267
    %v9486 = vpack.c.b16 %v8275, %v8268
    %v9487 = vpack.c.b16 %v8283, %v8276
    %v9488 = vpack.c.b16 %v8284, %v8277
    %v9489 = vpack.c.b16 %v8285, %v8278
    %v9490 = vpack.c.b16 %v8286, %v8279
    %v9491 = vpack.c.b16 %v8287, %v8280
    %v9492 = vpack.c.b16 %v8288, %v8281
    %v9493 = vpack.c.b16 %v8289, %v8282
    %v9494 = vpack.c.b16 %v8297, %v8290
    %v9495 = vpack.c.b16 %v8298, %v8291
    %v9496 = vpack.c.b16 %v8299, %v8292
    %v9497 = vpack.c.b16 %v8300, %v8293
    %v9498 = vpack.c.b16 %v8301, %v8294
    %v9499 = vpack.c.b16 %v8302, %v8295
    %v9500 = vpack.c.b16 %v8303, %v8296
    %v9501 = vpack.c.b16 %v8311, %v8304
    %v9502 = vpack.c.b16 %v8312, %v8305
    %v9503 = vpack.c.b16 %v8313, %v8306
    %v9504 = vpack.c.b16 %v8314, %v8307
    %v9505 = vpack.c.b16 %v8315, %v8308
    %v9506 = vpack.c.b16 %v8316, %v8309
    %v9507 = vpack.c.b16 %v8317, %v8310
    %v9508 = vpack.c.b16 %v8325, %v8318
    %v9509 = vpack.c.b16 %v8326, %v8319
    %v9510 = vpack.c.b16 %v8327, %v8320
    %v9511 = vpack.c.b16 %v8328, %v8321
    %v9512 = vpack.c.b16 %v8329, %v8322
    %v9513 = vpack.c.b16 %v8330, %v8323
    %v9514 = vpack.c.b16 %v8331, %v8324
    %v9515 = vpack.c.b16 %v8339, %v8332
    %v9516 = vpack.c.b16 %v8340, %v8333
    %v9517 = vpack.c.b16 %v8341, %v8334
    %v9518 = vpack.c.b16 %v8342, %v8335
    %v9519 = vpack.c.b16 %v8343, %v8336
    %v9520 = vpack.c.b16 %v8344, %v8337
    %v9521 = vpack.c.b16 %v8345, %v8338
    %v9522 = vpack.c.b16 %v8353, %v8346
    %v9523 = vpack.c.b16 %v8354, %v8347
    %v9524 = vpack.c.b16 %v8355, %v8348
    %v9525 = vpack.c.b16 %v8356, %v8349
    %v9526 = vpack.c.b16 %v8357, %v8350
    %v9527 = vpack.c.b16 %v8358, %v8351
    %v9528 = vpack.c.b16 %v8359, %v8352
    %v9529 = vpack.c.b16 %v8367, %v8360
    %v9530 = vpack.c.b16 %v8368, %v8361
    %v9531 = vpack.c.b16 %v8369, %v8362
    %v9532 = vpack.c.b16 %v8370, %v8363
    %v9533 = vpack.c.b16 %v8371, %v8364
    %v9534 = vpack.c.b16 %v8372, %v8365
    %v9535 = vpack.c.b16 %v8373, %v8366
    %v9536 = vpack.c.b16 %v8381, %v8374
    %v9537 = vpack.c.b16 %v8382, %v8375
    %v9538 = vpack.c.b16 %v8383, %v8376
    %v9539 = vpack.c.b16 %v8384, %v8377
    %v9540 = vpack.c.b16 %v8385, %v8378
    %v9541 = vpack.c.b16 %v8386, %v8379
    %v9542 = vpack.c.b16 %v8387, %v8380
    %v9543 = vpack.c.b16 %v8395, %v8388
    %v9544 = vpack.c.b16 %v8396, %v8389
    %v9545 = vpack.c.b16 %v8397, %v8390
    %v9546 = vpack.c.b16 %v8398, %v8391
    %v9547 = vpack.c.b16 %v8399, %v8392
    %v9548 = vpack.c.b16 %v8400, %v8393
    %v9549 = vpack.c.b16 %v8401, %v8394
    %v9550 = vpack.c.b16 %v8409, %v8402
    %v9551 = vpack.c.b16 %v8410, %v8403
    %v9552 = vpack.c.b16 %v8411, %v8404
    %v9553 = vpack.c.b16 %v8412, %v8405
    %v9554 = vpack.c.b16 %v8413, %v8406
    %v9555 = vpack.c.b16 %v8414, %v8407
    %v9556 = vpack.c.b16 %v8415, %v8408
    %v9557 = vpack.c.b16 %v8423, %v8416
    %v9558 = vpack.c.b16 %v8424, %v8417
    %v9559 = vpack.c.b16 %v8425, %v8418
    %v9560 = vpack.c.b16 %v8426, %v8419
    %v9561 = vpack.c.b16 %v8427, %v8420
    %v9562 = vpack.c.b16 %v8428, %v8421
    %v9563 = vpack.c.b16 %v8429, %v8422
    %v9564 = vpack.c.b16 %v8437, %v8430
    %v9565 = vpack.c.b16 %v8438, %v8431
    %v9566 = vpack.c.b16 %v8439, %v8432
    %v9567 = vpack.c.b16 %v8440, %v8433
    %v9568 = vpack.c.b16 %v8441, %v8434
    %v9569 = vpack.c.b16 %v8442, %v8435
    %v9570 = vpack.c.b16 %v8443, %v8436
    %v9571 = vpack.c.b16 %v8451, %v8444
    %v9572 = vpack.c.b16 %v8452, %v8445
    %v9573 = vpack.c.b16 %v8453, %v8446
    %v9574 = vpack.c.b16 %v8454, %v8447
    %v9575 = vpack.c.b16 %v8455, %v8448
    %v9576 = vpack.c.b16 %v8456, %v8449
    %v9577 = vpack.c.b16 %v8457, %v8450
    %v9578 = vpack.c.b16 %v8465, %v8458
    %v9579 = vpack.c.b16 %v8466, %v8459
    %v9580 = vpack.c.b16 %v8467, %v8460
    %v9581 = vpack.c.b16 %v8468, %v8461
    %v9582 = vpack.c.b16 %v8469, %v8462
    %v9583 = vpack.c.b16 %v8470, %v8463
    %v9584 = vpack.c.b16 %v8471, %v8464
    %v9585 = vpack.c.b16 %v8479, %v8472
    %v9586 = vpack.c.b16 %v8480, %v8473
    %v9587 = vpack.c.b16 %v8481, %v8474
    %v9588 = vpack.c.b16 %v8482, %v8475
    %v9589 = vpack.c.b16 %v8483, %v8476
    %v9590 = vpack.c.b16 %v8484, %v8477
    %v9591 = vpack.c.b16 %v8485, %v8478
    %v9592 = vpack.c.b16 %v8493, %v8486
    %v9593 = vpack.c.b16 %v8494, %v8487
    %v9594 = vpack.c.b16 %v8495, %v8488
    %v9595 = vpack.c.b16 %v8496, %v8489
    %v9596 = vpack.c.b16 %v8497, %v8490
    %v9597 = vpack.c.b16 %v8498, %v8491
    %v9598 = vpack.c.b16 %v8499, %v8492
    %v9599 = vpack.c.b16 %v8507, %v8500
    %v9600 = vpack.c.b16 %v8508, %v8501
    %v9601 = vpack.c.b16 %v8509, %v8502
    %v9602 = vpack.c.b16 %v8510, %v8503
    %v9603 = vpack.c.b16 %v8511, %v8504
    %v9604 = vpack.c.b16 %v8512, %v8505
    %v9605 = vpack.c.b16 %v8513, %v8506
    %v9606 = vpack.c.b16 %v8521, %v8514
    %v9607 = vpack.c.b16 %v8522, %v8515
    %v9608 = vpack.c.b16 %v8523, %v8516
    %v9609 = vpack.c.b16 %v8524, %v8517
    %v9610 = vpack.c.b16 %v8525, %v8518
    %v9611 = vpack.c.b16 %v8526, %v8519
    %v9612 = vpack.c.b16 %v8527, %v8520
    %v9613 = vpack.c.b16 %v8535, %v8528
    %v9614 = vpack.c.b16 %v8536, %v8529
    %v9615 = vpack.c.b16 %v8537, %v8530
    %v9616 = vpack.c.b16 %v8538, %v8531
    %v9617 = vpack.c.b16 %v8539, %v8532
    %v9618 = vpack.c.b16 %v8540, %v8533
    %v9619 = vpack.c.b16 %v8541, %v8534
    %v9620 = vpack.c.b16 %v8549, %v8542
    %v9621 = vpack.c.b16 %v8550, %v8543
    %v9622 = vpack.c.b16 %v8551, %v8544
    %v9623 = vpack.c.b16 %v8552, %v8545
    %v9624 = vpack.c.b16 %v8553, %v8546
    %v9625 = vpack.c.b16 %v8554, %v8547
    %v9626 = vpack.c.b16 %v8555, %v8548
    %v9627 = vpack.c.b16 %v8563, %v8556
    %v9628 = vpack.c.b16 %v8564, %v8557
    %v9629 = vpack.c.b16 %v8565, %v8558
    %v9630 = vpack.c.b16 %v8566, %v8559
    %v9631 = vpack.c.b16 %v8567, %v8560
    %v9632 = vpack.c.b16 %v8568, %v8561
    %v9633 = vpack.c.b16 %v8569, %v8562
    %v9634 = vpack.c.b16 %v8577, %v8570
    %v9635 = vpack.c.b16 %v8578, %v8571
    %v9636 = vpack.c.b16 %v8579, %v8572
    %v9637 = vpack.c.b16 %v8580, %v8573
    %v9638 = vpack.c.b16 %v8581, %v8574
    %v9639 = vpack.c.b16 %v8582, %v8575
    %v9640 = vpack.c.b16 %v8583, %v8576
    %v9641 = vpack.c.b16 %v8591, %v8584
    %v9642 = vpack.c.b16 %v8592, %v8585
    %v9643 = vpack.c.b16 %v8593, %v8586
    %v9644 = vpack.c.b16 %v8594, %v8587
    %v9645 = vpack.c.b16 %v8595, %v8588
    %v9646 = vpack.c.b16 %v8596, %v8589
    %v9647 = vpack.c.b16 %v8597, %v8590
    %v9648 = vpack.c.b16 %v8605, %v8598
    %v9649 = vpack.c.b16 %v8606, %v8599
    %v9650 = vpack.c.b16 %v8607, %v8600
    %v9651 = vpack.c.b16 %v8608, %v8601
    %v9652 = vpack.c.b16 %v8609, %v8602
    %v9653 = vpack.c.b16 %v8610, %v8603
    %v9654 = vpack.c.b16 %v8611, %v8604
    %v9655 = vpack.c.b16 %v8619, %v8612
    %v9656 = vpack.c.b16 %v8620, %v8613
    %v9657 = vpack.c.b16 %v8621, %v8614
    %v9658 = vpack.c.b16 %v8622, %v8615
    %v9659 = vpack.c.b16 %v8623, %v8616
    %v9660 = vpack.c.b16 %v8624, %v8617
    %v9661 = vpack.c.b16 %v8625, %v8618
    %v9662 = vpack.c.b16 %v8633, %v8626
    %v9663 = vpack.c.b16 %v8634, %v8627
    %v9664 = vpack.c.b16 %v8635, %v8628
    %v9665 = vpack.c.b16 %v8636, %v8629
    %v9666 = vpack.c.b16 %v8637, %v8630
    %v9667 = vpack.c.b16 %v8638, %v8631
    %v9668 = vpack.c.b16 %v8639, %v8632
    %v9669 = vpack.c.b16 %v8647, %v8640
    %v9670 = vpack.c.b16 %v8648, %v8641
    %v9671 = vpack.c.b16 %v8649, %v8642
    %v9672 = vpack.c.b16 %v8650, %v8643
    %v9673 = vpack.c.b16 %v8651, %v8644
    %v9674 = vpack.c.b16 %v8652, %v8645
    %v9675 = vpack.c.b16 %v8653, %v8646
    %v9676 = vpack.c.b16 %v8661, %v8654
    %v9677 = vpack.c.b16 %v8662, %v8655
    %v9678 = vpack.c.b16 %v8663, %v8656
    %v9679 = vpack.c.b16 %v8664, %v8657
    %v9680 = vpack.c.b16 %v8665, %v8658
    %v9681 = vpack.c.b16 %v8666, %v8659
    %v9682 = vpack.c.b16 %v8667, %v8660
    %v9683 = vpack.c.b16 %v8675, %v8668
    %v9684 = vpack.c.b16 %v8676, %v8669
    %v9685 = vpack.c.b16 %v8677, %v8670
    %v9686 = vpack.c.b16 %v8678, %v8671
    %v9687 = vpack.c.b16 %v8679, %v8672
    %v9688 = vpack.c.b16 %v8680, %v8673
    %v9689 = vpack.c.b16 %v8681, %v8674
    %v9690 = vpack.c.b16 %v8689, %v8682
    %v9691 = vpack.c.b16 %v8690, %v8683
    %v9692 = vpack.c.b16 %v8691, %v8684
    %v9693 = vpack.c.b16 %v8692, %v8685
    %v9694 = vpack.c.b16 %v8693, %v8686
    %v9695 = vpack.c.b16 %v8694, %v8687
    %v9696 = vpack.c.b16 %v8695, %v8688
    %v9697 = vpack.c.b16 %v8703, %v8696
    %v9698 = vpack.c.b16 %v8704, %v8697
    %v9699 = vpack.c.b16 %v8705, %v8698
    %v9700 = vpack.c.b16 %v8706, %v8699
    %v9701 = vpack.c.b16 %v8707, %v8700
    %v9702 = vpack.c.b16 %v8708, %v8701
    %v9703 = vpack.c.b16 %v8709, %v8702
    %v9704 = vpack.c.b16 %v8717, %v8710
    %v9705 = vpack.c.b16 %v8718, %v8711
    %v9706 = vpack.c.b16 %v8719, %v8712
    %v9707 = vpack.c.b16 %v8720, %v8713
    %v9708 = vpack.c.b16 %v8721, %v8714
    %v9709 = vpack.c.b16 %v8722, %v8715
    %v9710 = vpack.c.b16 %v8723, %v8716
    %v9711 = vpack.c.b16 %v8731, %v8724
    %v9712 = vpack.c.b16 %v8732, %v8725
    %v9713 = vpack.c.b16 %v8733, %v8726
    %v9714 = vpack.c.b16 %v8734, %v8727
    %v9715 = vpack.c.b16 %v8735, %v8728
    %v9716 = vpack.c.b16 %v8736, %v8729
    %v9717 = vpack.c.b16 %v8737, %v8730
    %v9718 = vpack.c.b16 %v8745, %v8738
    %v9719 = vpack.c.b16 %v8746, %v8739
    %v9720 = vpack.c.b16 %v8747, %v8740
    %v9721 = vpack.c.b16 %v8748, %v8741
    %v9722 = vpack.c.b16 %v8749, %v8742
    %v9723 = vpack.c.b16 %v8750, %v8743
    %v9724 = vpack.c.b16 %v8751, %v8744
    %v9725 = vpack.c.b16 %v8759, %v8752
    %v9726 = vpack.c.b16 %v8760, %v8753
    %v9727 = vpack.c.b16 %v8761, %v8754
    %v9728 = vpack.c.b16 %v8762, %v8755
    %v9729 = vpack.c.b16 %v8763, %v8756
    %v9730 = vpack.c.b16 %v8764, %v8757
    %v9731 = vpack.c.b16 %v8765, %v8758
    %v9732 = vpack.c.b16 %v8773, %v8766
    %v9733 = vpack.c.b16 %v8774, %v8767
    %v9734 = vpack.c.b16 %v8775, %v8768
    %v9735 = vpack.c.b16 %v8776, %v8769
    %v9736 = vpack.c.b16 %v8777, %v8770
    %v9737 = vpack.c.b16 %v8778, %v8771
    %v9738 = vpack.c.b16 %v8779, %v8772
    %v9739 = vpack.c.b16 %v8787, %v8780
    %v9740 = vpack.c.b16 %v8788, %v8781
    %v9741 = vpack.c.b16 %v8789, %v8782
    %v9742 = vpack.c.b16 %v8790, %v8783
    %v9743 = vpack.c.b16 %v8791, %v8784
    %v9744 = vpack.c.b16 %v8792, %v8785
    %v9745 = vpack.c.b16 %v8793, %v8786
    %v9746 = vpack.c.b16 %v8801, %v8794
    %v9747 = vpack.c.b16 %v8802, %v8795
    %v9748 = vpack.c.b16 %v8803, %v8796
    %v9749 = vpack.c.b16 %v8804, %v8797
    %v9750 = vpack.c.b16 %v8805, %v8798
    %v9751 = vpack.c.b16 %v8806, %v8799
    %v9752 = vpack.c.b16 %v8807, %v8800
    %v9753 = vpack.c.b16 %v8815, %v8808
    %v9754 = vpack.c.b16 %v8816, %v8809
    %v9755 = vpack.c.b16 %v8817, %v8810
    %v9756 = vpack.c.b16 %v8818, %v8811
    %v9757 = vpack.c.b16 %v8819, %v8812
    %v9758 = vpack.c.b16 %v8820, %v8813
    %v9759 = vpack.c.b16 %v8821, %v8814
    %v9760 = vpack.c.b16 %v8829, %v8822
    %v9761 = vpack.c.b16 %v8830, %v8823
    %v9762 = vpack.c.b16 %v8831, %v8824
    %v9763 = vpack.c.b16 %v8832, %v8825
    %v9764 = vpack.c.b16 %v8833, %v8826
    %v9765 = vpack.c.b16 %v8834, %v8827
    %v9766 = vpack.c.b16 %v8835, %v8828
    %v9767 = vpack.c.b16 %v8843, %v8836
    %v9768 = vpack.c.b16 %v8844, %v8837
    %v9769 = vpack.c.b16 %v8845, %v8838
    %v9770 = vpack.c.b16 %v8846, %v8839
    %v9771 = vpack.c.b16 %v8847, %v8840
    %v9772 = vpack.c.b16 %v8848, %v8841
    %v9773 = vpack.c.b16 %v8849, %v8842
    %v9774 = vpack.c.b16 %v8857, %v8850
    %v9775 = vpack.c.b16 %v8858, %v8851
    %v9776 = vpack.c.b16 %v8859, %v8852
    %v9777 = vpack.c.b16 %v8860, %v8853
    %v9778 = vpack.c.b16 %v8861, %v8854
    %v9779 = vpack.c.b16 %v8862, %v8855
    %v9780 = vpack.c.b16 %v8863, %v8856
    %v9781 = vpack.c.b16 %v8871, %v8864
    %v9782 = vpack.c.b16 %v8872, %v8865
    %v9783 = vpack.c.b16 %v8873, %v8866
    %v9784 = vpack.c.b16 %v8874, %v8867
    %v9785 = vpack.c.b16 %v8875, %v8868
    %v9786 = vpack.c.b16 %v8876, %v8869
    %v9787 = vpack.c.b16 %v8877, %v8870
    %v9788 = vpack.c.b16 %v8885, %v8878
    %v9789 = vpack.c.b16 %v8886, %v8879
    %v9790 = vpack.c.b16 %v8887, %v8880
    %v9791 = vpack.c.b16 %v8888, %v8881
    %v9792 = vpack.c.b16 %v8889, %v8882
    %v9793 = vpack.c.b16 %v8890, %v8883
    %v9794 = vpack.c.b16 %v8891, %v8884
    %v9795 = vpack.c.b16 %v8899, %v8892
    %v9796 = vpack.c.b16 %v8900, %v8893
    %v9797 = vpack.c.b16 %v8901, %v8894
    %v9798 = vpack.c.b16 %v8902, %v8895
    %v9799 = vpack.c.b16 %v8903, %v8896
    %v9800 = vpack.c.b16 %v8904, %v8897
    %v9801 = vpack.c.b16 %v8905, %v8898
    %v9802 = vpack.c.b16 %v8913, %v8906
    %v9803 = vpack.c.b16 %v8914, %v8907
    %v9804 = vpack.c.b16 %v8915, %v8908
    %v9805 = vpack.c.b16 %v8916, %v8909
    %v9806 = vpack.c.b16 %v8917, %v8910
    %v9807 = vpack.c.b16 %v8918, %v8911
    %v9808 = vpack.c.b16 %v8919, %v8912
    %v9809 = vpack.c.b16 %v8927, %v8920
    %v9810 = vpack.c.b16 %v8928, %v8921
    %v9811 = vpack.c.b16 %v8929, %v8922
    %v9812 = vpack.c.b16 %v8930, %v8923
    %v9813 = vpack.c.b16 %v8931, %v8924
    %v9814 = vpack.c.b16 %v8932, %v8925
    %v9815 = vpack.c.b16 %v8933, %v8926
    %v9816 = vpack.c.b16 %v8941, %v8934
    %v9817 = vpack.c.b16 %v8942, %v8935
    %v9818 = vpack.c.b16 %v8943, %v8936
    %v9819 = vpack.c.b16 %v8944, %v8937
    %v9820 = vpack.c.b16 %v8945, %v8938
    %v9821 = vpack.c.b16 %v8946, %v8939
    %v9822 = vpack.c.b16 %v8947, %v8940
    %v9823 = vpack.c.b16 %v8955, %v8948
    %v9824 = vpack.c.b16 %v8956, %v8949
    %v9825 = vpack.c.b16 %v8957, %v8950
    %v9826 = vpack.c.b16 %v8958, %v8951
    %v9827 = vpack.c.b16 %v8959, %v8952
    %v9828 = vpack.c.b16 %v8960, %v8953
    %v9829 = vpack.c.b16 %v8961, %v8954
    %v9830 = vpack.c.b16 %v8969, %v8962
    %v9831 = vpack.c.b16 %v8970, %v8963
    %v9832 = vpack.c.b16 %v8971, %v8964
    %v9833 = vpack.c.b16 %v8972, %v8965
    %v9834 = vpack.c.b16 %v8973, %v8966
    %v9835 = vpack.c.b16 %v8974, %v8967
    %v9836 = vpack.c.b16 %v8975, %v8968
    %v9837 = vpack.c.b16 %v8983, %v8976
    %v9838 = vpack.c.b16 %v8984, %v8977
    %v9839 = vpack.c.b16 %v8985, %v8978
    %v9840 = vpack.c.b16 %v8986, %v8979
    %v9841 = vpack.c.b16 %v8987, %v8980
    %v9842 = vpack.c.b16 %v8988, %v8981
    %v9843 = vpack.c.b16 %v8989, %v8982
    %v9844 = vpack.c.b16 %v8997, %v8990
    %v9845 = vpack.c.b16 %v8998, %v8991
    %v9846 = vpack.c.b16 %v8999, %v8992
    %v9847 = vpack.c.b16 %v9000, %v8993
    %v9848 = vpack.c.b16 %v9001, %v8994
    %v9849 = vpack.c.b16 %v9002, %v8995
    %v9850 = vpack.c.b16 %v9003, %v8996
    %v9851 = vpack.c.b16 %v9011, %v9004
    %v9852 = vpack.c.b16 %v9012, %v9005
    %v9853 = vpack.c.b16 %v9013, %v9006
    %v9854 = vpack.c.b16 %v9014, %v9007
    %v9855 = vpack.c.b16 %v9015, %v9008
    %v9856 = vpack.c.b16 %v9016, %v9009
    %v9857 = vpack.c.b16 %v9017, %v9010
    %v9858 = vpack.c.b16 %v9025, %v9018
    %v9859 = vpack.c.b16 %v9026, %v9019
    %v9860 = vpack.c.b16 %v9027, %v9020
    %v9861 = vpack.c.b16 %v9028, %v9021
    %v9862 = vpack.c.b16 %v9029, %v9022
    %v9863 = vpack.c.b16 %v9030, %v9023
    %v9864 = vpack.c.b16 %v9031, %v9024
    %v9865 = vpack.c.b16 %v9039, %v9032
    %v9866 = vpack.c.b16 %v9040, %v9033
    %v9867 = vpack.c.b16 %v9041, %v9034
    %v9868 = vpack.c.b16 %v9042, %v9035
    %v9869 = vpack.c.b16 %v9043, %v9036
    %v9870 = vpack.c.b16 %v9044, %v9037
    %v9871 = vpack.c.b16 %v9045, %v9038
    %v9872 = vpack.c.b16 %v9053, %v9046
    %v9873 = vpack.c.b16 %v9054, %v9047
    %v9874 = vpack.c.b16 %v9055, %v9048
    %v9875 = vpack.c.b16 %v9056, %v9049
    %v9876 = vpack.c.b16 %v9057, %v9050
    %v9877 = vpack.c.b16 %v9058, %v9051
    %v9878 = vpack.c.b16 %v9059, %v9052
    %v9879 = vpack.c.b16 %v9067, %v9060
    %v9880 = vpack.c.b16 %v9068, %v9061
    %v9881 = vpack.c.b16 %v9069, %v9062
    %v9882 = vpack.c.b16 %v9070, %v9063
    %v9883 = vpack.c.b16 %v9071, %v9064
    %v9884 = vpack.c.b16 %v9072, %v9065
    %v9885 = vpack.c.b16 %v9073, %v9066
    %v9886 = vpack.c.b16 %v9081, %v9074
    %v9887 = vpack.c.b16 %v9082, %v9075
    %v9888 = vpack.c.b16 %v9083, %v9076
    %v9889 = vpack.c.b16 %v9084, %v9077
    %v9890 = vpack.c.b16 %v9085, %v9078
    %v9891 = vpack.c.b16 %v9086, %v9079
    %v9892 = vpack.c.b16 %v9087, %v9080
    %v9893 = vpack.c.b16 %v9095, %v9088
    %v9894 = vpack.c.b16 %v9096, %v9089
    %v9895 = vpack.c.b16 %v9097, %v9090
    %v9896 = vpack.c.b16 %v9098, %v9091
    %v9897 = vpack.c.b16 %v9099, %v9092
    %v9898 = vpack.c.b16 %v9100, %v9093
    %v9899 = vpack.c.b16 %v9101, %v9094
    %v9900 = vpack.c.b16 %v9109, %v9102
    %v9901 = vpack.c.b16 %v9110, %v9103
    %v9902 = vpack.c.b16 %v9111, %v9104
    %v9903 = vpack.c.b16 %v9112, %v9105
    %v9904 = vpack.c.b16 %v9113, %v9106
    %v9905 = vpack.c.b16 %v9114, %v9107
    %v9906 = vpack.c.b16 %v9115, %v9108
    %v9907 = vpack.c.b16 %v9123, %v9116
    %v9908 = vpack.c.b16 %v9124, %v9117
    %v9909 = vpack.c.b16 %v9125, %v9118
    %v9910 = vpack.c.b16 %v9126, %v9119
    %v9911 = vpack.c.b16 %v9127, %v9120
    %v9912 = vpack.c.b16 %v9128, %v9121
    %v9913 = vpack.c.b16 %v9129, %v9122
    %v9914 = vpack.c.b16 %v9137, %v9130
    %v9915 = vpack.c.b16 %v9138, %v9131
    %v9916 = vpack.c.b16 %v9139, %v9132
    %v9917 = vpack.c.b16 %v9140, %v9133
    %v9918 = vpack.c.b16 %v9141, %v9134
    %v9919 = vpack.c.b16 %v9142, %v9135
    %v9920 = vpack.c.b16 %v9143, %v9136
    %v9921 = vpack.c.b16 %v9151, %v9144
    %v9922 = vpack.c.b16 %v9152, %v9145
    %v9923 = vpack.c.b16 %v9153, %v9146
    %v9924 = vpack.c.b16 %v9154, %v9147
    %v9925 = vpack.c.b16 %v9155, %v9148
    %v9926 = vpack.c.b16 %v9156, %v9149
    %v9927 = vpack.c.b16 %v9157, %v9150
    %v9928 = vpack.c.b16 %v9165, %v9158
    %v9929 = vpack.c.b16 %v9166, %v9159
    %v9930 = vpack.c.b16 %v9167, %v9160
    %v9931 = vpack.c.b16 %v9168, %v9161
    %v9932 = vpack.c.b16 %v9169, %v9162
    %v9933 = vpack.c.b16 %v9170, %v9163
    %v9934 = vpack.c.b16 %v9171, %v9164
    %v9935 = vpack.c.b16 %v9179, %v9172
    %v9936 = vpack.c.b16 %v9180, %v9173
    %v9937 = vpack.c.b16 %v9181, %v9174
    %v9938 = vpack.c.b16 %v9182, %v9175
    %v9939 = vpack.c.b16 %v9183, %v9176
    %v9940 = vpack.c.b16 %v9184, %v9177
    %v9941 = vpack.c.b16 %v9185, %v9178
    %v9942 = vpack.c.b16 %v9193, %v9186
    %v9943 = vpack.c.b16 %v9194, %v9187
    %v9944 = vpack.c.b16 %v9195, %v9188
    %v9945 = vpack.c.b16 %v9196, %v9189
    %v9946 = vpack.c.b16 %v9197, %v9190
    %v9947 = vpack.c.b16 %v9198, %v9191
    %v9948 = vpack.c.b16 %v9199, %v9192
    %v9949 = vpack.c.b16 %v9207, %v9200
    %v9950 = vpack.c.b16 %v9208, %v9201
    %v9951 = vpack.c.b16 %v9209, %v9202
    %v9952 = vpack.c.b16 %v9210, %v9203
    %v9953 = vpack.c.b16 %v9211, %v9204
    %v9954 = vpack.c.b16 %v9212, %v9205
    %v9955 = vpack.c.b16 %v9213, %v9206
    %v9956 = vpack.c.b16 %v9221, %v9214
    %v9957 = vpack.c.b16 %v9222, %v9215
    %v9958 = vpack.c.b16 %v9223, %v9216
    %v9959 = vpack.c.b16 %v9224, %v9217
    %v9960 = vpack.c.b16 %v9225, %v9218
    %v9961 = vpack.c.b16 %v9226, %v9219
    %v9962 = vpack.c.b16 %v9227, %v9220
    %v9963 = vpack.c.b16 %v9235, %v9228
    %v9964 = vpack.c.b16 %v9236, %v9229
    %v9965 = vpack.c.b16 %v9237, %v9230
    %v9966 = vpack.c.b16 %v9238, %v9231
    %v9967 = vpack.c.b16 %v9239, %v9232
    %v9968 = vpack.c.b16 %v9240, %v9233
    %v9969 = vpack.c.b16 %v9241, %v9234
    %10698 = vmatprep.subr.bf16.mxu0 %v9292
    %10699 = vmatpush1.bf16.msra.mxu0 %v9291
    %10700 = vmatprep.subr.bf16.mxu0 %v9285
    %10701 = vmatpush1.bf16.msra.mxu0 %v9284
    %10702 = vmatprep.subr.bf16.mxu0 %v9278
    %10703 = vmatpush1.bf16.msra.mxu0 %v9277
    %10704 = vmatprep.subr.bf16.mxu0 %v9271
    %10705 = vmatpush1.bf16.msra.mxu0 %v9270
    %10706 = vmatprep.subr.bf16.mxu0 %v9264
    %10707 = vmatpush1.bf16.msra.mxu0 %v9263
    %10708 = vmatprep.subr.bf16.mxu0 %v9257
    %10709 = vmatpush1.bf16.msra.mxu0 %v9256
    %10710 = vmatprep.subr.bf16.mxu0 %v9250
    %10711 = vmatpush1.bf16.msra.mxu0 %v9249
    %10712 = vmatprep.subr.bf16.mxu0 %v9243
    %10713 = vmatpush1.bf16.msra.mxu0 %v9242
    %10714 = vmatprep.subr.bf16.mxu0 %v9348
    %10715 = vmatpush2.bf16.msra.mxu0 %v9347
    %10716 = vmatprep.subr.bf16.mxu0 %v9341
    %10717 = vmatpush2.bf16.msra.mxu0 %v9340
    %10718 = vmatprep.subr.bf16.mxu0 %v9334
    %10719 = vmatpush2.bf16.msra.mxu0 %v9333
    %10720 = vmatprep.subr.bf16.mxu0 %v9327
    %10721 = vmatpush2.bf16.msra.mxu0 %v9326
    %10722 = vmatprep.subr.bf16.mxu0 %v9320
    %10723 = vmatpush2.bf16.msra.mxu0 %v9319
    %10724 = vmatprep.subr.bf16.mxu0 %v9313
    %10725 = vmatpush2.bf16.msra.mxu0 %v9312
    %10726 = vmatprep.subr.bf16.mxu0 %v9306
    %10727 = vmatpush2.bf16.msra.mxu0 %v9305
    %10728 = vmatprep.subr.bf16.mxu0 %v9299
    %10729 = vmatpush2.bf16.msra.mxu0 %v9298
    %10730 = vmatprep.mubr.bf16.mxu0 %v6073
    %10731 = vmatmul.mubr.bf16.gmra.mxu0 %v6072
    %v10732 = vpop.f32.mrf.mxu0
    %v10733 = vadd.f32 %v6922, %v10732
    %v10734 = vpop.f32.mrf.mxu0
    %v10735 = vadd.f32 %v6926, %v10734
    %v10736 = vpop.f32.mrf.mxu0
    %v10737 = vpop.f32.mrf.mxu0
    %10738 = vdwg.mxu0
    %10739 = vmatprep.subr.bf16.mxu0 %v9404
    %10740 = vmatpush1.bf16.msra.mxu0 %v9403
    %10741 = vmatprep.subr.bf16.mxu0 %v9397
    %10742 = vmatpush1.bf16.msra.mxu0 %v9396
    %10743 = vmatprep.subr.bf16.mxu0 %v9390
    %10744 = vmatpush1.bf16.msra.mxu0 %v9389
    %10745 = vmatprep.subr.bf16.mxu0 %v9383
    %10746 = vmatpush1.bf16.msra.mxu0 %v9382
    %10747 = vmatprep.subr.bf16.mxu0 %v9376
    %10748 = vmatpush1.bf16.msra.mxu0 %v9375
    %10749 = vmatprep.subr.bf16.mxu0 %v9369
    %10750 = vmatpush1.bf16.msra.mxu0 %v9368
    %10751 = vmatprep.subr.bf16.mxu0 %v9362
    %10752 = vmatpush1.bf16.msra.mxu0 %v9361
    %10753 = vmatprep.subr.bf16.mxu0 %v9355
    %10754 = vmatpush1.bf16.msra.mxu0 %v9354
    %10755 = vmatprep.subr.bf16.mxu0 %v9460
    %10756 = vmatpush2.bf16.msra.mxu0 %v9459
    %10757 = vmatprep.subr.bf16.mxu0 %v9453
    %10758 = vmatpush2.bf16.msra.mxu0 %v9452
    %10759 = vmatprep.subr.bf16.mxu0 %v9446
    %10760 = vmatpush2.bf16.msra.mxu0 %v9445
    %10761 = vmatprep.subr.bf16.mxu0 %v9439
    %10762 = vmatpush2.bf16.msra.mxu0 %v9438
    %10763 = vmatprep.subr.bf16.mxu0 %v9432
    %10764 = vmatpush2.bf16.msra.mxu0 %v9431
    %10765 = vmatprep.subr.bf16.mxu0 %v9425
    %10766 = vmatpush2.bf16.msra.mxu0 %v9424
    %10767 = vmatprep.subr.bf16.mxu0 %v9418
    %10768 = vmatpush2.bf16.msra.mxu0 %v9417
    %10769 = vmatprep.subr.bf16.mxu0 %v9411
    %10770 = vmatpush2.bf16.msra.mxu0 %v9410
    %10771 = vmatprep.mubr.bf16.mxu0 %v6075
    %10772 = vmatmul.mubr.bf16.gmra.mxu0 %v6074
    %v10773 = vpop.f32.mrf.mxu0
    %v10774 = vadd.f32 %v10733, %v10773
    %v10775 = vpop.f32.mrf.mxu0
    %v10776 = vadd.f32 %v10735, %v10775
    %v10777 = vpop.f32.mrf.mxu0
    %v10778 = vpop.f32.mrf.mxu0
    %10779 = vdwg.mxu0
    %10780 = vmatprep.subr.bf16.mxu0 %v9516
    %10781 = vmatpush1.bf16.msra.mxu0 %v9515
    %10782 = vmatprep.subr.bf16.mxu0 %v9509
    %10783 = vmatpush1.bf16.msra.mxu0 %v9508
    %10784 = vmatprep.subr.bf16.mxu0 %v9502
    %10785 = vmatpush1.bf16.msra.mxu0 %v9501
    %10786 = vmatprep.subr.bf16.mxu0 %v9495
    %10787 = vmatpush1.bf16.msra.mxu0 %v9494
    %10788 = vmatprep.subr.bf16.mxu0 %v9488
    %10789 = vmatpush1.bf16.msra.mxu0 %v9487
    %10790 = vmatprep.subr.bf16.mxu0 %v9481
    %10791 = vmatpush1.bf16.msra.mxu0 %v9480
    %10792 = vmatprep.subr.bf16.mxu0 %v9474
    %10793 = vmatpush1.bf16.msra.mxu0 %v9473
    %10794 = vmatprep.subr.bf16.mxu0 %v9467
    %10795 = vmatpush1.bf16.msra.mxu0 %v9466
    %10796 = vmatprep.subr.bf16.mxu0 %v9572
    %10797 = vmatpush2.bf16.msra.mxu0 %v9571
    %10798 = vmatprep.subr.bf16.mxu0 %v9565
    %10799 = vmatpush2.bf16.msra.mxu0 %v9564
    %10800 = vmatprep.subr.bf16.mxu0 %v9558
    %10801 = vmatpush2.bf16.msra.mxu0 %v9557
    %10802 = vmatprep.subr.bf16.mxu0 %v9551
    %10803 = vmatpush2.bf16.msra.mxu0 %v9550
    %10804 = vmatprep.subr.bf16.mxu0 %v9544
    %10805 = vmatpush2.bf16.msra.mxu0 %v9543
    %10806 = vmatprep.subr.bf16.mxu0 %v9537
    %10807 = vmatpush2.bf16.msra.mxu0 %v9536
    %10808 = vmatprep.subr.bf16.mxu0 %v9530
    %10809 = vmatpush2.bf16.msra.mxu0 %v9529
    %10810 = vmatprep.subr.bf16.mxu0 %v9523
    %10811 = vmatpush2.bf16.msra.mxu0 %v9522
    %10812 = vmatprep.mubr.bf16.mxu0 %v6077
    %10813 = vmatmul.mubr.bf16.gmra.mxu0 %v6076
    %v10814 = vpop.f32.mrf.mxu0
    %v10815 = vadd.f32 %v10774, %v10814
    %v10816 = vpop.f32.mrf.mxu0
    %v10817 = vadd.f32 %v10776, %v10816
    %v10818 = vpop.f32.mrf.mxu0
    %v10819 = vpop.f32.mrf.mxu0
    %10820 = vdwg.mxu0
    %10821 = vmatprep.subr.bf16.mxu0 %v9628
    %10822 = vmatpush1.bf16.msra.mxu0 %v9627
    %10823 = vmatprep.subr.bf16.mxu0 %v9621
    %10824 = vmatpush1.bf16.msra.mxu0 %v9620
    %10825 = vmatprep.subr.bf16.mxu0 %v9614
    %10826 = vmatpush1.bf16.msra.mxu0 %v9613
    %10827 = vmatprep.subr.bf16.mxu0 %v9607
    %10828 = vmatpush1.bf16.msra.mxu0 %v9606
    %10829 = vmatprep.subr.bf16.mxu0 %v9600
    %10830 = vmatpush1.bf16.msra.mxu0 %v9599
    %10831 = vmatprep.subr.bf16.mxu0 %v9593
    %10832 = vmatpush1.bf16.msra.mxu0 %v9592
    %10833 = vmatprep.subr.bf16.mxu0 %v9586
    %10834 = vmatpush1.bf16.msra.mxu0 %v9585
    %10835 = vmatprep.subr.bf16.mxu0 %v9579
    %10836 = vmatpush1.bf16.msra.mxu0 %v9578
    %10837 = vmatprep.subr.bf16.mxu0 %v9684
    %10838 = vmatpush2.bf16.msra.mxu0 %v9683
    %10839 = vmatprep.subr.bf16.mxu0 %v9677
    %10840 = vmatpush2.bf16.msra.mxu0 %v9676
    %10841 = vmatprep.subr.bf16.mxu0 %v9670
    %10842 = vmatpush2.bf16.msra.mxu0 %v9669
    %10843 = vmatprep.subr.bf16.mxu0 %v9663
    %10844 = vmatpush2.bf16.msra.mxu0 %v9662
    %10845 = vmatprep.subr.bf16.mxu0 %v9656
    %10846 = vmatpush2.bf16.msra.mxu0 %v9655
    %10847 = vmatprep.subr.bf16.mxu0 %v9649
    %10848 = vmatpush2.bf16.msra.mxu0 %v9648
    %10849 = vmatprep.subr.bf16.mxu0 %v9642
    %10850 = vmatpush2.bf16.msra.mxu0 %v9641
    %10851 = vmatprep.subr.bf16.mxu0 %v9635
    %10852 = vmatpush2.bf16.msra.mxu0 %v9634
    %10853 = vmatprep.mubr.bf16.mxu0 %v6079
    %10854 = vmatmul.mubr.bf16.gmra.mxu0 %v6078
    %v10855 = vpop.f32.mrf.mxu0
    %v10856 = vadd.f32 %v10815, %v10855
    %v10857 = vpop.f32.mrf.mxu0
    %v10858 = vadd.f32 %v10817, %v10857
    %v10859 = vpop.f32.mrf.mxu0
    %v10860 = vpop.f32.mrf.mxu0
    %10861 = vdwg.mxu0
    %10862 = vmatprep.subr.bf16.mxu0 %v9740
    %10863 = vmatpush1.bf16.msra.mxu0 %v9739
    %10864 = vmatprep.subr.bf16.mxu0 %v9733
    %10865 = vmatpush1.bf16.msra.mxu0 %v9732
    %10866 = vmatprep.subr.bf16.mxu0 %v9726
    %10867 = vmatpush1.bf16.msra.mxu0 %v9725
    %10868 = vmatprep.subr.bf16.mxu0 %v9719
    %10869 = vmatpush1.bf16.msra.mxu0 %v9718
    %10870 = vmatprep.subr.bf16.mxu0 %v9712
    %10871 = vmatpush1.bf16.msra.mxu0 %v9711
    %10872 = vmatprep.subr.bf16.mxu0 %v9705
    %10873 = vmatpush1.bf16.msra.mxu0 %v9704
    %10874 = vmatprep.subr.bf16.mxu0 %v9698
    %10875 = vmatpush1.bf16.msra.mxu0 %v9697
    %10876 = vmatprep.subr.bf16.mxu0 %v9691
    %10877 = vmatpush1.bf16.msra.mxu0 %v9690
    %10878 = vmatprep.subr.bf16.mxu0 %v9796
    %10879 = vmatpush2.bf16.msra.mxu0 %v9795
    %10880 = vmatprep.subr.bf16.mxu0 %v9789
    %10881 = vmatpush2.bf16.msra.mxu0 %v9788
    %10882 = vmatprep.subr.bf16.mxu0 %v9782
    %10883 = vmatpush2.bf16.msra.mxu0 %v9781
    %10884 = vmatprep.subr.bf16.mxu0 %v9775
    %10885 = vmatpush2.bf16.msra.mxu0 %v9774
    %10886 = vmatprep.subr.bf16.mxu0 %v9768
    %10887 = vmatpush2.bf16.msra.mxu0 %v9767
    %10888 = vmatprep.subr.bf16.mxu0 %v9761
    %10889 = vmatpush2.bf16.msra.mxu0 %v9760
    %10890 = vmatprep.subr.bf16.mxu0 %v9754
    %10891 = vmatpush2.bf16.msra.mxu0 %v9753
    %10892 = vmatprep.subr.bf16.mxu0 %v9747
    %10893 = vmatpush2.bf16.msra.mxu0 %v9746
    %10894 = vmatprep.mubr.bf16.mxu0 %v6081
    %10895 = vmatmul.mubr.bf16.gmra.mxu0 %v6080
    %v10896 = vpop.f32.mrf.mxu0
    %v10897 = vadd.f32 %v10856, %v10896
    %v10898 = vpop.f32.mrf.mxu0
    %v10899 = vadd.f32 %v10858, %v10898
    %v10900 = vpop.f32.mrf.mxu0
    %v10901 = vpop.f32.mrf.mxu0
    %10902 = vdwg.mxu0
    %10903 = vmatprep.subr.bf16.mxu0 %v9852
    %10904 = vmatpush1.bf16.msra.mxu0 %v9851
    %10905 = vmatprep.subr.bf16.mxu0 %v9845
    %10906 = vmatpush1.bf16.msra.mxu0 %v9844
    %10907 = vmatprep.subr.bf16.mxu0 %v9838
    %10908 = vmatpush1.bf16.msra.mxu0 %v9837
    %10909 = vmatprep.subr.bf16.mxu0 %v9831
    %10910 = vmatpush1.bf16.msra.mxu0 %v9830
    %10911 = vmatprep.subr.bf16.mxu0 %v9824
    %10912 = vmatpush1.bf16.msra.mxu0 %v9823
    %10913 = vmatprep.subr.bf16.mxu0 %v9817
    %10914 = vmatpush1.bf16.msra.mxu0 %v9816
    %10915 = vmatprep.subr.bf16.mxu0 %v9810
    %10916 = vmatpush1.bf16.msra.mxu0 %v9809
    %10917 = vmatprep.subr.bf16.mxu0 %v9803
    %10918 = vmatpush1.bf16.msra.mxu0 %v9802
    %10919 = vmatprep.subr.bf16.mxu0 %v9908
    %10920 = vmatpush2.bf16.msra.mxu0 %v9907
    %10921 = vmatprep.subr.bf16.mxu0 %v9901
    %10922 = vmatpush2.bf16.msra.mxu0 %v9900
    %10923 = vmatprep.subr.bf16.mxu0 %v9894
    %10924 = vmatpush2.bf16.msra.mxu0 %v9893
    %10925 = vmatprep.subr.bf16.mxu0 %v9887
    %10926 = vmatpush2.bf16.msra.mxu0 %v9886
    %10927 = vmatprep.subr.bf16.mxu0 %v9880
    %10928 = vmatpush2.bf16.msra.mxu0 %v9879
    %10929 = vmatprep.subr.bf16.mxu0 %v9873
    %10930 = vmatpush2.bf16.msra.mxu0 %v9872
    %10931 = vmatprep.subr.bf16.mxu0 %v9866
    %10932 = vmatpush2.bf16.msra.mxu0 %v9865
    %10933 = vmatprep.subr.bf16.mxu0 %v9859
    %10934 = vmatpush2.bf16.msra.mxu0 %v9858
    %10935 = vmatprep.mubr.bf16.mxu0 %v6083
    %10936 = vmatmul.mubr.bf16.gmra.mxu0 %v6082
    %v10937 = vpop.f32.mrf.mxu0
    %v10938 = vadd.f32 %v10897, %v10937
    %v10939 = vpop.f32.mrf.mxu0
    %v10940 = vadd.f32 %v10899, %v10939
    %v10941 = vpop.f32.mrf.mxu0
    %v10942 = vpop.f32.mrf.mxu0
    %10943 = vdwg.mxu0
    %10944 = vmatprep.subr.bf16.mxu0 %v9964
    %10945 = vmatpush1.bf16.msra.mxu0 %v9963
    %10946 = vmatprep.subr.bf16.mxu0 %v9957
    %10947 = vmatpush1.bf16.msra.mxu0 %v9956
    %10948 = vmatprep.subr.bf16.mxu0 %v9950
    %10949 = vmatpush1.bf16.msra.mxu0 %v9949
    %10950 = vmatprep.subr.bf16.mxu0 %v9943
    %10951 = vmatpush1.bf16.msra.mxu0 %v9942
    %10952 = vmatprep.subr.bf16.mxu0 %v9936
    %10953 = vmatpush1.bf16.msra.mxu0 %v9935
    %10954 = vmatprep.subr.bf16.mxu0 %v9929
    %10955 = vmatpush1.bf16.msra.mxu0 %v9928
    %10956 = vmatprep.subr.bf16.mxu0 %v9922
    %10957 = vmatpush1.bf16.msra.mxu0 %v9921
    %10958 = vmatprep.subr.bf16.mxu0 %v9915
    %10959 = vmatpush1.bf16.msra.mxu0 %v9914
    %10960 = vmatprep.subr.bf16.mxu0 0
    %10961 = vmatpush2.bf16.msra.mxu0 0
    %10962 = vmatprep.subr.bf16.mxu0 0
    %10963 = vmatpush2.bf16.msra.mxu0 0
    %10964 = vmatprep.subr.bf16.mxu0 0
    %10965 = vmatpush2.bf16.msra.mxu0 0
    %10966 = vmatprep.subr.bf16.mxu0 0
    %10967 = vmatpush2.bf16.msra.mxu0 0
    %10968 = vmatprep.subr.bf16.mxu0 0
    %10969 = vmatpush2.bf16.msra.mxu0 0
    %10970 = vmatprep.subr.bf16.mxu0 0
    %10971 = vmatpush2.bf16.msra.mxu0 0
    %10972 = vmatprep.subr.bf16.mxu0 0
    %10973 = vmatpush2.bf16.msra.mxu0 0
    %10974 = vmatprep.subr.bf16.mxu0 0
    %10975 = vmatpush2.bf16.msra.mxu0 0
    %10976 = vmatprep.mubr.bf16.mxu0 0
    %10977 = vmatmul.mubr.bf16.gmra.mxu0 %v6084
    %v10978 = vpop.f32.mrf.mxu0
    %v10979 = vadd.f32 %v10938, %v10978
    %v10980 = vpop.f32.mrf.mxu0
    %v10981 = vadd.f32 %v10940, %v10980
    %v10982 = vpop.f32.mrf.mxu0
    %v10983 = vpop.f32.mrf.mxu0
    %10984 = vdwg.mxu0
    %10985 = vmatprep.subr.bf16.mxu0 %v9294
    %10986 = vmatpush1.bf16.msra.mxu0 %v9293
    %10987 = vmatprep.subr.bf16.mxu0 %v9287
    %10988 = vmatpush1.bf16.msra.mxu0 %v9286
    %10989 = vmatprep.subr.bf16.mxu0 %v9280
    %10990 = vmatpush1.bf16.msra.mxu0 %v9279
    %10991 = vmatprep.subr.bf16.mxu0 %v9273
    %10992 = vmatpush1.bf16.msra.mxu0 %v9272
    %10993 = vmatprep.subr.bf16.mxu0 %v9266
    %10994 = vmatpush1.bf16.msra.mxu0 %v9265
    %10995 = vmatprep.subr.bf16.mxu0 %v9259
    %10996 = vmatpush1.bf16.msra.mxu0 %v9258
    %10997 = vmatprep.subr.bf16.mxu0 %v9252
    %10998 = vmatpush1.bf16.msra.mxu0 %v9251
    %10999 = vmatprep.subr.bf16.mxu0 %v9245
    %11000 = vmatpush1.bf16.msra.mxu0 %v9244
    %11001 = vmatprep.subr.bf16.mxu0 %v9350
    %11002 = vmatpush2.bf16.msra.mxu0 %v9349
    %11003 = vmatprep.subr.bf16.mxu0 %v9343
    %11004 = vmatpush2.bf16.msra.mxu0 %v9342
    %11005 = vmatprep.subr.bf16.mxu0 %v9336
    %11006 = vmatpush2.bf16.msra.mxu0 %v9335
    %11007 = vmatprep.subr.bf16.mxu0 %v9329
    %11008 = vmatpush2.bf16.msra.mxu0 %v9328
    %11009 = vmatprep.subr.bf16.mxu0 %v9322
    %11010 = vmatpush2.bf16.msra.mxu0 %v9321
    %11011 = vmatprep.subr.bf16.mxu0 %v9315
    %11012 = vmatpush2.bf16.msra.mxu0 %v9314
    %11013 = vmatprep.subr.bf16.mxu0 %v9308
    %11014 = vmatpush2.bf16.msra.mxu0 %v9307
    %11015 = vmatprep.subr.bf16.mxu0 %v9301
    %11016 = vmatpush2.bf16.msra.mxu0 %v9300
    %11017 = vmatprep.mubr.bf16.mxu0 %v6073
    %11018 = vmatmul.mubr.bf16.gmra.mxu0 %v6072
    %v11019 = vpop.f32.mrf.mxu0
    %v11020 = vadd.f32 %v6930, %v11019
    %v11021 = vpop.f32.mrf.mxu0
    %v11022 = vadd.f32 %v6934, %v11021
    %v11023 = vpop.f32.mrf.mxu0
    %v11024 = vpop.f32.mrf.mxu0
    %11025 = vdwg.mxu0
    %11026 = vmatprep.subr.bf16.mxu0 %v9406
    %11027 = vmatpush1.bf16.msra.mxu0 %v9405
    %11028 = vmatprep.subr.bf16.mxu0 %v9399
    %11029 = vmatpush1.bf16.msra.mxu0 %v9398
    %11030 = vmatprep.subr.bf16.mxu0 %v9392
    %11031 = vmatpush1.bf16.msra.mxu0 %v9391
    %11032 = vmatprep.subr.bf16.mxu0 %v9385
    %11033 = vmatpush1.bf16.msra.mxu0 %v9384
    %11034 = vmatprep.subr.bf16.mxu0 %v9378
    %11035 = vmatpush1.bf16.msra.mxu0 %v9377
    %11036 = vmatprep.subr.bf16.mxu0 %v9371
    %11037 = vmatpush1.bf16.msra.mxu0 %v9370
    %11038 = vmatprep.subr.bf16.mxu0 %v9364
    %11039 = vmatpush1.bf16.msra.mxu0 %v9363
    %11040 = vmatprep.subr.bf16.mxu0 %v9357
    %11041 = vmatpush1.bf16.msra.mxu0 %v9356
    %11042 = vmatprep.subr.bf16.mxu0 %v9462
    %11043 = vmatpush2.bf16.msra.mxu0 %v9461
    %11044 = vmatprep.subr.bf16.mxu0 %v9455
    %11045 = vmatpush2.bf16.msra.mxu0 %v9454
    %11046 = vmatprep.subr.bf16.mxu0 %v9448
    %11047 = vmatpush2.bf16.msra.mxu0 %v9447
    %11048 = vmatprep.subr.bf16.mxu0 %v9441
    %11049 = vmatpush2.bf16.msra.mxu0 %v9440
    %11050 = vmatprep.subr.bf16.mxu0 %v9434
    %11051 = vmatpush2.bf16.msra.mxu0 %v9433
    %11052 = vmatprep.subr.bf16.mxu0 %v9427
    %11053 = vmatpush2.bf16.msra.mxu0 %v9426
    %11054 = vmatprep.subr.bf16.mxu0 %v9420
    %11055 = vmatpush2.bf16.msra.mxu0 %v9419
    %11056 = vmatprep.subr.bf16.mxu0 %v9413
    %11057 = vmatpush2.bf16.msra.mxu0 %v9412
    %11058 = vmatprep.mubr.bf16.mxu0 %v6075
    %11059 = vmatmul.mubr.bf16.gmra.mxu0 %v6074
    %v11060 = vpop.f32.mrf.mxu0
    %v11061 = vadd.f32 %v11020, %v11060
    %v11062 = vpop.f32.mrf.mxu0
    %v11063 = vadd.f32 %v11022, %v11062
    %v11064 = vpop.f32.mrf.mxu0
    %v11065 = vpop.f32.mrf.mxu0
    %11066 = vdwg.mxu0
    %11067 = vmatprep.subr.bf16.mxu0 %v9518
    %11068 = vmatpush1.bf16.msra.mxu0 %v9517
    %11069 = vmatprep.subr.bf16.mxu0 %v9511
    %11070 = vmatpush1.bf16.msra.mxu0 %v9510
    %11071 = vmatprep.subr.bf16.mxu0 %v9504
    %11072 = vmatpush1.bf16.msra.mxu0 %v9503
    %11073 = vmatprep.subr.bf16.mxu0 %v9497
    %11074 = vmatpush1.bf16.msra.mxu0 %v9496
    %11075 = vmatprep.subr.bf16.mxu0 %v9490
    %11076 = vmatpush1.bf16.msra.mxu0 %v9489
    %11077 = vmatprep.subr.bf16.mxu0 %v9483
    %11078 = vmatpush1.bf16.msra.mxu0 %v9482
    %11079 = vmatprep.subr.bf16.mxu0 %v9476
    %11080 = vmatpush1.bf16.msra.mxu0 %v9475
    %11081 = vmatprep.subr.bf16.mxu0 %v9469
    %11082 = vmatpush1.bf16.msra.mxu0 %v9468
    %11083 = vmatprep.subr.bf16.mxu0 %v9574
    %11084 = vmatpush2.bf16.msra.mxu0 %v9573
    %11085 = vmatprep.subr.bf16.mxu0 %v9567
    %11086 = vmatpush2.bf16.msra.mxu0 %v9566
    %11087 = vmatprep.subr.bf16.mxu0 %v9560
    %11088 = vmatpush2.bf16.msra.mxu0 %v9559
    %11089 = vmatprep.subr.bf16.mxu0 %v9553
    %11090 = vmatpush2.bf16.msra.mxu0 %v9552
    %11091 = vmatprep.subr.bf16.mxu0 %v9546
    %11092 = vmatpush2.bf16.msra.mxu0 %v9545
    %11093 = vmatprep.subr.bf16.mxu0 %v9539
    %11094 = vmatpush2.bf16.msra.mxu0 %v9538
    %11095 = vmatprep.subr.bf16.mxu0 %v9532
    %11096 = vmatpush2.bf16.msra.mxu0 %v9531
    %11097 = vmatprep.subr.bf16.mxu0 %v9525
    %11098 = vmatpush2.bf16.msra.mxu0 %v9524
    %11099 = vmatprep.mubr.bf16.mxu0 %v6077
    %11100 = vmatmul.mubr.bf16.gmra.mxu0 %v6076
    %v11101 = vpop.f32.mrf.mxu0
    %v11102 = vadd.f32 %v11061, %v11101
    %v11103 = vpop.f32.mrf.mxu0
    %v11104 = vadd.f32 %v11063, %v11103
    %v11105 = vpop.f32.mrf.mxu0
    %v11106 = vpop.f32.mrf.mxu0
    %11107 = vdwg.mxu0
    %11108 = vmatprep.subr.bf16.mxu0 %v9630
    %11109 = vmatpush1.bf16.msra.mxu0 %v9629
    %11110 = vmatprep.subr.bf16.mxu0 %v9623
    %11111 = vmatpush1.bf16.msra.mxu0 %v9622
    %11112 = vmatprep.subr.bf16.mxu0 %v9616
    %11113 = vmatpush1.bf16.msra.mxu0 %v9615
    %11114 = vmatprep.subr.bf16.mxu0 %v9609
    %11115 = vmatpush1.bf16.msra.mxu0 %v9608
    %11116 = vmatprep.subr.bf16.mxu0 %v9602
    %11117 = vmatpush1.bf16.msra.mxu0 %v9601
    %11118 = vmatprep.subr.bf16.mxu0 %v9595
    %11119 = vmatpush1.bf16.msra.mxu0 %v9594
    %11120 = vmatprep.subr.bf16.mxu0 %v9588
    %11121 = vmatpush1.bf16.msra.mxu0 %v9587
    %11122 = vmatprep.subr.bf16.mxu0 %v9581
    %11123 = vmatpush1.bf16.msra.mxu0 %v9580
    %11124 = vmatprep.subr.bf16.mxu0 %v9686
    %11125 = vmatpush2.bf16.msra.mxu0 %v9685
    %11126 = vmatprep.subr.bf16.mxu0 %v9679
    %11127 = vmatpush2.bf16.msra.mxu0 %v9678
    %11128 = vmatprep.subr.bf16.mxu0 %v9672
    %11129 = vmatpush2.bf16.msra.mxu0 %v9671
    %11130 = vmatprep.subr.bf16.mxu0 %v9665
    %11131 = vmatpush2.bf16.msra.mxu0 %v9664
    %11132 = vmatprep.subr.bf16.mxu0 %v9658
    %11133 = vmatpush2.bf16.msra.mxu0 %v9657
    %11134 = vmatprep.subr.bf16.mxu0 %v9651
    %11135 = vmatpush2.bf16.msra.mxu0 %v9650
    %11136 = vmatprep.subr.bf16.mxu0 %v9644
    %11137 = vmatpush2.bf16.msra.mxu0 %v9643
    %11138 = vmatprep.subr.bf16.mxu0 %v9637
    %11139 = vmatpush2.bf16.msra.mxu0 %v9636
    %11140 = vmatprep.mubr.bf16.mxu0 %v6079
    %11141 = vmatmul.mubr.bf16.gmra.mxu0 %v6078
    %v11142 = vpop.f32.mrf.mxu0
    %v11143 = vadd.f32 %v11102, %v11142
    %v11144 = vpop.f32.mrf.mxu0
    %v11145 = vadd.f32 %v11104, %v11144
    %v11146 = vpop.f32.mrf.mxu0
    %v11147 = vpop.f32.mrf.mxu0
    %11148 = vdwg.mxu0
    %11149 = vmatprep.subr.bf16.mxu0 %v9742
    %11150 = vmatpush1.bf16.msra.mxu0 %v9741
    %11151 = vmatprep.subr.bf16.mxu0 %v9735
    %11152 = vmatpush1.bf16.msra.mxu0 %v9734
    %11153 = vmatprep.subr.bf16.mxu0 %v9728
    %11154 = vmatpush1.bf16.msra.mxu0 %v9727
    %11155 = vmatprep.subr.bf16.mxu0 %v9721
    %11156 = vmatpush1.bf16.msra.mxu0 %v9720
    %11157 = vmatprep.subr.bf16.mxu0 %v9714
    %11158 = vmatpush1.bf16.msra.mxu0 %v9713
    %11159 = vmatprep.subr.bf16.mxu0 %v9707
    %11160 = vmatpush1.bf16.msra.mxu0 %v9706
    %11161 = vmatprep.subr.bf16.mxu0 %v9700
    %11162 = vmatpush1.bf16.msra.mxu0 %v9699
    %11163 = vmatprep.subr.bf16.mxu0 %v9693
    %11164 = vmatpush1.bf16.msra.mxu0 %v9692
    %11165 = vmatprep.subr.bf16.mxu0 %v9798
    %11166 = vmatpush2.bf16.msra.mxu0 %v9797
    %11167 = vmatprep.subr.bf16.mxu0 %v9791
    %11168 = vmatpush2.bf16.msra.mxu0 %v9790
    %11169 = vmatprep.subr.bf16.mxu0 %v9784
    %11170 = vmatpush2.bf16.msra.mxu0 %v9783
    %11171 = vmatprep.subr.bf16.mxu0 %v9777
    %11172 = vmatpush2.bf16.msra.mxu0 %v9776
    %11173 = vmatprep.subr.bf16.mxu0 %v9770
    %11174 = vmatpush2.bf16.msra.mxu0 %v9769
    %11175 = vmatprep.subr.bf16.mxu0 %v9763
    %11176 = vmatpush2.bf16.msra.mxu0 %v9762
    %11177 = vmatprep.subr.bf16.mxu0 %v9756
    %11178 = vmatpush2.bf16.msra.mxu0 %v9755
    %11179 = vmatprep.subr.bf16.mxu0 %v9749
    %11180 = vmatpush2.bf16.msra.mxu0 %v9748
    %11181 = vmatprep.mubr.bf16.mxu0 %v6081
    %11182 = vmatmul.mubr.bf16.gmra.mxu0 %v6080
    %v11183 = vpop.f32.mrf.mxu0
    %v11184 = vadd.f32 %v11143, %v11183
    %v11185 = vpop.f32.mrf.mxu0
    %v11186 = vadd.f32 %v11145, %v11185
    %v11187 = vpop.f32.mrf.mxu0
    %v11188 = vpop.f32.mrf.mxu0
    %11189 = vdwg.mxu0
    %11190 = vmatprep.subr.bf16.mxu0 %v9854
    %11191 = vmatpush1.bf16.msra.mxu0 %v9853
    %11192 = vmatprep.subr.bf16.mxu0 %v9847
    %11193 = vmatpush1.bf16.msra.mxu0 %v9846
    %11194 = vmatprep.subr.bf16.mxu0 %v9840
    %11195 = vmatpush1.bf16.msra.mxu0 %v9839
    %11196 = vmatprep.subr.bf16.mxu0 %v9833
    %11197 = vmatpush1.bf16.msra.mxu0 %v9832
    %11198 = vmatprep.subr.bf16.mxu0 %v9826
    %11199 = vmatpush1.bf16.msra.mxu0 %v9825
    %11200 = vmatprep.subr.bf16.mxu0 %v9819
    %11201 = vmatpush1.bf16.msra.mxu0 %v9818
    %11202 = vmatprep.subr.bf16.mxu0 %v9812
    %11203 = vmatpush1.bf16.msra.mxu0 %v9811
    %11204 = vmatprep.subr.bf16.mxu0 %v9805
    %11205 = vmatpush1.bf16.msra.mxu0 %v9804
    %11206 = vmatprep.subr.bf16.mxu0 %v9910
    %11207 = vmatpush2.bf16.msra.mxu0 %v9909
    %11208 = vmatprep.subr.bf16.mxu0 %v9903
    %11209 = vmatpush2.bf16.msra.mxu0 %v9902
    %11210 = vmatprep.subr.bf16.mxu0 %v9896
    %11211 = vmatpush2.bf16.msra.mxu0 %v9895
    %11212 = vmatprep.subr.bf16.mxu0 %v9889
    %11213 = vmatpush2.bf16.msra.mxu0 %v9888
    %11214 = vmatprep.subr.bf16.mxu0 %v9882
    %11215 = vmatpush2.bf16.msra.mxu0 %v9881
    %11216 = vmatprep.subr.bf16.mxu0 %v9875
    %11217 = vmatpush2.bf16.msra.mxu0 %v9874
    %11218 = vmatprep.subr.bf16.mxu0 %v9868
    %11219 = vmatpush2.bf16.msra.mxu0 %v9867
    %11220 = vmatprep.subr.bf16.mxu0 %v9861
    %11221 = vmatpush2.bf16.msra.mxu0 %v9860
    %11222 = vmatprep.mubr.bf16.mxu0 %v6083
    %11223 = vmatmul.mubr.bf16.gmra.mxu0 %v6082
    %v11224 = vpop.f32.mrf.mxu0
    %v11225 = vadd.f32 %v11184, %v11224
    %v11226 = vpop.f32.mrf.mxu0
    %v11227 = vadd.f32 %v11186, %v11226
    %v11228 = vpop.f32.mrf.mxu0
    %v11229 = vpop.f32.mrf.mxu0
    %11230 = vdwg.mxu0
    %11231 = vmatprep.subr.bf16.mxu0 %v9966
    %11232 = vmatpush1.bf16.msra.mxu0 %v9965
    %11233 = vmatprep.subr.bf16.mxu0 %v9959
    %11234 = vmatpush1.bf16.msra.mxu0 %v9958
    %11235 = vmatprep.subr.bf16.mxu0 %v9952
    %11236 = vmatpush1.bf16.msra.mxu0 %v9951
    %11237 = vmatprep.subr.bf16.mxu0 %v9945
    %11238 = vmatpush1.bf16.msra.mxu0 %v9944
    %11239 = vmatprep.subr.bf16.mxu0 %v9938
    %11240 = vmatpush1.bf16.msra.mxu0 %v9937
    %11241 = vmatprep.subr.bf16.mxu0 %v9931
    %11242 = vmatpush1.bf16.msra.mxu0 %v9930
    %11243 = vmatprep.subr.bf16.mxu0 %v9924
    %11244 = vmatpush1.bf16.msra.mxu0 %v9923
    %11245 = vmatprep.subr.bf16.mxu0 %v9917
    %11246 = vmatpush1.bf16.msra.mxu0 %v9916
    %11247 = vmatprep.subr.bf16.mxu0 0
    %11248 = vmatpush2.bf16.msra.mxu0 0
    %11249 = vmatprep.subr.bf16.mxu0 0
    %11250 = vmatpush2.bf16.msra.mxu0 0
    %11251 = vmatprep.subr.bf16.mxu0 0
    %11252 = vmatpush2.bf16.msra.mxu0 0
    %11253 = vmatprep.subr.bf16.mxu0 0
    %11254 = vmatpush2.bf16.msra.mxu0 0
    %11255 = vmatprep.subr.bf16.mxu0 0
    %11256 = vmatpush2.bf16.msra.mxu0 0
    %11257 = vmatprep.subr.bf16.mxu0 0
    %11258 = vmatpush2.bf16.msra.mxu0 0
    %11259 = vmatprep.subr.bf16.mxu0 0
    %11260 = vmatpush2.bf16.msra.mxu0 0
    %11261 = vmatprep.subr.bf16.mxu0 0
    %11262 = vmatpush2.bf16.msra.mxu0 0
    %11263 = vmatprep.mubr.bf16.mxu0 0
    %11264 = vmatmul.mubr.bf16.gmra.mxu0 %v6084
    %v11265 = vpop.f32.mrf.mxu0
    %v11266 = vadd.f32 %v11225, %v11265
    %v11267 = vpop.f32.mrf.mxu0
    %v11268 = vadd.f32 %v11227, %v11267
    %v11269 = vpop.f32.mrf.mxu0
    %v11270 = vpop.f32.mrf.mxu0
    %11271 = vdwg.mxu0
    %11272 = vmatprep.subr.bf16.mxu0 %v9296
    %11273 = vmatpush1.bf16.msra.mxu0 %v9295
    %11274 = vmatprep.subr.bf16.mxu0 %v9289
    %11275 = vmatpush1.bf16.msra.mxu0 %v9288
    %11276 = vmatprep.subr.bf16.mxu0 %v9282
    %11277 = vmatpush1.bf16.msra.mxu0 %v9281
    %11278 = vmatprep.subr.bf16.mxu0 %v9275
    %11279 = vmatpush1.bf16.msra.mxu0 %v9274
    %11280 = vmatprep.subr.bf16.mxu0 %v9268
    %11281 = vmatpush1.bf16.msra.mxu0 %v9267
    %11282 = vmatprep.subr.bf16.mxu0 %v9261
    %11283 = vmatpush1.bf16.msra.mxu0 %v9260
    %11284 = vmatprep.subr.bf16.mxu0 %v9254
    %11285 = vmatpush1.bf16.msra.mxu0 %v9253
    %11286 = vmatprep.subr.bf16.mxu0 %v9247
    %11287 = vmatpush1.bf16.msra.mxu0 %v9246
    %11288 = vmatprep.subr.bf16.mxu0 %v9352
    %11289 = vmatpush2.bf16.msra.mxu0 %v9351
    %11290 = vmatprep.subr.bf16.mxu0 %v9345
    %11291 = vmatpush2.bf16.msra.mxu0 %v9344
    %11292 = vmatprep.subr.bf16.mxu0 %v9338
    %11293 = vmatpush2.bf16.msra.mxu0 %v9337
    %11294 = vmatprep.subr.bf16.mxu0 %v9331
    %11295 = vmatpush2.bf16.msra.mxu0 %v9330
    %11296 = vmatprep.subr.bf16.mxu0 %v9324
    %11297 = vmatpush2.bf16.msra.mxu0 %v9323
    %11298 = vmatprep.subr.bf16.mxu0 %v9317
    %11299 = vmatpush2.bf16.msra.mxu0 %v9316
    %11300 = vmatprep.subr.bf16.mxu0 %v9310
    %11301 = vmatpush2.bf16.msra.mxu0 %v9309
    %11302 = vmatprep.subr.bf16.mxu0 %v9303
    %11303 = vmatpush2.bf16.msra.mxu0 %v9302
    %11304 = vmatprep.mubr.bf16.mxu0 %v6073
    %11305 = vmatmul.mubr.bf16.gmra.mxu0 %v6072
    %v11306 = vpop.f32.mrf.mxu0
    %v11307 = vadd.f32 %v6938, %v11306
    %v11308 = vpop.f32.mrf.mxu0
    %v11309 = vadd.f32 %v6942, %v11308
    %v11310 = vpop.f32.mrf.mxu0
    %v11311 = vpop.f32.mrf.mxu0
    %11312 = vdwg.mxu0
    %11313 = vmatprep.subr.bf16.mxu0 %v9408
    %11314 = vmatpush1.bf16.msra.mxu0 %v9407
    %11315 = vmatprep.subr.bf16.mxu0 %v9401
    %11316 = vmatpush1.bf16.msra.mxu0 %v9400
    %11317 = vmatprep.subr.bf16.mxu0 %v9394
    %11318 = vmatpush1.bf16.msra.mxu0 %v9393
    %11319 = vmatprep.subr.bf16.mxu0 %v9387
    %11320 = vmatpush1.bf16.msra.mxu0 %v9386
    %11321 = vmatprep.subr.bf16.mxu0 %v9380
    %11322 = vmatpush1.bf16.msra.mxu0 %v9379
    %11323 = vmatprep.subr.bf16.mxu0 %v9373
    %11324 = vmatpush1.bf16.msra.mxu0 %v9372
    %11325 = vmatprep.subr.bf16.mxu0 %v9366
    %11326 = vmatpush1.bf16.msra.mxu0 %v9365
    %11327 = vmatprep.subr.bf16.mxu0 %v9359
    %11328 = vmatpush1.bf16.msra.mxu0 %v9358
    %11329 = vmatprep.subr.bf16.mxu0 %v9464
    %11330 = vmatpush2.bf16.msra.mxu0 %v9463
    %11331 = vmatprep.subr.bf16.mxu0 %v9457
    %11332 = vmatpush2.bf16.msra.mxu0 %v9456
    %11333 = vmatprep.subr.bf16.mxu0 %v9450
    %11334 = vmatpush2.bf16.msra.mxu0 %v9449
    %11335 = vmatprep.subr.bf16.mxu0 %v9443
    %11336 = vmatpush2.bf16.msra.mxu0 %v9442
    %11337 = vmatprep.subr.bf16.mxu0 %v9436
    %11338 = vmatpush2.bf16.msra.mxu0 %v9435
    %11339 = vmatprep.subr.bf16.mxu0 %v9429
    %11340 = vmatpush2.bf16.msra.mxu0 %v9428
    %11341 = vmatprep.subr.bf16.mxu0 %v9422
    %11342 = vmatpush2.bf16.msra.mxu0 %v9421
    %11343 = vmatprep.subr.bf16.mxu0 %v9415
    %11344 = vmatpush2.bf16.msra.mxu0 %v9414
    %11345 = vmatprep.mubr.bf16.mxu0 %v6075
    %11346 = vmatmul.mubr.bf16.gmra.mxu0 %v6074
    %v11347 = vpop.f32.mrf.mxu0
    %v11348 = vadd.f32 %v11307, %v11347
    %v11349 = vpop.f32.mrf.mxu0
    %v11350 = vadd.f32 %v11309, %v11349
    %v11351 = vpop.f32.mrf.mxu0
    %v11352 = vpop.f32.mrf.mxu0
    %11353 = vdwg.mxu0
    %11354 = vmatprep.subr.bf16.mxu0 %v9520
    %11355 = vmatpush1.bf16.msra.mxu0 %v9519
    %11356 = vmatprep.subr.bf16.mxu0 %v9513
    %11357 = vmatpush1.bf16.msra.mxu0 %v9512
    %11358 = vmatprep.subr.bf16.mxu0 %v9506
    %11359 = vmatpush1.bf16.msra.mxu0 %v9505
    %11360 = vmatprep.subr.bf16.mxu0 %v9499
    %11361 = vmatpush1.bf16.msra.mxu0 %v9498
    %11362 = vmatprep.subr.bf16.mxu0 %v9492
    %11363 = vmatpush1.bf16.msra.mxu0 %v9491
    %11364 = vmatprep.subr.bf16.mxu0 %v9485
    %11365 = vmatpush1.bf16.msra.mxu0 %v9484
    %11366 = vmatprep.subr.bf16.mxu0 %v9478
    %11367 = vmatpush1.bf16.msra.mxu0 %v9477
    %11368 = vmatprep.subr.bf16.mxu0 %v9471
    %11369 = vmatpush1.bf16.msra.mxu0 %v9470
    %11370 = vmatprep.subr.bf16.mxu0 %v9576
    %11371 = vmatpush2.bf16.msra.mxu0 %v9575
    %11372 = vmatprep.subr.bf16.mxu0 %v9569
    %11373 = vmatpush2.bf16.msra.mxu0 %v9568
    %11374 = vmatprep.subr.bf16.mxu0 %v9562
    %11375 = vmatpush2.bf16.msra.mxu0 %v9561
    %11376 = vmatprep.subr.bf16.mxu0 %v9555
    %11377 = vmatpush2.bf16.msra.mxu0 %v9554
    %11378 = vmatprep.subr.bf16.mxu0 %v9548
    %11379 = vmatpush2.bf16.msra.mxu0 %v9547
    %11380 = vmatprep.subr.bf16.mxu0 %v9541
    %11381 = vmatpush2.bf16.msra.mxu0 %v9540
    %11382 = vmatprep.subr.bf16.mxu0 %v9534
    %11383 = vmatpush2.bf16.msra.mxu0 %v9533
    %11384 = vmatprep.subr.bf16.mxu0 %v9527
    %11385 = vmatpush2.bf16.msra.mxu0 %v9526
    %11386 = vmatprep.mubr.bf16.mxu0 %v6077
    %11387 = vmatmul.mubr.bf16.gmra.mxu0 %v6076
    %v11388 = vpop.f32.mrf.mxu0
    %v11389 = vadd.f32 %v11348, %v11388
    %v11390 = vpop.f32.mrf.mxu0
    %v11391 = vadd.f32 %v11350, %v11390
    %v11392 = vpop.f32.mrf.mxu0
    %v11393 = vpop.f32.mrf.mxu0
    %11394 = vdwg.mxu0
    %11395 = vmatprep.subr.bf16.mxu0 %v9632
    %11396 = vmatpush1.bf16.msra.mxu0 %v9631
    %11397 = vmatprep.subr.bf16.mxu0 %v9625
    %11398 = vmatpush1.bf16.msra.mxu0 %v9624
    %11399 = vmatprep.subr.bf16.mxu0 %v9618
    %11400 = vmatpush1.bf16.msra.mxu0 %v9617
    %11401 = vmatprep.subr.bf16.mxu0 %v9611
    %11402 = vmatpush1.bf16.msra.mxu0 %v9610
    %11403 = vmatprep.subr.bf16.mxu0 %v9604
    %11404 = vmatpush1.bf16.msra.mxu0 %v9603
    %11405 = vmatprep.subr.bf16.mxu0 %v9597
    %11406 = vmatpush1.bf16.msra.mxu0 %v9596
    %11407 = vmatprep.subr.bf16.mxu0 %v9590
    %11408 = vmatpush1.bf16.msra.mxu0 %v9589
    %11409 = vmatprep.subr.bf16.mxu0 %v9583
    %11410 = vmatpush1.bf16.msra.mxu0 %v9582
    %11411 = vmatprep.subr.bf16.mxu0 %v9688
    %11412 = vmatpush2.bf16.msra.mxu0 %v9687
    %11413 = vmatprep.subr.bf16.mxu0 %v9681
    %11414 = vmatpush2.bf16.msra.mxu0 %v9680
    %11415 = vmatprep.subr.bf16.mxu0 %v9674
    %11416 = vmatpush2.bf16.msra.mxu0 %v9673
    %11417 = vmatprep.subr.bf16.mxu0 %v9667
    %11418 = vmatpush2.bf16.msra.mxu0 %v9666
    %11419 = vmatprep.subr.bf16.mxu0 %v9660
    %11420 = vmatpush2.bf16.msra.mxu0 %v9659
    %11421 = vmatprep.subr.bf16.mxu0 %v9653
    %11422 = vmatpush2.bf16.msra.mxu0 %v9652
    %11423 = vmatprep.subr.bf16.mxu0 %v9646
    %11424 = vmatpush2.bf16.msra.mxu0 %v9645
    %11425 = vmatprep.subr.bf16.mxu0 %v9639
    %11426 = vmatpush2.bf16.msra.mxu0 %v9638
    %11427 = vmatprep.mubr.bf16.mxu0 %v6079
    %11428 = vmatmul.mubr.bf16.gmra.mxu0 %v6078
    %v11429 = vpop.f32.mrf.mxu0
    %v11430 = vadd.f32 %v11389, %v11429
    %v11431 = vpop.f32.mrf.mxu0
    %v11432 = vadd.f32 %v11391, %v11431
    %v11433 = vpop.f32.mrf.mxu0
    %v11434 = vpop.f32.mrf.mxu0
    %11435 = vdwg.mxu0
    %11436 = vmatprep.subr.bf16.mxu0 %v9744
    %11437 = vmatpush1.bf16.msra.mxu0 %v9743
    %11438 = vmatprep.subr.bf16.mxu0 %v9737
    %11439 = vmatpush1.bf16.msra.mxu0 %v9736
    %11440 = vmatprep.subr.bf16.mxu0 %v9730
    %11441 = vmatpush1.bf16.msra.mxu0 %v9729
    %11442 = vmatprep.subr.bf16.mxu0 %v9723
    %11443 = vmatpush1.bf16.msra.mxu0 %v9722
    %11444 = vmatprep.subr.bf16.mxu0 %v9716
    %11445 = vmatpush1.bf16.msra.mxu0 %v9715
    %11446 = vmatprep.subr.bf16.mxu0 %v9709
    %11447 = vmatpush1.bf16.msra.mxu0 %v9708
    %11448 = vmatprep.subr.bf16.mxu0 %v9702
    %11449 = vmatpush1.bf16.msra.mxu0 %v9701
    %11450 = vmatprep.subr.bf16.mxu0 %v9695
    %11451 = vmatpush1.bf16.msra.mxu0 %v9694
    %11452 = vmatprep.subr.bf16.mxu0 %v9800
    %11453 = vmatpush2.bf16.msra.mxu0 %v9799
    %11454 = vmatprep.subr.bf16.mxu0 %v9793
    %11455 = vmatpush2.bf16.msra.mxu0 %v9792
    %11456 = vmatprep.subr.bf16.mxu0 %v9786
    %11457 = vmatpush2.bf16.msra.mxu0 %v9785
    %11458 = vmatprep.subr.bf16.mxu0 %v9779
    %11459 = vmatpush2.bf16.msra.mxu0 %v9778
    %11460 = vmatprep.subr.bf16.mxu0 %v9772
    %11461 = vmatpush2.bf16.msra.mxu0 %v9771
    %11462 = vmatprep.subr.bf16.mxu0 %v9765
    %11463 = vmatpush2.bf16.msra.mxu0 %v9764
    %11464 = vmatprep.subr.bf16.mxu0 %v9758
    %11465 = vmatpush2.bf16.msra.mxu0 %v9757
    %11466 = vmatprep.subr.bf16.mxu0 %v9751
    %11467 = vmatpush2.bf16.msra.mxu0 %v9750
    %11468 = vmatprep.mubr.bf16.mxu0 %v6081
    %11469 = vmatmul.mubr.bf16.gmra.mxu0 %v6080
    %v11470 = vpop.f32.mrf.mxu0
    %v11471 = vadd.f32 %v11430, %v11470
    %v11472 = vpop.f32.mrf.mxu0
    %v11473 = vadd.f32 %v11432, %v11472
    %v11474 = vpop.f32.mrf.mxu0
    %v11475 = vpop.f32.mrf.mxu0
    %11476 = vdwg.mxu0
    %11477 = vmatprep.subr.bf16.mxu0 %v9856
    %11478 = vmatpush1.bf16.msra.mxu0 %v9855
    %11479 = vmatprep.subr.bf16.mxu0 %v9849
    %11480 = vmatpush1.bf16.msra.mxu0 %v9848
    %11481 = vmatprep.subr.bf16.mxu0 %v9842
    %11482 = vmatpush1.bf16.msra.mxu0 %v9841
    %11483 = vmatprep.subr.bf16.mxu0 %v9835
    %11484 = vmatpush1.bf16.msra.mxu0 %v9834
    %11485 = vmatprep.subr.bf16.mxu0 %v9828
    %11486 = vmatpush1.bf16.msra.mxu0 %v9827
    %11487 = vmatprep.subr.bf16.mxu0 %v9821
    %11488 = vmatpush1.bf16.msra.mxu0 %v9820
    %11489 = vmatprep.subr.bf16.mxu0 %v9814
    %11490 = vmatpush1.bf16.msra.mxu0 %v9813
    %11491 = vmatprep.subr.bf16.mxu0 %v9807
    %11492 = vmatpush1.bf16.msra.mxu0 %v9806
    %11493 = vmatprep.subr.bf16.mxu0 %v9912
    %11494 = vmatpush2.bf16.msra.mxu0 %v9911
    %11495 = vmatprep.subr.bf16.mxu0 %v9905
    %11496 = vmatpush2.bf16.msra.mxu0 %v9904
    %11497 = vmatprep.subr.bf16.mxu0 %v9898
    %11498 = vmatpush2.bf16.msra.mxu0 %v9897
    %11499 = vmatprep.subr.bf16.mxu0 %v9891
    %11500 = vmatpush2.bf16.msra.mxu0 %v9890
    %11501 = vmatprep.subr.bf16.mxu0 %v9884
    %11502 = vmatpush2.bf16.msra.mxu0 %v9883
    %11503 = vmatprep.subr.bf16.mxu0 %v9877
    %11504 = vmatpush2.bf16.msra.mxu0 %v9876
    %11505 = vmatprep.subr.bf16.mxu0 %v9870
    %11506 = vmatpush2.bf16.msra.mxu0 %v9869
    %11507 = vmatprep.subr.bf16.mxu0 %v9863
    %11508 = vmatpush2.bf16.msra.mxu0 %v9862
    %11509 = vmatprep.mubr.bf16.mxu0 %v6083
    %11510 = vmatmul.mubr.bf16.gmra.mxu0 %v6082
    %v11511 = vpop.f32.mrf.mxu0
    %v11512 = vadd.f32 %v11471, %v11511
    %v11513 = vpop.f32.mrf.mxu0
    %v11514 = vadd.f32 %v11473, %v11513
    %v11515 = vpop.f32.mrf.mxu0
    %v11516 = vpop.f32.mrf.mxu0
    %11517 = vdwg.mxu0
    %11518 = vmatprep.subr.bf16.mxu0 %v9968
    %11519 = vmatpush1.bf16.msra.mxu0 %v9967
    %11520 = vmatprep.subr.bf16.mxu0 %v9961
    %11521 = vmatpush1.bf16.msra.mxu0 %v9960
    %11522 = vmatprep.subr.bf16.mxu0 %v9954
    %11523 = vmatpush1.bf16.msra.mxu0 %v9953
    %11524 = vmatprep.subr.bf16.mxu0 %v9947
    %11525 = vmatpush1.bf16.msra.mxu0 %v9946
    %11526 = vmatprep.subr.bf16.mxu0 %v9940
    %11527 = vmatpush1.bf16.msra.mxu0 %v9939
    %11528 = vmatprep.subr.bf16.mxu0 %v9933
    %11529 = vmatpush1.bf16.msra.mxu0 %v9932
    %11530 = vmatprep.subr.bf16.mxu0 %v9926
    %11531 = vmatpush1.bf16.msra.mxu0 %v9925
    %11532 = vmatprep.subr.bf16.mxu0 %v9919
    %11533 = vmatpush1.bf16.msra.mxu0 %v9918
    %11534 = vmatprep.subr.bf16.mxu0 0
    %11535 = vmatpush2.bf16.msra.mxu0 0
    %11536 = vmatprep.subr.bf16.mxu0 0
    %11537 = vmatpush2.bf16.msra.mxu0 0
    %11538 = vmatprep.subr.bf16.mxu0 0
    %11539 = vmatpush2.bf16.msra.mxu0 0
    %11540 = vmatprep.subr.bf16.mxu0 0
    %11541 = vmatpush2.bf16.msra.mxu0 0
    %11542 = vmatprep.subr.bf16.mxu0 0
    %11543 = vmatpush2.bf16.msra.mxu0 0
    %11544 = vmatprep.subr.bf16.mxu0 0
    %11545 = vmatpush2.bf16.msra.mxu0 0
    %11546 = vmatprep.subr.bf16.mxu0 0
    %11547 = vmatpush2.bf16.msra.mxu0 0
    %11548 = vmatprep.subr.bf16.mxu0 0
    %11549 = vmatpush2.bf16.msra.mxu0 0
    %11550 = vmatprep.mubr.bf16.mxu0 0
    %11551 = vmatmul.mubr.bf16.gmra.mxu0 %v6084
    %v11552 = vpop.f32.mrf.mxu0
    %v11553 = vadd.f32 %v11512, %v11552
    %v11554 = vpop.f32.mrf.mxu0
    %v11555 = vadd.f32 %v11514, %v11554
    %v11556 = vpop.f32.mrf.mxu0
    %v11557 = vpop.f32.mrf.mxu0
    %11558 = vdwg.mxu0
    %11559 = vmatprep.subr.bf16.mxu0 0
    %11560 = vmatpush1.bf16.msra.mxu0 %v9297
    %11561 = vmatprep.subr.bf16.mxu0 0
    %11562 = vmatpush1.bf16.msra.mxu0 %v9290
    %11563 = vmatprep.subr.bf16.mxu0 0
    %11564 = vmatpush1.bf16.msra.mxu0 %v9283
    %11565 = vmatprep.subr.bf16.mxu0 0
    %11566 = vmatpush1.bf16.msra.mxu0 %v9276
    %11567 = vmatprep.subr.bf16.mxu0 0
    %11568 = vmatpush1.bf16.msra.mxu0 %v9269
    %11569 = vmatprep.subr.bf16.mxu0 0
    %11570 = vmatpush1.bf16.msra.mxu0 %v9262
    %11571 = vmatprep.subr.bf16.mxu0 0
    %11572 = vmatpush1.bf16.msra.mxu0 %v9255
    %11573 = vmatprep.subr.bf16.mxu0 0
    %11574 = vmatpush1.bf16.msra.mxu0 %v9248
    %11575 = vmatprep.subr.bf16.mxu0 0
    %11576 = vmatpush2.bf16.msra.mxu0 %v9353
    %11577 = vmatprep.subr.bf16.mxu0 0
    %11578 = vmatpush2.bf16.msra.mxu0 %v9346
    %11579 = vmatprep.subr.bf16.mxu0 0
    %11580 = vmatpush2.bf16.msra.mxu0 %v9339
    %11581 = vmatprep.subr.bf16.mxu0 0
    %11582 = vmatpush2.bf16.msra.mxu0 %v9332
    %11583 = vmatprep.subr.bf16.mxu0 0
    %11584 = vmatpush2.bf16.msra.mxu0 %v9325
    %11585 = vmatprep.subr.bf16.mxu0 0
    %11586 = vmatpush2.bf16.msra.mxu0 %v9318
    %11587 = vmatprep.subr.bf16.mxu0 0
    %11588 = vmatpush2.bf16.msra.mxu0 %v9311
    %11589 = vmatprep.subr.bf16.mxu0 0
    %11590 = vmatpush2.bf16.msra.mxu0 %v9304
    %11591 = vmatprep.mubr.bf16.mxu0 %v6073
    %11592 = vmatmul.mubr.bf16.gmra.mxu0 %v6072
    %v11593 = vpop.f32.mrf.mxu0
    %v11594 = vadd.f32 %v6946, %v11593
    %v11595 = vpop.f32.mrf.mxu0
    %v11596 = vpop.f32.mrf.mxu0
    %v11597 = vpop.f32.mrf.mxu0
    %11598 = vdwg.mxu0
    %11599 = vmatprep.subr.bf16.mxu0 0
    %11600 = vmatpush1.bf16.msra.mxu0 %v9409
    %11601 = vmatprep.subr.bf16.mxu0 0
    %11602 = vmatpush1.bf16.msra.mxu0 %v9402
    %11603 = vmatprep.subr.bf16.mxu0 0
    %11604 = vmatpush1.bf16.msra.mxu0 %v9395
    %11605 = vmatprep.subr.bf16.mxu0 0
    %11606 = vmatpush1.bf16.msra.mxu0 %v9388
    %11607 = vmatprep.subr.bf16.mxu0 0
    %11608 = vmatpush1.bf16.msra.mxu0 %v9381
    %11609 = vmatprep.subr.bf16.mxu0 0
    %11610 = vmatpush1.bf16.msra.mxu0 %v9374
    %11611 = vmatprep.subr.bf16.mxu0 0
    %11612 = vmatpush1.bf16.msra.mxu0 %v9367
    %11613 = vmatprep.subr.bf16.mxu0 0
    %11614 = vmatpush1.bf16.msra.mxu0 %v9360
    %11615 = vmatprep.subr.bf16.mxu0 0
    %11616 = vmatpush2.bf16.msra.mxu0 %v9465
    %11617 = vmatprep.subr.bf16.mxu0 0
    %11618 = vmatpush2.bf16.msra.mxu0 %v9458
    %11619 = vmatprep.subr.bf16.mxu0 0
    %11620 = vmatpush2.bf16.msra.mxu0 %v9451
    %11621 = vmatprep.subr.bf16.mxu0 0
    %11622 = vmatpush2.bf16.msra.mxu0 %v9444
    %11623 = vmatprep.subr.bf16.mxu0 0
    %11624 = vmatpush2.bf16.msra.mxu0 %v9437
    %11625 = vmatprep.subr.bf16.mxu0 0
    %11626 = vmatpush2.bf16.msra.mxu0 %v9430
    %11627 = vmatprep.subr.bf16.mxu0 0
    %11628 = vmatpush2.bf16.msra.mxu0 %v9423
    %11629 = vmatprep.subr.bf16.mxu0 0
    %11630 = vmatpush2.bf16.msra.mxu0 %v9416
    %11631 = vmatprep.mubr.bf16.mxu0 %v6075
    %11632 = vmatmul.mubr.bf16.gmra.mxu0 %v6074
    %v11633 = vpop.f32.mrf.mxu0
    %v11634 = vadd.f32 %v11594, %v11633
    %v11635 = vpop.f32.mrf.mxu0
    %v11636 = vpop.f32.mrf.mxu0
    %v11637 = vpop.f32.mrf.mxu0
    %11638 = vdwg.mxu0
    %11639 = vmatprep.subr.bf16.mxu0 0
    %11640 = vmatpush1.bf16.msra.mxu0 %v9521
    %11641 = vmatprep.subr.bf16.mxu0 0
    %11642 = vmatpush1.bf16.msra.mxu0 %v9514
    %11643 = vmatprep.subr.bf16.mxu0 0
    %11644 = vmatpush1.bf16.msra.mxu0 %v9507
    %11645 = vmatprep.subr.bf16.mxu0 0
    %11646 = vmatpush1.bf16.msra.mxu0 %v9500
    %11647 = vmatprep.subr.bf16.mxu0 0
    %11648 = vmatpush1.bf16.msra.mxu0 %v9493
    %11649 = vmatprep.subr.bf16.mxu0 0
    %11650 = vmatpush1.bf16.msra.mxu0 %v9486
    %11651 = vmatprep.subr.bf16.mxu0 0
    %11652 = vmatpush1.bf16.msra.mxu0 %v9479
    %11653 = vmatprep.subr.bf16.mxu0 0
    %11654 = vmatpush1.bf16.msra.mxu0 %v9472
    %11655 = vmatprep.subr.bf16.mxu0 0
    %11656 = vmatpush2.bf16.msra.mxu0 %v9577
    %11657 = vmatprep.subr.bf16.mxu0 0
    %11658 = vmatpush2.bf16.msra.mxu0 %v9570
    %11659 = vmatprep.subr.bf16.mxu0 0
    %11660 = vmatpush2.bf16.msra.mxu0 %v9563
    %11661 = vmatprep.subr.bf16.mxu0 0
    %11662 = vmatpush2.bf16.msra.mxu0 %v9556
    %11663 = vmatprep.subr.bf16.mxu0 0
    %11664 = vmatpush2.bf16.msra.mxu0 %v9549
    %11665 = vmatprep.subr.bf16.mxu0 0
    %11666 = vmatpush2.bf16.msra.mxu0 %v9542
    %11667 = vmatprep.subr.bf16.mxu0 0
    %11668 = vmatpush2.bf16.msra.mxu0 %v9535
    %11669 = vmatprep.subr.bf16.mxu0 0
    %11670 = vmatpush2.bf16.msra.mxu0 %v9528
    %11671 = vmatprep.mubr.bf16.mxu0 %v6077
    %11672 = vmatmul.mubr.bf16.gmra.mxu0 %v6076
    %v11673 = vpop.f32.mrf.mxu0
    %v11674 = vadd.f32 %v11634, %v11673
    %v11675 = vpop.f32.mrf.mxu0
    %v11676 = vpop.f32.mrf.mxu0
    %v11677 = vpop.f32.mrf.mxu0
    %11678 = vdwg.mxu0
    %11679 = vmatprep.subr.bf16.mxu0 0
    %11680 = vmatpush1.bf16.msra.mxu0 %v9633
    %11681 = vmatprep.subr.bf16.mxu0 0
    %11682 = vmatpush1.bf16.msra.mxu0 %v9626
    %11683 = vmatprep.subr.bf16.mxu0 0
    %11684 = vmatpush1.bf16.msra.mxu0 %v9619
    %11685 = vmatprep.subr.bf16.mxu0 0
    %11686 = vmatpush1.bf16.msra.mxu0 %v9612
    %11687 = vmatprep.subr.bf16.mxu0 0
    %11688 = vmatpush1.bf16.msra.mxu0 %v9605
    %11689 = vmatprep.subr.bf16.mxu0 0
    %11690 = vmatpush1.bf16.msra.mxu0 %v9598
    %11691 = vmatprep.subr.bf16.mxu0 0
    %11692 = vmatpush1.bf16.msra.mxu0 %v9591
    %11693 = vmatprep.subr.bf16.mxu0 0
    %11694 = vmatpush1.bf16.msra.mxu0 %v9584
    %11695 = vmatprep.subr.bf16.mxu0 0
    %11696 = vmatpush2.bf16.msra.mxu0 %v9689
    %11697 = vmatprep.subr.bf16.mxu0 0
    %11698 = vmatpush2.bf16.msra.mxu0 %v9682
    %11699 = vmatprep.subr.bf16.mxu0 0
    %11700 = vmatpush2.bf16.msra.mxu0 %v9675
    %11701 = vmatprep.subr.bf16.mxu0 0
    %11702 = vmatpush2.bf16.msra.mxu0 %v9668
    %11703 = vmatprep.subr.bf16.mxu0 0
    %11704 = vmatpush2.bf16.msra.mxu0 %v9661
    %11705 = vmatprep.subr.bf16.mxu0 0
    %11706 = vmatpush2.bf16.msra.mxu0 %v9654
    %11707 = vmatprep.subr.bf16.mxu0 0
    %11708 = vmatpush2.bf16.msra.mxu0 %v9647
    %11709 = vmatprep.subr.bf16.mxu0 0
    %11710 = vmatpush2.bf16.msra.mxu0 %v9640
    %11711 = vmatprep.mubr.bf16.mxu0 %v6079
    %11712 = vmatmul.mubr.bf16.gmra.mxu0 %v6078
    %v11713 = vpop.f32.mrf.mxu0
    %v11714 = vadd.f32 %v11674, %v11713
    %v11715 = vpop.f32.mrf.mxu0
    %v11716 = vpop.f32.mrf.mxu0
    %v11717 = vpop.f32.mrf.mxu0
    %11718 = vdwg.mxu0
    %11719 = vmatprep.subr.bf16.mxu0 0
    %11720 = vmatpush1.bf16.msra.mxu0 %v9745
    %11721 = vmatprep.subr.bf16.mxu0 0
    %11722 = vmatpush1.bf16.msra.mxu0 %v9738
    %11723 = vmatprep.subr.bf16.mxu0 0
    %11724 = vmatpush1.bf16.msra.mxu0 %v9731
    %11725 = vmatprep.subr.bf16.mxu0 0
    %11726 = vmatpush1.bf16.msra.mxu0 %v9724
    %11727 = vmatprep.subr.bf16.mxu0 0
    %11728 = vmatpush1.bf16.msra.mxu0 %v9717
    %11729 = vmatprep.subr.bf16.mxu0 0
    %11730 = vmatpush1.bf16.msra.mxu0 %v9710
    %11731 = vmatprep.subr.bf16.mxu0 0
    %11732 = vmatpush1.bf16.msra.mxu0 %v9703
    %11733 = vmatprep.subr.bf16.mxu0 0
    %11734 = vmatpush1.bf16.msra.mxu0 %v9696
    %11735 = vmatprep.subr.bf16.mxu0 0
    %11736 = vmatpush2.bf16.msra.mxu0 %v9801
    %11737 = vmatprep.subr.bf16.mxu0 0
    %11738 = vmatpush2.bf16.msra.mxu0 %v9794
    %11739 = vmatprep.subr.bf16.mxu0 0
    %11740 = vmatpush2.bf16.msra.mxu0 %v9787
    %11741 = vmatprep.subr.bf16.mxu0 0
    %11742 = vmatpush2.bf16.msra.mxu0 %v9780
    %11743 = vmatprep.subr.bf16.mxu0 0
    %11744 = vmatpush2.bf16.msra.mxu0 %v9773
    %11745 = vmatprep.subr.bf16.mxu0 0
    %11746 = vmatpush2.bf16.msra.mxu0 %v9766
    %11747 = vmatprep.subr.bf16.mxu0 0
    %11748 = vmatpush2.bf16.msra.mxu0 %v9759
    %11749 = vmatprep.subr.bf16.mxu0 0
    %11750 = vmatpush2.bf16.msra.mxu0 %v9752
    %11751 = vmatprep.mubr.bf16.mxu0 %v6081
    %11752 = vmatmul.mubr.bf16.gmra.mxu0 %v6080
    %v11753 = vpop.f32.mrf.mxu0
    %v11754 = vadd.f32 %v11714, %v11753
    %v11755 = vpop.f32.mrf.mxu0
    %v11756 = vpop.f32.mrf.mxu0
    %v11757 = vpop.f32.mrf.mxu0
    %11758 = vdwg.mxu0
    %11759 = vmatprep.subr.bf16.mxu0 0
    %11760 = vmatpush1.bf16.msra.mxu0 %v9857
    %11761 = vmatprep.subr.bf16.mxu0 0
    %11762 = vmatpush1.bf16.msra.mxu0 %v9850
    %11763 = vmatprep.subr.bf16.mxu0 0
    %11764 = vmatpush1.bf16.msra.mxu0 %v9843
    %11765 = vmatprep.subr.bf16.mxu0 0
    %11766 = vmatpush1.bf16.msra.mxu0 %v9836
    %11767 = vmatprep.subr.bf16.mxu0 0
    %11768 = vmatpush1.bf16.msra.mxu0 %v9829
    %11769 = vmatprep.subr.bf16.mxu0 0
    %11770 = vmatpush1.bf16.msra.mxu0 %v9822
    %11771 = vmatprep.subr.bf16.mxu0 0
    %11772 = vmatpush1.bf16.msra.mxu0 %v9815
    %11773 = vmatprep.subr.bf16.mxu0 0
    %11774 = vmatpush1.bf16.msra.mxu0 %v9808
    %11775 = vmatprep.subr.bf16.mxu0 0
    %11776 = vmatpush2.bf16.msra.mxu0 %v9913
    %11777 = vmatprep.subr.bf16.mxu0 0
    %11778 = vmatpush2.bf16.msra.mxu0 %v9906
    %11779 = vmatprep.subr.bf16.mxu0 0
    %11780 = vmatpush2.bf16.msra.mxu0 %v9899
    %11781 = vmatprep.subr.bf16.mxu0 0
    %11782 = vmatpush2.bf16.msra.mxu0 %v9892
    %11783 = vmatprep.subr.bf16.mxu0 0
    %11784 = vmatpush2.bf16.msra.mxu0 %v9885
    %11785 = vmatprep.subr.bf16.mxu0 0
    %11786 = vmatpush2.bf16.msra.mxu0 %v9878
    %11787 = vmatprep.subr.bf16.mxu0 0
    %11788 = vmatpush2.bf16.msra.mxu0 %v9871
    %11789 = vmatprep.subr.bf16.mxu0 0
    %11790 = vmatpush2.bf16.msra.mxu0 %v9864
    %11791 = vmatprep.mubr.bf16.mxu0 %v6083
    %11792 = vmatmul.mubr.bf16.gmra.mxu0 %v6082
    %v11793 = vpop.f32.mrf.mxu0
    %v11794 = vadd.f32 %v11754, %v11793
    %v11795 = vpop.f32.mrf.mxu0
    %v11796 = vpop.f32.mrf.mxu0
    %v11797 = vpop.f32.mrf.mxu0
    %11798 = vdwg.mxu0
    %11799 = vmatprep.subr.bf16.mxu0 0
    %11800 = vmatpush1.bf16.msra.mxu0 %v9969
    %11801 = vmatprep.subr.bf16.mxu0 0
    %11802 = vmatpush1.bf16.msra.mxu0 %v9962
    %11803 = vmatprep.subr.bf16.mxu0 0
    %11804 = vmatpush1.bf16.msra.mxu0 %v9955
    %11805 = vmatprep.subr.bf16.mxu0 0
    %11806 = vmatpush1.bf16.msra.mxu0 %v9948
    %11807 = vmatprep.subr.bf16.mxu0 0
    %11808 = vmatpush1.bf16.msra.mxu0 %v9941
    %11809 = vmatprep.subr.bf16.mxu0 0
    %11810 = vmatpush1.bf16.msra.mxu0 %v9934
    %11811 = vmatprep.subr.bf16.mxu0 0
    %11812 = vmatpush1.bf16.msra.mxu0 %v9927
    %11813 = vmatprep.subr.bf16.mxu0 0
    %11814 = vmatpush1.bf16.msra.mxu0 %v9920
    %11815 = vmatprep.subr.bf16.mxu0 0
    %11816 = vmatpush2.bf16.msra.mxu0 0
    %11817 = vmatprep.subr.bf16.mxu0 0
    %11818 = vmatpush2.bf16.msra.mxu0 0
    %11819 = vmatprep.subr.bf16.mxu0 0
    %11820 = vmatpush2.bf16.msra.mxu0 0
    %11821 = vmatprep.subr.bf16.mxu0 0
    %11822 = vmatpush2.bf16.msra.mxu0 0
    %11823 = vmatprep.subr.bf16.mxu0 0
    %11824 = vmatpush2.bf16.msra.mxu0 0
    %11825 = vmatprep.subr.bf16.mxu0 0
    %11826 = vmatpush2.bf16.msra.mxu0 0
    %11827 = vmatprep.subr.bf16.mxu0 0
    %11828 = vmatpush2.bf16.msra.mxu0 0
    %11829 = vmatprep.subr.bf16.mxu0 0
    %11830 = vmatpush2.bf16.msra.mxu0 0
    %11831 = vmatprep.mubr.bf16.mxu0 0
    %11832 = vmatmul.mubr.bf16.gmra.mxu0 %v6084
    %v11833 = vpop.f32.mrf.mxu0
    %v11834 = vadd.f32 %v11794, %v11833
    %v11835 = vpop.f32.mrf.mxu0
    %v11836 = vpop.f32.mrf.mxu0
    %v11837 = vpop.f32.mrf.mxu0
    %11838 = vdwg.mxu0
    %v11839 = vxor.u32 %v10979, 2147483648
    %v11840 = vxor.u32 %v10981, 2147483648
    %v11841 = vxor.u32 %v11266, 2147483648
    %v11842 = vxor.u32 %v11268, 2147483648
    %v11843 = vxor.u32 %v11553, 2147483648
    %v11844 = vxor.u32 %v11555, 2147483648
    %v11845 = vxor.u32 %v11834, 2147483648
    %v11846 = vmul.f32 %v11839, 1.442695
    %v11847 = vpow.pop %v11846
    %v11848 = vmul.f32 %v11840, 1.442695
    %v11849 = vpow.pop %v11848
    %v11850 = vmul.f32 %v11841, 1.442695
    %v11851 = vpow.pop %v11850
    %v11852 = vmul.f32 %v11842, 1.442695
    %v11853 = vpow.pop %v11852
    %v11854 = vmul.f32 %v11843, 1.442695
    %v11855 = vpow.pop %v11854
    %v11856 = vmul.f32 %v11844, 1.442695
    %v11857 = vpow.pop %v11856
    %v11858 = vmul.f32 %v11845, 1.442695
    %v11859 = vpow.pop %v11858
    %v11860 = vadd.f32 %v11847, 1.0
    %v11861 = vadd.f32 %v11849, 1.0
    %v11862 = vadd.f32 %v11851, 1.0
    %v11863 = vadd.f32 %v11853, 1.0
    %v11864 = vadd.f32 %v11855, 1.0
    %v11865 = vadd.f32 %v11857, 1.0
    %v11866 = vadd.f32 %v11859, 1.0
    %v11867 = vrcp.pop %v11860
    %v11868 = vmul.f32 1.0, %v11867
    %v11869 = vrcp.pop %v11861
    %v11870 = vmul.f32 1.0, %v11869
    %v11871 = vrcp.pop %v11862
    %v11872 = vmul.f32 1.0, %v11871
    %v11873 = vrcp.pop %v11863
    %v11874 = vmul.f32 1.0, %v11873
    %v11875 = vrcp.pop %v11864
    %v11876 = vmul.f32 1.0, %v11875
    %v11877 = vrcp.pop %v11865
    %v11878 = vmul.f32 1.0, %v11877
    %v11879 = vrcp.pop %v11866
    %v11880 = vmul.f32 1.0, %v11879
    %11881 = vst [vmem:[%s7] sm:$0xff] %v11868
    %11882 = vst [vmem:[%s7 + $0x8] sm:$0xff] %v11870
    %11883 = vst [vmem:[%s7 + $0x10] sm:$0xff] %v11872
    %11884 = vst [vmem:[%s7 + $0x18] sm:$0xff] %v11874
    %11885 = vst [vmem:[%s7 + $0x20] sm:$0xff] %v11876
    %11886 = vst [vmem:[%s7 + $0x28] sm:$0xff] %v11878
    %11887 = vst [vmem:[%s7 + $0x30] sm:$0xff] %v11880
    // Predicated region
    $region54: #{decoder_forward.1} parent=1 // pred_check
      _
    $region55: #{decoder_forward.1} parent=1 // pred_check_branch
      %11889 = sbr.rel (0) target = $region57
    $region56: #{decoder_forward.1} parent=1 // pred_region
      _
    $region57: #{decoder_forward.1} parent=1 // pred_fallthru
      _
    // Predicated region
    $region58: #{decoder_forward.1} parent=1 // pred_check
      _
    $region59: #{decoder_forward.1} parent=1 // pred_check_branch
      %11891 = sbr.rel (0) target = $region61
    $region60: #{decoder_forward.1} parent=1 // pred_region
      _
    $region61: #{decoder_forward.1} parent=1 // pred_fallthru
      _
    %11892 = vsyncpa [#allocation3], 1
    %11893 = vsyncpa [#allocation5], 1
    %11894 = vsyncpa [#allocation8], 1
    %11895 = vsyncpa [#allocation11], 1

</llo_original>
